<compile_context>
chip_gen: v7x
topology: tpu7x:2x2x1
jax: 0.10.0
libtpu: 0.0.40
codegen_flags: <defaults>
</compile_context>

<pallas_src>
import functools
import math

import jax
import jax.numpy as jnp
from jax.experimental import pallas as pl
from jax.experimental.pallas import tpu as pltpu

LN_EPS = 1e-12          # BertLayerNorm eps
F32 = jnp.float32
BF16 = jnp.bfloat16


# ---------------------------------------------------------------------------
# small helpers (usable both inside kernels and in the pure-JAX reference)
# ---------------------------------------------------------------------------
def _erf(x):
    """erf via Abramowitz & Stegun 7.1.26 (|err| < 1.5e-7) — only exp/mul/add."""
    a1, a2, a3, a4, a5 = (0.254829592, -0.284496736, 1.421413741,
                          -1.453152027, 1.061405429)
    p = 0.3275911
    ax = jnp.abs(x)
    t = 1.0 / (1.0 + p * ax)
    poly = ((((a5 * t + a4) * t + a3) * t + a2) * t + a1) * t
    y = 1.0 - poly * jnp.exp(-ax * ax)
    return jnp.where(x >= 0, y, -y)


def _gelu(x):
    # exact-erf BERT gelu (not the tanh approximation)
    return 0.5 * x * (1.0 + _erf(x * 0.7071067811865476))


def _layernorm(y, gamma, beta):
    mu = jnp.mean(y, axis=-1, keepdims=True)
    var = jnp.mean(jnp.square(y - mu), axis=-1, keepdims=True)
    return (y - mu) * jax.lax.rsqrt(var + LN_EPS) * gamma + beta


def _pick_row_block(m, requested=None):
    """Row-tile size: a multiple of 8 that divides m (or m itself)."""
    if (requested is not None and 0 < requested <= m and m % requested == 0
            and (requested % 8 == 0 or requested == m)):
        return requested
    cap = min(128, m)            # production default; demo overrides via config
    t = cap - (cap % 8)
    while t >= 8:
        if m % t == 0:
            return t
        t -= 8
    return m


def _parallel_rows():
    # row/batch grid axis is embarrassingly parallel -> megacore sharding on v7x
    return pltpu.CompilerParams(dimension_semantics=("parallel",))


# ---------------------------------------------------------------------------
# Pallas kernels
# ---------------------------------------------------------------------------
def _qkv_kernel(x_ref, wq_ref, bq_ref, wk_ref, bk_ref, wv_ref, bv_ref,
                q_ref, k_ref, v_ref):
    """Fused Q/K/V projections: one x-tile load feeds three bf16 MXU matmuls."""
    x = x_ref[...].astype(BF16)
    q_ref[...] = (jnp.dot(x, wq_ref[...], preferred_element_type=F32)
                  + bq_ref[...]).astype(q_ref.dtype)
    k_ref[...] = (jnp.dot(x, wk_ref[...], preferred_element_type=F32)
                  + bk_ref[...]).astype(k_ref.dtype)
    v_ref[...] = (jnp.dot(x, wv_ref[...], preferred_element_type=F32)
                  + bv_ref[...]).astype(v_ref.dtype)


def _mha_kernel(q_ref, k_ref, v_ref, mask_ref, o_ref, *,
                num_heads, head_dim, scale):
    """Masked multi-head attention for one batch element (all heads)."""
    q_all = q_ref[0].astype(BF16)          # (Tq, A)
    k_all = k_ref[0].astype(BF16)          # (Tk, A)
    v_all = v_ref[0].astype(BF16)          # (Tk, A)
    mask = mask_ref[0]                     # (1, Tk) additive mask (f32)
    dn = (((1,), (1,)), ((), ()))          # contract feature dim: q @ k^T
    ctxs = []
    for h in range(num_heads):
        sl = slice(h * head_dim, (h + 1) * head_dim)
        s = jax.lax.dot_general(q_all[:, sl], k_all[:, sl], dn,
                                preferred_element_type=F32)
        s = s * scale + mask
        m = jnp.max(s, axis=-1, keepdims=True)
        p = jnp.exp(s - m)
        l = jnp.sum(p, axis=-1, keepdims=True)
        probs = (p / l).astype(BF16)       # dropout(probs) is identity in eval
        ctxs.append(jnp.dot(probs, v_all[:, sl], preferred_element_type=F32))
    o_ref[0] = jnp.concatenate(ctxs, axis=-1).astype(o_ref.dtype)


def _linear_residual_ln_kernel(x_ref, res_ref, w_ref, b_ref, g_ref, beta_ref,
                               o_ref):
    """LayerNorm(x @ W + b + residual): BertSelfOutput / BertBiOutput halves."""
    y = (jnp.dot(x_ref[...].astype(BF16), w_ref[...],
                 preferred_element_type=F32) + b_ref[...] + res_ref[...])
    o_ref[...] = _layernorm(y, g_ref[...], beta_ref[...]).astype(o_ref.dtype)


def _ffn_kernel(x_ref, w1_ref, b1_ref, w2_ref, b2_ref, g_ref, beta_ref, o_ref):
    """BertIntermediate + BertOutput fused: LN(gelu(xW1+b1)W2 + b2 + x)."""
    x = x_ref[...]
    h = (jnp.dot(x.astype(BF16), w1_ref[...], preferred_element_type=F32)
         + b1_ref[...])
    h = _gelu(h)
    y = (jnp.dot(h.astype(BF16), w2_ref[...], preferred_element_type=F32)
         + b2_ref[...] + x)
    o_ref[...] = _layernorm(y, g_ref[...], beta_ref[...]).astype(o_ref.dtype)


# ---------------------------------------------------------------------------
# pallas_call wrappers (row-tiled grids, weights streamed as bf16)
# ---------------------------------------------------------------------------
def qkv_projection(x2d, wq, bq, wk, bk, wv, bv, row_block=None):
    m, kin = x2d.shape
    a = wq.shape[1]
    tm = _pick_row_block(m, row_block)
    row_in = pl.BlockSpec((tm, kin), lambda i: (i, 0))
    w_spec = pl.BlockSpec((kin, a), lambda i: (0, 0))
    b_spec = pl.BlockSpec((1, a), lambda i: (0, 0))
    row_out = pl.BlockSpec((tm, a), lambda i: (i, 0))
    outs = pl.pallas_call(
        _qkv_kernel,
        grid=(m // tm,),
        in_specs=[row_in, w_spec, b_spec, w_spec, b_spec, w_spec, b_spec],
        out_specs=[row_out, row_out, row_out],
        out_shape=[jax.ShapeDtypeStruct((m, a), F32)] * 3,
        compiler_params=_parallel_rows(),
    )(x2d, wq.astype(BF16), bq, wk.astype(BF16), bk, wv.astype(BF16), bv)
    return outs[0], outs[1], outs[2]


def multi_head_attention(q, k, v, attn_mask4, num_heads):
    b, tq, a = q.shape
    tk = k.shape[1]
    assert a % num_heads == 0
    dh = a // num_heads
    mask3 = attn_mask4.reshape(b, 1, tk).astype(F32)
    kernel = functools.partial(_mha_kernel, num_heads=num_heads, head_dim=dh,
                               scale=1.0 / math.sqrt(dh))
    return pl.pallas_call(
        kernel,
        grid=(b,),
        in_specs=[pl.BlockSpec((1, tq, a), lambda i: (i, 0, 0)),
                  pl.BlockSpec((1, tk, a), lambda i: (i, 0, 0)),
                  pl.BlockSpec((1, tk, a), lambda i: (i, 0, 0)),
                  pl.BlockSpec((1, 1, tk), lambda i: (i, 0, 0))],
        out_specs=pl.BlockSpec((1, tq, a), lambda i: (i, 0, 0)),
        out_shape=jax.ShapeDtypeStruct((b, tq, a), F32),
        compiler_params=_parallel_rows(),
    )(q, k, v, mask3)


def linear_residual_layernorm(x2d, res2d, w, b, gamma, beta, row_block=None):
    m, kin = x2d.shape
    n = w.shape[1]
    tm = _pick_row_block(m, row_block)
    vec = pl.BlockSpec((1, n), lambda i: (0, 0))
    return pl.pallas_call(
        _linear_residual_ln_kernel,
        grid=(m // tm,),
        in_specs=[pl.BlockSpec((tm, kin), lambda i: (i, 0)),
                  pl.BlockSpec((tm, n), lambda i: (i, 0)),
                  pl.BlockSpec((kin, n), lambda i: (0, 0)),
                  vec, vec, vec],
        out_specs=pl.BlockSpec((tm, n), lambda i: (i, 0)),
        out_shape=jax.ShapeDtypeStruct((m, n), F32),
        compiler_params=_parallel_rows(),
    )(x2d, res2d, w.astype(BF16), b, gamma, beta)


def ffn_block(x2d, w1, b1, w2, b2, gamma, beta, row_block=None):
    m, h = x2d.shape
    inter = w1.shape[1]
    tm = _pick_row_block(m, row_block)
    hvec = pl.BlockSpec((1, h), lambda i: (0, 0))
    return pl.pallas_call(
        _ffn_kernel,
        grid=(m // tm,),
        in_specs=[pl.BlockSpec((tm, h), lambda i: (i, 0)),
                  pl.BlockSpec((h, inter), lambda i: (0, 0)),
                  pl.BlockSpec((1, inter), lambda i: (0, 0)),
                  pl.BlockSpec((inter, h), lambda i: (0, 0)),
                  hvec, hvec, hvec],
        out_specs=pl.BlockSpec((tm, h), lambda i: (i, 0)),
        out_shape=jax.ShapeDtypeStruct((m, h), F32),
        compiler_params=_parallel_rows(),
    )(x2d, w1.astype(BF16), b1, w2.astype(BF16), b2, gamma, beta)


# ---------------------------------------------------------------------------
# ViLBERT sub-modules built from the kernels
# ---------------------------------------------------------------------------
def bert_layer_forward(p, hidden, attn_mask4, *, num_heads, row_block=None):
    """BertLayer: SelfAttention + SelfOutput + Intermediate + Output."""
    b, t, h = hidden.shape
    x2 = hidden.reshape(b * t, h)
    q, k, v = qkv_projection(x2, p["q_w"], p["q_b"], p["k_w"], p["k_b"],
                             p["v_w"], p["v_b"], row_block)
    a = q.shape[-1]
    ctx = multi_head_attention(q.reshape(b, t, a), k.reshape(b, t, a),
                               v.reshape(b, t, a), attn_mask4, num_heads)
    attn_out = linear_residual_layernorm(ctx.reshape(b * t, a), x2,
                                         p["attn_out_w"], p["attn_out_b"],
                                         p["attn_ln_g"], p["attn_ln_b"],
                                         row_block)
    layer_out = ffn_block(attn_out, p["inter_w"], p["inter_b"],
                          p["out_w"], p["out_b"],
                          p["out_ln_g"], p["out_ln_b"], row_block)
    return layer_out.reshape(b, t, h)


def connection_layer_forward(p, image_emb, image_mask4, txt_emb, txt_mask4, *,
                             bi_num_heads, row_block=None):
    """BertConnectionLayer: BertBiAttention + BertBiOutput + both FFN stacks."""
    b, tv, hv = image_emb.shape
    _, tt, ht = txt_emb.shape
    img2 = image_emb.reshape(b * tv, hv)
    txt2 = txt_emb.reshape(b * tt, ht)
    # BertBiAttention projections (stream 1 = vision, stream 2 = text)
    q1, k1, v1 = qkv_projection(img2, p["q1_w"], p["q1_b"], p["k1_w"],
                                p["k1_b"], p["v1_w"], p["v1_b"], row_block)
    q2, k2, v2 = qkv_projection(txt2, p["q2_w"], p["q2_b"], p["k2_w"],
                                p["k2_b"], p["v2_w"], p["v2_b"], row_block)
    a = q1.shape[-1]
    # context1: text queries attend image keys/values (mask over image regions)
    ctx1 = multi_head_attention(q2.reshape(b, tt, a), k1.reshape(b, tv, a),
                                v1.reshape(b, tv, a), image_mask4, bi_num_heads)
    # context2: image queries attend text keys/values (mask over text tokens)
    ctx2 = multi_head_attention(q1.reshape(b, tv, a), k2.reshape(b, tt, a),
                                v2.reshape(b, tt, a), txt_mask4, bi_num_heads)
    # BertBiOutput: dense + residual + LayerNorm per stream
    attn_out1 = linear_residual_layernorm(ctx2.reshape(b * tv, a), img2,
                                          p["dense1_w"], p["dense1_b"],
                                          p["ln1_g"], p["ln1_b"], row_block)
    attn_out2 = linear_residual_layernorm(ctx1.reshape(b * tt, a), txt2,
                                          p["dense2_w"], p["dense2_b"],
                                          p["ln2_g"], p["ln2_b"], row_block)
    # v_intermediate/v_output (vision) and t_intermediate/t_output (text)
    out1 = ffn_block(attn_out1, p["v_inter_w"], p["v_inter_b"],
                     p["v_out_w"], p["v_out_b"],
                     p["v_out_ln_g"], p["v_out_ln_b"], row_block)
    out2 = ffn_block(attn_out2, p["t_inter_w"], p["t_inter_b"],
                     p["t_out_w"], p["t_out_b"],
                     p["t_out_ln_g"], p["t_out_ln_b"], row_block)
    return out1.reshape(b, tv, hv), out2.reshape(b, tt, ht)


# ---------------------------------------------------------------------------
# BertEncoder control flow (shared by Pallas path and pure-JAX reference)
# ---------------------------------------------------------------------------
def _encoder_forward(params, config, txt_embedding, image_embedding,
                     txt_attention_mask, txt_attention_mask2,
                     image_attention_mask, co_attention_mask,
                     t_layer_fn, v_layer_fn, connection_fn,
                     output_all_encoded_layers=True):
    del txt_attention_mask2          # unused by the reference forward
    v_start, t_start, count = 0, 0, 0
    all_encoder_layers_t, all_encoder_layers_v = [], []
    batch_size, num_words, t_hidden_size = txt_embedding.shape
    _, num_regions, v_hidden_size = image_embedding.shape

    for v_layer_id, t_layer_id in zip(config["v_biattention_id"],
                                      config["t_biattention_id"]):
        v_end, t_end = v_layer_id, t_layer_id
        assert config["fixed_t_layer"] <= t_end
        assert config["fixed_v_layer"] <= v_end
        for idx in range(t_start, config["fixed_t_layer"]):
            # torch.no_grad(): forward values identical; just stop gradients.
            txt_embedding = jax.lax.stop_gradient(
                t_layer_fn(params["t_layers"][idx], txt_embedding,
                           txt_attention_mask))
            t_start = config["fixed_t_layer"]
        for idx in range(t_start, t_end):
            txt_embedding = t_layer_fn(params["t_layers"][idx], txt_embedding,
                                       txt_attention_mask)
        for idx in range(v_start, config["fixed_v_layer"]):
            image_embedding = jax.lax.stop_gradient(
                v_layer_fn(params["v_layers"][idx], image_embedding,
                           image_attention_mask))
            v_start = config["fixed_v_layer"]
        for idx in range(v_start, v_end):
            image_embedding = v_layer_fn(params["v_layers"][idx],
                                         image_embedding, image_attention_mask)

        if count == 0 and config["in_batch_pairs"]:
            image_embedding = jnp.broadcast_to(
                image_embedding[None],
                (batch_size, batch_size, num_regions, v_hidden_size)
            ).reshape(batch_size * batch_size, num_regions, v_hidden_size)
            image_attention_mask = jnp.broadcast_to(
                image_attention_mask[None],
                (batch_size, batch_size, 1, 1, num_regions)
            ).reshape(batch_size * batch_size, 1, 1, num_regions)
            txt_embedding = jnp.broadcast_to(
                txt_embedding[:, None],
                (batch_size, batch_size, num_words, t_hidden_size)
            ).reshape(batch_size * batch_size, num_words, t_hidden_size)
            txt_attention_mask = jnp.broadcast_to(
                txt_attention_mask[:, None],
                (batch_size, batch_size, 1, 1, num_words)
            ).reshape(batch_size * batch_size, 1, 1, num_words)
            if co_attention_mask is not None:
                co_attention_mask = jnp.broadcast_to(
                    co_attention_mask[:, None],
                    (batch_size, batch_size, 1, num_regions, num_words)
                ).reshape(batch_size * batch_size, 1, num_regions, num_words)

        if count == 0 and config["fast_mode"]:
            txt_embedding = jnp.broadcast_to(
                txt_embedding,
                (image_embedding.shape[0],) + txt_embedding.shape[1:])
            txt_attention_mask = jnp.broadcast_to(
                txt_attention_mask,
                (image_embedding.shape[0],) + txt_attention_mask.shape[1:])

        if config["with_coattention"]:
            image_embedding, txt_embedding = connection_fn(
                params["c_layers"][count], image_embedding,
                image_attention_mask, txt_embedding, txt_attention_mask)

        v_start, t_start = v_end, t_end
        count += 1
        if output_all_encoded_layers:
            all_encoder_layers_t.append(txt_embedding)
            all_encoder_layers_v.append(image_embedding)

    for idx in range(v_start, len(params["v_layers"])):
        image_embedding = v_layer_fn(params["v_layers"][idx], image_embedding,
                                     image_attention_mask)
    for idx in range(t_start, len(params["t_layers"])):
        txt_embedding = t_layer_fn(params["t_layers"][idx], txt_embedding,
                                   txt_attention_mask)
    if not output_all_encoded_layers:
        all_encoder_layers_t.append(txt_embedding)
        all_encoder_layers_v.append(image_embedding)
    # TODO(synk): attention-probability visualisation outputs
    # (output_all_attention_masks=True) are not materialised by the fused
    # attention kernel; empty lists are returned instead.
    return all_encoder_layers_t, all_encoder_layers_v, ([], [], [])


def bert_encoder_forward(params, config, txt_embedding, image_embedding,
                         txt_attention_mask, txt_attention_mask2,
                         image_attention_mask, co_attention_mask=None,
                         output_all_encoded_layers=True):
    rb = config.get("row_block")
    return _encoder_forward(
        params, config, txt_embedding, image_embedding, txt_attention_mask,
        txt_attention_mask2, image_attention_mask, co_attention_mask,
        t_layer_fn=functools.partial(bert_layer_forward,
                                     num_heads=config["t_num_heads"],
                                     row_block=rb),
        v_layer_fn=functools.partial(bert_layer_forward,
                                     num_heads=config["v_num_heads"],
                                     row_block=rb),
        connection_fn=functools.partial(connection_layer_forward,
                                        bi_num_heads=config["bi_num_heads"],
                                        row_block=rb),
        output_all_encoded_layers=output_all_encoded_layers)


# ---------------------------------------------------------------------------
# Pure-JAX reference (same math, same bf16 matmul casting) for correctness
# ---------------------------------------------------------------------------
def _ref_linear(x, w, b):
    return jnp.dot(x.astype(BF16), w.astype(BF16),
                   preferred_element_type=F32) + b


def _ref_gelu(x):
    return jax.nn.gelu(x, approximate=False)


def _ref_attention(q, k, v, mask4, num_heads):
    b, tq, a = q.shape
    tk = k.shape[1]
    dh = a // num_heads
    qh = q.reshape(b, tq, num_heads, dh).transpose(0, 2, 1, 3)
    kh = k.reshape(b, tk, num_heads, dh).transpose(0, 2, 1, 3)
    vh = v.reshape(b, tk, num_heads, dh).transpose(0, 2, 1, 3)
    s = jnp.einsum("bhqd,bhkd->bhqk", qh.astype(BF16), kh.astype(BF16),
                   preferred_element_type=F32) / math.sqrt(dh)
    s = s + mask4.reshape(b, 1, 1, tk)
    p = jax.nn.softmax(s, axis=-1)
    ctx = jnp.einsum("bhqk,bhkd->bhqd", p.astype(BF16), vh.astype(BF16),
                     preferred_element_type=F32)
    return ctx.transpose(0, 2, 1, 3).reshape(b, tq, a)


def _ref_bert_layer(p, hidden, mask4, *, num_heads):
    b, t, h = hidden.shape
    x = hidden.reshape(b * t, h)
    q = _ref_linear(x, p["q_w"], p["q_b"])
    k = _ref_linear(x, p["k_w"], p["k_b"])
    v = _ref_linear(x, p["v_w"], p["v_b"])
    a = q.shape[-1]
    ctx = _ref_attention(q.reshape(b, t, a), k.reshape(b, t, a),
                         v.reshape(b, t, a), mask4, num_heads)
    attn = _layernorm(_ref_linear(ctx.reshape(b * t, a), p["attn_out_w"],
                                  p["attn_out_b"]) + x,
                      p["attn_ln_g"], p["attn_ln_b"])
    inter = _ref_gelu(_ref_linear(attn, p["inter_w"], p["inter_b"]))
    out = _layernorm(_ref_linear(inter, p["out_w"], p["out_b"]) + attn,
                     p["out_ln_g"], p["out_ln_b"])
    return out.reshape(b, t, h)


def _ref_connection_layer(p, image_emb, image_mask4, txt_emb, txt_mask4, *,
                          bi_num_heads):
    b, tv, hv = image_emb.shape
    _, tt, ht = txt_emb.shape
    img = image_emb.reshape(b * tv, hv)
    txt = txt_emb.reshape(b * tt, ht)
    q1 = _ref_linear(img, p["q1_w"], p["q1_b"])
    k1 = _ref_linear(img, p["k1_w"], p["k1_b"])
    v1 = _ref_linear(img, p["v1_w"], p["v1_b"])
    q2 = _ref_linear(txt, p["q2_w"], p["q2_b"])
    k2 = _ref_linear(txt, p["k2_w"], p["k2_b"])
    v2 = _ref_linear(txt, p["v2_w"], p["v2_b"])
    a = q1.shape[-1]
    ctx1 = _ref_attention(q2.reshape(b, tt, a), k1.reshape(b, tv, a),
                          v1.reshape(b, tv, a), image_mask4, bi_num_heads)
    ctx2 = _ref_attention(q1.reshape(b, tv, a), k2.reshape(b, tt, a),
                          v2.reshape(b, tt, a), txt_mask4, bi_num_heads)
    attn1 = _layernorm(_ref_linear(ctx2.reshape(b * tv, a), p["dense1_w"],
                                   p["dense1_b"]) + img,
                       p["ln1_g"], p["ln1_b"])
    attn2 = _layernorm(_ref_linear(ctx1.reshape(b * tt, a), p["dense2_w"],
                                   p["dense2_b"]) + txt,
                       p["ln2_g"], p["ln2_b"])
    out1 = _layernorm(
        _ref_linear(_ref_gelu(_ref_linear(attn1, p["v_inter_w"],
                                          p["v_inter_b"])),
                    p["v_out_w"], p["v_out_b"]) + attn1,
        p["v_out_ln_g"], p["v_out_ln_b"])
    out2 = _layernorm(
        _ref_linear(_ref_gelu(_ref_linear(attn2, p["t_inter_w"],
                                          p["t_inter_b"])),
                    p["t_out_w"], p["t_out_b"]) + attn2,
        p["t_out_ln_g"], p["t_out_ln_b"])
    return out1.reshape(b, tv, hv), out2.reshape(b, tt, ht)


def bert_encoder_reference(params, config, txt_embedding, image_embedding,
                           txt_attention_mask, txt_attention_mask2,
                           image_attention_mask, co_attention_mask=None,
                           output_all_encoded_layers=True):
    return _encoder_forward(
        params, config, txt_embedding, image_embedding, txt_attention_mask,
        txt_attention_mask2, image_attention_mask, co_attention_mask,
        t_layer_fn=functools.partial(_ref_bert_layer,
                                     num_heads=config["t_num_heads"]),
        v_layer_fn=functools.partial(_ref_bert_layer,
                                     num_heads=config["v_num_heads"]),
        connection_fn=functools.partial(_ref_connection_layer,
                                        bi_num_heads=config["bi_num_heads"]),
        output_all_encoded_layers=output_all_encoded_layers)


# ---------------------------------------------------------------------------
# deterministic synthetic parameters
# ---------------------------------------------------------------------------
def _init_bert_layer(key, hidden, intermediate):
    ks = jax.random.split(key, 12)
    std = 0.02
    w = lambda k, a, b: std * jax.random.normal(k, (a, b), F32)
    vec = lambda k, n: std * jax.random.normal(k, (1, n), F32)
    return {
        "q_w": w(ks[0], hidden, hidden), "q_b": vec(ks[1], hidden),
        "k_w": w(ks[2], hidden, hidden), "k_b": vec(ks[3], hidden),
        "v_w": w(ks[4], hidden, hidden), "v_b": vec(ks[5], hidden),
        "attn_out_w": w(ks[6], hidden, hidden), "attn_out_b": vec(ks[7], hidden),
        "attn_ln_g": jnp.ones((1, hidden), F32),
        "attn_ln_b": jnp.zeros((1, hidden), F32),
        "inter_w": w(ks[8], hidden, intermediate),
        "inter_b": vec(ks[9], intermediate),
        "out_w": w(ks[10], intermediate, hidden), "out_b": vec(ks[11], hidden),
        "out_ln_g": jnp.ones((1, hidden), F32),
        "out_ln_b": jnp.zeros((1, hidden), F32),
    }


def _init_connection_layer(key, t_hidden, v_hidden, bi_hidden, t_inter, v_inter):
    ks = jax.random.split(key, 24)
    std = 0.02
    w = lambda k, a, b: std * jax.random.normal(k, (a, b), F32)
    vec = lambda k, n: std * jax.random.normal(k, (1, n), F32)
    return {
        # BertBiAttention (stream 1 = vision, stream 2 = text)
        "q1_w": w(ks[0], v_hidden, bi_hidden), "q1_b": vec(ks[1], bi_hidden),
        "k1_w": w(ks[2], v_hidden, bi_hidden), "k1_b": vec(ks[3], bi_hidden),
        "v1_w": w(ks[4], v_hidden, bi_hidden), "v1_b": vec(ks[5], bi_hidden),
        "q2_w": w(ks[6], t_hidden, bi_hidden), "q2_b": vec(ks[7], bi_hidden),
        "k2_w": w(ks[8], t_hidden, bi_hidden), "k2_b": vec(ks[9], bi_hidden),
        "v2_w": w(ks[10], t_hidden, bi_hidden), "v2_b": vec(ks[11], bi_hidden),
        # BertBiOutput
        "dense1_w": w(ks[12], bi_hidden, v_hidden),
        "dense1_b": vec(ks[13], v_hidden),
        "ln1_g": jnp.ones((1, v_hidden), F32),
        "ln1_b": jnp.zeros((1, v_hidden), F32),
        "dense2_w": w(ks[14], bi_hidden, t_hidden),
        "dense2_b": vec(ks[15], t_hidden),
        "ln2_g": jnp.ones((1, t_hidden), F32),
        "ln2_b": jnp.zeros((1, t_hidden), F32),
        # v_intermediate / v_output
        "v_inter_w": w(ks[16], v_hidden, v_inter),
        "v_inter_b": vec(ks[17], v_inter),
        "v_out_w": w(ks[18], v_inter, v_hidden), "v_out_b": vec(ks[19], v_hidden),
        "v_out_ln_g": jnp.ones((1, v_hidden), F32),
        "v_out_ln_b": jnp.zeros((1, v_hidden), F32),
        # t_intermediate / t_output
        "t_inter_w": w(ks[20], t_hidden, t_inter),
        "t_inter_b": vec(ks[21], t_inter),
        "t_out_w": w(ks[22], t_inter, t_hidden), "t_out_b": vec(ks[23], t_hidden),
        "t_out_ln_g": jnp.ones((1, t_hidden), F32),
        "t_out_ln_b": jnp.zeros((1, t_hidden), F32),
    }


# ---------------------------------------------------------------------------
# demo
# ---------------------------------------------------------------------------
if __name__ == "__main__":
    key = jax.random.PRNGKey(0)
    (k_t0, k_t1, k_v0, k_v1, k_c0, k_te, k_ie, k_mt, k_mi) = jax.random.split(key, 9)

    # Small, self-consistent ViLBERT config.
    B = 2
    num_words, t_hidden, t_heads, t_inter = 8, 32, 4, 64
    num_regions, v_hidden, v_heads, v_inter = 8, 64, 4, 128
    bi_hidden, bi_heads = 32, 4

    CONFIG = {
        "t_biattention_id": [1],
        "v_biattention_id": [1],
        "fixed_t_layer": 1,
        "fixed_v_layer": 0,
        "with_coattention": True,
        "in_batch_pairs": False,
        "fast_mode": False,
        "t_num_heads": t_heads,
        "v_num_heads": v_heads,
        "bi_num_heads": bi_heads,
        # Tiny row tile so the demo exercises a multi-step grid; at real BERT
        # sizes use 128-512 (sized against per-generation VMEM).
        "row_block": 8,
    }

    params = {
        "t_layers": [_init_bert_layer(k_t0, t_hidden, t_inter),
                     _init_bert_layer(k_t1, t_hidden, t_inter)],
        "v_layers": [_init_bert_layer(k_v0, v_hidden, v_inter),
                     _init_bert_layer(k_v1, v_hidden, v_inter)],
        "c_layers": [_init_connection_layer(k_c0, t_hidden, v_hidden,
                                            bi_hidden, t_inter, v_inter)],
    }

    txt_embedding = jax.random.normal(k_te, (B, num_words, t_hidden), F32)
    image_embedding = jax.random.normal(k_ie, (B, num_regions, v_hidden), F32)

    # Standard BERT additive masks: 0 for visible tokens, -10000 for padding.
    txt_valid = (jax.random.uniform(k_mt, (B, num_words)) > 0.2).astype(F32)
    img_valid = (jax.random.uniform(k_mi, (B, num_regions)) > 0.2).astype(F32)
    txt_attention_mask = (1.0 - txt_valid)[:, None, None, :] * -10000.0
    image_attention_mask = (1.0 - img_valid)[:, None, None, :] * -10000.0
    txt_attention_mask2 = txt_attention_mask
    co_attention_mask = jnp.zeros((B, 1, num_regions, num_words), F32)

    run_pallas = jax.jit(
        lambda prm, te, ie, tmask, tmask2, imask, co: bert_encoder_forward(
            prm, CONFIG, te, ie, tmask, tmask2, imask,
            co_attention_mask=co, output_all_encoded_layers=False))

    enc_t, enc_v, _ = jax.block_until_ready(
        run_pallas(params, txt_embedding, image_embedding, txt_attention_mask,
                   txt_attention_mask2, image_attention_mask,
                   co_attention_mask))

    ref_t, ref_v, _ = bert_encoder_reference(
        params, CONFIG, txt_embedding, image_embedding, txt_attention_mask,
        txt_attention_mask2, image_attention_mask,
        co_attention_mask=co_attention_mask, output_all_encoded_layers=False)

    assert len(enc_t) == 1 and len(enc_v) == 1
    assert enc_t[0].shape == (B, num_words, t_hidden)
    assert enc_v[0].shape == (B, num_regions, v_hidden)
    assert jnp.allclose(enc_t[0], ref_t[0], atol=1e-2, rtol=1e-2), \
        float(jnp.max(jnp.abs(enc_t[0] - ref_t[0])))
    assert jnp.allclose(enc_v[0], ref_v[0], atol=1e-2, rtol=1e-2), \
        float(jnp.max(jnp.abs(enc_v[0] - ref_v[0])))

    print("KERNEL_OK")
</pallas_src>

<mosaic_0001>
module attributes {stable_mosaic.version = 11 : i64} {
  func.func @_qkv_kernel(%arg0: i32, %arg1: memref<8x32xf32, #tpu.memory_space<vmem>>, %arg2: memref<32x32xbf16, #tpu.memory_space<vmem>>, %arg3: memref<1x32xf32, #tpu.memory_space<vmem>>, %arg4: memref<32x32xbf16, #tpu.memory_space<vmem>>, %arg5: memref<1x32xf32, #tpu.memory_space<vmem>>, %arg6: memref<32x32xbf16, #tpu.memory_space<vmem>>, %arg7: memref<1x32xf32, #tpu.memory_space<vmem>>, %arg8: memref<8x32xf32, #tpu.memory_space<vmem>>, %arg9: memref<8x32xf32, #tpu.memory_space<vmem>>, %arg10: memref<8x32xf32, #tpu.memory_space<vmem>>) attributes {dimension_semantics = [#tpu.dimension_semantics<parallel>], iteration_bounds = array<i64: 2>, scalar_prefetch = 0 : i64, scratch_operands = 0 : i64, tpu.core_type = #tpu.core_type<tc>, window_params = [{transform_indices = @transform_0, window_bounds = array<i64: 8, 32>}, {pipeline_mode = #tpu.pipeline_mode<synchronous>, transform_indices = @transform_1, window_bounds = array<i64: 32, 32>}, {pipeline_mode = #tpu.pipeline_mode<synchronous>, transform_indices = @transform_2, window_bounds = array<i64: 1, 32>}, {pipeline_mode = #tpu.pipeline_mode<synchronous>, transform_indices = @transform_3, window_bounds = array<i64: 32, 32>}, {pipeline_mode = #tpu.pipeline_mode<synchronous>, transform_indices = @transform_4, window_bounds = array<i64: 1, 32>}, {pipeline_mode = #tpu.pipeline_mode<synchronous>, transform_indices = @transform_5, window_bounds = array<i64: 32, 32>}, {pipeline_mode = #tpu.pipeline_mode<synchronous>, transform_indices = @transform_6, window_bounds = array<i64: 1, 32>}, {transform_indices = @transform_7, window_bounds = array<i64: 8, 32>}, {transform_indices = @transform_8, window_bounds = array<i64: 8, 32>}, {transform_indices = @transform_9, window_bounds = array<i64: 8, 32>}]} {
    %c0 = arith.constant 0 : index
    %c0_0 = arith.constant 0 : index
    %0 = vector.load %arg1[%c0, %c0_0] : memref<8x32xf32, #tpu.memory_space<vmem>>, vector<8x32xf32>
    %1 = arith.truncf %0 : vector<8x32xf32> to vector<8x32xbf16>
    %c0_1 = arith.constant 0 : index
    %c0_2 = arith.constant 0 : index
    %2 = vector.load %arg2[%c0_1, %c0_2] : memref<32x32xbf16, #tpu.memory_space<vmem>>, vector<32x32xbf16>
    %cst = arith.constant dense<0.000000e+00> : vector<8x32xf32>
    %3 = tpu.matmul %1, %2, %cst {dimension_numbers = #tpu.dot_dimension_numbers<[1], [0], [0], [1], [0, 0, 1, 1], [], []>} : vector<8x32xbf16>, vector<32x32xbf16>, vector<8x32xf32> -> vector<8x32xf32>
    %c0_3 = arith.constant 0 : index
    %c0_4 = arith.constant 0 : index
    %4 = vector.load %arg3[%c0_3, %c0_4] : memref<1x32xf32, #tpu.memory_space<vmem>>, vector<1x32xf32>
    %5 = vector.broadcast %4 : vector<1x32xf32> to vector<8x32xf32>
    %6 = arith.addf %3, %5 : vector<8x32xf32>
    %c0_5 = arith.constant 0 : index
    %c0_6 = arith.constant 0 : index
    %7 = vector.load %arg8[%c0_5, %c0_6] : memref<8x32xf32, #tpu.memory_space<vmem>>, vector<8x32xf32>
    tpu.vector_store %arg8[%c0_5, %c0_6], %6 {strides = array<i32>} : memref<8x32xf32, #tpu.memory_space<vmem>>, vector<8x32xf32>,
    %c0_7 = arith.constant 0 : index
    %c0_8 = arith.constant 0 : index
    %8 = vector.load %arg4[%c0_7, %c0_8] : memref<32x32xbf16, #tpu.memory_space<vmem>>, vector<32x32xbf16>
    %cst_9 = arith.constant dense<0.000000e+00> : vector<8x32xf32>
    %9 = tpu.matmul %1, %8, %cst_9 {dimension_numbers = #tpu.dot_dimension_numbers<[1], [0], [0], [1], [0, 0, 1, 1], [], []>} : vector<8x32xbf16>, vector<32x32xbf16>, vector<8x32xf32> -> vector<8x32xf32>
    %c0_10 = arith.constant 0 : index
    %c0_11 = arith.constant 0 : index
    %10 = vector.load %arg5[%c0_10, %c0_11] : memref<1x32xf32, #tpu.memory_space<vmem>>, vector<1x32xf32>
    %11 = vector.broadcast %10 : vector<1x32xf32> to vector<8x32xf32>
    %12 = arith.addf %9, %11 : vector<8x32xf32>
    %c0_12 = arith.constant 0 : index
    %c0_13 = arith.constant 0 : index
    %13 = vector.load %arg9[%c0_12, %c0_13] : memref<8x32xf32, #tpu.memory_space<vmem>>, vector<8x32xf32>
    tpu.vector_store %arg9[%c0_12, %c0_13], %12 {strides = array<i32>} : memref<8x32xf32, #tpu.memory_space<vmem>>, vector<8x32xf32>,
    %c0_14 = arith.constant 0 : index
    %c0_15 = arith.constant 0 : index
    %14 = vector.load %arg6[%c0_14, %c0_15] : memref<32x32xbf16, #tpu.memory_space<vmem>>, vector<32x32xbf16>
    %cst_16 = arith.constant dense<0.000000e+00> : vector<8x32xf32>
    %15 = tpu.matmul %1, %14, %cst_16 {dimension_numbers = #tpu.dot_dimension_numbers<[1], [0], [0], [1], [0, 0, 1, 1], [], []>} : vector<8x32xbf16>, vector<32x32xbf16>, vector<8x32xf32> -> vector<8x32xf32>
    %c0_17 = arith.constant 0 : index
    %c0_18 = arith.constant 0 : index
    %16 = vector.load %arg7[%c0_17, %c0_18] : memref<1x32xf32, #tpu.memory_space<vmem>>, vector<1x32xf32>
    %17 = vector.broadcast %16 : vector<1x32xf32> to vector<8x32xf32>
    %18 = arith.addf %15, %17 : vector<8x32xf32>
    %c0_19 = arith.constant 0 : index
    %c0_20 = arith.constant 0 : index
    %19 = vector.load %arg10[%c0_19, %c0_20] : memref<8x32xf32, #tpu.memory_space<vmem>>, vector<8x32xf32>
    tpu.vector_store %arg10[%c0_19, %c0_20], %18 {strides = array<i32>} : memref<8x32xf32, #tpu.memory_space<vmem>>, vector<8x32xf32>,
    return
  }
  func.func @transform_0(%arg0: i32) -> (i32, i32) {
    %c0_i32 = arith.constant 0 : i32
    %c0_i32_0 = arith.constant 0 : i32
    return %arg0, %c0_i32 : i32, i32
  }
  func.func @transform_1(%arg0: i32) -> (i32, i32) {
    %c0_i32 = arith.constant 0 : i32
    %c0_i32_0 = arith.constant 0 : i32
    %c0_i32_1 = arith.constant 0 : i32
    return %c0_i32, %c0_i32_0 : i32, i32
  }
  func.func @transform_2(%arg0: i32) -> (i32, i32) {
    %c0_i32 = arith.constant 0 : i32
    %c0_i32_0 = arith.constant 0 : i32
    %c0_i32_1 = arith.constant 0 : i32
    return %c0_i32, %c0_i32_0 : i32, i32
  }
  func.func @transform_3(%arg0: i32) -> (i32, i32) {
    %c0_i32 = arith.constant 0 : i32
    %c0_i32_0 = arith.constant 0 : i32
    %c0_i32_1 = arith.constant 0 : i32
    return %c0_i32, %c0_i32_0 : i32, i32
  }
  func.func @transform_4(%arg0: i32) -> (i32, i32) {
    %c0_i32 = arith.constant 0 : i32
    %c0_i32_0 = arith.constant 0 : i32
    %c0_i32_1 = arith.constant 0 : i32
    return %c0_i32, %c0_i32_0 : i32, i32
  }
  func.func @transform_5(%arg0: i32) -> (i32, i32) {
    %c0_i32 = arith.constant 0 : i32
    %c0_i32_0 = arith.constant 0 : i32
    %c0_i32_1 = arith.constant 0 : i32
    return %c0_i32, %c0_i32_0 : i32, i32
  }
  func.func @transform_6(%arg0: i32) -> (i32, i32) {
    %c0_i32 = arith.constant 0 : i32
    %c0_i32_0 = arith.constant 0 : i32
    %c0_i32_1 = arith.constant 0 : i32
    return %c0_i32, %c0_i32_0 : i32, i32
  }
  func.func @transform_7(%arg0: i32) -> (i32, i32) {
    %c0_i32 = arith.constant 0 : i32
    %c0_i32_0 = arith.constant 0 : i32
    return %arg0, %c0_i32 : i32, i32
  }
  func.func @transform_8(%arg0: i32) -> (i32, i32) {
    %c0_i32 = arith.constant 0 : i32
    %c0_i32_0 = arith.constant 0 : i32
    return %arg0, %c0_i32 : i32, i32
  }
  func.func @transform_9(%arg0: i32) -> (i32, i32) {
    %c0_i32 = arith.constant 0 : i32
    %c0_i32_0 = arith.constant 0 : i32
    return %arg0, %c0_i32 : i32, i32
  }
}

module attributes {stable_mosaic.version = 11 : i64} {
  func.func @_linear_residual_ln_kernel(%arg0: i32, %arg1: memref<8x32xf32, #tpu.memory_space<vmem>>, %arg2: memref<8x32xf32, #tpu.memory_space<vmem>>, %arg3: memref<32x32xbf16, #tpu.memory_space<vmem>>, %arg4: memref<1x32xf32, #tpu.memory_space<vmem>>, %arg5: memref<1x32xf32, #tpu.memory_space<vmem>>, %arg6: memref<1x32xf32, #tpu.memory_space<vmem>>, %arg7: memref<8x32xf32, #tpu.memory_space<vmem>>) attributes {dimension_semantics = [#tpu.dimension_semantics<parallel>], iteration_bounds = array<i64: 2>, scalar_prefetch = 0 : i64, scratch_operands = 0 : i64, tpu.core_type = #tpu.core_type<tc>, window_params = [{transform_indices = @transform_0, window_bounds = array<i64: 8, 32>}, {transform_indices = @transform_1, window_bounds = array<i64: 8, 32>}, {pipeline_mode = #tpu.pipeline_mode<synchronous>, transform_indices = @transform_2, window_bounds = array<i64: 32, 32>}, {pipeline_mode = #tpu.pipeline_mode<synchronous>, transform_indices = @transform_3, window_bounds = array<i64: 1, 32>}, {pipeline_mode = #tpu.pipeline_mode<synchronous>, transform_indices = @transform_4, window_bounds = array<i64: 1, 32>}, {pipeline_mode = #tpu.pipeline_mode<synchronous>, transform_indices = @transform_5, window_bounds = array<i64: 1, 32>}, {transform_indices = @transform_6, window_bounds = array<i64: 8, 32>}]} {
    %c0 = arith.constant 0 : index
    %c0_0 = arith.constant 0 : index
    %0 = vector.load %arg1[%c0, %c0_0] : memref<8x32xf32, #tpu.memory_space<vmem>>, vector<8x32xf32>
    %1 = arith.truncf %0 : vector<8x32xf32> to vector<8x32xbf16>
    %c0_1 = arith.constant 0 : index
    %c0_2 = arith.constant 0 : index
    %2 = vector.load %arg3[%c0_1, %c0_2] : memref<32x32xbf16, #tpu.memory_space<vmem>>, vector<32x32xbf16>
    %cst = arith.constant dense<0.000000e+00> : vector<8x32xf32>
    %3 = tpu.matmul %1, %2, %cst {dimension_numbers = #tpu.dot_dimension_numbers<[1], [0], [0], [1], [0, 0, 1, 1], [], []>} : vector<8x32xbf16>, vector<32x32xbf16>, vector<8x32xf32> -> vector<8x32xf32>
    %c0_3 = arith.constant 0 : index
    %c0_4 = arith.constant 0 : index
    %4 = vector.load %arg4[%c0_3, %c0_4] : memref<1x32xf32, #tpu.memory_space<vmem>>, vector<1x32xf32>
    %5 = vector.broadcast %4 : vector<1x32xf32> to vector<8x32xf32>
    %6 = arith.addf %3, %5 : vector<8x32xf32>
    %c0_5 = arith.constant 0 : index
    %c0_6 = arith.constant 0 : index
    %7 = vector.load %arg2[%c0_5, %c0_6] : memref<8x32xf32, #tpu.memory_space<vmem>>, vector<8x32xf32>
    %8 = arith.addf %6, %7 : vector<8x32xf32>
    %c0_7 = arith.constant 0 : index
    %c0_8 = arith.constant 0 : index
    %9 = vector.load %arg5[%c0_7, %c0_8] : memref<1x32xf32, #tpu.memory_space<vmem>>, vector<1x32xf32>
    %c0_9 = arith.constant 0 : index
    %c0_10 = arith.constant 0 : index
    %10 = vector.load %arg6[%c0_9, %c0_10] : memref<1x32xf32, #tpu.memory_space<vmem>>, vector<1x32xf32>
    %cst_11 = arith.constant dense<0.000000e+00> : vector<8xf32>
    %11 = vector.multi_reduction <add>, %8, %cst_11 [1] : vector<8x32xf32> to vector<8xf32>
    %12 = vector.shape_cast %11 : vector<8xf32> to vector<8x1xf32>
    %cst_12 = arith.constant 3.200000e+01 : f32
    %13 = vector.broadcast %cst_12 : f32 to vector<8x1xf32>
    %14 = arith.divf %12, %13 : vector<8x1xf32>
    %15 = vector.broadcast %14 : vector<8x1xf32> to vector<8x32xf32>
    %16 = arith.subf %8, %15 : vector<8x32xf32>
    %17 = arith.mulf %16, %16 : vector<8x32xf32>
    %cst_13 = arith.constant dense<0.000000e+00> : vector<8xf32>
    %18 = vector.multi_reduction <add>, %17, %cst_13 [1] : vector<8x32xf32> to vector<8xf32>
    %19 = vector.shape_cast %18 : vector<8xf32> to vector<8x1xf32>
    %cst_14 = arith.constant 3.200000e+01 : f32
    %20 = vector.broadcast %cst_14 : f32 to vector<8x1xf32>
    %21 = arith.divf %19, %20 : vector<8x1xf32>
    %22 = vector.broadcast %14 : vector<8x1xf32> to vector<8x32xf32>
    %23 = arith.subf %8, %22 : vector<8x32xf32>
    %cst_15 = arith.constant 9.99999996E-13 : f32
    %24 = vector.broadcast %cst_15 : f32 to vector<8x1xf32>
    %25 = arith.addf %21, %24 : vector<8x1xf32>
    %26 = math.rsqrt %25 : vector<8x1xf32>
    %27 = vector.broadcast %26 : vector<8x1xf32> to vector<8x32xf32>
    %28 = arith.mulf %23, %27 : vector<8x32xf32>
    %29 = vector.broadcast %9 : vector<1x32xf32> to vector<8x32xf32>
    %30 = arith.mulf %28, %29 : vector<8x32xf32>
    %31 = vector.broadcast %10 : vector<1x32xf32> to vector<8x32xf32>
    %32 = arith.addf %30, %31 : vector<8x32xf32>
    %c0_16 = arith.constant 0 : index
    %c0_17 = arith.constant 0 : index
    %33 = vector.load %arg7[%c0_16, %c0_17] : memref<8x32xf32, #tpu.memory_space<vmem>>, vector<8x32xf32>
    tpu.vector_store %arg7[%c0_16, %c0_17], %32 {strides = array<i32>} : memref<8x32xf32, #tpu.memory_space<vmem>>, vector<8x32xf32>,
    return
  }
  func.func @transform_0(%arg0: i32) -> (i32, i32) {
    %c0_i32 = arith.constant 0 : i32
    %c0_i32_0 = arith.constant 0 : i32
    return %arg0, %c0_i32 : i32, i32
  }
  func.func @transform_1(%arg0: i32) -> (i32, i32) {
    %c0_i32 = arith.constant 0 : i32
    %c0_i32_0 = arith.constant 0 : i32
    return %arg0, %c0_i32 : i32, i32
  }
  func.func @transform_2(%arg0: i32) -> (i32, i32) {
    %c0_i32 = arith.constant 0 : i32
    %c0_i32_0 = arith.constant 0 : i32
    %c0_i32_1 = arith.constant 0 : i32
    return %c0_i32, %c0_i32_0 : i32, i32
  }
  func.func @transform_3(%arg0: i32) -> (i32, i32) {
    %c0_i32 = arith.constant 0 : i32
    %c0_i32_0 = arith.constant 0 : i32
    %c0_i32_1 = arith.constant 0 : i32
    return %c0_i32, %c0_i32_0 : i32, i32
  }
  func.func @transform_4(%arg0: i32) -> (i32, i32) {
    %c0_i32 = arith.constant 0 : i32
    %c0_i32_0 = arith.constant 0 : i32
    %c0_i32_1 = arith.constant 0 : i32
    return %c0_i32, %c0_i32_0 : i32, i32
  }
  func.func @transform_5(%arg0: i32) -> (i32, i32) {
    %c0_i32 = arith.constant 0 : i32
    %c0_i32_0 = arith.constant 0 : i32
    %c0_i32_1 = arith.constant 0 : i32
    return %c0_i32, %c0_i32_0 : i32, i32
  }
  func.func @transform_6(%arg0: i32) -> (i32, i32) {
    %c0_i32 = arith.constant 0 : i32
    %c0_i32_0 = arith.constant 0 : i32
    return %arg0, %c0_i32 : i32, i32
  }
}

module attributes {stable_mosaic.version = 11 : i64} {
  func.func @_mha_kernel(%arg0: i32, %arg1: memref<1x8x32xf32, #tpu.memory_space<vmem>>, %arg2: memref<1x8x32xf32, #tpu.memory_space<vmem>>, %arg3: memref<1x8x32xf32, #tpu.memory_space<vmem>>, %arg4: memref<1x1x8xf32, #tpu.memory_space<vmem>>, %arg5: memref<1x8x32xf32, #tpu.memory_space<vmem>>) attributes {dimension_semantics = [#tpu.dimension_semantics<parallel>], iteration_bounds = array<i64: 2>, scalar_prefetch = 0 : i64, scratch_operands = 0 : i64, tpu.core_type = #tpu.core_type<tc>, window_params = [{transform_indices = @transform_0, window_bounds = array<i64: 1, 8, 32>}, {transform_indices = @transform_1, window_bounds = array<i64: 1, 8, 32>}, {transform_indices = @transform_2, window_bounds = array<i64: 1, 8, 32>}, {transform_indices = @transform_3, window_bounds = array<i64: 1, 1, 8>}, {transform_indices = @transform_4, window_bounds = array<i64: 1, 8, 32>}]} {
    %c0 = arith.constant 0 : index
    %c0_0 = arith.constant 0 : index
    %c0_1 = arith.constant 0 : index
    %0 = vector.load %arg1[%c0, %c0_0, %c0_1] : memref<1x8x32xf32, #tpu.memory_space<vmem>>, vector<1x8x32xf32>
    %1 = vector.shape_cast %0 : vector<1x8x32xf32> to vector<8x32xf32>
    %2 = arith.truncf %1 : vector<8x32xf32> to vector<8x32xbf16>
    %c0_2 = arith.constant 0 : index
    %c0_3 = arith.constant 0 : index
    %c0_4 = arith.constant 0 : index
    %3 = vector.load %arg2[%c0_2, %c0_3, %c0_4] : memref<1x8x32xf32, #tpu.memory_space<vmem>>, vector<1x8x32xf32>
    %4 = vector.shape_cast %3 : vector<1x8x32xf32> to vector<8x32xf32>
    %5 = arith.truncf %4 : vector<8x32xf32> to vector<8x32xbf16>
    %c0_5 = arith.constant 0 : index
    %c0_6 = arith.constant 0 : index
    %c0_7 = arith.constant 0 : index
    %6 = vector.load %arg3[%c0_5, %c0_6, %c0_7] : memref<1x8x32xf32, #tpu.memory_space<vmem>>, vector<1x8x32xf32>
    %7 = vector.shape_cast %6 : vector<1x8x32xf32> to vector<8x32xf32>
    %8 = arith.truncf %7 : vector<8x32xf32> to vector<8x32xbf16>
    %c0_8 = arith.constant 0 : index
    %c0_9 = arith.constant 0 : index
    %c0_10 = arith.constant 0 : index
    %9 = vector.load %arg4[%c0_8, %c0_9, %c0_10] : memref<1x1x8xf32, #tpu.memory_space<vmem>>, vector<1x1x8xf32>
    %10 = vector.shape_cast %9 : vector<1x1x8xf32> to vector<1x8xf32>
    %11 = vector.extract_strided_slice %2 {offsets = [0, 0], sizes = [8, 8], strides = [1, 1]} : vector<8x32xbf16> to vector<8x8xbf16>
    %12 = vector.extract_strided_slice %5 {offsets = [0, 0], sizes = [8, 8], strides = [1, 1]} : vector<8x32xbf16> to vector<8x8xbf16>
    %cst = arith.constant dense<0.000000e+00> : vector<8x8xf32>
    %13 = tpu.matmul %11, %12, %cst {dimension_numbers = #tpu.dot_dimension_numbers<[1], [1], [0], [0], [0, 0, 1, 0], [], []>} : vector<8x8xbf16>, vector<8x8xbf16>, vector<8x8xf32> -> vector<8x8xf32>
    %cst_11 = arith.constant 0.353553385 : f32
    %14 = vector.broadcast %cst_11 : f32 to vector<8x8xf32>
    %15 = arith.mulf %13, %14 : vector<8x8xf32>
    %16 = vector.broadcast %10 : vector<1x8xf32> to vector<8x8xf32>
    %17 = arith.addf %15, %16 : vector<8x8xf32>
    %cst_12 = arith.constant dense<0xFF800000> : vector<8xf32>
    %18 = vector.multi_reduction <maximumf>, %17, %cst_12 [1] : vector<8x8xf32> to vector<8xf32>
    %19 = vector.shape_cast %18 : vector<8xf32> to vector<8x1xf32>
    %20 = vector.broadcast %19 : vector<8x1xf32> to vector<8x8xf32>
    %21 = arith.subf %17, %20 : vector<8x8xf32>
    %22 = math.exp %21 : vector<8x8xf32>
    %cst_13 = arith.constant dense<0.000000e+00> : vector<8xf32>
    %23 = vector.multi_reduction <add>, %22, %cst_13 [1] : vector<8x8xf32> to vector<8xf32>
    %24 = vector.shape_cast %23 : vector<8xf32> to vector<8x1xf32>
    %25 = vector.broadcast %24 : vector<8x1xf32> to vector<8x8xf32>
    %26 = arith.divf %22, %25 : vector<8x8xf32>
    %27 = arith.truncf %26 : vector<8x8xf32> to vector<8x8xbf16>
    %28 = vector.extract_strided_slice %8 {offsets = [0, 0], sizes = [8, 8], strides = [1, 1]} : vector<8x32xbf16> to vector<8x8xbf16>
    %cst_14 = arith.constant dense<0.000000e+00> : vector<8x8xf32>
    %29 = tpu.matmul %27, %28, %cst_14 {dimension_numbers = #tpu.dot_dimension_numbers<[1], [0], [0], [1], [0, 0, 1, 1], [], []>} : vector<8x8xbf16>, vector<8x8xbf16>, vector<8x8xf32> -> vector<8x8xf32>
    %30 = vector.extract_strided_slice %2 {offsets = [0, 8], sizes = [8, 8], strides = [1, 1]} : vector<8x32xbf16> to vector<8x8xbf16>
    %31 = vector.extract_strided_slice %5 {offsets = [0, 8], sizes = [8, 8], strides = [1, 1]} : vector<8x32xbf16> to vector<8x8xbf16>
    %cst_15 = arith.constant dense<0.000000e+00> : vector<8x8xf32>
    %32 = tpu.matmul %30, %31, %cst_15 {dimension_numbers = #tpu.dot_dimension_numbers<[1], [1], [0], [0], [0, 0, 1, 0], [], []>} : vector<8x8xbf16>, vector<8x8xbf16>, vector<8x8xf32> -> vector<8x8xf32>
    %cst_16 = arith.constant 0.353553385 : f32
    %33 = vector.broadcast %cst_16 : f32 to vector<8x8xf32>
    %34 = arith.mulf %32, %33 : vector<8x8xf32>
    %35 = vector.broadcast %10 : vector<1x8xf32> to vector<8x8xf32>
    %36 = arith.addf %34, %35 : vector<8x8xf32>
    %cst_17 = arith.constant dense<0xFF800000> : vector<8xf32>
    %37 = vector.multi_reduction <maximumf>, %36, %cst_17 [1] : vector<8x8xf32> to vector<8xf32>
    %38 = vector.shape_cast %37 : vector<8xf32> to vector<8x1xf32>
    %39 = vector.broadcast %38 : vector<8x1xf32> to vector<8x8xf32>
    %40 = arith.subf %36, %39 : vector<8x8xf32>
    %41 = math.exp %40 : vector<8x8xf32>
    %cst_18 = arith.constant dense<0.000000e+00> : vector<8xf32>
    %42 = vector.multi_reduction <add>, %41, %cst_18 [1] : vector<8x8xf32> to vector<8xf32>
    %43 = vector.shape_cast %42 : vector<8xf32> to vector<8x1xf32>
    %44 = vector.broadcast %43 : vector<8x1xf32> to vector<8x8xf32>
    %45 = arith.divf %41, %44 : vector<8x8xf32>
    %46 = arith.truncf %45 : vector<8x8xf32> to vector<8x8xbf16>
    %47 = vector.extract_strided_slice %8 {offsets = [0, 8], sizes = [8, 8], strides = [1, 1]} : vector<8x32xbf16> to vector<8x8xbf16>
    %cst_19 = arith.constant dense<0.000000e+00> : vector<8x8xf32>
    %48 = tpu.matmul %46, %47, %cst_19 {dimension_numbers = #tpu.dot_dimension_numbers<[1], [0], [0], [1], [0, 0, 1, 1], [], []>} : vector<8x8xbf16>, vector<8x8xbf16>, vector<8x8xf32> -> vector<8x8xf32>
    %49 = vector.extract_strided_slice %2 {offsets = [0, 16], sizes = [8, 8], strides = [1, 1]} : vector<8x32xbf16> to vector<8x8xbf16>
    %50 = vector.extract_strided_slice %5 {offsets = [0, 16], sizes = [8, 8], strides = [1, 1]} : vector<8x32xbf16> to vector<8x8xbf16>
    %cst_20 = arith.constant dense<0.000000e+00> : vector<8x8xf32>
    %51 = tpu.matmul %49, %50, %cst_20 {dimension_numbers = #tpu.dot_dimension_numbers<[1], [1], [0], [0], [0, 0, 1, 0], [], []>} : vector<8x8xbf16>, vector<8x8xbf16>, vector<8x8xf32> -> vector<8x8xf32>
    %cst_21 = arith.constant 0.353553385 : f32
    %52 = vector.broadcast %cst_21 : f32 to vector<8x8xf32>
    %53 = arith.mulf %51, %52 : vector<8x8xf32>
    %54 = vector.broadcast %10 : vector<1x8xf32> to vector<8x8xf32>
    %55 = arith.addf %53, %54 : vector<8x8xf32>
    %cst_22 = arith.constant dense<0xFF800000> : vector<8xf32>
    %56 = vector.multi_reduction <maximumf>, %55, %cst_22 [1] : vector<8x8xf32> to vector<8xf32>
    %57 = vector.shape_cast %56 : vector<8xf32> to vector<8x1xf32>
    %58 = vector.broadcast %57 : vector<8x1xf32> to vector<8x8xf32>
    %59 = arith.subf %55, %58 : vector<8x8xf32>
    %60 = math.exp %59 : vector<8x8xf32>
    %cst_23 = arith.constant dense<0.000000e+00> : vector<8xf32>
    %61 = vector.multi_reduction <add>, %60, %cst_23 [1] : vector<8x8xf32> to vector<8xf32>
    %62 = vector.shape_cast %61 : vector<8xf32> to vector<8x1xf32>
    %63 = vector.broadcast %62 : vector<8x1xf32> to vector<8x8xf32>
    %64 = arith.divf %60, %63 : vector<8x8xf32>
    %65 = arith.truncf %64 : vector<8x8xf32> to vector<8x8xbf16>
    %66 = vector.extract_strided_slice %8 {offsets = [0, 16], sizes = [8, 8], strides = [1, 1]} : vector<8x32xbf16> to vector<8x8xbf16>
    %cst_24 = arith.constant dense<0.000000e+00> : vector<8x8xf32>
    %67 = tpu.matmul %65, %66, %cst_24 {dimension_numbers = #tpu.dot_dimension_numbers<[1], [0], [0], [1], [0, 0, 1, 1], [], []>} : vector<8x8xbf16>, vector<8x8xbf16>, vector<8x8xf32> -> vector<8x8xf32>
    %68 = vector.extract_strided_slice %2 {offsets = [0, 24], sizes = [8, 8], strides = [1, 1]} : vector<8x32xbf16> to vector<8x8xbf16>
    %69 = vector.extract_strided_slice %5 {offsets = [0, 24], sizes = [8, 8], strides = [1, 1]} : vector<8x32xbf16> to vector<8x8xbf16>
    %cst_25 = arith.constant dense<0.000000e+00> : vector<8x8xf32>
    %70 = tpu.matmul %68, %69, %cst_25 {dimension_numbers = #tpu.dot_dimension_numbers<[1], [1], [0], [0], [0, 0, 1, 0], [], []>} : vector<8x8xbf16>, vector<8x8xbf16>, vector<8x8xf32> -> vector<8x8xf32>
    %cst_26 = arith.constant 0.353553385 : f32
    %71 = vector.broadcast %cst_26 : f32 to vector<8x8xf32>
    %72 = arith.mulf %70, %71 : vector<8x8xf32>
    %73 = vector.broadcast %10 : vector<1x8xf32> to vector<8x8xf32>
    %74 = arith.addf %72, %73 : vector<8x8xf32>
    %cst_27 = arith.constant dense<0xFF800000> : vector<8xf32>
    %75 = vector.multi_reduction <maximumf>, %74, %cst_27 [1] : vector<8x8xf32> to vector<8xf32>
    %76 = vector.shape_cast %75 : vector<8xf32> to vector<8x1xf32>
    %77 = vector.broadcast %76 : vector<8x1xf32> to vector<8x8xf32>
    %78 = arith.subf %74, %77 : vector<8x8xf32>
    %79 = math.exp %78 : vector<8x8xf32>
    %cst_28 = arith.constant dense<0.000000e+00> : vector<8xf32>
    %80 = vector.multi_reduction <add>, %79, %cst_28 [1] : vector<8x8xf32> to vector<8xf32>
    %81 = vector.shape_cast %80 : vector<8xf32> to vector<8x1xf32>
    %82 = vector.broadcast %81 : vector<8x1xf32> to vector<8x8xf32>
    %83 = arith.divf %79, %82 : vector<8x8xf32>
    %84 = arith.truncf %83 : vector<8x8xf32> to vector<8x8xbf16>
    %85 = vector.extract_strided_slice %8 {offsets = [0, 24], sizes = [8, 8], strides = [1, 1]} : vector<8x32xbf16> to vector<8x8xbf16>
    %cst_29 = arith.constant dense<0.000000e+00> : vector<8x8xf32>
    %86 = tpu.matmul %84, %85, %cst_29 {dimension_numbers = #tpu.dot_dimension_numbers<[1], [0], [0], [1], [0, 0, 1, 1], [], []>} : vector<8x8xbf16>, vector<8x8xbf16>, vector<8x8xf32> -> vector<8x8xf32>
    %87 = tpu.concatenate %29, %48, %67, %86 in 1 : vector<8x8xf32>, vector<8x8xf32>, vector<8x8xf32>, vector<8x8xf32> -> vector<8x32xf32>
    %c0_30 = arith.constant 0 : index
    %c0_31 = arith.constant 0 : index
    %c0_32 = arith.constant 0 : index
    %88 = vector.load %arg5[%c0_30, %c0_31, %c0_32] : memref<1x8x32xf32, #tpu.memory_space<vmem>>, vector<1x8x32xf32>
    %89 = vector.shape_cast %88 : vector<1x8x32xf32> to vector<8x32xf32>
    %90 = vector.shape_cast %87 : vector<8x32xf32> to vector<1x8x32xf32>
    tpu.vector_store %arg5[%c0_30, %c0_31, %c0_32], %90 {strides = array<i32>} : memref<1x8x32xf32, #tpu.memory_space<vmem>>, vector<1x8x32xf32>,
    return
  }
  func.func @transform_0(%arg0: i32) -> (i32, i32, i32) {
    %c0_i32 = arith.constant 0 : i32
    %c0_i32_0 = arith.constant 0 : i32
    %c0_i32_1 = arith.constant 0 : i32
    return %arg0, %c0_i32, %c0_i32_0 : i32, i32, i32
  }
  func.func @transform_1(%arg0: i32) -> (i32, i32, i32) {
    %c0_i32 = arith.constant 0 : i32
    %c0_i32_0 = arith.constant 0 : i32
    %c0_i32_1 = arith.constant 0 : i32
    return %arg0, %c0_i32, %c0_i32_0 : i32, i32, i32
  }
  func.func @transform_2(%arg0: i32) -> (i32, i32, i32) {
    %c0_i32 = arith.constant 0 : i32
    %c0_i32_0 = arith.constant 0 : i32
    %c0_i32_1 = arith.constant 0 : i32
    return %arg0, %c0_i32, %c0_i32_0 : i32, i32, i32
  }
  func.func @transform_3(%arg0: i32) -> (i32, i32, i32) {
    %c0_i32 = arith.constant 0 : i32
    %c0_i32_0 = arith.constant 0 : i32
    %c0_i32_1 = arith.constant 0 : i32
    return %arg0, %c0_i32, %c0_i32_0 : i32, i32, i32
  }
  func.func @transform_4(%arg0: i32) -> (i32, i32, i32) {
    %c0_i32 = arith.constant 0 : i32
    %c0_i32_0 = arith.constant 0 : i32
    %c0_i32_1 = arith.constant 0 : i32
    return %arg0, %c0_i32, %c0_i32_0 : i32, i32, i32
  }
}

module attributes {stable_mosaic.version = 11 : i64} {
  func.func @_ffn_kernel(%arg0: i32, %arg1: memref<8x32xf32, #tpu.memory_space<vmem>>, %arg2: memref<32x64xbf16, #tpu.memory_space<vmem>>, %arg3: memref<1x64xf32, #tpu.memory_space<vmem>>, %arg4: memref<64x32xbf16, #tpu.memory_space<vmem>>, %arg5: memref<1x32xf32, #tpu.memory_space<vmem>>, %arg6: memref<1x32xf32, #tpu.memory_space<vmem>>, %arg7: memref<1x32xf32, #tpu.memory_space<vmem>>, %arg8: memref<8x32xf32, #tpu.memory_space<vmem>>) attributes {dimension_semantics = [#tpu.dimension_semantics<parallel>], iteration_bounds = array<i64: 2>, scalar_prefetch = 0 : i64, scratch_operands = 0 : i64, tpu.core_type = #tpu.core_type<tc>, window_params = [{transform_indices = @transform_0, window_bounds = array<i64: 8, 32>}, {pipeline_mode = #tpu.pipeline_mode<synchronous>, transform_indices = @transform_1, window_bounds = array<i64: 32, 64>}, {pipeline_mode = #tpu.pipeline_mode<synchronous>, transform_indices = @transform_2, window_bounds = array<i64: 1, 64>}, {pipeline_mode = #tpu.pipeline_mode<synchronous>, transform_indices = @transform_3, window_bounds = array<i64: 64, 32>}, {pipeline_mode = #tpu.pipeline_mode<synchronous>, transform_indices = @transform_4, window_bounds = array<i64: 1, 32>}, {pipeline_mode = #tpu.pipeline_mode<synchronous>, transform_indices = @transform_5, window_bounds = array<i64: 1, 32>}, {pipeline_mode = #tpu.pipeline_mode<synchronous>, transform_indices = @transform_6, window_bounds = array<i64: 1, 32>}, {transform_indices = @transform_7, window_bounds = array<i64: 8, 32>}]} {
    %c0 = arith.constant 0 : index
    %c0_0 = arith.constant 0 : index
    %0 = vector.load %arg1[%c0, %c0_0] : memref<8x32xf32, #tpu.memory_space<vmem>>, vector<8x32xf32>
    %1 = arith.truncf %0 : vector<8x32xf32> to vector<8x32xbf16>
    %c0_1 = arith.constant 0 : index
    %c0_2 = arith.constant 0 : index
    %2 = vector.load %arg2[%c0_1, %c0_2] : memref<32x64xbf16, #tpu.memory_space<vmem>>, vector<32x64xbf16>
    %cst = arith.constant dense<0.000000e+00> : vector<8x64xf32>
    %3 = tpu.matmul %1, %2, %cst {dimension_numbers = #tpu.dot_dimension_numbers<[1], [0], [0], [1], [0, 0, 1, 1], [], []>} : vector<8x32xbf16>, vector<32x64xbf16>, vector<8x64xf32> -> vector<8x64xf32>
    %c0_3 = arith.constant 0 : index
    %c0_4 = arith.constant 0 : index
    %4 = vector.load %arg3[%c0_3, %c0_4] : memref<1x64xf32, #tpu.memory_space<vmem>>, vector<1x64xf32>
    %5 = vector.broadcast %4 : vector<1x64xf32> to vector<8x64xf32>
    %6 = arith.addf %3, %5 : vector<8x64xf32>
    %cst_5 = arith.constant 5.000000e-01 : f32
    %7 = vector.broadcast %cst_5 : f32 to vector<8x64xf32>
    %8 = arith.mulf %7, %6 : vector<8x64xf32>
    %cst_6 = arith.constant 0.707106769 : f32
    %9 = vector.broadcast %cst_6 : f32 to vector<8x64xf32>
    %10 = arith.mulf %6, %9 : vector<8x64xf32>
    %11 = math.absf %10 : vector<8x64xf32>
    %cst_7 = arith.constant 0.327591091 : f32
    %12 = vector.broadcast %cst_7 : f32 to vector<8x64xf32>
    %13 = arith.mulf %12, %11 : vector<8x64xf32>
    %cst_8 = arith.constant 1.000000e+00 : f32
    %14 = vector.broadcast %cst_8 : f32 to vector<8x64xf32>
    %15 = arith.addf %14, %13 : vector<8x64xf32>
    %cst_9 = arith.constant 1.000000e+00 : f32
    %16 = vector.broadcast %cst_9 : f32 to vector<8x64xf32>
    %17 = arith.divf %16, %15 : vector<8x64xf32>
    %cst_10 = arith.constant 1.06140542 : f32
    %18 = vector.broadcast %cst_10 : f32 to vector<8x64xf32>
    %19 = arith.mulf %18, %17 : vector<8x64xf32>
    %cst_11 = arith.constant -1.45315206 : f32
    %20 = vector.broadcast %cst_11 : f32 to vector<8x64xf32>
    %21 = arith.addf %19, %20 : vector<8x64xf32>
    %22 = arith.mulf %21, %17 : vector<8x64xf32>
    %cst_12 = arith.constant 1.42141378 : f32
    %23 = vector.broadcast %cst_12 : f32 to vector<8x64xf32>
    %24 = arith.addf %22, %23 : vector<8x64xf32>
    %25 = arith.mulf %24, %17 : vector<8x64xf32>
    %cst_13 = arith.constant -0.284496725 : f32
    %26 = vector.broadcast %cst_13 : f32 to vector<8x64xf32>
    %27 = arith.addf %25, %26 : vector<8x64xf32>
    %28 = arith.mulf %27, %17 : vector<8x64xf32>
    %cst_14 = arith.constant 0.254829586 : f32
    %29 = vector.broadcast %cst_14 : f32 to vector<8x64xf32>
    %30 = arith.addf %28, %29 : vector<8x64xf32>
    %31 = arith.mulf %30, %17 : vector<8x64xf32>
    %cst_15 = arith.constant 0.000000e+00 : f32
    %32 = vector.broadcast %cst_15 : f32 to vector<8x64xf32>
    %33 = arith.subf %32, %11 : vector<8x64xf32>
    %34 = arith.mulf %33, %11 : vector<8x64xf32>
    %35 = math.exp %34 : vector<8x64xf32>
    %36 = arith.mulf %31, %35 : vector<8x64xf32>
    %cst_16 = arith.constant 1.000000e+00 : f32
    %37 = vector.broadcast %cst_16 : f32 to vector<8x64xf32>
    %38 = arith.subf %37, %36 : vector<8x64xf32>
    %cst_17 = arith.constant 0.000000e+00 : f32
    %39 = vector.broadcast %cst_17 : f32 to vector<8x64xf32>
    %40 = arith.cmpf oge, %10, %39 : vector<8x64xf32>
    %cst_18 = arith.constant 0.000000e+00 : f32
    %41 = vector.broadcast %cst_18 : f32 to vector<8x64xf32>
    %42 = arith.subf %41, %38 : vector<8x64xf32>
    %43 = arith.select %40, %38, %42 : vector<8x64xi1>, vector<8x64xf32>
    %cst_19 = arith.constant 1.000000e+00 : f32
    %44 = vector.broadcast %cst_19 : f32 to vector<8x64xf32>
    %45 = arith.addf %44, %43 : vector<8x64xf32>
    %46 = arith.mulf %8, %45 : vector<8x64xf32>
    %47 = arith.truncf %46 : vector<8x64xf32> to vector<8x64xbf16>
    %c0_20 = arith.constant 0 : index
    %c0_21 = arith.constant 0 : index
    %48 = vector.load %arg4[%c0_20, %c0_21] : memref<64x32xbf16, #tpu.memory_space<vmem>>, vector<64x32xbf16>
    %cst_22 = arith.constant dense<0.000000e+00> : vector<8x32xf32>
    %49 = tpu.matmul %47, %48, %cst_22 {dimension_numbers = #tpu.dot_dimension_numbers<[1], [0], [0], [1], [0, 0, 1, 1], [], []>} : vector<8x64xbf16>, vector<64x32xbf16>, vector<8x32xf32> -> vector<8x32xf32>
    %c0_23 = arith.constant 0 : index
    %c0_24 = arith.constant 0 : index
    %50 = vector.load %arg5[%c0_23, %c0_24] : memref<1x32xf32, #tpu.memory_space<vmem>>, vector<1x32xf32>
    %51 = vector.broadcast %50 : vector<1x32xf32> to vector<8x32xf32>
    %52 = arith.addf %49, %51 : vector<8x32xf32>
    %53 = arith.addf %52, %0 : vector<8x32xf32>
    %c0_25 = arith.constant 0 : index
    %c0_26 = arith.constant 0 : index
    %54 = vector.load %arg6[%c0_25, %c0_26] : memref<1x32xf32, #tpu.memory_space<vmem>>, vector<1x32xf32>
    %c0_27 = arith.constant 0 : index
    %c0_28 = arith.constant 0 : index
    %55 = vector.load %arg7[%c0_27, %c0_28] : memref<1x32xf32, #tpu.memory_space<vmem>>, vector<1x32xf32>
    %cst_29 = arith.constant dense<0.000000e+00> : vector<8xf32>
    %56 = vector.multi_reduction <add>, %53, %cst_29 [1] : vector<8x32xf32> to vector<8xf32>
    %57 = vector.shape_cast %56 : vector<8xf32> to vector<8x1xf32>
    %cst_30 = arith.constant 3.200000e+01 : f32
    %58 = vector.broadcast %cst_30 : f32 to vector<8x1xf32>
    %59 = arith.divf %57, %58 : vector<8x1xf32>
    %60 = vector.broadcast %59 : vector<8x1xf32> to vector<8x32xf32>
    %61 = arith.subf %53, %60 : vector<8x32xf32>
    %62 = arith.mulf %61, %61 : vector<8x32xf32>
    %cst_31 = arith.constant dense<0.000000e+00> : vector<8xf32>
    %63 = vector.multi_reduction <add>, %62, %cst_31 [1] : vector<8x32xf32> to vector<8xf32>
    %64 = vector.shape_cast %63 : vector<8xf32> to vector<8x1xf32>
    %cst_32 = arith.constant 3.200000e+01 : f32
    %65 = vector.broadcast %cst_32 : f32 to vector<8x1xf32>
    %66 = arith.divf %64, %65 : vector<8x1xf32>
    %67 = vector.broadcast %59 : vector<8x1xf32> to vector<8x32xf32>
    %68 = arith.subf %53, %67 : vector<8x32xf32>
    %cst_33 = arith.constant 9.99999996E-13 : f32
    %69 = vector.broadcast %cst_33 : f32 to vector<8x1xf32>
    %70 = arith.addf %66, %69 : vector<8x1xf32>
    %71 = math.rsqrt %70 : vector<8x1xf32>
    %72 = vector.broadcast %71 : vector<8x1xf32> to vector<8x32xf32>
    %73 = arith.mulf %68, %72 : vector<8x32xf32>
    %74 = vector.broadcast %54 : vector<1x32xf32> to vector<8x32xf32>
    %75 = arith.mulf %73, %74 : vector<8x32xf32>
    %76 = vector.broadcast %55 : vector<1x32xf32> to vector<8x32xf32>
    %77 = arith.addf %75, %76 : vector<8x32xf32>
    %c0_34 = arith.constant 0 : index
    %c0_35 = arith.constant 0 : index
    %78 = vector.load %arg8[%c0_34, %c0_35] : memref<8x32xf32, #tpu.memory_space<vmem>>, vector<8x32xf32>
    tpu.vector_store %arg8[%c0_34, %c0_35], %77 {strides = array<i32>} : memref<8x32xf32, #tpu.memory_space<vmem>>, vector<8x32xf32>,
    return
  }
  func.func @transform_0(%arg0: i32) -> (i32, i32) {
    %c0_i32 = arith.constant 0 : i32
    %c0_i32_0 = arith.constant 0 : i32
    return %arg0, %c0_i32 : i32, i32
  }
  func.func @transform_1(%arg0: i32) -> (i32, i32) {
    %c0_i32 = arith.constant 0 : i32
    %c0_i32_0 = arith.constant 0 : i32
    %c0_i32_1 = arith.constant 0 : i32
    return %c0_i32, %c0_i32_0 : i32, i32
  }
  func.func @transform_2(%arg0: i32) -> (i32, i32) {
    %c0_i32 = arith.constant 0 : i32
    %c0_i32_0 = arith.constant 0 : i32
    %c0_i32_1 = arith.constant 0 : i32
    return %c0_i32, %c0_i32_0 : i32, i32
  }
  func.func @transform_3(%arg0: i32) -> (i32, i32) {
    %c0_i32 = arith.constant 0 : i32
    %c0_i32_0 = arith.constant 0 : i32
    %c0_i32_1 = arith.constant 0 : i32
    return %c0_i32, %c0_i32_0 : i32, i32
  }
  func.func @transform_4(%arg0: i32) -> (i32, i32) {
    %c0_i32 = arith.constant 0 : i32
    %c0_i32_0 = arith.constant 0 : i32
    %c0_i32_1 = arith.constant 0 : i32
    return %c0_i32, %c0_i32_0 : i32, i32
  }
  func.func @transform_5(%arg0: i32) -> (i32, i32) {
    %c0_i32 = arith.constant 0 : i32
    %c0_i32_0 = arith.constant 0 : i32
    %c0_i32_1 = arith.constant 0 : i32
    return %c0_i32, %c0_i32_0 : i32, i32
  }
  func.func @transform_6(%arg0: i32) -> (i32, i32) {
    %c0_i32 = arith.constant 0 : i32
    %c0_i32_0 = arith.constant 0 : i32
    %c0_i32_1 = arith.constant 0 : i32
    return %c0_i32, %c0_i32_0 : i32, i32
  }
  func.func @transform_7(%arg0: i32) -> (i32, i32) {
    %c0_i32 = arith.constant 0 : i32
    %c0_i32_0 = arith.constant 0 : i32
    return %arg0, %c0_i32 : i32, i32
  }
}

module attributes {stable_mosaic.version = 11 : i64} {
  func.func @_mha_kernel(%arg0: i32, %arg1: memref<1x8x64xf32, #tpu.memory_space<vmem>>, %arg2: memref<1x8x64xf32, #tpu.memory_space<vmem>>, %arg3: memref<1x8x64xf32, #tpu.memory_space<vmem>>, %arg4: memref<1x1x8xf32, #tpu.memory_space<vmem>>, %arg5: memref<1x8x64xf32, #tpu.memory_space<vmem>>) attributes {dimension_semantics = [#tpu.dimension_semantics<parallel>], iteration_bounds = array<i64: 2>, scalar_prefetch = 0 : i64, scratch_operands = 0 : i64, tpu.core_type = #tpu.core_type<tc>, window_params = [{transform_indices = @transform_0, window_bounds = array<i64: 1, 8, 64>}, {transform_indices = @transform_1, window_bounds = array<i64: 1, 8, 64>}, {transform_indices = @transform_2, window_bounds = array<i64: 1, 8, 64>}, {transform_indices = @transform_3, window_bounds = array<i64: 1, 1, 8>}, {transform_indices = @transform_4, window_bounds = array<i64: 1, 8, 64>}]} {
    %c0 = arith.constant 0 : index
    %c0_0 = arith.constant 0 : index
    %c0_1 = arith.constant 0 : index
    %0 = vector.load %arg1[%c0, %c0_0, %c0_1] : memref<1x8x64xf32, #tpu.memory_space<vmem>>, vector<1x8x64xf32>
    %1 = vector.shape_cast %0 : vector<1x8x64xf32> to vector<8x64xf32>
    %2 = arith.truncf %1 : vector<8x64xf32> to vector<8x64xbf16>
    %c0_2 = arith.constant 0 : index
    %c0_3 = arith.constant 0 : index
    %c0_4 = arith.constant 0 : index
    %3 = vector.load %arg2[%c0_2, %c0_3, %c0_4] : memref<1x8x64xf32, #tpu.memory_space<vmem>>, vector<1x8x64xf32>
    %4 = vector.shape_cast %3 : vector<1x8x64xf32> to vector<8x64xf32>
    %5 = arith.truncf %4 : vector<8x64xf32> to vector<8x64xbf16>
    %c0_5 = arith.constant 0 : index
    %c0_6 = arith.constant 0 : index
    %c0_7 = arith.constant 0 : index
    %6 = vector.load %arg3[%c0_5, %c0_6, %c0_7] : memref<1x8x64xf32, #tpu.memory_space<vmem>>, vector<1x8x64xf32>
    %7 = vector.shape_cast %6 : vector<1x8x64xf32> to vector<8x64xf32>
    %8 = arith.truncf %7 : vector<8x64xf32> to vector<8x64xbf16>
    %c0_8 = arith.constant 0 : index
    %c0_9 = arith.constant 0 : index
    %c0_10 = arith.constant 0 : index
    %9 = vector.load %arg4[%c0_8, %c0_9, %c0_10] : memref<1x1x8xf32, #tpu.memory_space<vmem>>, vector<1x1x8xf32>
    %10 = vector.shape_cast %9 : vector<1x1x8xf32> to vector<1x8xf32>
    %11 = vector.extract_strided_slice %2 {offsets = [0, 0], sizes = [8, 16], strides = [1, 1]} : vector<8x64xbf16> to vector<8x16xbf16>
    %12 = vector.extract_strided_slice %5 {offsets = [0, 0], sizes = [8, 16], strides = [1, 1]} : vector<8x64xbf16> to vector<8x16xbf16>
    %cst = arith.constant dense<0.000000e+00> : vector<8x8xf32>
    %13 = tpu.matmul %11, %12, %cst {dimension_numbers = #tpu.dot_dimension_numbers<[1], [1], [0], [0], [0, 0, 1, 0], [], []>} : vector<8x16xbf16>, vector<8x16xbf16>, vector<8x8xf32> -> vector<8x8xf32>
    %cst_11 = arith.constant 2.500000e-01 : f32
    %14 = vector.broadcast %cst_11 : f32 to vector<8x8xf32>
    %15 = arith.mulf %13, %14 : vector<8x8xf32>
    %16 = vector.broadcast %10 : vector<1x8xf32> to vector<8x8xf32>
    %17 = arith.addf %15, %16 : vector<8x8xf32>
    %cst_12 = arith.constant dense<0xFF800000> : vector<8xf32>
    %18 = vector.multi_reduction <maximumf>, %17, %cst_12 [1] : vector<8x8xf32> to vector<8xf32>
    %19 = vector.shape_cast %18 : vector<8xf32> to vector<8x1xf32>
    %20 = vector.broadcast %19 : vector<8x1xf32> to vector<8x8xf32>
    %21 = arith.subf %17, %20 : vector<8x8xf32>
    %22 = math.exp %21 : vector<8x8xf32>
    %cst_13 = arith.constant dense<0.000000e+00> : vector<8xf32>
    %23 = vector.multi_reduction <add>, %22, %cst_13 [1] : vector<8x8xf32> to vector<8xf32>
    %24 = vector.shape_cast %23 : vector<8xf32> to vector<8x1xf32>
    %25 = vector.broadcast %24 : vector<8x1xf32> to vector<8x8xf32>
    %26 = arith.divf %22, %25 : vector<8x8xf32>
    %27 = arith.truncf %26 : vector<8x8xf32> to vector<8x8xbf16>
    %28 = vector.extract_strided_slice %8 {offsets = [0, 0], sizes = [8, 16], strides = [1, 1]} : vector<8x64xbf16> to vector<8x16xbf16>
    %cst_14 = arith.constant dense<0.000000e+00> : vector<8x16xf32>
    %29 = tpu.matmul %27, %28, %cst_14 {dimension_numbers = #tpu.dot_dimension_numbers<[1], [0], [0], [1], [0, 0, 1, 1], [], []>} : vector<8x8xbf16>, vector<8x16xbf16>, vector<8x16xf32> -> vector<8x16xf32>
    %30 = vector.extract_strided_slice %2 {offsets = [0, 16], sizes = [8, 16], strides = [1, 1]} : vector<8x64xbf16> to vector<8x16xbf16>
    %31 = vector.extract_strided_slice %5 {offsets = [0, 16], sizes = [8, 16], strides = [1, 1]} : vector<8x64xbf16> to vector<8x16xbf16>
    %cst_15 = arith.constant dense<0.000000e+00> : vector<8x8xf32>
    %32 = tpu.matmul %30, %31, %cst_15 {dimension_numbers = #tpu.dot_dimension_numbers<[1], [1], [0], [0], [0, 0, 1, 0], [], []>} : vector<8x16xbf16>, vector<8x16xbf16>, vector<8x8xf32> -> vector<8x8xf32>
    %cst_16 = arith.constant 2.500000e-01 : f32
    %33 = vector.broadcast %cst_16 : f32 to vector<8x8xf32>
    %34 = arith.mulf %32, %33 : vector<8x8xf32>
    %35 = vector.broadcast %10 : vector<1x8xf32> to vector<8x8xf32>
    %36 = arith.addf %34, %35 : vector<8x8xf32>
    %cst_17 = arith.constant dense<0xFF800000> : vector<8xf32>
    %37 = vector.multi_reduction <maximumf>, %36, %cst_17 [1] : vector<8x8xf32> to vector<8xf32>
    %38 = vector.shape_cast %37 : vector<8xf32> to vector<8x1xf32>
    %39 = vector.broadcast %38 : vector<8x1xf32> to vector<8x8xf32>
    %40 = arith.subf %36, %39 : vector<8x8xf32>
    %41 = math.exp %40 : vector<8x8xf32>
    %cst_18 = arith.constant dense<0.000000e+00> : vector<8xf32>
    %42 = vector.multi_reduction <add>, %41, %cst_18 [1] : vector<8x8xf32> to vector<8xf32>
    %43 = vector.shape_cast %42 : vector<8xf32> to vector<8x1xf32>
    %44 = vector.broadcast %43 : vector<8x1xf32> to vector<8x8xf32>
    %45 = arith.divf %41, %44 : vector<8x8xf32>
    %46 = arith.truncf %45 : vector<8x8xf32> to vector<8x8xbf16>
    %47 = vector.extract_strided_slice %8 {offsets = [0, 16], sizes = [8, 16], strides = [1, 1]} : vector<8x64xbf16> to vector<8x16xbf16>
    %cst_19 = arith.constant dense<0.000000e+00> : vector<8x16xf32>
    %48 = tpu.matmul %46, %47, %cst_19 {dimension_numbers = #tpu.dot_dimension_numbers<[1], [0], [0], [1], [0, 0, 1, 1], [], []>} : vector<8x8xbf16>, vector<8x16xbf16>, vector<8x16xf32> -> vector<8x16xf32>
    %49 = vector.extract_strided_slice %2 {offsets = [0, 32], sizes = [8, 16], strides = [1, 1]} : vector<8x64xbf16> to vector<8x16xbf16>
    %50 = vector.extract_strided_slice %5 {offsets = [0, 32], sizes = [8, 16], strides = [1, 1]} : vector<8x64xbf16> to vector<8x16xbf16>
    %cst_20 = arith.constant dense<0.000000e+00> : vector<8x8xf32>
    %51 = tpu.matmul %49, %50, %cst_20 {dimension_numbers = #tpu.dot_dimension_numbers<[1], [1], [0], [0], [0, 0, 1, 0], [], []>} : vector<8x16xbf16>, vector<8x16xbf16>, vector<8x8xf32> -> vector<8x8xf32>
    %cst_21 = arith.constant 2.500000e-01 : f32
    %52 = vector.broadcast %cst_21 : f32 to vector<8x8xf32>
    %53 = arith.mulf %51, %52 : vector<8x8xf32>
    %54 = vector.broadcast %10 : vector<1x8xf32> to vector<8x8xf32>
    %55 = arith.addf %53, %54 : vector<8x8xf32>
    %cst_22 = arith.constant dense<0xFF800000> : vector<8xf32>
    %56 = vector.multi_reduction <maximumf>, %55, %cst_22 [1] : vector<8x8xf32> to vector<8xf32>
    %57 = vector.shape_cast %56 : vector<8xf32> to vector<8x1xf32>
    %58 = vector.broadcast %57 : vector<8x1xf32> to vector<8x8xf32>
    %59 = arith.subf %55, %58 : vector<8x8xf32>
    %60 = math.exp %59 : vector<8x8xf32>
    %cst_23 = arith.constant dense<0.000000e+00> : vector<8xf32>
    %61 = vector.multi_reduction <add>, %60, %cst_23 [1] : vector<8x8xf32> to vector<8xf32>
    %62 = vector.shape_cast %61 : vector<8xf32> to vector<8x1xf32>
    %63 = vector.broadcast %62 : vector<8x1xf32> to vector<8x8xf32>
    %64 = arith.divf %60, %63 : vector<8x8xf32>
    %65 = arith.truncf %64 : vector<8x8xf32> to vector<8x8xbf16>
    %66 = vector.extract_strided_slice %8 {offsets = [0, 32], sizes = [8, 16], strides = [1, 1]} : vector<8x64xbf16> to vector<8x16xbf16>
    %cst_24 = arith.constant dense<0.000000e+00> : vector<8x16xf32>
    %67 = tpu.matmul %65, %66, %cst_24 {dimension_numbers = #tpu.dot_dimension_numbers<[1], [0], [0], [1], [0, 0, 1, 1], [], []>} : vector<8x8xbf16>, vector<8x16xbf16>, vector<8x16xf32> -> vector<8x16xf32>
    %68 = vector.extract_strided_slice %2 {offsets = [0, 48], sizes = [8, 16], strides = [1, 1]} : vector<8x64xbf16> to vector<8x16xbf16>
    %69 = vector.extract_strided_slice %5 {offsets = [0, 48], sizes = [8, 16], strides = [1, 1]} : vector<8x64xbf16> to vector<8x16xbf16>
    %cst_25 = arith.constant dense<0.000000e+00> : vector<8x8xf32>
    %70 = tpu.matmul %68, %69, %cst_25 {dimension_numbers = #tpu.dot_dimension_numbers<[1], [1], [0], [0], [0, 0, 1, 0], [], []>} : vector<8x16xbf16>, vector<8x16xbf16>, vector<8x8xf32> -> vector<8x8xf32>
    %cst_26 = arith.constant 2.500000e-01 : f32
    %71 = vector.broadcast %cst_26 : f32 to vector<8x8xf32>
    %72 = arith.mulf %70, %71 : vector<8x8xf32>
    %73 = vector.broadcast %10 : vector<1x8xf32> to vector<8x8xf32>
    %74 = arith.addf %72, %73 : vector<8x8xf32>
    %cst_27 = arith.constant dense<0xFF800000> : vector<8xf32>
    %75 = vector.multi_reduction <maximumf>, %74, %cst_27 [1] : vector<8x8xf32> to vector<8xf32>
    %76 = vector.shape_cast %75 : vector<8xf32> to vector<8x1xf32>
    %77 = vector.broadcast %76 : vector<8x1xf32> to vector<8x8xf32>
    %78 = arith.subf %74, %77 : vector<8x8xf32>
    %79 = math.exp %78 : vector<8x8xf32>
    %cst_28 = arith.constant dense<0.000000e+00> : vector<8xf32>
    %80 = vector.multi_reduction <add>, %79, %cst_28 [1] : vector<8x8xf32> to vector<8xf32>
    %81 = vector.shape_cast %80 : vector<8xf32> to vector<8x1xf32>
    %82 = vector.broadcast %81 : vector<8x1xf32> to vector<8x8xf32>
    %83 = arith.divf %79, %82 : vector<8x8xf32>
    %84 = arith.truncf %83 : vector<8x8xf32> to vector<8x8xbf16>
    %85 = vector.extract_strided_slice %8 {offsets = [0, 48], sizes = [8, 16], strides = [1, 1]} : vector<8x64xbf16> to vector<8x16xbf16>
    %cst_29 = arith.constant dense<0.000000e+00> : vector<8x16xf32>
    %86 = tpu.matmul %84, %85, %cst_29 {dimension_numbers = #tpu.dot_dimension_numbers<[1], [0], [0], [1], [0, 0, 1, 1], [], []>} : vector<8x8xbf16>, vector<8x16xbf16>, vector<8x16xf32> -> vector<8x16xf32>
    %87 = tpu.concatenate %29, %48, %67, %86 in 1 : vector<8x16xf32>, vector<8x16xf32>, vector<8x16xf32>, vector<8x16xf32> -> vector<8x64xf32>
    %c0_30 = arith.constant 0 : index
    %c0_31 = arith.constant 0 : index
    %c0_32 = arith.constant 0 : index
    %88 = vector.load %arg5[%c0_30, %c0_31, %c0_32] : memref<1x8x64xf32, #tpu.memory_space<vmem>>, vector<1x8x64xf32>
    %89 = vector.shape_cast %88 : vector<1x8x64xf32> to vector<8x64xf32>
    %90 = vector.shape_cast %87 : vector<8x64xf32> to vector<1x8x64xf32>
    tpu.vector_store %arg5[%c0_30, %c0_31, %c0_32], %90 {strides = array<i32>} : memref<1x8x64xf32, #tpu.memory_space<vmem>>, vector<1x8x64xf32>,
    return
  }
  func.func @transform_0(%arg0: i32) -> (i32, i32, i32) {
    %c0_i32 = arith.constant 0 : i32
    %c0_i32_0 = arith.constant 0 : i32
    %c0_i32_1 = arith.constant 0 : i32
    return %arg0, %c0_i32, %c0_i32_0 : i32, i32, i32
  }
  func.func @transform_1(%arg0: i32) -> (i32, i32, i32) {
    %c0_i32 = arith.constant 0 : i32
    %c0_i32_0 = arith.constant 0 : i32
    %c0_i32_1 = arith.constant 0 : i32
    return %arg0, %c0_i32, %c0_i32_0 : i32, i32, i32
  }
  func.func @transform_2(%arg0: i32) -> (i32, i32, i32) {
    %c0_i32 = arith.constant 0 : i32
    %c0_i32_0 = arith.constant 0 : i32
    %c0_i32_1 = arith.constant 0 : i32
    return %arg0, %c0_i32, %c0_i32_0 : i32, i32, i32
  }
  func.func @transform_3(%arg0: i32) -> (i32, i32, i32) {
    %c0_i32 = arith.constant 0 : i32
    %c0_i32_0 = arith.constant 0 : i32
    %c0_i32_1 = arith.constant 0 : i32
    return %arg0, %c0_i32, %c0_i32_0 : i32, i32, i32
  }
  func.func @transform_4(%arg0: i32) -> (i32, i32, i32) {
    %c0_i32 = arith.constant 0 : i32
    %c0_i32_0 = arith.constant 0 : i32
    %c0_i32_1 = arith.constant 0 : i32
    return %arg0, %c0_i32, %c0_i32_0 : i32, i32, i32
  }
}

module attributes {stable_mosaic.version = 11 : i64} {
  func.func @_linear_residual_ln_kernel(%arg0: i32, %arg1: memref<8x64xf32, #tpu.memory_space<vmem>>, %arg2: memref<8x64xf32, #tpu.memory_space<vmem>>, %arg3: memref<64x64xbf16, #tpu.memory_space<vmem>>, %arg4: memref<1x64xf32, #tpu.memory_space<vmem>>, %arg5: memref<1x64xf32, #tpu.memory_space<vmem>>, %arg6: memref<1x64xf32, #tpu.memory_space<vmem>>, %arg7: memref<8x64xf32, #tpu.memory_space<vmem>>) attributes {dimension_semantics = [#tpu.dimension_semantics<parallel>], iteration_bounds = array<i64: 2>, scalar_prefetch = 0 : i64, scratch_operands = 0 : i64, tpu.core_type = #tpu.core_type<tc>, window_params = [{transform_indices = @transform_0, window_bounds = array<i64: 8, 64>}, {transform_indices = @transform_1, window_bounds = array<i64: 8, 64>}, {pipeline_mode = #tpu.pipeline_mode<synchronous>, transform_indices = @transform_2, window_bounds = array<i64: 64, 64>}, {pipeline_mode = #tpu.pipeline_mode<synchronous>, transform_indices = @transform_3, window_bounds = array<i64: 1, 64>}, {pipeline_mode = #tpu.pipeline_mode<synchronous>, transform_indices = @transform_4, window_bounds = array<i64: 1, 64>}, {pipeline_mode = #tpu.pipeline_mode<synchronous>, transform_indices = @transform_5, window_bounds = array<i64: 1, 64>}, {transform_indices = @transform_6, window_bounds = array<i64: 8, 64>}]} {
    %c0 = arith.constant 0 : index
    %c0_0 = arith.constant 0 : index
    %0 = vector.load %arg1[%c0, %c0_0] : memref<8x64xf32, #tpu.memory_space<vmem>>, vector<8x64xf32>
    %1 = arith.truncf %0 : vector<8x64xf32> to vector<8x64xbf16>
    %c0_1 = arith.constant 0 : index
    %c0_2 = arith.constant 0 : index
    %2 = vector.load %arg3[%c0_1, %c0_2] : memref<64x64xbf16, #tpu.memory_space<vmem>>, vector<64x64xbf16>
    %cst = arith.constant dense<0.000000e+00> : vector<8x64xf32>
    %3 = tpu.matmul %1, %2, %cst {dimension_numbers = #tpu.dot_dimension_numbers<[1], [0], [0], [1], [0, 0, 1, 1], [], []>} : vector<8x64xbf16>, vector<64x64xbf16>, vector<8x64xf32> -> vector<8x64xf32>
    %c0_3 = arith.constant 0 : index
    %c0_4 = arith.constant 0 : index
    %4 = vector.load %arg4[%c0_3, %c0_4] : memref<1x64xf32, #tpu.memory_space<vmem>>, vector<1x64xf32>
    %5 = vector.broadcast %4 : vector<1x64xf32> to vector<8x64xf32>
    %6 = arith.addf %3, %5 : vector<8x64xf32>
    %c0_5 = arith.constant 0 : index
    %c0_6 = arith.constant 0 : index
    %7 = vector.load %arg2[%c0_5, %c0_6] : memref<8x64xf32, #tpu.memory_space<vmem>>, vector<8x64xf32>
    %8 = arith.addf %6, %7 : vector<8x64xf32>
    %c0_7 = arith.constant 0 : index
    %c0_8 = arith.constant 0 : index
    %9 = vector.load %arg5[%c0_7, %c0_8] : memref<1x64xf32, #tpu.memory_space<vmem>>, vector<1x64xf32>
    %c0_9 = arith.constant 0 : index
    %c0_10 = arith.constant 0 : index
    %10 = vector.load %arg6[%c0_9, %c0_10] : memref<1x64xf32, #tpu.memory_space<vmem>>, vector<1x64xf32>
    %cst_11 = arith.constant dense<0.000000e+00> : vector<8xf32>
    %11 = vector.multi_reduction <add>, %8, %cst_11 [1] : vector<8x64xf32> to vector<8xf32>
    %12 = vector.shape_cast %11 : vector<8xf32> to vector<8x1xf32>
    %cst_12 = arith.constant 6.400000e+01 : f32
    %13 = vector.broadcast %cst_12 : f32 to vector<8x1xf32>
    %14 = arith.divf %12, %13 : vector<8x1xf32>
    %15 = vector.broadcast %14 : vector<8x1xf32> to vector<8x64xf32>
    %16 = arith.subf %8, %15 : vector<8x64xf32>
    %17 = arith.mulf %16, %16 : vector<8x64xf32>
    %cst_13 = arith.constant dense<0.000000e+00> : vector<8xf32>
    %18 = vector.multi_reduction <add>, %17, %cst_13 [1] : vector<8x64xf32> to vector<8xf32>
    %19 = vector.shape_cast %18 : vector<8xf32> to vector<8x1xf32>
    %cst_14 = arith.constant 6.400000e+01 : f32
    %20 = vector.broadcast %cst_14 : f32 to vector<8x1xf32>
    %21 = arith.divf %19, %20 : vector<8x1xf32>
    %22 = vector.broadcast %14 : vector<8x1xf32> to vector<8x64xf32>
    %23 = arith.subf %8, %22 : vector<8x64xf32>
    %cst_15 = arith.constant 9.99999996E-13 : f32
    %24 = vector.broadcast %cst_15 : f32 to vector<8x1xf32>
    %25 = arith.addf %21, %24 : vector<8x1xf32>
    %26 = math.rsqrt %25 : vector<8x1xf32>
    %27 = vector.broadcast %26 : vector<8x1xf32> to vector<8x64xf32>
    %28 = arith.mulf %23, %27 : vector<8x64xf32>
    %29 = vector.broadcast %9 : vector<1x64xf32> to vector<8x64xf32>
    %30 = arith.mulf %28, %29 : vector<8x64xf32>
    %31 = vector.broadcast %10 : vector<1x64xf32> to vector<8x64xf32>
    %32 = arith.addf %30, %31 : vector<8x64xf32>
    %c0_16 = arith.constant 0 : index
    %c0_17 = arith.constant 0 : index
    %33 = vector.load %arg7[%c0_16, %c0_17] : memref<8x64xf32, #tpu.memory_space<vmem>>, vector<8x64xf32>
    tpu.vector_store %arg7[%c0_16, %c0_17], %32 {strides = array<i32>} : memref<8x64xf32, #tpu.memory_space<vmem>>, vector<8x64xf32>,
    return
  }
  func.func @transform_0(%arg0: i32) -> (i32, i32) {
    %c0_i32 = arith.constant 0 : i32
    %c0_i32_0 = arith.constant 0 : i32
    return %arg0, %c0_i32 : i32, i32
  }
  func.func @transform_1(%arg0: i32) -> (i32, i32) {
    %c0_i32 = arith.constant 0 : i32
    %c0_i32_0 = arith.constant 0 : i32
    return %arg0, %c0_i32 : i32, i32
  }
  func.func @transform_2(%arg0: i32) -> (i32, i32) {
    %c0_i32 = arith.constant 0 : i32
    %c0_i32_0 = arith.constant 0 : i32
    %c0_i32_1 = arith.constant 0 : i32
    return %c0_i32, %c0_i32_0 : i32, i32
  }
  func.func @transform_3(%arg0: i32) -> (i32, i32) {
    %c0_i32 = arith.constant 0 : i32
    %c0_i32_0 = arith.constant 0 : i32
    %c0_i32_1 = arith.constant 0 : i32
    return %c0_i32, %c0_i32_0 : i32, i32
  }
  func.func @transform_4(%arg0: i32) -> (i32, i32) {
    %c0_i32 = arith.constant 0 : i32
    %c0_i32_0 = arith.constant 0 : i32
    %c0_i32_1 = arith.constant 0 : i32
    return %c0_i32, %c0_i32_0 : i32, i32
  }
  func.func @transform_5(%arg0: i32) -> (i32, i32) {
    %c0_i32 = arith.constant 0 : i32
    %c0_i32_0 = arith.constant 0 : i32
    %c0_i32_1 = arith.constant 0 : i32
    return %c0_i32, %c0_i32_0 : i32, i32
  }
  func.func @transform_6(%arg0: i32) -> (i32, i32) {
    %c0_i32 = arith.constant 0 : i32
    %c0_i32_0 = arith.constant 0 : i32
    return %arg0, %c0_i32 : i32, i32
  }
}

module attributes {stable_mosaic.version = 11 : i64} {
  func.func @_qkv_kernel(%arg0: i32, %arg1: memref<8x64xf32, #tpu.memory_space<vmem>>, %arg2: memref<64x64xbf16, #tpu.memory_space<vmem>>, %arg3: memref<1x64xf32, #tpu.memory_space<vmem>>, %arg4: memref<64x64xbf16, #tpu.memory_space<vmem>>, %arg5: memref<1x64xf32, #tpu.memory_space<vmem>>, %arg6: memref<64x64xbf16, #tpu.memory_space<vmem>>, %arg7: memref<1x64xf32, #tpu.memory_space<vmem>>, %arg8: memref<8x64xf32, #tpu.memory_space<vmem>>, %arg9: memref<8x64xf32, #tpu.memory_space<vmem>>, %arg10: memref<8x64xf32, #tpu.memory_space<vmem>>) attributes {dimension_semantics = [#tpu.dimension_semantics<parallel>], iteration_bounds = array<i64: 2>, scalar_prefetch = 0 : i64, scratch_operands = 0 : i64, tpu.core_type = #tpu.core_type<tc>, window_params = [{transform_indices = @transform_0, window_bounds = array<i64: 8, 64>}, {pipeline_mode = #tpu.pipeline_mode<synchronous>, transform_indices = @transform_1, window_bounds = array<i64: 64, 64>}, {pipeline_mode = #tpu.pipeline_mode<synchronous>, transform_indices = @transform_2, window_bounds = array<i64: 1, 64>}, {pipeline_mode = #tpu.pipeline_mode<synchronous>, transform_indices = @transform_3, window_bounds = array<i64: 64, 64>}, {pipeline_mode = #tpu.pipeline_mode<synchronous>, transform_indices = @transform_4, window_bounds = array<i64: 1, 64>}, {pipeline_mode = #tpu.pipeline_mode<synchronous>, transform_indices = @transform_5, window_bounds = array<i64: 64, 64>}, {pipeline_mode = #tpu.pipeline_mode<synchronous>, transform_indices = @transform_6, window_bounds = array<i64: 1, 64>}, {transform_indices = @transform_7, window_bounds = array<i64: 8, 64>}, {transform_indices = @transform_8, window_bounds = array<i64: 8, 64>}, {transform_indices = @transform_9, window_bounds = array<i64: 8, 64>}]} {
    %c0 = arith.constant 0 : index
    %c0_0 = arith.constant 0 : index
    %0 = vector.load %arg1[%c0, %c0_0] : memref<8x64xf32, #tpu.memory_space<vmem>>, vector<8x64xf32>
    %1 = arith.truncf %0 : vector<8x64xf32> to vector<8x64xbf16>
    %c0_1 = arith.constant 0 : index
    %c0_2 = arith.constant 0 : index
    %2 = vector.load %arg2[%c0_1, %c0_2] : memref<64x64xbf16, #tpu.memory_space<vmem>>, vector<64x64xbf16>
    %cst = arith.constant dense<0.000000e+00> : vector<8x64xf32>
    %3 = tpu.matmul %1, %2, %cst {dimension_numbers = #tpu.dot_dimension_numbers<[1], [0], [0], [1], [0, 0, 1, 1], [], []>} : vector<8x64xbf16>, vector<64x64xbf16>, vector<8x64xf32> -> vector<8x64xf32>
    %c0_3 = arith.constant 0 : index
    %c0_4 = arith.constant 0 : index
    %4 = vector.load %arg3[%c0_3, %c0_4] : memref<1x64xf32, #tpu.memory_space<vmem>>, vector<1x64xf32>
    %5 = vector.broadcast %4 : vector<1x64xf32> to vector<8x64xf32>
    %6 = arith.addf %3, %5 : vector<8x64xf32>
    %c0_5 = arith.constant 0 : index
    %c0_6 = arith.constant 0 : index
    %7 = vector.load %arg8[%c0_5, %c0_6] : memref<8x64xf32, #tpu.memory_space<vmem>>, vector<8x64xf32>
    tpu.vector_store %arg8[%c0_5, %c0_6], %6 {strides = array<i32>} : memref<8x64xf32, #tpu.memory_space<vmem>>, vector<8x64xf32>,
    %c0_7 = arith.constant 0 : index
    %c0_8 = arith.constant 0 : index
    %8 = vector.load %arg4[%c0_7, %c0_8] : memref<64x64xbf16, #tpu.memory_space<vmem>>, vector<64x64xbf16>
    %cst_9 = arith.constant dense<0.000000e+00> : vector<8x64xf32>
    %9 = tpu.matmul %1, %8, %cst_9 {dimension_numbers = #tpu.dot_dimension_numbers<[1], [0], [0], [1], [0, 0, 1, 1], [], []>} : vector<8x64xbf16>, vector<64x64xbf16>, vector<8x64xf32> -> vector<8x64xf32>
    %c0_10 = arith.constant 0 : index
    %c0_11 = arith.constant 0 : index
    %10 = vector.load %arg5[%c0_10, %c0_11] : memref<1x64xf32, #tpu.memory_space<vmem>>, vector<1x64xf32>
    %11 = vector.broadcast %10 : vector<1x64xf32> to vector<8x64xf32>
    %12 = arith.addf %9, %11 : vector<8x64xf32>
    %c0_12 = arith.constant 0 : index
    %c0_13 = arith.constant 0 : index
    %13 = vector.load %arg9[%c0_12, %c0_13] : memref<8x64xf32, #tpu.memory_space<vmem>>, vector<8x64xf32>
    tpu.vector_store %arg9[%c0_12, %c0_13], %12 {strides = array<i32>} : memref<8x64xf32, #tpu.memory_space<vmem>>, vector<8x64xf32>,
    %c0_14 = arith.constant 0 : index
    %c0_15 = arith.constant 0 : index
    %14 = vector.load %arg6[%c0_14, %c0_15] : memref<64x64xbf16, #tpu.memory_space<vmem>>, vector<64x64xbf16>
    %cst_16 = arith.constant dense<0.000000e+00> : vector<8x64xf32>
    %15 = tpu.matmul %1, %14, %cst_16 {dimension_numbers = #tpu.dot_dimension_numbers<[1], [0], [0], [1], [0, 0, 1, 1], [], []>} : vector<8x64xbf16>, vector<64x64xbf16>, vector<8x64xf32> -> vector<8x64xf32>
    %c0_17 = arith.constant 0 : index
    %c0_18 = arith.constant 0 : index
    %16 = vector.load %arg7[%c0_17, %c0_18] : memref<1x64xf32, #tpu.memory_space<vmem>>, vector<1x64xf32>
    %17 = vector.broadcast %16 : vector<1x64xf32> to vector<8x64xf32>
    %18 = arith.addf %15, %17 : vector<8x64xf32>
    %c0_19 = arith.constant 0 : index
    %c0_20 = arith.constant 0 : index
    %19 = vector.load %arg10[%c0_19, %c0_20] : memref<8x64xf32, #tpu.memory_space<vmem>>, vector<8x64xf32>
    tpu.vector_store %arg10[%c0_19, %c0_20], %18 {strides = array<i32>} : memref<8x64xf32, #tpu.memory_space<vmem>>, vector<8x64xf32>,
    return
  }
  func.func @transform_0(%arg0: i32) -> (i32, i32) {
    %c0_i32 = arith.constant 0 : i32
    %c0_i32_0 = arith.constant 0 : i32
    return %arg0, %c0_i32 : i32, i32
  }
  func.func @transform_1(%arg0: i32) -> (i32, i32) {
    %c0_i32 = arith.constant 0 : i32
    %c0_i32_0 = arith.constant 0 : i32
    %c0_i32_1 = arith.constant 0 : i32
    return %c0_i32, %c0_i32_0 : i32, i32
  }
  func.func @transform_2(%arg0: i32) -> (i32, i32) {
    %c0_i32 = arith.constant 0 : i32
    %c0_i32_0 = arith.constant 0 : i32
    %c0_i32_1 = arith.constant 0 : i32
    return %c0_i32, %c0_i32_0 : i32, i32
  }
  func.func @transform_3(%arg0: i32) -> (i32, i32) {
    %c0_i32 = arith.constant 0 : i32
    %c0_i32_0 = arith.constant 0 : i32
    %c0_i32_1 = arith.constant 0 : i32
    return %c0_i32, %c0_i32_0 : i32, i32
  }
  func.func @transform_4(%arg0: i32) -> (i32, i32) {
    %c0_i32 = arith.constant 0 : i32
    %c0_i32_0 = arith.constant 0 : i32
    %c0_i32_1 = arith.constant 0 : i32
    return %c0_i32, %c0_i32_0 : i32, i32
  }
  func.func @transform_5(%arg0: i32) -> (i32, i32) {
    %c0_i32 = arith.constant 0 : i32
    %c0_i32_0 = arith.constant 0 : i32
    %c0_i32_1 = arith.constant 0 : i32
    return %c0_i32, %c0_i32_0 : i32, i32
  }
  func.func @transform_6(%arg0: i32) -> (i32, i32) {
    %c0_i32 = arith.constant 0 : i32
    %c0_i32_0 = arith.constant 0 : i32
    %c0_i32_1 = arith.constant 0 : i32
    return %c0_i32, %c0_i32_0 : i32, i32
  }
  func.func @transform_7(%arg0: i32) -> (i32, i32) {
    %c0_i32 = arith.constant 0 : i32
    %c0_i32_0 = arith.constant 0 : i32
    return %arg0, %c0_i32 : i32, i32
  }
  func.func @transform_8(%arg0: i32) -> (i32, i32) {
    %c0_i32 = arith.constant 0 : i32
    %c0_i32_0 = arith.constant 0 : i32
    return %arg0, %c0_i32 : i32, i32
  }
  func.func @transform_9(%arg0: i32) -> (i32, i32) {
    %c0_i32 = arith.constant 0 : i32
    %c0_i32_0 = arith.constant 0 : i32
    return %arg0, %c0_i32 : i32, i32
  }
}

module attributes {stable_mosaic.version = 11 : i64} {
  func.func @_ffn_kernel(%arg0: i32, %arg1: memref<8x64xf32, #tpu.memory_space<vmem>>, %arg2: memref<64x128xbf16, #tpu.memory_space<vmem>>, %arg3: memref<1x128xf32, #tpu.memory_space<vmem>>, %arg4: memref<128x64xbf16, #tpu.memory_space<vmem>>, %arg5: memref<1x64xf32, #tpu.memory_space<vmem>>, %arg6: memref<1x64xf32, #tpu.memory_space<vmem>>, %arg7: memref<1x64xf32, #tpu.memory_space<vmem>>, %arg8: memref<8x64xf32, #tpu.memory_space<vmem>>) attributes {dimension_semantics = [#tpu.dimension_semantics<parallel>], iteration_bounds = array<i64: 2>, scalar_prefetch = 0 : i64, scratch_operands = 0 : i64, tpu.core_type = #tpu.core_type<tc>, window_params = [{transform_indices = @transform_0, window_bounds = array<i64: 8, 64>}, {pipeline_mode = #tpu.pipeline_mode<synchronous>, transform_indices = @transform_1, window_bounds = array<i64: 64, 128>}, {pipeline_mode = #tpu.pipeline_mode<synchronous>, transform_indices = @transform_2, window_bounds = array<i64: 1, 128>}, {pipeline_mode = #tpu.pipeline_mode<synchronous>, transform_indices = @transform_3, window_bounds = array<i64: 128, 64>}, {pipeline_mode = #tpu.pipeline_mode<synchronous>, transform_indices = @transform_4, window_bounds = array<i64: 1, 64>}, {pipeline_mode = #tpu.pipeline_mode<synchronous>, transform_indices = @transform_5, window_bounds = array<i64: 1, 64>}, {pipeline_mode = #tpu.pipeline_mode<synchronous>, transform_indices = @transform_6, window_bounds = array<i64: 1, 64>}, {transform_indices = @transform_7, window_bounds = array<i64: 8, 64>}]} {
    %c0 = arith.constant 0 : index
    %c0_0 = arith.constant 0 : index
    %0 = vector.load %arg1[%c0, %c0_0] : memref<8x64xf32, #tpu.memory_space<vmem>>, vector<8x64xf32>
    %1 = arith.truncf %0 : vector<8x64xf32> to vector<8x64xbf16>
    %c0_1 = arith.constant 0 : index
    %c0_2 = arith.constant 0 : index
    %2 = vector.load %arg2[%c0_1, %c0_2] : memref<64x128xbf16, #tpu.memory_space<vmem>>, vector<64x128xbf16>
    %cst = arith.constant dense<0.000000e+00> : vector<8x128xf32>
    %3 = tpu.matmul %1, %2, %cst {dimension_numbers = #tpu.dot_dimension_numbers<[1], [0], [0], [1], [0, 0, 1, 1], [], []>} : vector<8x64xbf16>, vector<64x128xbf16>, vector<8x128xf32> -> vector<8x128xf32>
    %c0_3 = arith.constant 0 : index
    %c0_4 = arith.constant 0 : index
    %4 = vector.load %arg3[%c0_3, %c0_4] : memref<1x128xf32, #tpu.memory_space<vmem>>, vector<1x128xf32>
    %5 = vector.broadcast %4 : vector<1x128xf32> to vector<8x128xf32>
    %6 = arith.addf %3, %5 : vector<8x128xf32>
    %cst_5 = arith.constant 5.000000e-01 : f32
    %7 = vector.broadcast %cst_5 : f32 to vector<8x128xf32>
    %8 = arith.mulf %7, %6 : vector<8x128xf32>
    %cst_6 = arith.constant 0.707106769 : f32
    %9 = vector.broadcast %cst_6 : f32 to vector<8x128xf32>
    %10 = arith.mulf %6, %9 : vector<8x128xf32>
    %11 = math.absf %10 : vector<8x128xf32>
    %cst_7 = arith.constant 0.327591091 : f32
    %12 = vector.broadcast %cst_7 : f32 to vector<8x128xf32>
    %13 = arith.mulf %12, %11 : vector<8x128xf32>
    %cst_8 = arith.constant 1.000000e+00 : f32
    %14 = vector.broadcast %cst_8 : f32 to vector<8x128xf32>
    %15 = arith.addf %14, %13 : vector<8x128xf32>
    %cst_9 = arith.constant 1.000000e+00 : f32
    %16 = vector.broadcast %cst_9 : f32 to vector<8x128xf32>
    %17 = arith.divf %16, %15 : vector<8x128xf32>
    %cst_10 = arith.constant 1.06140542 : f32
    %18 = vector.broadcast %cst_10 : f32 to vector<8x128xf32>
    %19 = arith.mulf %18, %17 : vector<8x128xf32>
    %cst_11 = arith.constant -1.45315206 : f32
    %20 = vector.broadcast %cst_11 : f32 to vector<8x128xf32>
    %21 = arith.addf %19, %20 : vector<8x128xf32>
    %22 = arith.mulf %21, %17 : vector<8x128xf32>
    %cst_12 = arith.constant 1.42141378 : f32
    %23 = vector.broadcast %cst_12 : f32 to vector<8x128xf32>
    %24 = arith.addf %22, %23 : vector<8x128xf32>
    %25 = arith.mulf %24, %17 : vector<8x128xf32>
    %cst_13 = arith.constant -0.284496725 : f32
    %26 = vector.broadcast %cst_13 : f32 to vector<8x128xf32>
    %27 = arith.addf %25, %26 : vector<8x128xf32>
    %28 = arith.mulf %27, %17 : vector<8x128xf32>
    %cst_14 = arith.constant 0.254829586 : f32
    %29 = vector.broadcast %cst_14 : f32 to vector<8x128xf32>
    %30 = arith.addf %28, %29 : vector<8x128xf32>
    %31 = arith.mulf %30, %17 : vector<8x128xf32>
    %cst_15 = arith.constant 0.000000e+00 : f32
    %32 = vector.broadcast %cst_15 : f32 to vector<8x128xf32>
    %33 = arith.subf %32, %11 : vector<8x128xf32>
    %34 = arith.mulf %33, %11 : vector<8x128xf32>
    %35 = math.exp %34 : vector<8x128xf32>
    %36 = arith.mulf %31, %35 : vector<8x128xf32>
    %cst_16 = arith.constant 1.000000e+00 : f32
    %37 = vector.broadcast %cst_16 : f32 to vector<8x128xf32>
    %38 = arith.subf %37, %36 : vector<8x128xf32>
    %cst_17 = arith.constant 0.000000e+00 : f32
    %39 = vector.broadcast %cst_17 : f32 to vector<8x128xf32>
    %40 = arith.cmpf oge, %10, %39 : vector<8x128xf32>
    %cst_18 = arith.constant 0.000000e+00 : f32
    %41 = vector.broadcast %cst_18 : f32 to vector<8x128xf32>
    %42 = arith.subf %41, %38 : vector<8x128xf32>
    %43 = arith.select %40, %38, %42 : vector<8x128xi1>, vector<8x128xf32>
    %cst_19 = arith.constant 1.000000e+00 : f32
    %44 = vector.broadcast %cst_19 : f32 to vector<8x128xf32>
    %45 = arith.addf %44, %43 : vector<8x128xf32>
    %46 = arith.mulf %8, %45 : vector<8x128xf32>
    %47 = arith.truncf %46 : vector<8x128xf32> to vector<8x128xbf16>
    %c0_20 = arith.constant 0 : index
    %c0_21 = arith.constant 0 : index
    %48 = vector.load %arg4[%c0_20, %c0_21] : memref<128x64xbf16, #tpu.memory_space<vmem>>, vector<128x64xbf16>
    %cst_22 = arith.constant dense<0.000000e+00> : vector<8x64xf32>
    %49 = tpu.matmul %47, %48, %cst_22 {dimension_numbers = #tpu.dot_dimension_numbers<[1], [0], [0], [1], [0, 0, 1, 1], [], []>} : vector<8x128xbf16>, vector<128x64xbf16>, vector<8x64xf32> -> vector<8x64xf32>
    %c0_23 = arith.constant 0 : index
    %c0_24 = arith.constant 0 : index
    %50 = vector.load %arg5[%c0_23, %c0_24] : memref<1x64xf32, #tpu.memory_space<vmem>>, vector<1x64xf32>
    %51 = vector.broadcast %50 : vector<1x64xf32> to vector<8x64xf32>
    %52 = arith.addf %49, %51 : vector<8x64xf32>
    %53 = arith.addf %52, %0 : vector<8x64xf32>
    %c0_25 = arith.constant 0 : index
    %c0_26 = arith.constant 0 : index
    %54 = vector.load %arg6[%c0_25, %c0_26] : memref<1x64xf32, #tpu.memory_space<vmem>>, vector<1x64xf32>
    %c0_27 = arith.constant 0 : index
    %c0_28 = arith.constant 0 : index
    %55 = vector.load %arg7[%c0_27, %c0_28] : memref<1x64xf32, #tpu.memory_space<vmem>>, vector<1x64xf32>
    %cst_29 = arith.constant dense<0.000000e+00> : vector<8xf32>
    %56 = vector.multi_reduction <add>, %53, %cst_29 [1] : vector<8x64xf32> to vector<8xf32>
    %57 = vector.shape_cast %56 : vector<8xf32> to vector<8x1xf32>
    %cst_30 = arith.constant 6.400000e+01 : f32
    %58 = vector.broadcast %cst_30 : f32 to vector<8x1xf32>
    %59 = arith.divf %57, %58 : vector<8x1xf32>
    %60 = vector.broadcast %59 : vector<8x1xf32> to vector<8x64xf32>
    %61 = arith.subf %53, %60 : vector<8x64xf32>
    %62 = arith.mulf %61, %61 : vector<8x64xf32>
    %cst_31 = arith.constant dense<0.000000e+00> : vector<8xf32>
    %63 = vector.multi_reduction <add>, %62, %cst_31 [1] : vector<8x64xf32> to vector<8xf32>
    %64 = vector.shape_cast %63 : vector<8xf32> to vector<8x1xf32>
    %cst_32 = arith.constant 6.400000e+01 : f32
    %65 = vector.broadcast %cst_32 : f32 to vector<8x1xf32>
    %66 = arith.divf %64, %65 : vector<8x1xf32>
    %67 = vector.broadcast %59 : vector<8x1xf32> to vector<8x64xf32>
    %68 = arith.subf %53, %67 : vector<8x64xf32>
    %cst_33 = arith.constant 9.99999996E-13 : f32
    %69 = vector.broadcast %cst_33 : f32 to vector<8x1xf32>
    %70 = arith.addf %66, %69 : vector<8x1xf32>
    %71 = math.rsqrt %70 : vector<8x1xf32>
    %72 = vector.broadcast %71 : vector<8x1xf32> to vector<8x64xf32>
    %73 = arith.mulf %68, %72 : vector<8x64xf32>
    %74 = vector.broadcast %54 : vector<1x64xf32> to vector<8x64xf32>
    %75 = arith.mulf %73, %74 : vector<8x64xf32>
    %76 = vector.broadcast %55 : vector<1x64xf32> to vector<8x64xf32>
    %77 = arith.addf %75, %76 : vector<8x64xf32>
    %c0_34 = arith.constant 0 : index
    %c0_35 = arith.constant 0 : index
    %78 = vector.load %arg8[%c0_34, %c0_35] : memref<8x64xf32, #tpu.memory_space<vmem>>, vector<8x64xf32>
    tpu.vector_store %arg8[%c0_34, %c0_35], %77 {strides = array<i32>} : memref<8x64xf32, #tpu.memory_space<vmem>>, vector<8x64xf32>,
    return
  }
  func.func @transform_0(%arg0: i32) -> (i32, i32) {
    %c0_i32 = arith.constant 0 : i32
    %c0_i32_0 = arith.constant 0 : i32
    return %arg0, %c0_i32 : i32, i32
  }
  func.func @transform_1(%arg0: i32) -> (i32, i32) {
    %c0_i32 = arith.constant 0 : i32
    %c0_i32_0 = arith.constant 0 : i32
    %c0_i32_1 = arith.constant 0 : i32
    return %c0_i32, %c0_i32_0 : i32, i32
  }
  func.func @transform_2(%arg0: i32) -> (i32, i32) {
    %c0_i32 = arith.constant 0 : i32
    %c0_i32_0 = arith.constant 0 : i32
    %c0_i32_1 = arith.constant 0 : i32
    return %c0_i32, %c0_i32_0 : i32, i32
  }
  func.func @transform_3(%arg0: i32) -> (i32, i32) {
    %c0_i32 = arith.constant 0 : i32
    %c0_i32_0 = arith.constant 0 : i32
    %c0_i32_1 = arith.constant 0 : i32
    return %c0_i32, %c0_i32_0 : i32, i32
  }
  func.func @transform_4(%arg0: i32) -> (i32, i32) {
    %c0_i32 = arith.constant 0 : i32
    %c0_i32_0 = arith.constant 0 : i32
    %c0_i32_1 = arith.constant 0 : i32
    return %c0_i32, %c0_i32_0 : i32, i32
  }
  func.func @transform_5(%arg0: i32) -> (i32, i32) {
    %c0_i32 = arith.constant 0 : i32
    %c0_i32_0 = arith.constant 0 : i32
    %c0_i32_1 = arith.constant 0 : i32
    return %c0_i32, %c0_i32_0 : i32, i32
  }
  func.func @transform_6(%arg0: i32) -> (i32, i32) {
    %c0_i32 = arith.constant 0 : i32
    %c0_i32_0 = arith.constant 0 : i32
    %c0_i32_1 = arith.constant 0 : i32
    return %c0_i32, %c0_i32_0 : i32, i32
  }
  func.func @transform_7(%arg0: i32) -> (i32, i32) {
    %c0_i32 = arith.constant 0 : i32
    %c0_i32_0 = arith.constant 0 : i32
    return %arg0, %c0_i32 : i32, i32
  }
}

module attributes {stable_mosaic.version = 11 : i64} {
  func.func @_qkv_kernel(%arg0: i32, %arg1: memref<8x64xf32, #tpu.memory_space<vmem>>, %arg2: memref<64x32xbf16, #tpu.memory_space<vmem>>, %arg3: memref<1x32xf32, #tpu.memory_space<vmem>>, %arg4: memref<64x32xbf16, #tpu.memory_space<vmem>>, %arg5: memref<1x32xf32, #tpu.memory_space<vmem>>, %arg6: memref<64x32xbf16, #tpu.memory_space<vmem>>, %arg7: memref<1x32xf32, #tpu.memory_space<vmem>>, %arg8: memref<8x32xf32, #tpu.memory_space<vmem>>, %arg9: memref<8x32xf32, #tpu.memory_space<vmem>>, %arg10: memref<8x32xf32, #tpu.memory_space<vmem>>) attributes {dimension_semantics = [#tpu.dimension_semantics<parallel>], iteration_bounds = array<i64: 2>, scalar_prefetch = 0 : i64, scratch_operands = 0 : i64, tpu.core_type = #tpu.core_type<tc>, window_params = [{transform_indices = @transform_0, window_bounds = array<i64: 8, 64>}, {pipeline_mode = #tpu.pipeline_mode<synchronous>, transform_indices = @transform_1, window_bounds = array<i64: 64, 32>}, {pipeline_mode = #tpu.pipeline_mode<synchronous>, transform_indices = @transform_2, window_bounds = array<i64: 1, 32>}, {pipeline_mode = #tpu.pipeline_mode<synchronous>, transform_indices = @transform_3, window_bounds = array<i64: 64, 32>}, {pipeline_mode = #tpu.pipeline_mode<synchronous>, transform_indices = @transform_4, window_bounds = array<i64: 1, 32>}, {pipeline_mode = #tpu.pipeline_mode<synchronous>, transform_indices = @transform_5, window_bounds = array<i64: 64, 32>}, {pipeline_mode = #tpu.pipeline_mode<synchronous>, transform_indices = @transform_6, window_bounds = array<i64: 1, 32>}, {transform_indices = @transform_7, window_bounds = array<i64: 8, 32>}, {transform_indices = @transform_8, window_bounds = array<i64: 8, 32>}, {transform_indices = @transform_9, window_bounds = array<i64: 8, 32>}]} {
    %c0 = arith.constant 0 : index
    %c0_0 = arith.constant 0 : index
    %0 = vector.load %arg1[%c0, %c0_0] : memref<8x64xf32, #tpu.memory_space<vmem>>, vector<8x64xf32>
    %1 = arith.truncf %0 : vector<8x64xf32> to vector<8x64xbf16>
    %c0_1 = arith.constant 0 : index
    %c0_2 = arith.constant 0 : index
    %2 = vector.load %arg2[%c0_1, %c0_2] : memref<64x32xbf16, #tpu.memory_space<vmem>>, vector<64x32xbf16>
    %cst = arith.constant dense<0.000000e+00> : vector<8x32xf32>
    %3 = tpu.matmul %1, %2, %cst {dimension_numbers = #tpu.dot_dimension_numbers<[1], [0], [0], [1], [0, 0, 1, 1], [], []>} : vector<8x64xbf16>, vector<64x32xbf16>, vector<8x32xf32> -> vector<8x32xf32>
    %c0_3 = arith.constant 0 : index
    %c0_4 = arith.constant 0 : index
    %4 = vector.load %arg3[%c0_3, %c0_4] : memref<1x32xf32, #tpu.memory_space<vmem>>, vector<1x32xf32>
    %5 = vector.broadcast %4 : vector<1x32xf32> to vector<8x32xf32>
    %6 = arith.addf %3, %5 : vector<8x32xf32>
    %c0_5 = arith.constant 0 : index
    %c0_6 = arith.constant 0 : index
    %7 = vector.load %arg8[%c0_5, %c0_6] : memref<8x32xf32, #tpu.memory_space<vmem>>, vector<8x32xf32>
    tpu.vector_store %arg8[%c0_5, %c0_6], %6 {strides = array<i32>} : memref<8x32xf32, #tpu.memory_space<vmem>>, vector<8x32xf32>,
    %c0_7 = arith.constant 0 : index
    %c0_8 = arith.constant 0 : index
    %8 = vector.load %arg4[%c0_7, %c0_8] : memref<64x32xbf16, #tpu.memory_space<vmem>>, vector<64x32xbf16>
    %cst_9 = arith.constant dense<0.000000e+00> : vector<8x32xf32>
    %9 = tpu.matmul %1, %8, %cst_9 {dimension_numbers = #tpu.dot_dimension_numbers<[1], [0], [0], [1], [0, 0, 1, 1], [], []>} : vector<8x64xbf16>, vector<64x32xbf16>, vector<8x32xf32> -> vector<8x32xf32>
    %c0_10 = arith.constant 0 : index
    %c0_11 = arith.constant 0 : index
    %10 = vector.load %arg5[%c0_10, %c0_11] : memref<1x32xf32, #tpu.memory_space<vmem>>, vector<1x32xf32>
    %11 = vector.broadcast %10 : vector<1x32xf32> to vector<8x32xf32>
    %12 = arith.addf %9, %11 : vector<8x32xf32>
    %c0_12 = arith.constant 0 : index
    %c0_13 = arith.constant 0 : index
    %13 = vector.load %arg9[%c0_12, %c0_13] : memref<8x32xf32, #tpu.memory_space<vmem>>, vector<8x32xf32>
    tpu.vector_store %arg9[%c0_12, %c0_13], %12 {strides = array<i32>} : memref<8x32xf32, #tpu.memory_space<vmem>>, vector<8x32xf32>,
    %c0_14 = arith.constant 0 : index
    %c0_15 = arith.constant 0 : index
    %14 = vector.load %arg6[%c0_14, %c0_15] : memref<64x32xbf16, #tpu.memory_space<vmem>>, vector<64x32xbf16>
    %cst_16 = arith.constant dense<0.000000e+00> : vector<8x32xf32>
    %15 = tpu.matmul %1, %14, %cst_16 {dimension_numbers = #tpu.dot_dimension_numbers<[1], [0], [0], [1], [0, 0, 1, 1], [], []>} : vector<8x64xbf16>, vector<64x32xbf16>, vector<8x32xf32> -> vector<8x32xf32>
    %c0_17 = arith.constant 0 : index
    %c0_18 = arith.constant 0 : index
    %16 = vector.load %arg7[%c0_17, %c0_18] : memref<1x32xf32, #tpu.memory_space<vmem>>, vector<1x32xf32>
    %17 = vector.broadcast %16 : vector<1x32xf32> to vector<8x32xf32>
    %18 = arith.addf %15, %17 : vector<8x32xf32>
    %c0_19 = arith.constant 0 : index
    %c0_20 = arith.constant 0 : index
    %19 = vector.load %arg10[%c0_19, %c0_20] : memref<8x32xf32, #tpu.memory_space<vmem>>, vector<8x32xf32>
    tpu.vector_store %arg10[%c0_19, %c0_20], %18 {strides = array<i32>} : memref<8x32xf32, #tpu.memory_space<vmem>>, vector<8x32xf32>,
    return
  }
  func.func @transform_0(%arg0: i32) -> (i32, i32) {
    %c0_i32 = arith.constant 0 : i32
    %c0_i32_0 = arith.constant 0 : i32
    return %arg0, %c0_i32 : i32, i32
  }
  func.func @transform_1(%arg0: i32) -> (i32, i32) {
    %c0_i32 = arith.constant 0 : i32
    %c0_i32_0 = arith.constant 0 : i32
    %c0_i32_1 = arith.constant 0 : i32
    return %c0_i32, %c0_i32_0 : i32, i32
  }
  func.func @transform_2(%arg0: i32) -> (i32, i32) {
    %c0_i32 = arith.constant 0 : i32
    %c0_i32_0 = arith.constant 0 : i32
    %c0_i32_1 = arith.constant 0 : i32
    return %c0_i32, %c0_i32_0 : i32, i32
  }
  func.func @transform_3(%arg0: i32) -> (i32, i32) {
    %c0_i32 = arith.constant 0 : i32
    %c0_i32_0 = arith.constant 0 : i32
    %c0_i32_1 = arith.constant 0 : i32
    return %c0_i32, %c0_i32_0 : i32, i32
  }
  func.func @transform_4(%arg0: i32) -> (i32, i32) {
    %c0_i32 = arith.constant 0 : i32
    %c0_i32_0 = arith.constant 0 : i32
    %c0_i32_1 = arith.constant 0 : i32
    return %c0_i32, %c0_i32_0 : i32, i32
  }
  func.func @transform_5(%arg0: i32) -> (i32, i32) {
    %c0_i32 = arith.constant 0 : i32
    %c0_i32_0 = arith.constant 0 : i32
    %c0_i32_1 = arith.constant 0 : i32
    return %c0_i32, %c0_i32_0 : i32, i32
  }
  func.func @transform_6(%arg0: i32) -> (i32, i32) {
    %c0_i32 = arith.constant 0 : i32
    %c0_i32_0 = arith.constant 0 : i32
    %c0_i32_1 = arith.constant 0 : i32
    return %c0_i32, %c0_i32_0 : i32, i32
  }
  func.func @transform_7(%arg0: i32) -> (i32, i32) {
    %c0_i32 = arith.constant 0 : i32
    %c0_i32_0 = arith.constant 0 : i32
    return %arg0, %c0_i32 : i32, i32
  }
  func.func @transform_8(%arg0: i32) -> (i32, i32) {
    %c0_i32 = arith.constant 0 : i32
    %c0_i32_0 = arith.constant 0 : i32
    return %arg0, %c0_i32 : i32, i32
  }
  func.func @transform_9(%arg0: i32) -> (i32, i32) {
    %c0_i32 = arith.constant 0 : i32
    %c0_i32_0 = arith.constant 0 : i32
    return %arg0, %c0_i32 : i32, i32
  }
}

module attributes {stable_mosaic.version = 11 : i64} {
  func.func @_ffn_kernel(%arg0: i32, %arg1: memref<8x32xf32, #tpu.memory_space<vmem>>, %arg2: memref<32x64xbf16, #tpu.memory_space<vmem>>, %arg3: memref<1x64xf32, #tpu.memory_space<vmem>>, %arg4: memref<64x32xbf16, #tpu.memory_space<vmem>>, %arg5: memref<1x32xf32, #tpu.memory_space<vmem>>, %arg6: memref<1x32xf32, #tpu.memory_space<vmem>>, %arg7: memref<1x32xf32, #tpu.memory_space<vmem>>, %arg8: memref<8x32xf32, #tpu.memory_space<vmem>>) attributes {dimension_semantics = [#tpu.dimension_semantics<parallel>], iteration_bounds = array<i64: 2>, scalar_prefetch = 0 : i64, scratch_operands = 0 : i64, tpu.core_type = #tpu.core_type<tc>, window_params = [{transform_indices = @transform_0, window_bounds = array<i64: 8, 32>}, {pipeline_mode = #tpu.pipeline_mode<synchronous>, transform_indices = @transform_1, window_bounds = array<i64: 32, 64>}, {pipeline_mode = #tpu.pipeline_mode<synchronous>, transform_indices = @transform_2, window_bounds = array<i64: 1, 64>}, {pipeline_mode = #tpu.pipeline_mode<synchronous>, transform_indices = @transform_3, window_bounds = array<i64: 64, 32>}, {pipeline_mode = #tpu.pipeline_mode<synchronous>, transform_indices = @transform_4, window_bounds = array<i64: 1, 32>}, {pipeline_mode = #tpu.pipeline_mode<synchronous>, transform_indices = @transform_5, window_bounds = array<i64: 1, 32>}, {pipeline_mode = #tpu.pipeline_mode<synchronous>, transform_indices = @transform_6, window_bounds = array<i64: 1, 32>}, {transform_indices = @transform_7, window_bounds = array<i64: 8, 32>}]} {
    %c0 = arith.constant 0 : index
    %c0_0 = arith.constant 0 : index
    %0 = vector.load %arg1[%c0, %c0_0] : memref<8x32xf32, #tpu.memory_space<vmem>>, vector<8x32xf32>
    %1 = arith.truncf %0 : vector<8x32xf32> to vector<8x32xbf16>
    %c0_1 = arith.constant 0 : index
    %c0_2 = arith.constant 0 : index
    %2 = vector.load %arg2[%c0_1, %c0_2] : memref<32x64xbf16, #tpu.memory_space<vmem>>, vector<32x64xbf16>
    %cst = arith.constant dense<0.000000e+00> : vector<8x64xf32>
    %3 = tpu.matmul %1, %2, %cst {dimension_numbers = #tpu.dot_dimension_numbers<[1], [0], [0], [1], [0, 0, 1, 1], [], []>} : vector<8x32xbf16>, vector<32x64xbf16>, vector<8x64xf32> -> vector<8x64xf32>
    %c0_3 = arith.constant 0 : index
    %c0_4 = arith.constant 0 : index
    %4 = vector.load %arg3[%c0_3, %c0_4] : memref<1x64xf32, #tpu.memory_space<vmem>>, vector<1x64xf32>
    %5 = vector.broadcast %4 : vector<1x64xf32> to vector<8x64xf32>
    %6 = arith.addf %3, %5 : vector<8x64xf32>
    %cst_5 = arith.constant 5.000000e-01 : f32
    %7 = vector.broadcast %cst_5 : f32 to vector<8x64xf32>
    %8 = arith.mulf %7, %6 : vector<8x64xf32>
    %cst_6 = arith.constant 0.707106769 : f32
    %9 = vector.broadcast %cst_6 : f32 to vector<8x64xf32>
    %10 = arith.mulf %6, %9 : vector<8x64xf32>
    %11 = math.absf %10 : vector<8x64xf32>
    %cst_7 = arith.constant 0.327591091 : f32
    %12 = vector.broadcast %cst_7 : f32 to vector<8x64xf32>
    %13 = arith.mulf %12, %11 : vector<8x64xf32>
    %cst_8 = arith.constant 1.000000e+00 : f32
    %14 = vector.broadcast %cst_8 : f32 to vector<8x64xf32>
    %15 = arith.addf %14, %13 : vector<8x64xf32>
    %cst_9 = arith.constant 1.000000e+00 : f32
    %16 = vector.broadcast %cst_9 : f32 to vector<8x64xf32>
    %17 = arith.divf %16, %15 : vector<8x64xf32>
    %cst_10 = arith.constant 1.06140542 : f32
    %18 = vector.broadcast %cst_10 : f32 to vector<8x64xf32>
    %19 = arith.mulf %18, %17 : vector<8x64xf32>
    %cst_11 = arith.constant -1.45315206 : f32
    %20 = vector.broadcast %cst_11 : f32 to vector<8x64xf32>
    %21 = arith.addf %19, %20 : vector<8x64xf32>
    %22 = arith.mulf %21, %17 : vector<8x64xf32>
    %cst_12 = arith.constant 1.42141378 : f32
    %23 = vector.broadcast %cst_12 : f32 to vector<8x64xf32>
    %24 = arith.addf %22, %23 : vector<8x64xf32>
    %25 = arith.mulf %24, %17 : vector<8x64xf32>
    %cst_13 = arith.constant -0.284496725 : f32
    %26 = vector.broadcast %cst_13 : f32 to vector<8x64xf32>
    %27 = arith.addf %25, %26 : vector<8x64xf32>
    %28 = arith.mulf %27, %17 : vector<8x64xf32>
    %cst_14 = arith.constant 0.254829586 : f32
    %29 = vector.broadcast %cst_14 : f32 to vector<8x64xf32>
    %30 = arith.addf %28, %29 : vector<8x64xf32>
    %31 = arith.mulf %30, %17 : vector<8x64xf32>
    %cst_15 = arith.constant 0.000000e+00 : f32
    %32 = vector.broadcast %cst_15 : f32 to vector<8x64xf32>
    %33 = arith.subf %32, %11 : vector<8x64xf32>
    %34 = arith.mulf %33, %11 : vector<8x64xf32>
    %35 = math.exp %34 : vector<8x64xf32>
    %36 = arith.mulf %31, %35 : vector<8x64xf32>
    %cst_16 = arith.constant 1.000000e+00 : f32
    %37 = vector.broadcast %cst_16 : f32 to vector<8x64xf32>
    %38 = arith.subf %37, %36 : vector<8x64xf32>
    %cst_17 = arith.constant 0.000000e+00 : f32
    %39 = vector.broadcast %cst_17 : f32 to vector<8x64xf32>
    %40 = arith.cmpf oge, %10, %39 : vector<8x64xf32>
    %cst_18 = arith.constant 0.000000e+00 : f32
    %41 = vector.broadcast %cst_18 : f32 to vector<8x64xf32>
    %42 = arith.subf %41, %38 : vector<8x64xf32>
    %43 = arith.select %40, %38, %42 : vector<8x64xi1>, vector<8x64xf32>
    %cst_19 = arith.constant 1.000000e+00 : f32
    %44 = vector.broadcast %cst_19 : f32 to vector<8x64xf32>
    %45 = arith.addf %44, %43 : vector<8x64xf32>
    %46 = arith.mulf %8, %45 : vector<8x64xf32>
    %47 = arith.truncf %46 : vector<8x64xf32> to vector<8x64xbf16>
    %c0_20 = arith.constant 0 : index
    %c0_21 = arith.constant 0 : index
    %48 = vector.load %arg4[%c0_20, %c0_21] : memref<64x32xbf16, #tpu.memory_space<vmem>>, vector<64x32xbf16>
    %cst_22 = arith.constant dense<0.000000e+00> : vector<8x32xf32>
    %49 = tpu.matmul %47, %48, %cst_22 {dimension_numbers = #tpu.dot_dimension_numbers<[1], [0], [0], [1], [0, 0, 1, 1], [], []>} : vector<8x64xbf16>, vector<64x32xbf16>, vector<8x32xf32> -> vector<8x32xf32>
    %c0_23 = arith.constant 0 : index
    %c0_24 = arith.constant 0 : index
    %50 = vector.load %arg5[%c0_23, %c0_24] : memref<1x32xf32, #tpu.memory_space<vmem>>, vector<1x32xf32>
    %51 = vector.broadcast %50 : vector<1x32xf32> to vector<8x32xf32>
    %52 = arith.addf %49, %51 : vector<8x32xf32>
    %53 = arith.addf %52, %0 : vector<8x32xf32>
    %c0_25 = arith.constant 0 : index
    %c0_26 = arith.constant 0 : index
    %54 = vector.load %arg6[%c0_25, %c0_26] : memref<1x32xf32, #tpu.memory_space<vmem>>, vector<1x32xf32>
    %c0_27 = arith.constant 0 : index
    %c0_28 = arith.constant 0 : index
    %55 = vector.load %arg7[%c0_27, %c0_28] : memref<1x32xf32, #tpu.memory_space<vmem>>, vector<1x32xf32>
    %cst_29 = arith.constant dense<0.000000e+00> : vector<8xf32>
    %56 = vector.multi_reduction <add>, %53, %cst_29 [1] : vector<8x32xf32> to vector<8xf32>
    %57 = vector.shape_cast %56 : vector<8xf32> to vector<8x1xf32>
    %cst_30 = arith.constant 3.200000e+01 : f32
    %58 = vector.broadcast %cst_30 : f32 to vector<8x1xf32>
    %59 = arith.divf %57, %58 : vector<8x1xf32>
    %60 = vector.broadcast %59 : vector<8x1xf32> to vector<8x32xf32>
    %61 = arith.subf %53, %60 : vector<8x32xf32>
    %62 = arith.mulf %61, %61 : vector<8x32xf32>
    %cst_31 = arith.constant dense<0.000000e+00> : vector<8xf32>
    %63 = vector.multi_reduction <add>, %62, %cst_31 [1] : vector<8x32xf32> to vector<8xf32>
    %64 = vector.shape_cast %63 : vector<8xf32> to vector<8x1xf32>
    %cst_32 = arith.constant 3.200000e+01 : f32
    %65 = vector.broadcast %cst_32 : f32 to vector<8x1xf32>
    %66 = arith.divf %64, %65 : vector<8x1xf32>
    %67 = vector.broadcast %59 : vector<8x1xf32> to vector<8x32xf32>
    %68 = arith.subf %53, %67 : vector<8x32xf32>
    %cst_33 = arith.constant 9.99999996E-13 : f32
    %69 = vector.broadcast %cst_33 : f32 to vector<8x1xf32>
    %70 = arith.addf %66, %69 : vector<8x1xf32>
    %71 = math.rsqrt %70 : vector<8x1xf32>
    %72 = vector.broadcast %71 : vector<8x1xf32> to vector<8x32xf32>
    %73 = arith.mulf %68, %72 : vector<8x32xf32>
    %74 = vector.broadcast %54 : vector<1x32xf32> to vector<8x32xf32>
    %75 = arith.mulf %73, %74 : vector<8x32xf32>
    %76 = vector.broadcast %55 : vector<1x32xf32> to vector<8x32xf32>
    %77 = arith.addf %75, %76 : vector<8x32xf32>
    %c0_34 = arith.constant 0 : index
    %c0_35 = arith.constant 0 : index
    %78 = vector.load %arg8[%c0_34, %c0_35] : memref<8x32xf32, #tpu.memory_space<vmem>>, vector<8x32xf32>
    tpu.vector_store %arg8[%c0_34, %c0_35], %77 {strides = array<i32>} : memref<8x32xf32, #tpu.memory_space<vmem>>, vector<8x32xf32>,
    return
  }
  func.func @transform_0(%arg0: i32) -> (i32, i32) {
    %c0_i32 = arith.constant 0 : i32
    %c0_i32_0 = arith.constant 0 : i32
    return %arg0, %c0_i32 : i32, i32
  }
  func.func @transform_1(%arg0: i32) -> (i32, i32) {
    %c0_i32 = arith.constant 0 : i32
    %c0_i32_0 = arith.constant 0 : i32
    %c0_i32_1 = arith.constant 0 : i32
    return %c0_i32, %c0_i32_0 : i32, i32
  }
  func.func @transform_2(%arg0: i32) -> (i32, i32) {
    %c0_i32 = arith.constant 0 : i32
    %c0_i32_0 = arith.constant 0 : i32
    %c0_i32_1 = arith.constant 0 : i32
    return %c0_i32, %c0_i32_0 : i32, i32
  }
  func.func @transform_3(%arg0: i32) -> (i32, i32) {
    %c0_i32 = arith.constant 0 : i32
    %c0_i32_0 = arith.constant 0 : i32
    %c0_i32_1 = arith.constant 0 : i32
    return %c0_i32, %c0_i32_0 : i32, i32
  }
  func.func @transform_4(%arg0: i32) -> (i32, i32) {
    %c0_i32 = arith.constant 0 : i32
    %c0_i32_0 = arith.constant 0 : i32
    %c0_i32_1 = arith.constant 0 : i32
    return %c0_i32, %c0_i32_0 : i32, i32
  }
  func.func @transform_5(%arg0: i32) -> (i32, i32) {
    %c0_i32 = arith.constant 0 : i32
    %c0_i32_0 = arith.constant 0 : i32
    %c0_i32_1 = arith.constant 0 : i32
    return %c0_i32, %c0_i32_0 : i32, i32
  }
  func.func @transform_6(%arg0: i32) -> (i32, i32) {
    %c0_i32 = arith.constant 0 : i32
    %c0_i32_0 = arith.constant 0 : i32
    %c0_i32_1 = arith.constant 0 : i32
    return %c0_i32, %c0_i32_0 : i32, i32
  }
  func.func @transform_7(%arg0: i32) -> (i32, i32) {
    %c0_i32 = arith.constant 0 : i32
    %c0_i32_0 = arith.constant 0 : i32
    return %arg0, %c0_i32 : i32, i32
  }
}

module attributes {stable_mosaic.version = 11 : i64} {
  func.func @_linear_residual_ln_kernel(%arg0: i32, %arg1: memref<8x32xf32, #tpu.memory_space<vmem>>, %arg2: memref<8x64xf32, #tpu.memory_space<vmem>>, %arg3: memref<32x64xbf16, #tpu.memory_space<vmem>>, %arg4: memref<1x64xf32, #tpu.memory_space<vmem>>, %arg5: memref<1x64xf32, #tpu.memory_space<vmem>>, %arg6: memref<1x64xf32, #tpu.memory_space<vmem>>, %arg7: memref<8x64xf32, #tpu.memory_space<vmem>>) attributes {dimension_semantics = [#tpu.dimension_semantics<parallel>], iteration_bounds = array<i64: 2>, scalar_prefetch = 0 : i64, scratch_operands = 0 : i64, tpu.core_type = #tpu.core_type<tc>, window_params = [{transform_indices = @transform_0, window_bounds = array<i64: 8, 32>}, {transform_indices = @transform_1, window_bounds = array<i64: 8, 64>}, {pipeline_mode = #tpu.pipeline_mode<synchronous>, transform_indices = @transform_2, window_bounds = array<i64: 32, 64>}, {pipeline_mode = #tpu.pipeline_mode<synchronous>, transform_indices = @transform_3, window_bounds = array<i64: 1, 64>}, {pipeline_mode = #tpu.pipeline_mode<synchronous>, transform_indices = @transform_4, window_bounds = array<i64: 1, 64>}, {pipeline_mode = #tpu.pipeline_mode<synchronous>, transform_indices = @transform_5, window_bounds = array<i64: 1, 64>}, {transform_indices = @transform_6, window_bounds = array<i64: 8, 64>}]} {
    %c0 = arith.constant 0 : index
    %c0_0 = arith.constant 0 : index
    %0 = vector.load %arg1[%c0, %c0_0] : memref<8x32xf32, #tpu.memory_space<vmem>>, vector<8x32xf32>
    %1 = arith.truncf %0 : vector<8x32xf32> to vector<8x32xbf16>
    %c0_1 = arith.constant 0 : index
    %c0_2 = arith.constant 0 : index
    %2 = vector.load %arg3[%c0_1, %c0_2] : memref<32x64xbf16, #tpu.memory_space<vmem>>, vector<32x64xbf16>
    %cst = arith.constant dense<0.000000e+00> : vector<8x64xf32>
    %3 = tpu.matmul %1, %2, %cst {dimension_numbers = #tpu.dot_dimension_numbers<[1], [0], [0], [1], [0, 0, 1, 1], [], []>} : vector<8x32xbf16>, vector<32x64xbf16>, vector<8x64xf32> -> vector<8x64xf32>
    %c0_3 = arith.constant 0 : index
    %c0_4 = arith.constant 0 : index
    %4 = vector.load %arg4[%c0_3, %c0_4] : memref<1x64xf32, #tpu.memory_space<vmem>>, vector<1x64xf32>
    %5 = vector.broadcast %4 : vector<1x64xf32> to vector<8x64xf32>
    %6 = arith.addf %3, %5 : vector<8x64xf32>
    %c0_5 = arith.constant 0 : index
    %c0_6 = arith.constant 0 : index
    %7 = vector.load %arg2[%c0_5, %c0_6] : memref<8x64xf32, #tpu.memory_space<vmem>>, vector<8x64xf32>
    %8 = arith.addf %6, %7 : vector<8x64xf32>
    %c0_7 = arith.constant 0 : index
    %c0_8 = arith.constant 0 : index
    %9 = vector.load %arg5[%c0_7, %c0_8] : memref<1x64xf32, #tpu.memory_space<vmem>>, vector<1x64xf32>
    %c0_9 = arith.constant 0 : index
    %c0_10 = arith.constant 0 : index
    %10 = vector.load %arg6[%c0_9, %c0_10] : memref<1x64xf32, #tpu.memory_space<vmem>>, vector<1x64xf32>
    %cst_11 = arith.constant dense<0.000000e+00> : vector<8xf32>
    %11 = vector.multi_reduction <add>, %8, %cst_11 [1] : vector<8x64xf32> to vector<8xf32>
    %12 = vector.shape_cast %11 : vector<8xf32> to vector<8x1xf32>
    %cst_12 = arith.constant 6.400000e+01 : f32
    %13 = vector.broadcast %cst_12 : f32 to vector<8x1xf32>
    %14 = arith.divf %12, %13 : vector<8x1xf32>
    %15 = vector.broadcast %14 : vector<8x1xf32> to vector<8x64xf32>
    %16 = arith.subf %8, %15 : vector<8x64xf32>
    %17 = arith.mulf %16, %16 : vector<8x64xf32>
    %cst_13 = arith.constant dense<0.000000e+00> : vector<8xf32>
    %18 = vector.multi_reduction <add>, %17, %cst_13 [1] : vector<8x64xf32> to vector<8xf32>
    %19 = vector.shape_cast %18 : vector<8xf32> to vector<8x1xf32>
    %cst_14 = arith.constant 6.400000e+01 : f32
    %20 = vector.broadcast %cst_14 : f32 to vector<8x1xf32>
    %21 = arith.divf %19, %20 : vector<8x1xf32>
    %22 = vector.broadcast %14 : vector<8x1xf32> to vector<8x64xf32>
    %23 = arith.subf %8, %22 : vector<8x64xf32>
    %cst_15 = arith.constant 9.99999996E-13 : f32
    %24 = vector.broadcast %cst_15 : f32 to vector<8x1xf32>
    %25 = arith.addf %21, %24 : vector<8x1xf32>
    %26 = math.rsqrt %25 : vector<8x1xf32>
    %27 = vector.broadcast %26 : vector<8x1xf32> to vector<8x64xf32>
    %28 = arith.mulf %23, %27 : vector<8x64xf32>
    %29 = vector.broadcast %9 : vector<1x64xf32> to vector<8x64xf32>
    %30 = arith.mulf %28, %29 : vector<8x64xf32>
    %31 = vector.broadcast %10 : vector<1x64xf32> to vector<8x64xf32>
    %32 = arith.addf %30, %31 : vector<8x64xf32>
    %c0_16 = arith.constant 0 : index
    %c0_17 = arith.constant 0 : index
    %33 = vector.load %arg7[%c0_16, %c0_17] : memref<8x64xf32, #tpu.memory_space<vmem>>, vector<8x64xf32>
    tpu.vector_store %arg7[%c0_16, %c0_17], %32 {strides = array<i32>} : memref<8x64xf32, #tpu.memory_space<vmem>>, vector<8x64xf32>,
    return
  }
  func.func @transform_0(%arg0: i32) -> (i32, i32) {
    %c0_i32 = arith.constant 0 : i32
    %c0_i32_0 = arith.constant 0 : i32
    return %arg0, %c0_i32 : i32, i32
  }
  func.func @transform_1(%arg0: i32) -> (i32, i32) {
    %c0_i32 = arith.constant 0 : i32
    %c0_i32_0 = arith.constant 0 : i32
    return %arg0, %c0_i32 : i32, i32
  }
  func.func @transform_2(%arg0: i32) -> (i32, i32) {
    %c0_i32 = arith.constant 0 : i32
    %c0_i32_0 = arith.constant 0 : i32
    %c0_i32_1 = arith.constant 0 : i32
    return %c0_i32, %c0_i32_0 : i32, i32
  }
  func.func @transform_3(%arg0: i32) -> (i32, i32) {
    %c0_i32 = arith.constant 0 : i32
    %c0_i32_0 = arith.constant 0 : i32
    %c0_i32_1 = arith.constant 0 : i32
    return %c0_i32, %c0_i32_0 : i32, i32
  }
  func.func @transform_4(%arg0: i32) -> (i32, i32) {
    %c0_i32 = arith.constant 0 : i32
    %c0_i32_0 = arith.constant 0 : i32
    %c0_i32_1 = arith.constant 0 : i32
    return %c0_i32, %c0_i32_0 : i32, i32
  }
  func.func @transform_5(%arg0: i32) -> (i32, i32) {
    %c0_i32 = arith.constant 0 : i32
    %c0_i32_0 = arith.constant 0 : i32
    %c0_i32_1 = arith.constant 0 : i32
    return %c0_i32, %c0_i32_0 : i32, i32
  }
  func.func @transform_6(%arg0: i32) -> (i32, i32) {
    %c0_i32 = arith.constant 0 : i32
    %c0_i32_0 = arith.constant 0 : i32
    return %arg0, %c0_i32 : i32, i32
  }
}

module attributes {stable_mosaic.version = 11 : i64} {
  func.func @_ffn_kernel(%arg0: i32, %arg1: memref<8x64xf32, #tpu.memory_space<vmem>>, %arg2: memref<64x128xbf16, #tpu.memory_space<vmem>>, %arg3: memref<1x128xf32, #tpu.memory_space<vmem>>, %arg4: memref<128x64xbf16, #tpu.memory_space<vmem>>, %arg5: memref<1x64xf32, #tpu.memory_space<vmem>>, %arg6: memref<1x64xf32, #tpu.memory_space<vmem>>, %arg7: memref<1x64xf32, #tpu.memory_space<vmem>>, %arg8: memref<8x64xf32, #tpu.memory_space<vmem>>) attributes {dimension_semantics = [#tpu.dimension_semantics<parallel>], iteration_bounds = array<i64: 2>, scalar_prefetch = 0 : i64, scratch_operands = 0 : i64, tpu.core_type = #tpu.core_type<tc>, window_params = [{transform_indices = @transform_0, window_bounds = array<i64: 8, 64>}, {pipeline_mode = #tpu.pipeline_mode<synchronous>, transform_indices = @transform_1, window_bounds = array<i64: 64, 128>}, {pipeline_mode = #tpu.pipeline_mode<synchronous>, transform_indices = @transform_2, window_bounds = array<i64: 1, 128>}, {pipeline_mode = #tpu.pipeline_mode<synchronous>, transform_indices = @transform_3, window_bounds = array<i64: 128, 64>}, {pipeline_mode = #tpu.pipeline_mode<synchronous>, transform_indices = @transform_4, window_bounds = array<i64: 1, 64>}, {pipeline_mode = #tpu.pipeline_mode<synchronous>, transform_indices = @transform_5, window_bounds = array<i64: 1, 64>}, {pipeline_mode = #tpu.pipeline_mode<synchronous>, transform_indices = @transform_6, window_bounds = array<i64: 1, 64>}, {transform_indices = @transform_7, window_bounds = array<i64: 8, 64>}]} {
    %c0 = arith.constant 0 : index
    %c0_0 = arith.constant 0 : index
    %0 = vector.load %arg1[%c0, %c0_0] : memref<8x64xf32, #tpu.memory_space<vmem>>, vector<8x64xf32>
    %1 = arith.truncf %0 : vector<8x64xf32> to vector<8x64xbf16>
    %c0_1 = arith.constant 0 : index
    %c0_2 = arith.constant 0 : index
    %2 = vector.load %arg2[%c0_1, %c0_2] : memref<64x128xbf16, #tpu.memory_space<vmem>>, vector<64x128xbf16>
    %cst = arith.constant dense<0.000000e+00> : vector<8x128xf32>
    %3 = tpu.matmul %1, %2, %cst {dimension_numbers = #tpu.dot_dimension_numbers<[1], [0], [0], [1], [0, 0, 1, 1], [], []>} : vector<8x64xbf16>, vector<64x128xbf16>, vector<8x128xf32> -> vector<8x128xf32>
    %c0_3 = arith.constant 0 : index
    %c0_4 = arith.constant 0 : index
    %4 = vector.load %arg3[%c0_3, %c0_4] : memref<1x128xf32, #tpu.memory_space<vmem>>, vector<1x128xf32>
    %5 = vector.broadcast %4 : vector<1x128xf32> to vector<8x128xf32>
    %6 = arith.addf %3, %5 : vector<8x128xf32>
    %cst_5 = arith.constant 5.000000e-01 : f32
    %7 = vector.broadcast %cst_5 : f32 to vector<8x128xf32>
    %8 = arith.mulf %7, %6 : vector<8x128xf32>
    %cst_6 = arith.constant 0.707106769 : f32
    %9 = vector.broadcast %cst_6 : f32 to vector<8x128xf32>
    %10 = arith.mulf %6, %9 : vector<8x128xf32>
    %11 = math.absf %10 : vector<8x128xf32>
    %cst_7 = arith.constant 0.327591091 : f32
    %12 = vector.broadcast %cst_7 : f32 to vector<8x128xf32>
    %13 = arith.mulf %12, %11 : vector<8x128xf32>
    %cst_8 = arith.constant 1.000000e+00 : f32
    %14 = vector.broadcast %cst_8 : f32 to vector<8x128xf32>
    %15 = arith.addf %14, %13 : vector<8x128xf32>
    %cst_9 = arith.constant 1.000000e+00 : f32
    %16 = vector.broadcast %cst_9 : f32 to vector<8x128xf32>
    %17 = arith.divf %16, %15 : vector<8x128xf32>
    %cst_10 = arith.constant 1.06140542 : f32
    %18 = vector.broadcast %cst_10 : f32 to vector<8x128xf32>
    %19 = arith.mulf %18, %17 : vector<8x128xf32>
    %cst_11 = arith.constant -1.45315206 : f32
    %20 = vector.broadcast %cst_11 : f32 to vector<8x128xf32>
    %21 = arith.addf %19, %20 : vector<8x128xf32>
    %22 = arith.mulf %21, %17 : vector<8x128xf32>
    %cst_12 = arith.constant 1.42141378 : f32
    %23 = vector.broadcast %cst_12 : f32 to vector<8x128xf32>
    %24 = arith.addf %22, %23 : vector<8x128xf32>
    %25 = arith.mulf %24, %17 : vector<8x128xf32>
    %cst_13 = arith.constant -0.284496725 : f32
    %26 = vector.broadcast %cst_13 : f32 to vector<8x128xf32>
    %27 = arith.addf %25, %26 : vector<8x128xf32>
    %28 = arith.mulf %27, %17 : vector<8x128xf32>
    %cst_14 = arith.constant 0.254829586 : f32
    %29 = vector.broadcast %cst_14 : f32 to vector<8x128xf32>
    %30 = arith.addf %28, %29 : vector<8x128xf32>
    %31 = arith.mulf %30, %17 : vector<8x128xf32>
    %cst_15 = arith.constant 0.000000e+00 : f32
    %32 = vector.broadcast %cst_15 : f32 to vector<8x128xf32>
    %33 = arith.subf %32, %11 : vector<8x128xf32>
    %34 = arith.mulf %33, %11 : vector<8x128xf32>
    %35 = math.exp %34 : vector<8x128xf32>
    %36 = arith.mulf %31, %35 : vector<8x128xf32>
    %cst_16 = arith.constant 1.000000e+00 : f32
    %37 = vector.broadcast %cst_16 : f32 to vector<8x128xf32>
    %38 = arith.subf %37, %36 : vector<8x128xf32>
    %cst_17 = arith.constant 0.000000e+00 : f32
    %39 = vector.broadcast %cst_17 : f32 to vector<8x128xf32>
    %40 = arith.cmpf oge, %10, %39 : vector<8x128xf32>
    %cst_18 = arith.constant 0.000000e+00 : f32
    %41 = vector.broadcast %cst_18 : f32 to vector<8x128xf32>
    %42 = arith.subf %41, %38 : vector<8x128xf32>
    %43 = arith.select %40, %38, %42 : vector<8x128xi1>, vector<8x128xf32>
    %cst_19 = arith.constant 1.000000e+00 : f32
    %44 = vector.broadcast %cst_19 : f32 to vector<8x128xf32>
    %45 = arith.addf %44, %43 : vector<8x128xf32>
    %46 = arith.mulf %8, %45 : vector<8x128xf32>
    %47 = arith.truncf %46 : vector<8x128xf32> to vector<8x128xbf16>
    %c0_20 = arith.constant 0 : index
    %c0_21 = arith.constant 0 : index
    %48 = vector.load %arg4[%c0_20, %c0_21] : memref<128x64xbf16, #tpu.memory_space<vmem>>, vector<128x64xbf16>
    %cst_22 = arith.constant dense<0.000000e+00> : vector<8x64xf32>
    %49 = tpu.matmul %47, %48, %cst_22 {dimension_numbers = #tpu.dot_dimension_numbers<[1], [0], [0], [1], [0, 0, 1, 1], [], []>} : vector<8x128xbf16>, vector<128x64xbf16>, vector<8x64xf32> -> vector<8x64xf32>
    %c0_23 = arith.constant 0 : index
    %c0_24 = arith.constant 0 : index
    %50 = vector.load %arg5[%c0_23, %c0_24] : memref<1x64xf32, #tpu.memory_space<vmem>>, vector<1x64xf32>
    %51 = vector.broadcast %50 : vector<1x64xf32> to vector<8x64xf32>
    %52 = arith.addf %49, %51 : vector<8x64xf32>
    %53 = arith.addf %52, %0 : vector<8x64xf32>
    %c0_25 = arith.constant 0 : index
    %c0_26 = arith.constant 0 : index
    %54 = vector.load %arg6[%c0_25, %c0_26] : memref<1x64xf32, #tpu.memory_space<vmem>>, vector<1x64xf32>
    %c0_27 = arith.constant 0 : index
    %c0_28 = arith.constant 0 : index
    %55 = vector.load %arg7[%c0_27, %c0_28] : memref<1x64xf32, #tpu.memory_space<vmem>>, vector<1x64xf32>
    %cst_29 = arith.constant dense<0.000000e+00> : vector<8xf32>
    %56 = vector.multi_reduction <add>, %53, %cst_29 [1] : vector<8x64xf32> to vector<8xf32>
    %57 = vector.shape_cast %56 : vector<8xf32> to vector<8x1xf32>
    %cst_30 = arith.constant 6.400000e+01 : f32
    %58 = vector.broadcast %cst_30 : f32 to vector<8x1xf32>
    %59 = arith.divf %57, %58 : vector<8x1xf32>
    %60 = vector.broadcast %59 : vector<8x1xf32> to vector<8x64xf32>
    %61 = arith.subf %53, %60 : vector<8x64xf32>
    %62 = arith.mulf %61, %61 : vector<8x64xf32>
    %cst_31 = arith.constant dense<0.000000e+00> : vector<8xf32>
    %63 = vector.multi_reduction <add>, %62, %cst_31 [1] : vector<8x64xf32> to vector<8xf32>
    %64 = vector.shape_cast %63 : vector<8xf32> to vector<8x1xf32>
    %cst_32 = arith.constant 6.400000e+01 : f32
    %65 = vector.broadcast %cst_32 : f32 to vector<8x1xf32>
    %66 = arith.divf %64, %65 : vector<8x1xf32>
    %67 = vector.broadcast %59 : vector<8x1xf32> to vector<8x64xf32>
    %68 = arith.subf %53, %67 : vector<8x64xf32>
    %cst_33 = arith.constant 9.99999996E-13 : f32
    %69 = vector.broadcast %cst_33 : f32 to vector<8x1xf32>
    %70 = arith.addf %66, %69 : vector<8x1xf32>
    %71 = math.rsqrt %70 : vector<8x1xf32>
    %72 = vector.broadcast %71 : vector<8x1xf32> to vector<8x64xf32>
    %73 = arith.mulf %68, %72 : vector<8x64xf32>
    %74 = vector.broadcast %54 : vector<1x64xf32> to vector<8x64xf32>
    %75 = arith.mulf %73, %74 : vector<8x64xf32>
    %76 = vector.broadcast %55 : vector<1x64xf32> to vector<8x64xf32>
    %77 = arith.addf %75, %76 : vector<8x64xf32>
    %c0_34 = arith.constant 0 : index
    %c0_35 = arith.constant 0 : index
    %78 = vector.load %arg8[%c0_34, %c0_35] : memref<8x64xf32, #tpu.memory_space<vmem>>, vector<8x64xf32>
    tpu.vector_store %arg8[%c0_34, %c0_35], %77 {strides = array<i32>} : memref<8x64xf32, #tpu.memory_space<vmem>>, vector<8x64xf32>,
    return
  }
  func.func @transform_0(%arg0: i32) -> (i32, i32) {
    %c0_i32 = arith.constant 0 : i32
    %c0_i32_0 = arith.constant 0 : i32
    return %arg0, %c0_i32 : i32, i32
  }
  func.func @transform_1(%arg0: i32) -> (i32, i32) {
    %c0_i32 = arith.constant 0 : i32
    %c0_i32_0 = arith.constant 0 : i32
    %c0_i32_1 = arith.constant 0 : i32
    return %c0_i32, %c0_i32_0 : i32, i32
  }
  func.func @transform_2(%arg0: i32) -> (i32, i32) {
    %c0_i32 = arith.constant 0 : i32
    %c0_i32_0 = arith.constant 0 : i32
    %c0_i32_1 = arith.constant 0 : i32
    return %c0_i32, %c0_i32_0 : i32, i32
  }
  func.func @transform_3(%arg0: i32) -> (i32, i32) {
    %c0_i32 = arith.constant 0 : i32
    %c0_i32_0 = arith.constant 0 : i32
    %c0_i32_1 = arith.constant 0 : i32
    return %c0_i32, %c0_i32_0 : i32, i32
  }
  func.func @transform_4(%arg0: i32) -> (i32, i32) {
    %c0_i32 = arith.constant 0 : i32
    %c0_i32_0 = arith.constant 0 : i32
    %c0_i32_1 = arith.constant 0 : i32
    return %c0_i32, %c0_i32_0 : i32, i32
  }
  func.func @transform_5(%arg0: i32) -> (i32, i32) {
    %c0_i32 = arith.constant 0 : i32
    %c0_i32_0 = arith.constant 0 : i32
    %c0_i32_1 = arith.constant 0 : i32
    return %c0_i32, %c0_i32_0 : i32, i32
  }
  func.func @transform_6(%arg0: i32) -> (i32, i32) {
    %c0_i32 = arith.constant 0 : i32
    %c0_i32_0 = arith.constant 0 : i32
    %c0_i32_1 = arith.constant 0 : i32
    return %c0_i32, %c0_i32_0 : i32, i32
  }
  func.func @transform_7(%arg0: i32) -> (i32, i32) {
    %c0_i32 = arith.constant 0 : i32
    %c0_i32_0 = arith.constant 0 : i32
    return %arg0, %c0_i32 : i32, i32
  }
}

</mosaic_0001>

<llo_original>
// kernel: _lambda_.26
$region0: #{_lambda_.26}
  #allocation0 [shape = 'u32[]', space=smem, size = 0x4, offset = 0x4, fixed_abs, tag = 'smem constant byte address 0x4 - core index']
  #allocation1 [shape = 'u32[144,128]{1,0:T(1,128)}', space=vmem, size = 0x12000, scoped, tag = 'internal scratch']
  %s0 = inlined_call_operand.vmem [shape: f32[16,32], index: 0, kind: input, shape index: {}]
  %s1 = inlined_call_operand.vmem [shape: f32[16,32], index: 1, kind: input, shape index: {}]
  %s2 = inlined_call_operand.vmem [shape: bf16[32,32], index: 2, kind: input, shape index: {}]
  %s3 = inlined_call_operand.vmem [shape: f32[1,32], index: 3, kind: input, shape index: {}]
  %s4 = inlined_call_operand.vmem [shape: f32[1,32], index: 4, kind: input, shape index: {}]
  %s5 = inlined_call_operand.vmem [shape: f32[1,32], index: 5, kind: input, shape index: {}]
  %s6 = inlined_call_operand.vmem [shape: f32[16,32], index: 6, kind: output, shape index: {}]
  %s7 = sld [smem:[#allocation0]]
  $region57: #{_lambda_.26} parent=0
    _
  %s9 = ssub.s32 1, %s7
  %s10 = scalar_select 0, %s9, %s7
  loop: start=0, step=1, limit=4
  $region2: #{_lambda_.26} parent=0 // loop_pre_header
    _
  $region3: #{_lambda_.26} parent=0 // loop_header
    %s12 = sphi 0, %s16
    %p13 = scmp.ge.s32.totalorder %s12, 4
    %s22 = sphi 0, %s24
    %s25 = sphi 0, %s22
    %s26 = sphi 0, %s25
    %s42 = sphi 0, %s26
    %s48 = sphi 0, %s50
    %s51 = sphi 0, %s48
    %s52 = sphi 0, %s51
    %s68 = sphi 0, %s52
    %s72 = sphi 0, %s72
    %s74 = sphi 0, %s72
    %s75 = sphi 0, %s74
    %s89 = sphi 0, %s75
    %s93 = sphi 0, %s93
    %s95 = sphi 0, %s93
    %s96 = sphi 0, %s95
    %s110 = sphi 0, %s96
    %s114 = sphi 0, %s114
    %s116 = sphi 0, %s114
    %s117 = sphi 0, %s116
    %s131 = sphi 0, %s117
    %s135 = sphi 0, %s135
    %s137 = sphi 0, %s135
    %s138 = sphi 0, %s137
    %s152 = sphi 0, %s138
    %s158 = sphi 0, %s160
    %s161 = sphi 0, %s158
    %s162 = sphi 0, %s161
    %s178 = sphi 0, %s162
  $region4: #{_lambda_.26} parent=0 // loop_header_branch
    %15 = sbr.rel (%p13) target = $region8
  $region5: #{_lambda_.26} parent=0 // loop_body
    %s17 = ssub.s32 %s12, 1
    %s18 = ssub.s32 %s12, 2
    %s19 = sadd.s32 %s12, 1
    %s20 = ssub.s32 %s12, %s19
    %p21 = scmp.eq.s32.totalorder %s20, 0
    %s23 = sadd.s32 %s22, 1
    %s24 = scalar_select %p21, %s22, %s23
    %p27 = pneg %p21
    %p28 = scmp.eq.s32.totalorder %s12, 1
    %p29 = por %p27, %p28
    %p30 = scmp.ne.s32.totalorder %s22, %s25
    %p31 = scmp.eq.s32.totalorder %s12, 0
    %p32 = por %p30, %p31
    %p33 = scmp.ne.s32.totalorder %s22, %s25
    %p34 = scmp.eq.s32.totalorder %s17, 1
    %p35 = por %p33, %p34
    %p36 = scmp.ne.s32.totalorder %s25, %s26
    %p37 = scmp.eq.s32.totalorder %s17, 0
    %p38 = por %p36, %p37
    %p39 = scmp.ne.s32.totalorder %s25, %s26
    %p40 = scmp.eq.s32.totalorder %s18, 1
    %p41 = por %p39, %p40
    %p43 = scmp.ne.s32.totalorder %s26, %s42
    %p44 = scmp.eq.s32.totalorder %s18, 0
    %p45 = por %p43, %p44
    %s46 = ssub.s32 %s12, %s19
    %p47 = scmp.eq.s32.totalorder %s46, 0
    %s49 = sadd.s32 %s48, 1
    %s50 = scalar_select %p47, %s48, %s49
    %p53 = pneg %p47
    %p54 = scmp.eq.s32.totalorder %s12, 1
    %p55 = por %p53, %p54
    %p56 = scmp.ne.s32.totalorder %s48, %s51
    %p57 = scmp.eq.s32.totalorder %s12, 0
    %p58 = por %p56, %p57
    %p59 = scmp.ne.s32.totalorder %s48, %s51
    %p60 = scmp.eq.s32.totalorder %s17, 1
    %p61 = por %p59, %p60
    %p62 = scmp.ne.s32.totalorder %s51, %s52
    %p63 = scmp.eq.s32.totalorder %s17, 0
    %p64 = por %p62, %p63
    %p65 = scmp.ne.s32.totalorder %s51, %s52
    %p66 = scmp.eq.s32.totalorder %s18, 1
    %p67 = por %p65, %p66
    %p69 = scmp.ne.s32.totalorder %s52, %s68
    %p70 = scmp.eq.s32.totalorder %s18, 0
    %p71 = por %p69, %p70
    %s73 = sadd.s32 %s72, 1
    %p76 = scmp.eq.s32.totalorder %s12, 1
    %p77 = scmp.ne.s32.totalorder %s72, %s74
    %p78 = scmp.eq.s32.totalorder %s12, 0
    %p79 = por %p77, %p78
    %p80 = scmp.ne.s32.totalorder %s72, %s74
    %p81 = scmp.eq.s32.totalorder %s17, 1
    %p82 = por %p80, %p81
    %p83 = scmp.ne.s32.totalorder %s74, %s75
    %p84 = scmp.eq.s32.totalorder %s17, 0
    %p85 = por %p83, %p84
    %p86 = scmp.ne.s32.totalorder %s74, %s75
    %p87 = scmp.eq.s32.totalorder %s18, 1
    %p88 = por %p86, %p87
    %p90 = scmp.ne.s32.totalorder %s75, %s89
    %p91 = scmp.eq.s32.totalorder %s18, 0
    %p92 = por %p90, %p91
    %s94 = sadd.s32 %s93, 1
    %p97 = scmp.eq.s32.totalorder %s12, 1
    %p98 = scmp.ne.s32.totalorder %s93, %s95
    %p99 = scmp.eq.s32.totalorder %s12, 0
    %p100 = por %p98, %p99
    %p101 = scmp.ne.s32.totalorder %s93, %s95
    %p102 = scmp.eq.s32.totalorder %s17, 1
    %p103 = por %p101, %p102
    %p104 = scmp.ne.s32.totalorder %s95, %s96
    %p105 = scmp.eq.s32.totalorder %s17, 0
    %p106 = por %p104, %p105
    %p107 = scmp.ne.s32.totalorder %s95, %s96
    %p108 = scmp.eq.s32.totalorder %s18, 1
    %p109 = por %p107, %p108
    %p111 = scmp.ne.s32.totalorder %s96, %s110
    %p112 = scmp.eq.s32.totalorder %s18, 0
    %p113 = por %p111, %p112
    %s115 = sadd.s32 %s114, 1
    %p118 = scmp.eq.s32.totalorder %s12, 1
    %p119 = scmp.ne.s32.totalorder %s114, %s116
    %p120 = scmp.eq.s32.totalorder %s12, 0
    %p121 = por %p119, %p120
    %p122 = scmp.ne.s32.totalorder %s114, %s116
    %p123 = scmp.eq.s32.totalorder %s17, 1
    %p124 = por %p122, %p123
    %p125 = scmp.ne.s32.totalorder %s116, %s117
    %p126 = scmp.eq.s32.totalorder %s17, 0
    %p127 = por %p125, %p126
    %p128 = scmp.ne.s32.totalorder %s116, %s117
    %p129 = scmp.eq.s32.totalorder %s18, 1
    %p130 = por %p128, %p129
    %p132 = scmp.ne.s32.totalorder %s117, %s131
    %p133 = scmp.eq.s32.totalorder %s18, 0
    %p134 = por %p132, %p133
    %s136 = sadd.s32 %s135, 1
    %p139 = scmp.eq.s32.totalorder %s12, 1
    %p140 = scmp.ne.s32.totalorder %s135, %s137
    %p141 = scmp.eq.s32.totalorder %s12, 0
    %p142 = por %p140, %p141
    %p143 = scmp.ne.s32.totalorder %s135, %s137
    %p144 = scmp.eq.s32.totalorder %s17, 1
    %p145 = por %p143, %p144
    %p146 = scmp.ne.s32.totalorder %s137, %s138
    %p147 = scmp.eq.s32.totalorder %s17, 0
    %p148 = por %p146, %p147
    %p149 = scmp.ne.s32.totalorder %s137, %s138
    %p150 = scmp.eq.s32.totalorder %s18, 1
    %p151 = por %p149, %p150
    %p153 = scmp.ne.s32.totalorder %s138, %s152
    %p154 = scmp.eq.s32.totalorder %s18, 0
    %p155 = por %p153, %p154
    %s156 = ssub.s32 %s12, %s19
    %p157 = scmp.eq.s32.totalorder %s156, 0
    %s159 = sadd.s32 %s158, 1
    %s160 = scalar_select %p157, %s158, %s159
    %p163 = pneg %p157
    %p164 = scmp.eq.s32.totalorder %s12, 1
    %p165 = por %p163, %p164
    %p166 = scmp.ne.s32.totalorder %s158, %s161
    %p167 = scmp.eq.s32.totalorder %s12, 0
    %p168 = por %p166, %p167
    %p169 = scmp.ne.s32.totalorder %s158, %s161
    %p170 = scmp.eq.s32.totalorder %s17, 1
    %p171 = por %p169, %p170
    %p172 = scmp.ne.s32.totalorder %s161, %s162
    %p173 = scmp.eq.s32.totalorder %s17, 0
    %p174 = por %p172, %p173
    %p175 = scmp.ne.s32.totalorder %s161, %s162
    %p176 = scmp.eq.s32.totalorder %s18, 1
    %p177 = por %p175, %p176
    %p179 = scmp.ne.s32.totalorder %s162, %s178
    %p180 = scmp.eq.s32.totalorder %s18, 0
    %p181 = por %p179, %p180
    %p182 = scmp.le.s32.totalorder 1, %s12
    %p183 = scmp.lt.s32.totalorder %s12, 3
    %p184 = pnand %p182, %p183
    %p185 = pneg %p184
    // Predicated region
    $region9: #{_lambda_.26} parent=5 // pred_check
      _
    $region10: #{_lambda_.26} parent=5 // pred_check_branch
      %187 = sbr.rel (%p184) target = $region12
    $region11: #{_lambda_.26} parent=5 // pred_region
      %s188 = ssub.s32 %s12, 1
      // Predicated region
      $region13: #{_lambda_.26} parent=11 // pred_check
        %p189 = pneg %p85
      $region14: #{_lambda_.26} parent=11 // pred_check_branch
        %191 = sbr.rel (%p189) target = $region16
      $region15: #{_lambda_.26} parent=11 // pred_region
        _
      $region16: #{_lambda_.26} parent=11 // pred_fallthru
        _
      // Predicated region
      $region17: #{_lambda_.26} parent=11 // pred_check
        %p192 = pneg %p106
      $region18: #{_lambda_.26} parent=11 // pred_check_branch
        %194 = sbr.rel (%p192) target = $region20
      $region19: #{_lambda_.26} parent=11 // pred_region
        _
      $region20: #{_lambda_.26} parent=11 // pred_fallthru
        _
      // Predicated region
      $region21: #{_lambda_.26} parent=11 // pred_check
        %p195 = pneg %p127
      $region22: #{_lambda_.26} parent=11 // pred_check_branch
        %197 = sbr.rel (%p195) target = $region24
      $region23: #{_lambda_.26} parent=11 // pred_region
        _
      $region24: #{_lambda_.26} parent=11 // pred_fallthru
        _
      // Predicated region
      $region25: #{_lambda_.26} parent=11 // pred_check
        %p198 = pneg %p148
      $region26: #{_lambda_.26} parent=11 // pred_check_branch
        %200 = sbr.rel (%p198) target = $region28
      $region27: #{_lambda_.26} parent=11 // pred_region
        _
      $region28: #{_lambda_.26} parent=11 // pred_fallthru
        _
    $region12: #{_lambda_.26} parent=5 // pred_fallthru
      _
    %p201 = scmp.lt.s32.totalorder %s12, 2
    // Predicated region
    $region29: #{_lambda_.26} parent=5 // pred_check
      %p202 = pneg %p201
    $region30: #{_lambda_.26} parent=5 // pred_check_branch
      %204 = sbr.rel (%p202) target = $region32
    $region31: #{_lambda_.26} parent=5 // pred_region
      // Predicated region
      $region33: #{_lambda_.26} parent=31 // pred_check
        %p205 = pneg %p32
      $region34: #{_lambda_.26} parent=31 // pred_check_branch
        %207 = sbr.rel (%p205) target = $region36
      $region35: #{_lambda_.26} parent=31 // pred_region
        %p208 = scmp.lt.s32.totalorder %s12, 1
        %s209 = scalar_select %p208, %s12, 1
        %s210 = smul.addr %s209, 8
        %s211 = scalar_lea.vmem %s0, %s210
      $region36: #{_lambda_.26} parent=31 // pred_fallthru
        _
      // Predicated region
      $region37: #{_lambda_.26} parent=31 // pred_check
        %p212 = pneg %p58
      $region38: #{_lambda_.26} parent=31 // pred_check_branch
        %214 = sbr.rel (%p212) target = $region40
      $region39: #{_lambda_.26} parent=31 // pred_region
        %p215 = scmp.lt.s32.totalorder %s12, 1
        %s216 = scalar_select %p215, %s12, 1
        %s217 = smul.addr %s216, 8
        %s218 = scalar_lea.vmem %s1, %s217
      $region40: #{_lambda_.26} parent=31 // pred_fallthru
        _
    $region32: #{_lambda_.26} parent=5 // pred_fallthru
      _
    %p219 = scmp.le.s32.totalorder 1, %s12
    %p220 = scmp.lt.s32.totalorder %s12, 3
    %p221 = pnand %p219, %p220
    %p222 = pneg %p221
    // Predicated region
    $region41: #{_lambda_.26} parent=5 // pred_check
      _
    $region42: #{_lambda_.26} parent=5 // pred_check_branch
      %224 = sbr.rel (%p221) target = $region44
    $region43: #{_lambda_.26} parent=5 // pred_region
      %s225 = ssub.s32 %s12, 1
      %p226 = scmp.lt.s32.totalorder %s17, 1
      %s227 = scalar_select %p226, %s17, 1
      %s228 = smul.addr %s227, 8
      %s229 = scalar_lea.vmem %s0, %s228
      %p230 = pneg %p38
      %p231 = pneg %p35
      %p232 = scmp.lt.s32.totalorder %s17, 1
      %s233 = scalar_select %p232, %s17, 1
      %s234 = smul.addr %s233, 8
      %s235 = scalar_lea.vmem %s1, %s234
      %p236 = pneg %p64
      %p237 = pneg %p61
      %p238 = pneg %p85
      %p239 = pneg %p82
      %p240 = pneg %p106
      %p241 = pneg %p103
      %p242 = pneg %p127
      %p243 = pneg %p124
      %p244 = pneg %p148
      %p245 = pneg %p145
      %p246 = pneg %p174
      %p247 = pneg %p171
      %p248 = scmp.lt.s32.totalorder %s17, 1
      %s249 = scalar_select %p248, %s17, 1
      %s250 = smul.addr %s249, 8
      %s251 = scalar_lea.vmem %s6, %s250
      %p252 = scmp.lt.s32.totalorder %s17, 1
      %s253 = scalar_select %p252, %s17, 1
      %s254 = smul.addr %s253, 8
      %s255 = scalar_lea.vmem %s0, %s254
      %p256 = scmp.lt.s32.totalorder %s17, 1
      %s257 = scalar_select %p256, %s17, 1
      %s258 = smul.addr %s257, 8
      %s259 = scalar_lea.vmem %s1, %s258
      %p260 = scmp.lt.s32.totalorder %s17, 1
      %s261 = scalar_select %p260, %s17, 1
      %s262 = smul.addr %s261, 8
      %s263 = scalar_lea.vmem %s6, %s262
      %v265 = vld [vmem:[%s255] sm:$0xff]
      %v266 = vpack.c.bf16 %v265, %v265
      %v267 = vld [vmem:[%s2] sm:$0xf]
      %v268 = vld [vmem:[%s2 + $0x4] sm:$0xf]
      %v269 = vld [vmem:[%s2 + $0x8] sm:$0xf]
      %v270 = vld [vmem:[%s2 + $0xc] sm:$0xf]
      %v271 = vld [vmem:[%s3] sm:$0x1]
      %v273 = vlaneseq
      %v274 = vshrl.u32 %v273, 7
      %v275 = vsub.s32 0, %v274
      %v276 = vrot.slane %v271, %v275
      %v282 = vunpack.c.l.b16 %v267
      %v283 = vunpack.c.l.b16 %v268
      %v284 = vunpack.c.l.b16 %v269
      %v285 = vunpack.c.l.b16 %v270
      %v286 = vpack.c.b16 %v283, %v282
      %v287 = vpack.c.b16 %v285, %v284
      %vm290 = vcmask 261120
      %v292 = vsel %vm290, %v266, 0
      %294 = vmatprep.subr.bf16.mxu0 0
      %295 = vmatpush1.bf16.msra.mxu0 %v286
      %296 = vmatprep.subr.bf16.mxu0 0
      %297 = vmatpush1.bf16.msra.mxu0 %v287
      %298 = vmatprep.subr.bf16.mxu0 0
      %299 = vmatpush1.bf16.msra.mxu0 0
      %300 = vmatprep.subr.bf16.mxu0 0
      %301 = vmatpush1.bf16.msra.mxu0 0
      %302 = vmatprep.subr.bf16.mxu0 0
      %303 = vmatpush1.bf16.msra.mxu0 0
      %304 = vmatprep.subr.bf16.mxu0 0
      %305 = vmatpush1.bf16.msra.mxu0 0
      %306 = vmatprep.subr.bf16.mxu0 0
      %307 = vmatpush1.bf16.msra.mxu0 0
      %308 = vmatprep.subr.bf16.mxu0 0
      %309 = vmatpush1.bf16.msra.mxu0 0
      %310 = vmatprep.subr.bf16.mxu0 0
      %311 = vmatpush1.bf16.msra.mxu0 0
      %312 = vmatprep.subr.bf16.mxu0 0
      %313 = vmatpush1.bf16.msra.mxu0 0
      %314 = vmatprep.subr.bf16.mxu0 0
      %315 = vmatpush1.bf16.msra.mxu0 0
      %316 = vmatprep.subr.bf16.mxu0 0
      %317 = vmatpush1.bf16.msra.mxu0 0
      %318 = vmatprep.subr.bf16.mxu0 0
      %319 = vmatpush1.bf16.msra.mxu0 0
      %320 = vmatprep.subr.bf16.mxu0 0
      %321 = vmatpush1.bf16.msra.mxu0 0
      %322 = vmatprep.subr.bf16.mxu0 0
      %323 = vmatpush1.bf16.msra.mxu0 0
      %324 = vmatprep.subr.bf16.mxu0 0
      %325 = vmatpush1.bf16.msra.mxu0 0
      %326 = vmatprep.mubr.bf16.mxu0 0
      %327 = vmatmul.mubr.bf16.gmra.mrb[0].mxu0 %v292
      %v328 = vpop.f32.mrb[0].mxu0
      %v329 = vadd.f32 %v276, %v328
      %v330 = vpop.f32.mrb[0].mxu0
      %v331 = vpop.f32.mrb[0].mxu0
      %v332 = vpop.f32.mrb[0].mxu0
      %333 = vdwg.mxu0
      %v334 = vld [vmem:[%s259] sm:$0xff]
      %v335 = vadd.f32 %v329, %v334
      %v336 = vld [vmem:[%s4] sm:$0x1]
      %v337 = vld [vmem:[%s5] sm:$0x1]
      %v338 = vsel %vm290, %v335, 0.0
      %339 = vadd.xlane.f32.xlu0 %v338
      %v340 = vpop.xlane.xlu0 %339
      %v341 = vrcp.pop 32.0
      %v342 = vmul.f32 %v340, %v341
      %v343 = vsub.f32 %v335, %v342
      %v344 = vmul.f32 %v343, %v343
      %v345 = vsel %vm290, %v344, 0.0
      %346 = vadd.xlane.f32.xlu0 %v345
      %v347 = vpop.xlane.xlu0 %346
      %v348 = vmul.f32 %v347, %v341
      %v349 = vadd.f32 %v348, 1e-12
      %v350 = vrsqrt.pop %v349
      %v351 = vmul.f32 %v343, %v350
      %v353 = vlaneseq
      %v354 = vshrl.u32 %v353, 7
      %v355 = vsub.s32 0, %v354
      %v356 = vrot.slane %v336, %v355
      %v358 = vmul.f32 %v351, %v356
      %v360 = vlaneseq
      %v361 = vshrl.u32 %v360, 7
      %v362 = vsub.s32 0, %v361
      %v363 = vrot.slane %v337, %v362
      %v365 = vadd.f32 %v358, %v363
      %366 = vst.msk [vmem:[%s263] sm:$0xff] %vm290, %v365
      %p367 = scmp.lt.s32.totalorder %s17, 1
      %s368 = scalar_select %p367, %s17, 1
      %s369 = smul.addr %s368, 8
      %s370 = scalar_lea.vmem %s6, %s369
      // Predicated region
      $region45: #{_lambda_.26} parent=43 // pred_check
        %p371 = pneg %p171
      $region46: #{_lambda_.26} parent=43 // pred_check_branch
        %373 = sbr.rel (%p371) target = $region48
      $region47: #{_lambda_.26} parent=43 // pred_region
        _
      $region48: #{_lambda_.26} parent=43 // pred_fallthru
        _
    $region44: #{_lambda_.26} parent=5 // pred_fallthru
      _
    %p374 = scmp.le.s32.totalorder 2, %s12
    // Predicated region
    $region49: #{_lambda_.26} parent=5 // pred_check
      %p375 = pneg %p374
    $region50: #{_lambda_.26} parent=5 // pred_check_branch
      %377 = sbr.rel (%p375) target = $region52
    $region51: #{_lambda_.26} parent=5 // pred_region
      %s378 = ssub.s32 %s12, 2
      // Predicated region
      $region53: #{_lambda_.26} parent=51 // pred_check
        %p379 = pneg %p177
      $region54: #{_lambda_.26} parent=51 // pred_check_branch
        %381 = sbr.rel (%p379) target = $region56
      $region55: #{_lambda_.26} parent=51 // pred_region
        %p382 = scmp.lt.s32.totalorder %s18, 1
        %s383 = scalar_select %p382, %s18, 1
        %s384 = smul.addr %s383, 8
        %s385 = scalar_lea.vmem %s6, %s384
      $region56: #{_lambda_.26} parent=51 // pred_fallthru
        _
    $region52: #{_lambda_.26} parent=5 // pred_fallthru
      _
  $region6: #{_lambda_.26} parent=0 // loop_footer
    %s16 = sadd.s32 1, %s12
  $region7: #{_lambda_.26} parent=0 // loop_footer_branch
    %11 = sbr.rel target = $region3
  $region8: #{_lambda_.26} parent=0 // loop_exit
    _

// kernel: _lambda_.24
$region0: #{_lambda_.24}
  #allocation0 [shape = 'u32[]', space=smem, size = 0x4, offset = 0x4, fixed_abs, tag = 'smem constant byte address 0x4 - core index']
  #allocation1 [shape = 'u32[144,128]{1,0:T(1,128)}', space=vmem, size = 0x12000, scoped, tag = 'internal scratch']
  %s0 = inlined_call_operand.vmem [shape: f32[16,32], index: 0, kind: input, shape index: {}]
  %s1 = inlined_call_operand.vmem [shape: bf16[32,32], index: 1, kind: input, shape index: {}]
  %s2 = inlined_call_operand.vmem [shape: f32[1,32], index: 2, kind: input, shape index: {}]
  %s3 = inlined_call_operand.vmem [shape: bf16[32,32], index: 3, kind: input, shape index: {}]
  %s4 = inlined_call_operand.vmem [shape: f32[1,32], index: 4, kind: input, shape index: {}]
  %s5 = inlined_call_operand.vmem [shape: bf16[32,32], index: 5, kind: input, shape index: {}]
  %s6 = inlined_call_operand.vmem [shape: f32[1,32], index: 6, kind: input, shape index: {}]
  %s7 = inlined_call_operand.vmem [shape: f32[16,32], index: 7, kind: output, shape index: {0}]
  %s8 = inlined_call_operand.vmem [shape: f32[16,32], index: 8, kind: output, shape index: {1}]
  %s9 = inlined_call_operand.vmem [shape: f32[16,32], index: 9, kind: output, shape index: {2}]
  %10 = xla_tuple %s7, %s8, %s9
  %s11 = sld [smem:[#allocation0]]
  $region77: #{_lambda_.24} parent=0
    _
  %s13 = ssub.s32 1, %s11
  %s14 = scalar_select 0, %s13, %s11
  loop: start=0, step=1, limit=4
  $region2: #{_lambda_.24} parent=0 // loop_pre_header
    _
  $region3: #{_lambda_.24} parent=0 // loop_header
    %s16 = sphi 0, %s20
    %p17 = scmp.ge.s32.totalorder %s16, 4
    %s26 = sphi 0, %s28
    %s29 = sphi 0, %s26
    %s30 = sphi 0, %s29
    %s46 = sphi 0, %s30
    %s50 = sphi 0, %s50
    %s52 = sphi 0, %s50
    %s53 = sphi 0, %s52
    %s67 = sphi 0, %s53
    %s71 = sphi 0, %s71
    %s73 = sphi 0, %s71
    %s74 = sphi 0, %s73
    %s88 = sphi 0, %s74
    %s92 = sphi 0, %s92
    %s94 = sphi 0, %s92
    %s95 = sphi 0, %s94
    %s109 = sphi 0, %s95
    %s113 = sphi 0, %s113
    %s115 = sphi 0, %s113
    %s116 = sphi 0, %s115
    %s130 = sphi 0, %s116
    %s134 = sphi 0, %s134
    %s136 = sphi 0, %s134
    %s137 = sphi 0, %s136
    %s151 = sphi 0, %s137
    %s155 = sphi 0, %s155
    %s157 = sphi 0, %s155
    %s158 = sphi 0, %s157
    %s172 = sphi 0, %s158
    %s178 = sphi 0, %s180
    %s181 = sphi 0, %s178
    %s182 = sphi 0, %s181
    %s198 = sphi 0, %s182
    %s204 = sphi 0, %s206
    %s207 = sphi 0, %s204
    %s208 = sphi 0, %s207
    %s224 = sphi 0, %s208
    %s230 = sphi 0, %s232
    %s233 = sphi 0, %s230
    %s234 = sphi 0, %s233
    %s250 = sphi 0, %s234
  $region4: #{_lambda_.24} parent=0 // loop_header_branch
    %19 = sbr.rel (%p17) target = $region8
  $region5: #{_lambda_.24} parent=0 // loop_body
    %s21 = ssub.s32 %s16, 1
    %s22 = ssub.s32 %s16, 2
    %s23 = sadd.s32 %s16, 1
    %s24 = ssub.s32 %s16, %s23
    %p25 = scmp.eq.s32.totalorder %s24, 0
    %s27 = sadd.s32 %s26, 1
    %s28 = scalar_select %p25, %s26, %s27
    %p31 = pneg %p25
    %p32 = scmp.eq.s32.totalorder %s16, 1
    %p33 = por %p31, %p32
    %p34 = scmp.ne.s32.totalorder %s26, %s29
    %p35 = scmp.eq.s32.totalorder %s16, 0
    %p36 = por %p34, %p35
    %p37 = scmp.ne.s32.totalorder %s26, %s29
    %p38 = scmp.eq.s32.totalorder %s21, 1
    %p39 = por %p37, %p38
    %p40 = scmp.ne.s32.totalorder %s29, %s30
    %p41 = scmp.eq.s32.totalorder %s21, 0
    %p42 = por %p40, %p41
    %p43 = scmp.ne.s32.totalorder %s29, %s30
    %p44 = scmp.eq.s32.totalorder %s22, 1
    %p45 = por %p43, %p44
    %p47 = scmp.ne.s32.totalorder %s30, %s46
    %p48 = scmp.eq.s32.totalorder %s22, 0
    %p49 = por %p47, %p48
    %s51 = sadd.s32 %s50, 1
    %p54 = scmp.eq.s32.totalorder %s16, 1
    %p55 = scmp.ne.s32.totalorder %s50, %s52
    %p56 = scmp.eq.s32.totalorder %s16, 0
    %p57 = por %p55, %p56
    %p58 = scmp.ne.s32.totalorder %s50, %s52
    %p59 = scmp.eq.s32.totalorder %s21, 1
    %p60 = por %p58, %p59
    %p61 = scmp.ne.s32.totalorder %s52, %s53
    %p62 = scmp.eq.s32.totalorder %s21, 0
    %p63 = por %p61, %p62
    %p64 = scmp.ne.s32.totalorder %s52, %s53
    %p65 = scmp.eq.s32.totalorder %s22, 1
    %p66 = por %p64, %p65
    %p68 = scmp.ne.s32.totalorder %s53, %s67
    %p69 = scmp.eq.s32.totalorder %s22, 0
    %p70 = por %p68, %p69
    %s72 = sadd.s32 %s71, 1
    %p75 = scmp.eq.s32.totalorder %s16, 1
    %p76 = scmp.ne.s32.totalorder %s71, %s73
    %p77 = scmp.eq.s32.totalorder %s16, 0
    %p78 = por %p76, %p77
    %p79 = scmp.ne.s32.totalorder %s71, %s73
    %p80 = scmp.eq.s32.totalorder %s21, 1
    %p81 = por %p79, %p80
    %p82 = scmp.ne.s32.totalorder %s73, %s74
    %p83 = scmp.eq.s32.totalorder %s21, 0
    %p84 = por %p82, %p83
    %p85 = scmp.ne.s32.totalorder %s73, %s74
    %p86 = scmp.eq.s32.totalorder %s22, 1
    %p87 = por %p85, %p86
    %p89 = scmp.ne.s32.totalorder %s74, %s88
    %p90 = scmp.eq.s32.totalorder %s22, 0
    %p91 = por %p89, %p90
    %s93 = sadd.s32 %s92, 1
    %p96 = scmp.eq.s32.totalorder %s16, 1
    %p97 = scmp.ne.s32.totalorder %s92, %s94
    %p98 = scmp.eq.s32.totalorder %s16, 0
    %p99 = por %p97, %p98
    %p100 = scmp.ne.s32.totalorder %s92, %s94
    %p101 = scmp.eq.s32.totalorder %s21, 1
    %p102 = por %p100, %p101
    %p103 = scmp.ne.s32.totalorder %s94, %s95
    %p104 = scmp.eq.s32.totalorder %s21, 0
    %p105 = por %p103, %p104
    %p106 = scmp.ne.s32.totalorder %s94, %s95
    %p107 = scmp.eq.s32.totalorder %s22, 1
    %p108 = por %p106, %p107
    %p110 = scmp.ne.s32.totalorder %s95, %s109
    %p111 = scmp.eq.s32.totalorder %s22, 0
    %p112 = por %p110, %p111
    %s114 = sadd.s32 %s113, 1
    %p117 = scmp.eq.s32.totalorder %s16, 1
    %p118 = scmp.ne.s32.totalorder %s113, %s115
    %p119 = scmp.eq.s32.totalorder %s16, 0
    %p120 = por %p118, %p119
    %p121 = scmp.ne.s32.totalorder %s113, %s115
    %p122 = scmp.eq.s32.totalorder %s21, 1
    %p123 = por %p121, %p122
    %p124 = scmp.ne.s32.totalorder %s115, %s116
    %p125 = scmp.eq.s32.totalorder %s21, 0
    %p126 = por %p124, %p125
    %p127 = scmp.ne.s32.totalorder %s115, %s116
    %p128 = scmp.eq.s32.totalorder %s22, 1
    %p129 = por %p127, %p128
    %p131 = scmp.ne.s32.totalorder %s116, %s130
    %p132 = scmp.eq.s32.totalorder %s22, 0
    %p133 = por %p131, %p132
    %s135 = sadd.s32 %s134, 1
    %p138 = scmp.eq.s32.totalorder %s16, 1
    %p139 = scmp.ne.s32.totalorder %s134, %s136
    %p140 = scmp.eq.s32.totalorder %s16, 0
    %p141 = por %p139, %p140
    %p142 = scmp.ne.s32.totalorder %s134, %s136
    %p143 = scmp.eq.s32.totalorder %s21, 1
    %p144 = por %p142, %p143
    %p145 = scmp.ne.s32.totalorder %s136, %s137
    %p146 = scmp.eq.s32.totalorder %s21, 0
    %p147 = por %p145, %p146
    %p148 = scmp.ne.s32.totalorder %s136, %s137
    %p149 = scmp.eq.s32.totalorder %s22, 1
    %p150 = por %p148, %p149
    %p152 = scmp.ne.s32.totalorder %s137, %s151
    %p153 = scmp.eq.s32.totalorder %s22, 0
    %p154 = por %p152, %p153
    %s156 = sadd.s32 %s155, 1
    %p159 = scmp.eq.s32.totalorder %s16, 1
    %p160 = scmp.ne.s32.totalorder %s155, %s157
    %p161 = scmp.eq.s32.totalorder %s16, 0
    %p162 = por %p160, %p161
    %p163 = scmp.ne.s32.totalorder %s155, %s157
    %p164 = scmp.eq.s32.totalorder %s21, 1
    %p165 = por %p163, %p164
    %p166 = scmp.ne.s32.totalorder %s157, %s158
    %p167 = scmp.eq.s32.totalorder %s21, 0
    %p168 = por %p166, %p167
    %p169 = scmp.ne.s32.totalorder %s157, %s158
    %p170 = scmp.eq.s32.totalorder %s22, 1
    %p171 = por %p169, %p170
    %p173 = scmp.ne.s32.totalorder %s158, %s172
    %p174 = scmp.eq.s32.totalorder %s22, 0
    %p175 = por %p173, %p174
    %s176 = ssub.s32 %s16, %s23
    %p177 = scmp.eq.s32.totalorder %s176, 0
    %s179 = sadd.s32 %s178, 1
    %s180 = scalar_select %p177, %s178, %s179
    %p183 = pneg %p177
    %p184 = scmp.eq.s32.totalorder %s16, 1
    %p185 = por %p183, %p184
    %p186 = scmp.ne.s32.totalorder %s178, %s181
    %p187 = scmp.eq.s32.totalorder %s16, 0
    %p188 = por %p186, %p187
    %p189 = scmp.ne.s32.totalorder %s178, %s181
    %p190 = scmp.eq.s32.totalorder %s21, 1
    %p191 = por %p189, %p190
    %p192 = scmp.ne.s32.totalorder %s181, %s182
    %p193 = scmp.eq.s32.totalorder %s21, 0
    %p194 = por %p192, %p193
    %p195 = scmp.ne.s32.totalorder %s181, %s182
    %p196 = scmp.eq.s32.totalorder %s22, 1
    %p197 = por %p195, %p196
    %p199 = scmp.ne.s32.totalorder %s182, %s198
    %p200 = scmp.eq.s32.totalorder %s22, 0
    %p201 = por %p199, %p200
    %s202 = ssub.s32 %s16, %s23
    %p203 = scmp.eq.s32.totalorder %s202, 0
    %s205 = sadd.s32 %s204, 1
    %s206 = scalar_select %p203, %s204, %s205
    %p209 = pneg %p203
    %p210 = scmp.eq.s32.totalorder %s16, 1
    %p211 = por %p209, %p210
    %p212 = scmp.ne.s32.totalorder %s204, %s207
    %p213 = scmp.eq.s32.totalorder %s16, 0
    %p214 = por %p212, %p213
    %p215 = scmp.ne.s32.totalorder %s204, %s207
    %p216 = scmp.eq.s32.totalorder %s21, 1
    %p217 = por %p215, %p216
    %p218 = scmp.ne.s32.totalorder %s207, %s208
    %p219 = scmp.eq.s32.totalorder %s21, 0
    %p220 = por %p218, %p219
    %p221 = scmp.ne.s32.totalorder %s207, %s208
    %p222 = scmp.eq.s32.totalorder %s22, 1
    %p223 = por %p221, %p222
    %p225 = scmp.ne.s32.totalorder %s208, %s224
    %p226 = scmp.eq.s32.totalorder %s22, 0
    %p227 = por %p225, %p226
    %s228 = ssub.s32 %s16, %s23
    %p229 = scmp.eq.s32.totalorder %s228, 0
    %s231 = sadd.s32 %s230, 1
    %s232 = scalar_select %p229, %s230, %s231
    %p235 = pneg %p229
    %p236 = scmp.eq.s32.totalorder %s16, 1
    %p237 = por %p235, %p236
    %p238 = scmp.ne.s32.totalorder %s230, %s233
    %p239 = scmp.eq.s32.totalorder %s16, 0
    %p240 = por %p238, %p239
    %p241 = scmp.ne.s32.totalorder %s230, %s233
    %p242 = scmp.eq.s32.totalorder %s21, 1
    %p243 = por %p241, %p242
    %p244 = scmp.ne.s32.totalorder %s233, %s234
    %p245 = scmp.eq.s32.totalorder %s21, 0
    %p246 = por %p244, %p245
    %p247 = scmp.ne.s32.totalorder %s233, %s234
    %p248 = scmp.eq.s32.totalorder %s22, 1
    %p249 = por %p247, %p248
    %p251 = scmp.ne.s32.totalorder %s234, %s250
    %p252 = scmp.eq.s32.totalorder %s22, 0
    %p253 = por %p251, %p252
    %p254 = scmp.le.s32.totalorder 1, %s16
    %p255 = scmp.lt.s32.totalorder %s16, 3
    %p256 = pnand %p254, %p255
    %p257 = pneg %p256
    // Predicated region
    $region9: #{_lambda_.24} parent=5 // pred_check
      _
    $region10: #{_lambda_.24} parent=5 // pred_check_branch
      %259 = sbr.rel (%p256) target = $region12
    $region11: #{_lambda_.24} parent=5 // pred_region
      %s260 = ssub.s32 %s16, 1
      // Predicated region
      $region13: #{_lambda_.24} parent=11 // pred_check
        %p261 = pneg %p63
      $region14: #{_lambda_.24} parent=11 // pred_check_branch
        %263 = sbr.rel (%p261) target = $region16
      $region15: #{_lambda_.24} parent=11 // pred_region
        _
      $region16: #{_lambda_.24} parent=11 // pred_fallthru
        _
      // Predicated region
      $region17: #{_lambda_.24} parent=11 // pred_check
        %p264 = pneg %p84
      $region18: #{_lambda_.24} parent=11 // pred_check_branch
        %266 = sbr.rel (%p264) target = $region20
      $region19: #{_lambda_.24} parent=11 // pred_region
        _
      $region20: #{_lambda_.24} parent=11 // pred_fallthru
        _
      // Predicated region
      $region21: #{_lambda_.24} parent=11 // pred_check
        %p267 = pneg %p105
      $region22: #{_lambda_.24} parent=11 // pred_check_branch
        %269 = sbr.rel (%p267) target = $region24
      $region23: #{_lambda_.24} parent=11 // pred_region
        _
      $region24: #{_lambda_.24} parent=11 // pred_fallthru
        _
      // Predicated region
      $region25: #{_lambda_.24} parent=11 // pred_check
        %p270 = pneg %p126
      $region26: #{_lambda_.24} parent=11 // pred_check_branch
        %272 = sbr.rel (%p270) target = $region28
      $region27: #{_lambda_.24} parent=11 // pred_region
        _
      $region28: #{_lambda_.24} parent=11 // pred_fallthru
        _
      // Predicated region
      $region29: #{_lambda_.24} parent=11 // pred_check
        %p273 = pneg %p147
      $region30: #{_lambda_.24} parent=11 // pred_check_branch
        %275 = sbr.rel (%p273) target = $region32
      $region31: #{_lambda_.24} parent=11 // pred_region
        _
      $region32: #{_lambda_.24} parent=11 // pred_fallthru
        _
      // Predicated region
      $region33: #{_lambda_.24} parent=11 // pred_check
        %p276 = pneg %p168
      $region34: #{_lambda_.24} parent=11 // pred_check_branch
        %278 = sbr.rel (%p276) target = $region36
      $region35: #{_lambda_.24} parent=11 // pred_region
        _
      $region36: #{_lambda_.24} parent=11 // pred_fallthru
        _
    $region12: #{_lambda_.24} parent=5 // pred_fallthru
      _
    %p279 = scmp.lt.s32.totalorder %s16, 2
    // Predicated region
    $region37: #{_lambda_.24} parent=5 // pred_check
      %p280 = pneg %p279
    $region38: #{_lambda_.24} parent=5 // pred_check_branch
      %282 = sbr.rel (%p280) target = $region40
    $region39: #{_lambda_.24} parent=5 // pred_region
      // Predicated region
      $region41: #{_lambda_.24} parent=39 // pred_check
        %p283 = pneg %p36
      $region42: #{_lambda_.24} parent=39 // pred_check_branch
        %285 = sbr.rel (%p283) target = $region44
      $region43: #{_lambda_.24} parent=39 // pred_region
        %p286 = scmp.lt.s32.totalorder %s16, 1
        %s287 = scalar_select %p286, %s16, 1
        %s288 = smul.addr %s287, 8
        %s289 = scalar_lea.vmem %s0, %s288
      $region44: #{_lambda_.24} parent=39 // pred_fallthru
        _
    $region40: #{_lambda_.24} parent=5 // pred_fallthru
      _
    %p290 = scmp.le.s32.totalorder 1, %s16
    %p291 = scmp.lt.s32.totalorder %s16, 3
    %p292 = pnand %p290, %p291
    %p293 = pneg %p292
    // Predicated region
    $region45: #{_lambda_.24} parent=5 // pred_check
      _
    $region46: #{_lambda_.24} parent=5 // pred_check_branch
      %295 = sbr.rel (%p292) target = $region48
    $region47: #{_lambda_.24} parent=5 // pred_region
      %s296 = ssub.s32 %s16, 1
      %p297 = scmp.lt.s32.totalorder %s21, 1
      %s298 = scalar_select %p297, %s21, 1
      %s299 = smul.addr %s298, 8
      %s300 = scalar_lea.vmem %s0, %s299
      %p301 = pneg %p42
      %p302 = pneg %p39
      %p303 = pneg %p63
      %p304 = pneg %p60
      %p305 = pneg %p84
      %p306 = pneg %p81
      %p307 = pneg %p105
      %p308 = pneg %p102
      %p309 = pneg %p126
      %p310 = pneg %p123
      %p311 = pneg %p147
      %p312 = pneg %p144
      %p313 = pneg %p168
      %p314 = pneg %p165
      %p315 = pneg %p194
      %p316 = pneg %p191
      %p317 = scmp.lt.s32.totalorder %s21, 1
      %s318 = scalar_select %p317, %s21, 1
      %s319 = smul.addr %s318, 8
      %s320 = scalar_lea.vmem %s7, %s319
      %p321 = pneg %p220
      %p322 = pneg %p217
      %p323 = scmp.lt.s32.totalorder %s21, 1
      %s324 = scalar_select %p323, %s21, 1
      %s325 = smul.addr %s324, 8
      %s326 = scalar_lea.vmem %s8, %s325
      %p327 = pneg %p246
      %p328 = pneg %p243
      %p329 = scmp.lt.s32.totalorder %s21, 1
      %s330 = scalar_select %p329, %s21, 1
      %s331 = smul.addr %s330, 8
      %s332 = scalar_lea.vmem %s9, %s331
      %p333 = scmp.lt.s32.totalorder %s21, 1
      %s334 = scalar_select %p333, %s21, 1
      %s335 = smul.addr %s334, 8
      %s336 = scalar_lea.vmem %s0, %s335
      %p337 = scmp.lt.s32.totalorder %s21, 1
      %s338 = scalar_select %p337, %s21, 1
      %s339 = smul.addr %s338, 8
      %s340 = scalar_lea.vmem %s7, %s339
      %p341 = scmp.lt.s32.totalorder %s21, 1
      %s342 = scalar_select %p341, %s21, 1
      %s343 = smul.addr %s342, 8
      %s344 = scalar_lea.vmem %s8, %s343
      %p345 = scmp.lt.s32.totalorder %s21, 1
      %s346 = scalar_select %p345, %s21, 1
      %s347 = smul.addr %s346, 8
      %s348 = scalar_lea.vmem %s9, %s347
      %v350 = vld [vmem:[%s336] sm:$0xff]
      %v351 = vpack.c.bf16 %v350, %v350
      %v352 = vld [vmem:[%s1] sm:$0xf]
      %v353 = vld [vmem:[%s1 + $0x4] sm:$0xf]
      %v354 = vld [vmem:[%s1 + $0x8] sm:$0xf]
      %v355 = vld [vmem:[%s1 + $0xc] sm:$0xf]
      %v356 = vld [vmem:[%s2] sm:$0x1]
      %v358 = vlaneseq
      %v359 = vshrl.u32 %v358, 7
      %v360 = vsub.s32 0, %v359
      %v361 = vrot.slane %v356, %v360
      %v367 = vunpack.c.l.b16 %v352
      %v368 = vunpack.c.l.b16 %v353
      %v369 = vunpack.c.l.b16 %v354
      %v370 = vunpack.c.l.b16 %v355
      %v371 = vpack.c.b16 %v368, %v367
      %v372 = vpack.c.b16 %v370, %v369
      %vm375 = vcmask 261120
      %v377 = vsel %vm375, %v351, 0
      %379 = vmatprep.subr.bf16.mxu0 0
      %380 = vmatpush1.bf16.msra.mxu0 %v371
      %381 = vmatprep.subr.bf16.mxu0 0
      %382 = vmatpush1.bf16.msra.mxu0 %v372
      %383 = vmatprep.subr.bf16.mxu0 0
      %384 = vmatpush1.bf16.msra.mxu0 0
      %385 = vmatprep.subr.bf16.mxu0 0
      %386 = vmatpush1.bf16.msra.mxu0 0
      %387 = vmatprep.subr.bf16.mxu0 0
      %388 = vmatpush1.bf16.msra.mxu0 0
      %389 = vmatprep.subr.bf16.mxu0 0
      %390 = vmatpush1.bf16.msra.mxu0 0
      %391 = vmatprep.subr.bf16.mxu0 0
      %392 = vmatpush1.bf16.msra.mxu0 0
      %393 = vmatprep.subr.bf16.mxu0 0
      %394 = vmatpush1.bf16.msra.mxu0 0
      %395 = vmatprep.subr.bf16.mxu0 0
      %396 = vmatpush1.bf16.msra.mxu0 0
      %397 = vmatprep.subr.bf16.mxu0 0
      %398 = vmatpush1.bf16.msra.mxu0 0
      %399 = vmatprep.subr.bf16.mxu0 0
      %400 = vmatpush1.bf16.msra.mxu0 0
      %401 = vmatprep.subr.bf16.mxu0 0
      %402 = vmatpush1.bf16.msra.mxu0 0
      %403 = vmatprep.subr.bf16.mxu0 0
      %404 = vmatpush1.bf16.msra.mxu0 0
      %405 = vmatprep.subr.bf16.mxu0 0
      %406 = vmatpush1.bf16.msra.mxu0 0
      %407 = vmatprep.subr.bf16.mxu0 0
      %408 = vmatpush1.bf16.msra.mxu0 0
      %409 = vmatprep.subr.bf16.mxu0 0
      %410 = vmatpush1.bf16.msra.mxu0 0
      %411 = vmatprep.mubr.bf16.mxu0 0
      %412 = vmatmul.mubr.bf16.gmra.mrb[0].mxu0 %v377
      %v413 = vpop.f32.mrb[0].mxu0
      %v414 = vadd.f32 %v361, %v413
      %v415 = vpop.f32.mrb[0].mxu0
      %v416 = vpop.f32.mrb[0].mxu0
      %v417 = vpop.f32.mrb[0].mxu0
      %418 = vdwg.mxu0
      %419 = vst.msk [vmem:[%s340] sm:$0xff] %vm375, %v414
      %v420 = vld [vmem:[%s3] sm:$0xf]
      %v421 = vld [vmem:[%s3 + $0x4] sm:$0xf]
      %v422 = vld [vmem:[%s3 + $0x8] sm:$0xf]
      %v423 = vld [vmem:[%s3 + $0xc] sm:$0xf]
      %v424 = vld [vmem:[%s4] sm:$0x1]
      %v426 = vlaneseq
      %v427 = vshrl.u32 %v426, 7
      %v428 = vsub.s32 0, %v427
      %v429 = vrot.slane %v424, %v428
      %v435 = vunpack.c.l.b16 %v420
      %v436 = vunpack.c.l.b16 %v421
      %v437 = vunpack.c.l.b16 %v422
      %v438 = vunpack.c.l.b16 %v423
      %v439 = vpack.c.b16 %v436, %v435
      %v440 = vpack.c.b16 %v438, %v437
      %443 = vmatprep.subr.bf16.mxu0 0
      %444 = vmatpush1.bf16.msra.mxu0 %v439
      %445 = vmatprep.subr.bf16.mxu0 0
      %446 = vmatpush1.bf16.msra.mxu0 %v440
      %447 = vmatprep.subr.bf16.mxu0 0
      %448 = vmatpush1.bf16.msra.mxu0 0
      %449 = vmatprep.subr.bf16.mxu0 0
      %450 = vmatpush1.bf16.msra.mxu0 0
      %451 = vmatprep.subr.bf16.mxu0 0
      %452 = vmatpush1.bf16.msra.mxu0 0
      %453 = vmatprep.subr.bf16.mxu0 0
      %454 = vmatpush1.bf16.msra.mxu0 0
      %455 = vmatprep.subr.bf16.mxu0 0
      %456 = vmatpush1.bf16.msra.mxu0 0
      %457 = vmatprep.subr.bf16.mxu0 0
      %458 = vmatpush1.bf16.msra.mxu0 0
      %459 = vmatprep.subr.bf16.mxu0 0
      %460 = vmatpush1.bf16.msra.mxu0 0
      %461 = vmatprep.subr.bf16.mxu0 0
      %462 = vmatpush1.bf16.msra.mxu0 0
      %463 = vmatprep.subr.bf16.mxu0 0
      %464 = vmatpush1.bf16.msra.mxu0 0
      %465 = vmatprep.subr.bf16.mxu0 0
      %466 = vmatpush1.bf16.msra.mxu0 0
      %467 = vmatprep.subr.bf16.mxu0 0
      %468 = vmatpush1.bf16.msra.mxu0 0
      %469 = vmatprep.subr.bf16.mxu0 0
      %470 = vmatpush1.bf16.msra.mxu0 0
      %471 = vmatprep.subr.bf16.mxu0 0
      %472 = vmatpush1.bf16.msra.mxu0 0
      %473 = vmatprep.subr.bf16.mxu0 0
      %474 = vmatpush1.bf16.msra.mxu0 0
      %475 = vmatprep.mubr.bf16.mxu0 0
      %476 = vmatmul.mubr.bf16.gmra.mrb[0].mxu0 %v377
      %v477 = vpop.f32.mrb[0].mxu0
      %v478 = vadd.f32 %v429, %v477
      %v479 = vpop.f32.mrb[0].mxu0
      %v480 = vpop.f32.mrb[0].mxu0
      %v481 = vpop.f32.mrb[0].mxu0
      %482 = vdwg.mxu0
      %483 = vst.msk [vmem:[%s344] sm:$0xff] %vm375, %v478
      %v484 = vld [vmem:[%s5] sm:$0xf]
      %v485 = vld [vmem:[%s5 + $0x4] sm:$0xf]
      %v486 = vld [vmem:[%s5 + $0x8] sm:$0xf]
      %v487 = vld [vmem:[%s5 + $0xc] sm:$0xf]
      %v488 = vld [vmem:[%s6] sm:$0x1]
      %v490 = vlaneseq
      %v491 = vshrl.u32 %v490, 7
      %v492 = vsub.s32 0, %v491
      %v493 = vrot.slane %v488, %v492
      %v499 = vunpack.c.l.b16 %v484
      %v500 = vunpack.c.l.b16 %v485
      %v501 = vunpack.c.l.b16 %v486
      %v502 = vunpack.c.l.b16 %v487
      %v503 = vpack.c.b16 %v500, %v499
      %v504 = vpack.c.b16 %v502, %v501
      %507 = vmatprep.subr.bf16.mxu0 0
      %508 = vmatpush1.bf16.msra.mxu0 %v503
      %509 = vmatprep.subr.bf16.mxu0 0
      %510 = vmatpush1.bf16.msra.mxu0 %v504
      %511 = vmatprep.subr.bf16.mxu0 0
      %512 = vmatpush1.bf16.msra.mxu0 0
      %513 = vmatprep.subr.bf16.mxu0 0
      %514 = vmatpush1.bf16.msra.mxu0 0
      %515 = vmatprep.subr.bf16.mxu0 0
      %516 = vmatpush1.bf16.msra.mxu0 0
      %517 = vmatprep.subr.bf16.mxu0 0
      %518 = vmatpush1.bf16.msra.mxu0 0
      %519 = vmatprep.subr.bf16.mxu0 0
      %520 = vmatpush1.bf16.msra.mxu0 0
      %521 = vmatprep.subr.bf16.mxu0 0
      %522 = vmatpush1.bf16.msra.mxu0 0
      %523 = vmatprep.subr.bf16.mxu0 0
      %524 = vmatpush1.bf16.msra.mxu0 0
      %525 = vmatprep.subr.bf16.mxu0 0
      %526 = vmatpush1.bf16.msra.mxu0 0
      %527 = vmatprep.subr.bf16.mxu0 0
      %528 = vmatpush1.bf16.msra.mxu0 0
      %529 = vmatprep.subr.bf16.mxu0 0
      %530 = vmatpush1.bf16.msra.mxu0 0
      %531 = vmatprep.subr.bf16.mxu0 0
      %532 = vmatpush1.bf16.msra.mxu0 0
      %533 = vmatprep.subr.bf16.mxu0 0
      %534 = vmatpush1.bf16.msra.mxu0 0
      %535 = vmatprep.subr.bf16.mxu0 0
      %536 = vmatpush1.bf16.msra.mxu0 0
      %537 = vmatprep.subr.bf16.mxu0 0
      %538 = vmatpush1.bf16.msra.mxu0 0
      %539 = vmatprep.mubr.bf16.mxu0 0
      %540 = vmatmul.mubr.bf16.gmra.mrb[0].mxu0 %v377
      %v541 = vpop.f32.mrb[0].mxu0
      %v542 = vadd.f32 %v493, %v541
      %v543 = vpop.f32.mrb[0].mxu0
      %v544 = vpop.f32.mrb[0].mxu0
      %v545 = vpop.f32.mrb[0].mxu0
      %546 = vdwg.mxu0
      %547 = vst.msk [vmem:[%s348] sm:$0xff] %vm375, %v542
      %p548 = scmp.lt.s32.totalorder %s21, 1
      %s549 = scalar_select %p548, %s21, 1
      %s550 = smul.addr %s549, 8
      %s551 = scalar_lea.vmem %s7, %s550
      %p552 = scmp.lt.s32.totalorder %s21, 1
      %s553 = scalar_select %p552, %s21, 1
      %s554 = smul.addr %s553, 8
      %s555 = scalar_lea.vmem %s8, %s554
      %p556 = scmp.lt.s32.totalorder %s21, 1
      %s557 = scalar_select %p556, %s21, 1
      %s558 = smul.addr %s557, 8
      %s559 = scalar_lea.vmem %s9, %s558
      // Predicated region
      $region49: #{_lambda_.24} parent=47 // pred_check
        %p560 = pneg %p191
      $region50: #{_lambda_.24} parent=47 // pred_check_branch
        %562 = sbr.rel (%p560) target = $region52
      $region51: #{_lambda_.24} parent=47 // pred_region
        _
      $region52: #{_lambda_.24} parent=47 // pred_fallthru
        _
      // Predicated region
      $region53: #{_lambda_.24} parent=47 // pred_check
        %p563 = pneg %p217
      $region54: #{_lambda_.24} parent=47 // pred_check_branch
        %565 = sbr.rel (%p563) target = $region56
      $region55: #{_lambda_.24} parent=47 // pred_region
        _
      $region56: #{_lambda_.24} parent=47 // pred_fallthru
        _
      // Predicated region
      $region57: #{_lambda_.24} parent=47 // pred_check
        %p566 = pneg %p243
      $region58: #{_lambda_.24} parent=47 // pred_check_branch
        %568 = sbr.rel (%p566) target = $region60
      $region59: #{_lambda_.24} parent=47 // pred_region
        _
      $region60: #{_lambda_.24} parent=47 // pred_fallthru
        _
    $region48: #{_lambda_.24} parent=5 // pred_fallthru
      _
    %p569 = scmp.le.s32.totalorder 2, %s16
    // Predicated region
    $region61: #{_lambda_.24} parent=5 // pred_check
      %p570 = pneg %p569
    $region62: #{_lambda_.24} parent=5 // pred_check_branch
      %572 = sbr.rel (%p570) target = $region64
    $region63: #{_lambda_.24} parent=5 // pred_region
      %s573 = ssub.s32 %s16, 2
      // Predicated region
      $region65: #{_lambda_.24} parent=63 // pred_check
        %p574 = pneg %p197
      $region66: #{_lambda_.24} parent=63 // pred_check_branch
        %576 = sbr.rel (%p574) target = $region68
      $region67: #{_lambda_.24} parent=63 // pred_region
        %p577 = scmp.lt.s32.totalorder %s22, 1
        %s578 = scalar_select %p577, %s22, 1
        %s579 = smul.addr %s578, 8
        %s580 = scalar_lea.vmem %s7, %s579
      $region68: #{_lambda_.24} parent=63 // pred_fallthru
        _
      // Predicated region
      $region69: #{_lambda_.24} parent=63 // pred_check
        %p581 = pneg %p223
      $region70: #{_lambda_.24} parent=63 // pred_check_branch
        %583 = sbr.rel (%p581) target = $region72
      $region71: #{_lambda_.24} parent=63 // pred_region
        %p584 = scmp.lt.s32.totalorder %s22, 1
        %s585 = scalar_select %p584, %s22, 1
        %s586 = smul.addr %s585, 8
        %s587 = scalar_lea.vmem %s8, %s586
      $region72: #{_lambda_.24} parent=63 // pred_fallthru
        _
      // Predicated region
      $region73: #{_lambda_.24} parent=63 // pred_check
        %p588 = pneg %p249
      $region74: #{_lambda_.24} parent=63 // pred_check_branch
        %590 = sbr.rel (%p588) target = $region76
      $region75: #{_lambda_.24} parent=63 // pred_region
        %p591 = scmp.lt.s32.totalorder %s22, 1
        %s592 = scalar_select %p591, %s22, 1
        %s593 = smul.addr %s592, 8
        %s594 = scalar_lea.vmem %s9, %s593
      $region76: #{_lambda_.24} parent=63 // pred_fallthru
        _
    $region64: #{_lambda_.24} parent=5 // pred_fallthru
      _
  $region6: #{_lambda_.24} parent=0 // loop_footer
    %s20 = sadd.s32 1, %s16
  $region7: #{_lambda_.24} parent=0 // loop_footer_branch
    %15 = sbr.rel target = $region3
  $region8: #{_lambda_.24} parent=0 // loop_exit
    _

// kernel: _lambda_.25
$region0: #{_lambda_.25}
  #allocation0 [shape = 'u32[]', space=smem, size = 0x4, offset = 0x4, fixed_abs, tag = 'smem constant byte address 0x4 - core index']
  #allocation1 [shape = 'u32[144,128]{1,0:T(1,128)}', space=vmem, size = 0x12000, scoped, tag = 'internal scratch']
  %s0 = inlined_call_operand.vmem [shape: f32[2,8,32], index: 0, kind: input, shape index: {}]
  %s1 = inlined_call_operand.vmem [shape: f32[2,8,32], index: 1, kind: input, shape index: {}]
  %s2 = inlined_call_operand.vmem [shape: f32[2,8,32], index: 2, kind: input, shape index: {}]
  %s3 = inlined_call_operand.vmem [shape: f32[2,1,8], index: 3, kind: input, shape index: {}]
  %s4 = inlined_call_operand.vmem [shape: f32[2,8,32], index: 4, kind: output, shape index: {}]
  %s5 = sld [smem:[#allocation0]]
  $region49: #{_lambda_.25} parent=0
    _
  %s7 = ssub.s32 1, %s5
  %s8 = scalar_select 0, %s7, %s5
  loop: start=0, step=1, limit=4
  $region2: #{_lambda_.25} parent=0 // loop_pre_header
    _
  $region3: #{_lambda_.25} parent=0 // loop_header
    %s10 = sphi 0, %s14
    %p11 = scmp.ge.s32.totalorder %s10, 4
    %s20 = sphi 0, %s22
    %s23 = sphi 0, %s20
    %s24 = sphi 0, %s23
    %s40 = sphi 0, %s24
    %s46 = sphi 0, %s48
    %s49 = sphi 0, %s46
    %s50 = sphi 0, %s49
    %s66 = sphi 0, %s50
    %s72 = sphi 0, %s74
    %s75 = sphi 0, %s72
    %s76 = sphi 0, %s75
    %s92 = sphi 0, %s76
    %s98 = sphi 0, %s100
    %s101 = sphi 0, %s98
    %s102 = sphi 0, %s101
    %s118 = sphi 0, %s102
    %s124 = sphi 0, %s126
    %s127 = sphi 0, %s124
    %s128 = sphi 0, %s127
    %s144 = sphi 0, %s128
  $region4: #{_lambda_.25} parent=0 // loop_header_branch
    %13 = sbr.rel (%p11) target = $region8
  $region5: #{_lambda_.25} parent=0 // loop_body
    %s15 = ssub.s32 %s10, 1
    %s16 = ssub.s32 %s10, 2
    %s17 = sadd.s32 %s10, 1
    %s18 = ssub.s32 %s10, %s17
    %p19 = scmp.eq.s32.totalorder %s18, 0
    %s21 = sadd.s32 %s20, 1
    %s22 = scalar_select %p19, %s20, %s21
    %p25 = pneg %p19
    %p26 = scmp.eq.s32.totalorder %s10, 1
    %p27 = por %p25, %p26
    %p28 = scmp.ne.s32.totalorder %s20, %s23
    %p29 = scmp.eq.s32.totalorder %s10, 0
    %p30 = por %p28, %p29
    %p31 = scmp.ne.s32.totalorder %s20, %s23
    %p32 = scmp.eq.s32.totalorder %s15, 1
    %p33 = por %p31, %p32
    %p34 = scmp.ne.s32.totalorder %s23, %s24
    %p35 = scmp.eq.s32.totalorder %s15, 0
    %p36 = por %p34, %p35
    %p37 = scmp.ne.s32.totalorder %s23, %s24
    %p38 = scmp.eq.s32.totalorder %s16, 1
    %p39 = por %p37, %p38
    %p41 = scmp.ne.s32.totalorder %s24, %s40
    %p42 = scmp.eq.s32.totalorder %s16, 0
    %p43 = por %p41, %p42
    %s44 = ssub.s32 %s10, %s17
    %p45 = scmp.eq.s32.totalorder %s44, 0
    %s47 = sadd.s32 %s46, 1
    %s48 = scalar_select %p45, %s46, %s47
    %p51 = pneg %p45
    %p52 = scmp.eq.s32.totalorder %s10, 1
    %p53 = por %p51, %p52
    %p54 = scmp.ne.s32.totalorder %s46, %s49
    %p55 = scmp.eq.s32.totalorder %s10, 0
    %p56 = por %p54, %p55
    %p57 = scmp.ne.s32.totalorder %s46, %s49
    %p58 = scmp.eq.s32.totalorder %s15, 1
    %p59 = por %p57, %p58
    %p60 = scmp.ne.s32.totalorder %s49, %s50
    %p61 = scmp.eq.s32.totalorder %s15, 0
    %p62 = por %p60, %p61
    %p63 = scmp.ne.s32.totalorder %s49, %s50
    %p64 = scmp.eq.s32.totalorder %s16, 1
    %p65 = por %p63, %p64
    %p67 = scmp.ne.s32.totalorder %s50, %s66
    %p68 = scmp.eq.s32.totalorder %s16, 0
    %p69 = por %p67, %p68
    %s70 = ssub.s32 %s10, %s17
    %p71 = scmp.eq.s32.totalorder %s70, 0
    %s73 = sadd.s32 %s72, 1
    %s74 = scalar_select %p71, %s72, %s73
    %p77 = pneg %p71
    %p78 = scmp.eq.s32.totalorder %s10, 1
    %p79 = por %p77, %p78
    %p80 = scmp.ne.s32.totalorder %s72, %s75
    %p81 = scmp.eq.s32.totalorder %s10, 0
    %p82 = por %p80, %p81
    %p83 = scmp.ne.s32.totalorder %s72, %s75
    %p84 = scmp.eq.s32.totalorder %s15, 1
    %p85 = por %p83, %p84
    %p86 = scmp.ne.s32.totalorder %s75, %s76
    %p87 = scmp.eq.s32.totalorder %s15, 0
    %p88 = por %p86, %p87
    %p89 = scmp.ne.s32.totalorder %s75, %s76
    %p90 = scmp.eq.s32.totalorder %s16, 1
    %p91 = por %p89, %p90
    %p93 = scmp.ne.s32.totalorder %s76, %s92
    %p94 = scmp.eq.s32.totalorder %s16, 0
    %p95 = por %p93, %p94
    %s96 = ssub.s32 %s10, %s17
    %p97 = scmp.eq.s32.totalorder %s96, 0
    %s99 = sadd.s32 %s98, 1
    %s100 = scalar_select %p97, %s98, %s99
    %p103 = pneg %p97
    %p104 = scmp.eq.s32.totalorder %s10, 1
    %p105 = por %p103, %p104
    %p106 = scmp.ne.s32.totalorder %s98, %s101
    %p107 = scmp.eq.s32.totalorder %s10, 0
    %p108 = por %p106, %p107
    %p109 = scmp.ne.s32.totalorder %s98, %s101
    %p110 = scmp.eq.s32.totalorder %s15, 1
    %p111 = por %p109, %p110
    %p112 = scmp.ne.s32.totalorder %s101, %s102
    %p113 = scmp.eq.s32.totalorder %s15, 0
    %p114 = por %p112, %p113
    %p115 = scmp.ne.s32.totalorder %s101, %s102
    %p116 = scmp.eq.s32.totalorder %s16, 1
    %p117 = por %p115, %p116
    %p119 = scmp.ne.s32.totalorder %s102, %s118
    %p120 = scmp.eq.s32.totalorder %s16, 0
    %p121 = por %p119, %p120
    %s122 = ssub.s32 %s10, %s17
    %p123 = scmp.eq.s32.totalorder %s122, 0
    %s125 = sadd.s32 %s124, 1
    %s126 = scalar_select %p123, %s124, %s125
    %p129 = pneg %p123
    %p130 = scmp.eq.s32.totalorder %s10, 1
    %p131 = por %p129, %p130
    %p132 = scmp.ne.s32.totalorder %s124, %s127
    %p133 = scmp.eq.s32.totalorder %s10, 0
    %p134 = por %p132, %p133
    %p135 = scmp.ne.s32.totalorder %s124, %s127
    %p136 = scmp.eq.s32.totalorder %s15, 1
    %p137 = por %p135, %p136
    %p138 = scmp.ne.s32.totalorder %s127, %s128
    %p139 = scmp.eq.s32.totalorder %s15, 0
    %p140 = por %p138, %p139
    %p141 = scmp.ne.s32.totalorder %s127, %s128
    %p142 = scmp.eq.s32.totalorder %s16, 1
    %p143 = por %p141, %p142
    %p145 = scmp.ne.s32.totalorder %s128, %s144
    %p146 = scmp.eq.s32.totalorder %s16, 0
    %p147 = por %p145, %p146
    %p148 = scmp.le.s32.totalorder 1, %s10
    %p149 = scmp.lt.s32.totalorder %s10, 3
    %p150 = pnand %p148, %p149
    %p151 = pneg %p150
    // Predicated region
    $region9: #{_lambda_.25} parent=5 // pred_check
      _
    $region10: #{_lambda_.25} parent=5 // pred_check_branch
      %153 = sbr.rel (%p150) target = $region12
    $region11: #{_lambda_.25} parent=5 // pred_region
      %s154 = ssub.s32 %s10, 1
    $region12: #{_lambda_.25} parent=5 // pred_fallthru
      _
    %p155 = scmp.lt.s32.totalorder %s10, 2
    // Predicated region
    $region13: #{_lambda_.25} parent=5 // pred_check
      %p156 = pneg %p155
    $region14: #{_lambda_.25} parent=5 // pred_check_branch
      %158 = sbr.rel (%p156) target = $region16
    $region15: #{_lambda_.25} parent=5 // pred_region
      // Predicated region
      $region17: #{_lambda_.25} parent=15 // pred_check
        %p159 = pneg %p30
      $region18: #{_lambda_.25} parent=15 // pred_check_branch
        %161 = sbr.rel (%p159) target = $region20
      $region19: #{_lambda_.25} parent=15 // pred_region
        %p162 = scmp.lt.s32.totalorder %s10, 1
        %s163 = scalar_select %p162, %s10, 1
        %s164 = smul.addr %s163, 8
        %s165 = scalar_lea.vmem %s0, %s164
      $region20: #{_lambda_.25} parent=15 // pred_fallthru
        _
      // Predicated region
      $region21: #{_lambda_.25} parent=15 // pred_check
        %p166 = pneg %p56
      $region22: #{_lambda_.25} parent=15 // pred_check_branch
        %168 = sbr.rel (%p166) target = $region24
      $region23: #{_lambda_.25} parent=15 // pred_region
        %p169 = scmp.lt.s32.totalorder %s10, 1
        %s170 = scalar_select %p169, %s10, 1
        %s171 = smul.addr %s170, 8
        %s172 = scalar_lea.vmem %s1, %s171
      $region24: #{_lambda_.25} parent=15 // pred_fallthru
        _
      // Predicated region
      $region25: #{_lambda_.25} parent=15 // pred_check
        %p173 = pneg %p82
      $region26: #{_lambda_.25} parent=15 // pred_check_branch
        %175 = sbr.rel (%p173) target = $region28
      $region27: #{_lambda_.25} parent=15 // pred_region
        %p176 = scmp.lt.s32.totalorder %s10, 1
        %s177 = scalar_select %p176, %s10, 1
        %s178 = smul.addr %s177, 8
        %s179 = scalar_lea.vmem %s2, %s178
      $region28: #{_lambda_.25} parent=15 // pred_fallthru
        _
      // Predicated region
      $region29: #{_lambda_.25} parent=15 // pred_check
        %p180 = pneg %p108
      $region30: #{_lambda_.25} parent=15 // pred_check_branch
        %182 = sbr.rel (%p180) target = $region32
      $region31: #{_lambda_.25} parent=15 // pred_region
        %p183 = scmp.lt.s32.totalorder %s10, 1
        %s184 = scalar_select %p183, %s10, 1
        %s185 = scalar_lea.vmem %s3, %s184
      $region32: #{_lambda_.25} parent=15 // pred_fallthru
        _
    $region16: #{_lambda_.25} parent=5 // pred_fallthru
      _
    %p186 = scmp.le.s32.totalorder 1, %s10
    %p187 = scmp.lt.s32.totalorder %s10, 3
    %p188 = pnand %p186, %p187
    %p189 = pneg %p188
    // Predicated region
    $region33: #{_lambda_.25} parent=5 // pred_check
      _
    $region34: #{_lambda_.25} parent=5 // pred_check_branch
      %191 = sbr.rel (%p188) target = $region36
    $region35: #{_lambda_.25} parent=5 // pred_region
      %s192 = ssub.s32 %s10, 1
      %p193 = scmp.lt.s32.totalorder %s15, 1
      %s194 = scalar_select %p193, %s15, 1
      %s195 = smul.addr %s194, 8
      %s196 = scalar_lea.vmem %s0, %s195
      %p197 = pneg %p36
      %p198 = pneg %p33
      %p199 = scmp.lt.s32.totalorder %s15, 1
      %s200 = scalar_select %p199, %s15, 1
      %s201 = smul.addr %s200, 8
      %s202 = scalar_lea.vmem %s1, %s201
      %p203 = pneg %p62
      %p204 = pneg %p59
      %p205 = scmp.lt.s32.totalorder %s15, 1
      %s206 = scalar_select %p205, %s15, 1
      %s207 = smul.addr %s206, 8
      %s208 = scalar_lea.vmem %s2, %s207
      %p209 = pneg %p88
      %p210 = pneg %p85
      %p211 = scmp.lt.s32.totalorder %s15, 1
      %s212 = scalar_select %p211, %s15, 1
      %s213 = scalar_lea.vmem %s3, %s212
      %p214 = pneg %p114
      %p215 = pneg %p111
      %p216 = pneg %p140
      %p217 = pneg %p137
      %p218 = scmp.lt.s32.totalorder %s15, 1
      %s219 = scalar_select %p218, %s15, 1
      %s220 = smul.addr %s219, 8
      %s221 = scalar_lea.vmem %s4, %s220
      %p222 = scmp.lt.s32.totalorder %s15, 1
      %s223 = scalar_select %p222, %s15, 1
      %s224 = smul.addr %s223, 8
      %s225 = scalar_lea.vmem %s0, %s224
      %p226 = scmp.lt.s32.totalorder %s15, 1
      %s227 = scalar_select %p226, %s15, 1
      %s228 = smul.addr %s227, 8
      %s229 = scalar_lea.vmem %s1, %s228
      %p230 = scmp.lt.s32.totalorder %s15, 1
      %s231 = scalar_select %p230, %s15, 1
      %s232 = smul.addr %s231, 8
      %s233 = scalar_lea.vmem %s2, %s232
      %p234 = scmp.lt.s32.totalorder %s15, 1
      %s235 = scalar_select %p234, %s15, 1
      %s236 = scalar_lea.vmem %s3, %s235
      %p237 = scmp.lt.s32.totalorder %s15, 1
      %s238 = scalar_select %p237, %s15, 1
      %s239 = smul.addr %s238, 8
      %s240 = scalar_lea.vmem %s4, %s239
      %v242 = vld [vmem:[%s225] sm:$0xff]
      %v243 = vpack.c.bf16 %v242, %v242
      %v244 = vld [vmem:[%s229] sm:$0xff]
      %v245 = vpack.c.bf16 %v244, %v244
      %v246 = vld [vmem:[%s233] sm:$0xff]
      %v247 = vpack.c.bf16 %v246, %v246
      %v248 = vld [vmem:[%s236] sm:$0x1]
      %vm249 = vcmask 64512
      %v251 = vsel %vm249, %v243, 0
      %v254 = vsel %vm249, %v245, 0
      %256 = vmatprep.subr.bf16.mxu0 0
      %257 = vmatpush1.bf16.xpose.msra.mxu0 %v254
      %258 = vmatprep.subr.bf16.mxu0 0
      %259 = vmatpush1.bf16.xpose.msra.mxu0 0
      %260 = vmatprep.subr.bf16.mxu0 0
      %261 = vmatpush1.bf16.xpose.msra.mxu0 0
      %262 = vmatprep.subr.bf16.mxu0 0
      %263 = vmatpush1.bf16.xpose.msra.mxu0 0
      %264 = vmatprep.subr.bf16.mxu0 0
      %265 = vmatpush1.bf16.xpose.msra.mxu0 0
      %266 = vmatprep.subr.bf16.mxu0 0
      %267 = vmatpush1.bf16.xpose.msra.mxu0 0
      %268 = vmatprep.subr.bf16.mxu0 0
      %269 = vmatpush1.bf16.xpose.msra.mxu0 0
      %270 = vmatprep.subr.bf16.mxu0 0
      %271 = vmatpush1.bf16.xpose.msra.mxu0 0
      %272 = vmatprep.subr.bf16.mxu0 0
      %273 = vmatpush1.bf16.xpose.msra.mxu0 0
      %274 = vmatprep.subr.bf16.mxu0 0
      %275 = vmatpush1.bf16.xpose.msra.mxu0 0
      %276 = vmatprep.subr.bf16.mxu0 0
      %277 = vmatpush1.bf16.xpose.msra.mxu0 0
      %278 = vmatprep.subr.bf16.mxu0 0
      %279 = vmatpush1.bf16.xpose.msra.mxu0 0
      %280 = vmatprep.subr.bf16.mxu0 0
      %281 = vmatpush1.bf16.xpose.msra.mxu0 0
      %282 = vmatprep.subr.bf16.mxu0 0
      %283 = vmatpush1.bf16.xpose.msra.mxu0 0
      %284 = vmatprep.subr.bf16.mxu0 0
      %285 = vmatpush1.bf16.xpose.msra.mxu0 0
      %286 = vmatprep.subr.bf16.mxu0 0
      %287 = vmatpush1.bf16.xpose.msra.mxu0 0
      %288 = vmatprep.mubr.bf16.mxu0 0
      %289 = vmatmul.mubr.bf16.gmra.mrb[0].mxu0 %v251
      %v290 = vpop.f32.mrb[0].mxu0
      %v291 = vadd.f32 0.0, %v290
      %v292 = vpop.f32.mrb[0].mxu0
      %v293 = vpop.f32.mrb[0].mxu0
      %v294 = vpop.f32.mrb[0].mxu0
      %295 = vdwg.mxu0
      %v296 = vmul.f32 %v291, 0.35355338
      %v298 = vlaneseq
      %v299 = vshrl.u32 %v298, 7
      %v300 = vsub.s32 0, %v299
      %v301 = vrot.slane %v248, %v300
      %v303 = vadd.f32 %v296, %v301
      %v304 = vsel %vm249, %v303, -inf
      %305 = vmax.xlane.f32.xlu0 %v304
      %v306 = vpop.xlane.xlu0 %305
      %v307 = vsub.f32 %v303, %v306
      %v308 = vmul.f32 %v307, 1.442695
      %v309 = vpow.pop %v308
      %v310 = vsel %vm249, %v309, 0.0
      %311 = vadd.xlane.f32.xlu0 %v310
      %v312 = vpop.xlane.xlu0 %311
      %v313 = vrcp.pop %v312
      %v314 = vmul.f32 %v309, %v313
      %v315 = vpack.c.bf16 %v314, %v314
      %v317 = vsel %vm249, %v315, 0
      %vm319 = vcmask 1043456
      %v321 = vsel %vm319, %v247, 0
      %323 = vmatprep.subr.bf16.mxu0 0
      %324 = vmatpush1.bf16.msra.mxu0 %v321
      %325 = vmatprep.subr.bf16.mxu0 0
      %326 = vmatpush1.bf16.msra.mxu0 0
      %327 = vmatprep.subr.bf16.mxu0 0
      %328 = vmatpush1.bf16.msra.mxu0 0
      %329 = vmatprep.subr.bf16.mxu0 0
      %330 = vmatpush1.bf16.msra.mxu0 0
      %331 = vmatprep.subr.bf16.mxu0 0
      %332 = vmatpush1.bf16.msra.mxu0 0
      %333 = vmatprep.subr.bf16.mxu0 0
      %334 = vmatpush1.bf16.msra.mxu0 0
      %335 = vmatprep.subr.bf16.mxu0 0
      %336 = vmatpush1.bf16.msra.mxu0 0
      %337 = vmatprep.subr.bf16.mxu0 0
      %338 = vmatpush1.bf16.msra.mxu0 0
      %339 = vmatprep.subr.bf16.mxu0 0
      %340 = vmatpush1.bf16.msra.mxu0 0
      %341 = vmatprep.subr.bf16.mxu0 0
      %342 = vmatpush1.bf16.msra.mxu0 0
      %343 = vmatprep.subr.bf16.mxu0 0
      %344 = vmatpush1.bf16.msra.mxu0 0
      %345 = vmatprep.subr.bf16.mxu0 0
      %346 = vmatpush1.bf16.msra.mxu0 0
      %347 = vmatprep.subr.bf16.mxu0 0
      %348 = vmatpush1.bf16.msra.mxu0 0
      %349 = vmatprep.subr.bf16.mxu0 0
      %350 = vmatpush1.bf16.msra.mxu0 0
      %351 = vmatprep.subr.bf16.mxu0 0
      %352 = vmatpush1.bf16.msra.mxu0 0
      %353 = vmatprep.subr.bf16.mxu0 0
      %354 = vmatpush1.bf16.msra.mxu0 0
      %355 = vmatprep.mubr.bf16.mxu0 0
      %356 = vmatmul.mubr.bf16.gmra.mrb[0].mxu0 %v317
      %v357 = vpop.f32.mrb[0].mxu0
      %v358 = vadd.f32 0.0, %v357
      %v359 = vpop.f32.mrb[0].mxu0
      %v360 = vpop.f32.mrb[0].mxu0
      %v361 = vpop.f32.mrb[0].mxu0
      %362 = vdwg.mxu0
      %364 = vrot.lane.b32.xlu0 %v243, 120
      %v365 = vpop.permute.xlu0 %364
      %367 = vrot.lane.b32.xlu0 %v245, 120
      %v368 = vpop.permute.xlu0 %367
      %v370 = vsel %vm249, %v365, 0
      %v373 = vsel %vm249, %v368, 0
      %375 = vmatprep.subr.bf16.mxu0 0
      %376 = vmatpush1.bf16.xpose.msra.mxu0 %v373
      %377 = vmatprep.subr.bf16.mxu0 0
      %378 = vmatpush1.bf16.xpose.msra.mxu0 0
      %379 = vmatprep.subr.bf16.mxu0 0
      %380 = vmatpush1.bf16.xpose.msra.mxu0 0
      %381 = vmatprep.subr.bf16.mxu0 0
      %382 = vmatpush1.bf16.xpose.msra.mxu0 0
      %383 = vmatprep.subr.bf16.mxu0 0
      %384 = vmatpush1.bf16.xpose.msra.mxu0 0
      %385 = vmatprep.subr.bf16.mxu0 0
      %386 = vmatpush1.bf16.xpose.msra.mxu0 0
      %387 = vmatprep.subr.bf16.mxu0 0
      %388 = vmatpush1.bf16.xpose.msra.mxu0 0
      %389 = vmatprep.subr.bf16.mxu0 0
      %390 = vmatpush1.bf16.xpose.msra.mxu0 0
      %391 = vmatprep.subr.bf16.mxu0 0
      %392 = vmatpush1.bf16.xpose.msra.mxu0 0
      %393 = vmatprep.subr.bf16.mxu0 0
      %394 = vmatpush1.bf16.xpose.msra.mxu0 0
      %395 = vmatprep.subr.bf16.mxu0 0
      %396 = vmatpush1.bf16.xpose.msra.mxu0 0
      %397 = vmatprep.subr.bf16.mxu0 0
      %398 = vmatpush1.bf16.xpose.msra.mxu0 0
      %399 = vmatprep.subr.bf16.mxu0 0
      %400 = vmatpush1.bf16.xpose.msra.mxu0 0
      %401 = vmatprep.subr.bf16.mxu0 0
      %402 = vmatpush1.bf16.xpose.msra.mxu0 0
      %403 = vmatprep.subr.bf16.mxu0 0
      %404 = vmatpush1.bf16.xpose.msra.mxu0 0
      %405 = vmatprep.subr.bf16.mxu0 0
      %406 = vmatpush1.bf16.xpose.msra.mxu0 0
      %407 = vmatprep.mubr.bf16.mxu0 0
      %408 = vmatmul.mubr.bf16.gmra.mrb[0].mxu0 %v370
      %v409 = vpop.f32.mrb[0].mxu0
      %v410 = vadd.f32 0.0, %v409
      %v411 = vpop.f32.mrb[0].mxu0
      %v412 = vpop.f32.mrb[0].mxu0
      %v413 = vpop.f32.mrb[0].mxu0
      %414 = vdwg.mxu0
      %v415 = vmul.f32 %v410, 0.35355338
      %v416 = vadd.f32 %v415, %v301
      %v417 = vsel %vm249, %v416, -inf
      %418 = vmax.xlane.f32.xlu0 %v417
      %v419 = vpop.xlane.xlu0 %418
      %v420 = vsub.f32 %v416, %v419
      %v421 = vmul.f32 %v420, 1.442695
      %v422 = vpow.pop %v421
      %v423 = vsel %vm249, %v422, 0.0
      %424 = vadd.xlane.f32.xlu0 %v423
      %v425 = vpop.xlane.xlu0 %424
      %v426 = vrcp.pop %v425
      %v427 = vmul.f32 %v422, %v426
      %v428 = vpack.c.bf16 %v427, %v427
      %430 = vrot.lane.b32.xlu0 %v247, 120
      %v431 = vpop.permute.xlu0 %430
      %v433 = vsel %vm249, %v428, 0
      %v436 = vsel %vm319, %v431, 0
      %438 = vmatprep.subr.bf16.mxu0 0
      %439 = vmatpush1.bf16.msra.mxu0 %v436
      %440 = vmatprep.subr.bf16.mxu0 0
      %441 = vmatpush1.bf16.msra.mxu0 0
      %442 = vmatprep.subr.bf16.mxu0 0
      %443 = vmatpush1.bf16.msra.mxu0 0
      %444 = vmatprep.subr.bf16.mxu0 0
      %445 = vmatpush1.bf16.msra.mxu0 0
      %446 = vmatprep.subr.bf16.mxu0 0
      %447 = vmatpush1.bf16.msra.mxu0 0
      %448 = vmatprep.subr.bf16.mxu0 0
      %449 = vmatpush1.bf16.msra.mxu0 0
      %450 = vmatprep.subr.bf16.mxu0 0
      %451 = vmatpush1.bf16.msra.mxu0 0
      %452 = vmatprep.subr.bf16.mxu0 0
      %453 = vmatpush1.bf16.msra.mxu0 0
      %454 = vmatprep.subr.bf16.mxu0 0
      %455 = vmatpush1.bf16.msra.mxu0 0
      %456 = vmatprep.subr.bf16.mxu0 0
      %457 = vmatpush1.bf16.msra.mxu0 0
      %458 = vmatprep.subr.bf16.mxu0 0
      %459 = vmatpush1.bf16.msra.mxu0 0
      %460 = vmatprep.subr.bf16.mxu0 0
      %461 = vmatpush1.bf16.msra.mxu0 0
      %462 = vmatprep.subr.bf16.mxu0 0
      %463 = vmatpush1.bf16.msra.mxu0 0
      %464 = vmatprep.subr.bf16.mxu0 0
      %465 = vmatpush1.bf16.msra.mxu0 0
      %466 = vmatprep.subr.bf16.mxu0 0
      %467 = vmatpush1.bf16.msra.mxu0 0
      %468 = vmatprep.subr.bf16.mxu0 0
      %469 = vmatpush1.bf16.msra.mxu0 0
      %470 = vmatprep.mubr.bf16.mxu0 0
      %471 = vmatmul.mubr.bf16.gmra.mrb[0].mxu0 %v433
      %v472 = vpop.f32.mrb[0].mxu0
      %v473 = vadd.f32 0.0, %v472
      %v474 = vpop.f32.mrb[0].mxu0
      %v475 = vpop.f32.mrb[0].mxu0
      %v476 = vpop.f32.mrb[0].mxu0
      %477 = vdwg.mxu0
      %478 = vrot.lane.b32.xlu0 %v243, 112
      %v479 = vpop.permute.xlu0 %478
      %480 = vrot.lane.b32.xlu0 %v245, 112
      %v481 = vpop.permute.xlu0 %480
      %v483 = vsel %vm249, %v479, 0
      %v486 = vsel %vm249, %v481, 0
      %488 = vmatprep.subr.bf16.mxu0 0
      %489 = vmatpush1.bf16.xpose.msra.mxu0 %v486
      %490 = vmatprep.subr.bf16.mxu0 0
      %491 = vmatpush1.bf16.xpose.msra.mxu0 0
      %492 = vmatprep.subr.bf16.mxu0 0
      %493 = vmatpush1.bf16.xpose.msra.mxu0 0
      %494 = vmatprep.subr.bf16.mxu0 0
      %495 = vmatpush1.bf16.xpose.msra.mxu0 0
      %496 = vmatprep.subr.bf16.mxu0 0
      %497 = vmatpush1.bf16.xpose.msra.mxu0 0
      %498 = vmatprep.subr.bf16.mxu0 0
      %499 = vmatpush1.bf16.xpose.msra.mxu0 0
      %500 = vmatprep.subr.bf16.mxu0 0
      %501 = vmatpush1.bf16.xpose.msra.mxu0 0
      %502 = vmatprep.subr.bf16.mxu0 0
      %503 = vmatpush1.bf16.xpose.msra.mxu0 0
      %504 = vmatprep.subr.bf16.mxu0 0
      %505 = vmatpush1.bf16.xpose.msra.mxu0 0
      %506 = vmatprep.subr.bf16.mxu0 0
      %507 = vmatpush1.bf16.xpose.msra.mxu0 0
      %508 = vmatprep.subr.bf16.mxu0 0
      %509 = vmatpush1.bf16.xpose.msra.mxu0 0
      %510 = vmatprep.subr.bf16.mxu0 0
      %511 = vmatpush1.bf16.xpose.msra.mxu0 0
      %512 = vmatprep.subr.bf16.mxu0 0
      %513 = vmatpush1.bf16.xpose.msra.mxu0 0
      %514 = vmatprep.subr.bf16.mxu0 0
      %515 = vmatpush1.bf16.xpose.msra.mxu0 0
      %516 = vmatprep.subr.bf16.mxu0 0
      %517 = vmatpush1.bf16.xpose.msra.mxu0 0
      %518 = vmatprep.subr.bf16.mxu0 0
      %519 = vmatpush1.bf16.xpose.msra.mxu0 0
      %520 = vmatprep.mubr.bf16.mxu0 0
      %521 = vmatmul.mubr.bf16.gmra.mrb[0].mxu0 %v483
      %v522 = vpop.f32.mrb[0].mxu0
      %v523 = vadd.f32 0.0, %v522
      %v524 = vpop.f32.mrb[0].mxu0
      %v525 = vpop.f32.mrb[0].mxu0
      %v526 = vpop.f32.mrb[0].mxu0
      %527 = vdwg.mxu0
      %v528 = vmul.f32 %v523, 0.35355338
      %v529 = vadd.f32 %v528, %v301
      %v530 = vsel %vm249, %v529, -inf
      %531 = vmax.xlane.f32.xlu0 %v530
      %v532 = vpop.xlane.xlu0 %531
      %v533 = vsub.f32 %v529, %v532
      %v534 = vmul.f32 %v533, 1.442695
      %v535 = vpow.pop %v534
      %v536 = vsel %vm249, %v535, 0.0
      %537 = vadd.xlane.f32.xlu0 %v536
      %v538 = vpop.xlane.xlu0 %537
      %v539 = vrcp.pop %v538
      %v540 = vmul.f32 %v535, %v539
      %v541 = vpack.c.bf16 %v540, %v540
      %542 = vrot.lane.b32.xlu0 %v247, 112
      %v543 = vpop.permute.xlu0 %542
      %v545 = vsel %vm249, %v541, 0
      %v548 = vsel %vm319, %v543, 0
      %550 = vmatprep.subr.bf16.mxu0 0
      %551 = vmatpush1.bf16.msra.mxu0 %v548
      %552 = vmatprep.subr.bf16.mxu0 0
      %553 = vmatpush1.bf16.msra.mxu0 0
      %554 = vmatprep.subr.bf16.mxu0 0
      %555 = vmatpush1.bf16.msra.mxu0 0
      %556 = vmatprep.subr.bf16.mxu0 0
      %557 = vmatpush1.bf16.msra.mxu0 0
      %558 = vmatprep.subr.bf16.mxu0 0
      %559 = vmatpush1.bf16.msra.mxu0 0
      %560 = vmatprep.subr.bf16.mxu0 0
      %561 = vmatpush1.bf16.msra.mxu0 0
      %562 = vmatprep.subr.bf16.mxu0 0
      %563 = vmatpush1.bf16.msra.mxu0 0
      %564 = vmatprep.subr.bf16.mxu0 0
      %565 = vmatpush1.bf16.msra.mxu0 0
      %566 = vmatprep.subr.bf16.mxu0 0
      %567 = vmatpush1.bf16.msra.mxu0 0
      %568 = vmatprep.subr.bf16.mxu0 0
      %569 = vmatpush1.bf16.msra.mxu0 0
      %570 = vmatprep.subr.bf16.mxu0 0
      %571 = vmatpush1.bf16.msra.mxu0 0
      %572 = vmatprep.subr.bf16.mxu0 0
      %573 = vmatpush1.bf16.msra.mxu0 0
      %574 = vmatprep.subr.bf16.mxu0 0
      %575 = vmatpush1.bf16.msra.mxu0 0
      %576 = vmatprep.subr.bf16.mxu0 0
      %577 = vmatpush1.bf16.msra.mxu0 0
      %578 = vmatprep.subr.bf16.mxu0 0
      %579 = vmatpush1.bf16.msra.mxu0 0
      %580 = vmatprep.subr.bf16.mxu0 0
      %581 = vmatpush1.bf16.msra.mxu0 0
      %582 = vmatprep.mubr.bf16.mxu0 0
      %583 = vmatmul.mubr.bf16.gmra.mrb[0].mxu0 %v545
      %v584 = vpop.f32.mrb[0].mxu0
      %v585 = vadd.f32 0.0, %v584
      %v586 = vpop.f32.mrb[0].mxu0
      %v587 = vpop.f32.mrb[0].mxu0
      %v588 = vpop.f32.mrb[0].mxu0
      %589 = vdwg.mxu0
      %590 = vrot.lane.b32.xlu0 %v243, 104
      %v591 = vpop.permute.xlu0 %590
      %592 = vrot.lane.b32.xlu0 %v245, 104
      %v593 = vpop.permute.xlu0 %592
      %v595 = vsel %vm249, %v591, 0
      %v598 = vsel %vm249, %v593, 0
      %600 = vmatprep.subr.bf16.mxu0 0
      %601 = vmatpush1.bf16.xpose.msra.mxu0 %v598
      %602 = vmatprep.subr.bf16.mxu0 0
      %603 = vmatpush1.bf16.xpose.msra.mxu0 0
      %604 = vmatprep.subr.bf16.mxu0 0
      %605 = vmatpush1.bf16.xpose.msra.mxu0 0
      %606 = vmatprep.subr.bf16.mxu0 0
      %607 = vmatpush1.bf16.xpose.msra.mxu0 0
      %608 = vmatprep.subr.bf16.mxu0 0
      %609 = vmatpush1.bf16.xpose.msra.mxu0 0
      %610 = vmatprep.subr.bf16.mxu0 0
      %611 = vmatpush1.bf16.xpose.msra.mxu0 0
      %612 = vmatprep.subr.bf16.mxu0 0
      %613 = vmatpush1.bf16.xpose.msra.mxu0 0
      %614 = vmatprep.subr.bf16.mxu0 0
      %615 = vmatpush1.bf16.xpose.msra.mxu0 0
      %616 = vmatprep.subr.bf16.mxu0 0
      %617 = vmatpush1.bf16.xpose.msra.mxu0 0
      %618 = vmatprep.subr.bf16.mxu0 0
      %619 = vmatpush1.bf16.xpose.msra.mxu0 0
      %620 = vmatprep.subr.bf16.mxu0 0
      %621 = vmatpush1.bf16.xpose.msra.mxu0 0
      %622 = vmatprep.subr.bf16.mxu0 0
      %623 = vmatpush1.bf16.xpose.msra.mxu0 0
      %624 = vmatprep.subr.bf16.mxu0 0
      %625 = vmatpush1.bf16.xpose.msra.mxu0 0
      %626 = vmatprep.subr.bf16.mxu0 0
      %627 = vmatpush1.bf16.xpose.msra.mxu0 0
      %628 = vmatprep.subr.bf16.mxu0 0
      %629 = vmatpush1.bf16.xpose.msra.mxu0 0
      %630 = vmatprep.subr.bf16.mxu0 0
      %631 = vmatpush1.bf16.xpose.msra.mxu0 0
      %632 = vmatprep.mubr.bf16.mxu0 0
      %633 = vmatmul.mubr.bf16.gmra.mrb[0].mxu0 %v595
      %v634 = vpop.f32.mrb[0].mxu0
      %v635 = vadd.f32 0.0, %v634
      %v636 = vpop.f32.mrb[0].mxu0
      %v637 = vpop.f32.mrb[0].mxu0
      %v638 = vpop.f32.mrb[0].mxu0
      %639 = vdwg.mxu0
      %v640 = vmul.f32 %v635, 0.35355338
      %v641 = vadd.f32 %v640, %v301
      %v642 = vsel %vm249, %v641, -inf
      %643 = vmax.xlane.f32.xlu0 %v642
      %v644 = vpop.xlane.xlu0 %643
      %v645 = vsub.f32 %v641, %v644
      %v646 = vmul.f32 %v645, 1.442695
      %v647 = vpow.pop %v646
      %v648 = vsel %vm249, %v647, 0.0
      %649 = vadd.xlane.f32.xlu0 %v648
      %v650 = vpop.xlane.xlu0 %649
      %v651 = vrcp.pop %v650
      %v652 = vmul.f32 %v647, %v651
      %v653 = vpack.c.bf16 %v652, %v652
      %654 = vrot.lane.b32.xlu0 %v247, 104
      %v655 = vpop.permute.xlu0 %654
      %v657 = vsel %vm249, %v653, 0
      %v660 = vsel %vm319, %v655, 0
      %662 = vmatprep.subr.bf16.mxu0 0
      %663 = vmatpush1.bf16.msra.mxu0 %v660
      %664 = vmatprep.subr.bf16.mxu0 0
      %665 = vmatpush1.bf16.msra.mxu0 0
      %666 = vmatprep.subr.bf16.mxu0 0
      %667 = vmatpush1.bf16.msra.mxu0 0
      %668 = vmatprep.subr.bf16.mxu0 0
      %669 = vmatpush1.bf16.msra.mxu0 0
      %670 = vmatprep.subr.bf16.mxu0 0
      %671 = vmatpush1.bf16.msra.mxu0 0
      %672 = vmatprep.subr.bf16.mxu0 0
      %673 = vmatpush1.bf16.msra.mxu0 0
      %674 = vmatprep.subr.bf16.mxu0 0
      %675 = vmatpush1.bf16.msra.mxu0 0
      %676 = vmatprep.subr.bf16.mxu0 0
      %677 = vmatpush1.bf16.msra.mxu0 0
      %678 = vmatprep.subr.bf16.mxu0 0
      %679 = vmatpush1.bf16.msra.mxu0 0
      %680 = vmatprep.subr.bf16.mxu0 0
      %681 = vmatpush1.bf16.msra.mxu0 0
      %682 = vmatprep.subr.bf16.mxu0 0
      %683 = vmatpush1.bf16.msra.mxu0 0
      %684 = vmatprep.subr.bf16.mxu0 0
      %685 = vmatpush1.bf16.msra.mxu0 0
      %686 = vmatprep.subr.bf16.mxu0 0
      %687 = vmatpush1.bf16.msra.mxu0 0
      %688 = vmatprep.subr.bf16.mxu0 0
      %689 = vmatpush1.bf16.msra.mxu0 0
      %690 = vmatprep.subr.bf16.mxu0 0
      %691 = vmatpush1.bf16.msra.mxu0 0
      %692 = vmatprep.subr.bf16.mxu0 0
      %693 = vmatpush1.bf16.msra.mxu0 0
      %694 = vmatprep.mubr.bf16.mxu0 0
      %695 = vmatmul.mubr.bf16.gmra.mrb[0].mxu0 %v657
      %v696 = vpop.f32.mrb[0].mxu0
      %v697 = vadd.f32 0.0, %v696
      %v698 = vpop.f32.mrb[0].mxu0
      %v699 = vpop.f32.mrb[0].mxu0
      %v700 = vpop.f32.mrb[0].mxu0
      %701 = vdwg.mxu0
      %703 = vrot.lane.b32.xlu0 %v473, 8
      %v704 = vpop.permute.xlu0 %703
      %707 = vrot.lane.b32.xlu0 %v585, 16
      %v708 = vpop.permute.xlu0 %707
      %711 = vrot.lane.b32.xlu0 %v697, 24
      %v712 = vpop.permute.xlu0 %711
      %v714 = vsel %vm249, %v358, %v704
      %vm715 = vcmask 130048
      %v716 = vsel %vm715, %v714, %v708
      %vm717 = vcmask 195584
      %v718 = vsel %vm717, %v716, %v712
      %vm719 = vcmask 261120
      %720 = vst.msk [vmem:[%s240] sm:$0xff] %vm719, %v718
      %p721 = scmp.lt.s32.totalorder %s15, 1
      %s722 = scalar_select %p721, %s15, 1
      %s723 = smul.addr %s722, 8
      %s724 = scalar_lea.vmem %s4, %s723
      // Predicated region
      $region37: #{_lambda_.25} parent=35 // pred_check
        %p725 = pneg %p137
      $region38: #{_lambda_.25} parent=35 // pred_check_branch
        %727 = sbr.rel (%p725) target = $region40
      $region39: #{_lambda_.25} parent=35 // pred_region
        _
      $region40: #{_lambda_.25} parent=35 // pred_fallthru
        _
    $region36: #{_lambda_.25} parent=5 // pred_fallthru
      _
    %p728 = scmp.le.s32.totalorder 2, %s10
    // Predicated region
    $region41: #{_lambda_.25} parent=5 // pred_check
      %p729 = pneg %p728
    $region42: #{_lambda_.25} parent=5 // pred_check_branch
      %731 = sbr.rel (%p729) target = $region44
    $region43: #{_lambda_.25} parent=5 // pred_region
      %s732 = ssub.s32 %s10, 2
      // Predicated region
      $region45: #{_lambda_.25} parent=43 // pred_check
        %p733 = pneg %p143
      $region46: #{_lambda_.25} parent=43 // pred_check_branch
        %735 = sbr.rel (%p733) target = $region48
      $region47: #{_lambda_.25} parent=43 // pred_region
        %p736 = scmp.lt.s32.totalorder %s16, 1
        %s737 = scalar_select %p736, %s16, 1
        %s738 = smul.addr %s737, 8
        %s739 = scalar_lea.vmem %s4, %s738
      $region48: #{_lambda_.25} parent=43 // pred_fallthru
        _
    $region44: #{_lambda_.25} parent=5 // pred_fallthru
      _
  $region6: #{_lambda_.25} parent=0 // loop_footer
    %s14 = sadd.s32 1, %s10
  $region7: #{_lambda_.25} parent=0 // loop_footer_branch
    %9 = sbr.rel target = $region3
  $region8: #{_lambda_.25} parent=0 // loop_exit
    _

// kernel: _lambda_.30
$region0: #{_lambda_.30}
  #allocation0 [shape = 'u32[]', space=smem, size = 0x4, offset = 0x4, fixed_abs, tag = 'smem constant byte address 0x4 - core index']
  #allocation1 [shape = 'u32[144,128]{1,0:T(1,128)}', space=vmem, size = 0x12000, scoped, tag = 'internal scratch']
  %s0 = inlined_call_operand.vmem [shape: f32[16,64], index: 0, kind: input, shape index: {}]
  %s1 = inlined_call_operand.vmem [shape: f32[16,64], index: 1, kind: input, shape index: {}]
  %s2 = inlined_call_operand.vmem [shape: bf16[64,64], index: 2, kind: input, shape index: {}]
  %s3 = inlined_call_operand.vmem [shape: f32[1,64], index: 3, kind: input, shape index: {}]
  %s4 = inlined_call_operand.vmem [shape: f32[1,64], index: 4, kind: input, shape index: {}]
  %s5 = inlined_call_operand.vmem [shape: f32[1,64], index: 5, kind: input, shape index: {}]
  %s6 = inlined_call_operand.vmem [shape: f32[16,64], index: 6, kind: output, shape index: {}]
  %s7 = sld [smem:[#allocation0]]
  $region57: #{_lambda_.30} parent=0
    _
  %s9 = ssub.s32 1, %s7
  %s10 = scalar_select 0, %s9, %s7
  loop: start=0, step=1, limit=4
  $region2: #{_lambda_.30} parent=0 // loop_pre_header
    _
  $region3: #{_lambda_.30} parent=0 // loop_header
    %s12 = sphi 0, %s16
    %p13 = scmp.ge.s32.totalorder %s12, 4
    %s22 = sphi 0, %s24
    %s25 = sphi 0, %s22
    %s26 = sphi 0, %s25
    %s42 = sphi 0, %s26
    %s48 = sphi 0, %s50
    %s51 = sphi 0, %s48
    %s52 = sphi 0, %s51
    %s68 = sphi 0, %s52
    %s72 = sphi 0, %s72
    %s74 = sphi 0, %s72
    %s75 = sphi 0, %s74
    %s89 = sphi 0, %s75
    %s93 = sphi 0, %s93
    %s95 = sphi 0, %s93
    %s96 = sphi 0, %s95
    %s110 = sphi 0, %s96
    %s114 = sphi 0, %s114
    %s116 = sphi 0, %s114
    %s117 = sphi 0, %s116
    %s131 = sphi 0, %s117
    %s135 = sphi 0, %s135
    %s137 = sphi 0, %s135
    %s138 = sphi 0, %s137
    %s152 = sphi 0, %s138
    %s158 = sphi 0, %s160
    %s161 = sphi 0, %s158
    %s162 = sphi 0, %s161
    %s178 = sphi 0, %s162
  $region4: #{_lambda_.30} parent=0 // loop_header_branch
    %15 = sbr.rel (%p13) target = $region8
  $region5: #{_lambda_.30} parent=0 // loop_body
    %s17 = ssub.s32 %s12, 1
    %s18 = ssub.s32 %s12, 2
    %s19 = sadd.s32 %s12, 1
    %s20 = ssub.s32 %s12, %s19
    %p21 = scmp.eq.s32.totalorder %s20, 0
    %s23 = sadd.s32 %s22, 1
    %s24 = scalar_select %p21, %s22, %s23
    %p27 = pneg %p21
    %p28 = scmp.eq.s32.totalorder %s12, 1
    %p29 = por %p27, %p28
    %p30 = scmp.ne.s32.totalorder %s22, %s25
    %p31 = scmp.eq.s32.totalorder %s12, 0
    %p32 = por %p30, %p31
    %p33 = scmp.ne.s32.totalorder %s22, %s25
    %p34 = scmp.eq.s32.totalorder %s17, 1
    %p35 = por %p33, %p34
    %p36 = scmp.ne.s32.totalorder %s25, %s26
    %p37 = scmp.eq.s32.totalorder %s17, 0
    %p38 = por %p36, %p37
    %p39 = scmp.ne.s32.totalorder %s25, %s26
    %p40 = scmp.eq.s32.totalorder %s18, 1
    %p41 = por %p39, %p40
    %p43 = scmp.ne.s32.totalorder %s26, %s42
    %p44 = scmp.eq.s32.totalorder %s18, 0
    %p45 = por %p43, %p44
    %s46 = ssub.s32 %s12, %s19
    %p47 = scmp.eq.s32.totalorder %s46, 0
    %s49 = sadd.s32 %s48, 1
    %s50 = scalar_select %p47, %s48, %s49
    %p53 = pneg %p47
    %p54 = scmp.eq.s32.totalorder %s12, 1
    %p55 = por %p53, %p54
    %p56 = scmp.ne.s32.totalorder %s48, %s51
    %p57 = scmp.eq.s32.totalorder %s12, 0
    %p58 = por %p56, %p57
    %p59 = scmp.ne.s32.totalorder %s48, %s51
    %p60 = scmp.eq.s32.totalorder %s17, 1
    %p61 = por %p59, %p60
    %p62 = scmp.ne.s32.totalorder %s51, %s52
    %p63 = scmp.eq.s32.totalorder %s17, 0
    %p64 = por %p62, %p63
    %p65 = scmp.ne.s32.totalorder %s51, %s52
    %p66 = scmp.eq.s32.totalorder %s18, 1
    %p67 = por %p65, %p66
    %p69 = scmp.ne.s32.totalorder %s52, %s68
    %p70 = scmp.eq.s32.totalorder %s18, 0
    %p71 = por %p69, %p70
    %s73 = sadd.s32 %s72, 1
    %p76 = scmp.eq.s32.totalorder %s12, 1
    %p77 = scmp.ne.s32.totalorder %s72, %s74
    %p78 = scmp.eq.s32.totalorder %s12, 0
    %p79 = por %p77, %p78
    %p80 = scmp.ne.s32.totalorder %s72, %s74
    %p81 = scmp.eq.s32.totalorder %s17, 1
    %p82 = por %p80, %p81
    %p83 = scmp.ne.s32.totalorder %s74, %s75
    %p84 = scmp.eq.s32.totalorder %s17, 0
    %p85 = por %p83, %p84
    %p86 = scmp.ne.s32.totalorder %s74, %s75
    %p87 = scmp.eq.s32.totalorder %s18, 1
    %p88 = por %p86, %p87
    %p90 = scmp.ne.s32.totalorder %s75, %s89
    %p91 = scmp.eq.s32.totalorder %s18, 0
    %p92 = por %p90, %p91
    %s94 = sadd.s32 %s93, 1
    %p97 = scmp.eq.s32.totalorder %s12, 1
    %p98 = scmp.ne.s32.totalorder %s93, %s95
    %p99 = scmp.eq.s32.totalorder %s12, 0
    %p100 = por %p98, %p99
    %p101 = scmp.ne.s32.totalorder %s93, %s95
    %p102 = scmp.eq.s32.totalorder %s17, 1
    %p103 = por %p101, %p102
    %p104 = scmp.ne.s32.totalorder %s95, %s96
    %p105 = scmp.eq.s32.totalorder %s17, 0
    %p106 = por %p104, %p105
    %p107 = scmp.ne.s32.totalorder %s95, %s96
    %p108 = scmp.eq.s32.totalorder %s18, 1
    %p109 = por %p107, %p108
    %p111 = scmp.ne.s32.totalorder %s96, %s110
    %p112 = scmp.eq.s32.totalorder %s18, 0
    %p113 = por %p111, %p112
    %s115 = sadd.s32 %s114, 1
    %p118 = scmp.eq.s32.totalorder %s12, 1
    %p119 = scmp.ne.s32.totalorder %s114, %s116
    %p120 = scmp.eq.s32.totalorder %s12, 0
    %p121 = por %p119, %p120
    %p122 = scmp.ne.s32.totalorder %s114, %s116
    %p123 = scmp.eq.s32.totalorder %s17, 1
    %p124 = por %p122, %p123
    %p125 = scmp.ne.s32.totalorder %s116, %s117
    %p126 = scmp.eq.s32.totalorder %s17, 0
    %p127 = por %p125, %p126
    %p128 = scmp.ne.s32.totalorder %s116, %s117
    %p129 = scmp.eq.s32.totalorder %s18, 1
    %p130 = por %p128, %p129
    %p132 = scmp.ne.s32.totalorder %s117, %s131
    %p133 = scmp.eq.s32.totalorder %s18, 0
    %p134 = por %p132, %p133
    %s136 = sadd.s32 %s135, 1
    %p139 = scmp.eq.s32.totalorder %s12, 1
    %p140 = scmp.ne.s32.totalorder %s135, %s137
    %p141 = scmp.eq.s32.totalorder %s12, 0
    %p142 = por %p140, %p141
    %p143 = scmp.ne.s32.totalorder %s135, %s137
    %p144 = scmp.eq.s32.totalorder %s17, 1
    %p145 = por %p143, %p144
    %p146 = scmp.ne.s32.totalorder %s137, %s138
    %p147 = scmp.eq.s32.totalorder %s17, 0
    %p148 = por %p146, %p147
    %p149 = scmp.ne.s32.totalorder %s137, %s138
    %p150 = scmp.eq.s32.totalorder %s18, 1
    %p151 = por %p149, %p150
    %p153 = scmp.ne.s32.totalorder %s138, %s152
    %p154 = scmp.eq.s32.totalorder %s18, 0
    %p155 = por %p153, %p154
    %s156 = ssub.s32 %s12, %s19
    %p157 = scmp.eq.s32.totalorder %s156, 0
    %s159 = sadd.s32 %s158, 1
    %s160 = scalar_select %p157, %s158, %s159
    %p163 = pneg %p157
    %p164 = scmp.eq.s32.totalorder %s12, 1
    %p165 = por %p163, %p164
    %p166 = scmp.ne.s32.totalorder %s158, %s161
    %p167 = scmp.eq.s32.totalorder %s12, 0
    %p168 = por %p166, %p167
    %p169 = scmp.ne.s32.totalorder %s158, %s161
    %p170 = scmp.eq.s32.totalorder %s17, 1
    %p171 = por %p169, %p170
    %p172 = scmp.ne.s32.totalorder %s161, %s162
    %p173 = scmp.eq.s32.totalorder %s17, 0
    %p174 = por %p172, %p173
    %p175 = scmp.ne.s32.totalorder %s161, %s162
    %p176 = scmp.eq.s32.totalorder %s18, 1
    %p177 = por %p175, %p176
    %p179 = scmp.ne.s32.totalorder %s162, %s178
    %p180 = scmp.eq.s32.totalorder %s18, 0
    %p181 = por %p179, %p180
    %p182 = scmp.le.s32.totalorder 1, %s12
    %p183 = scmp.lt.s32.totalorder %s12, 3
    %p184 = pnand %p182, %p183
    %p185 = pneg %p184
    // Predicated region
    $region9: #{_lambda_.30} parent=5 // pred_check
      _
    $region10: #{_lambda_.30} parent=5 // pred_check_branch
      %187 = sbr.rel (%p184) target = $region12
    $region11: #{_lambda_.30} parent=5 // pred_region
      %s188 = ssub.s32 %s12, 1
      // Predicated region
      $region13: #{_lambda_.30} parent=11 // pred_check
        %p189 = pneg %p85
      $region14: #{_lambda_.30} parent=11 // pred_check_branch
        %191 = sbr.rel (%p189) target = $region16
      $region15: #{_lambda_.30} parent=11 // pred_region
        _
      $region16: #{_lambda_.30} parent=11 // pred_fallthru
        _
      // Predicated region
      $region17: #{_lambda_.30} parent=11 // pred_check
        %p192 = pneg %p106
      $region18: #{_lambda_.30} parent=11 // pred_check_branch
        %194 = sbr.rel (%p192) target = $region20
      $region19: #{_lambda_.30} parent=11 // pred_region
        _
      $region20: #{_lambda_.30} parent=11 // pred_fallthru
        _
      // Predicated region
      $region21: #{_lambda_.30} parent=11 // pred_check
        %p195 = pneg %p127
      $region22: #{_lambda_.30} parent=11 // pred_check_branch
        %197 = sbr.rel (%p195) target = $region24
      $region23: #{_lambda_.30} parent=11 // pred_region
        _
      $region24: #{_lambda_.30} parent=11 // pred_fallthru
        _
      // Predicated region
      $region25: #{_lambda_.30} parent=11 // pred_check
        %p198 = pneg %p148
      $region26: #{_lambda_.30} parent=11 // pred_check_branch
        %200 = sbr.rel (%p198) target = $region28
      $region27: #{_lambda_.30} parent=11 // pred_region
        _
      $region28: #{_lambda_.30} parent=11 // pred_fallthru
        _
    $region12: #{_lambda_.30} parent=5 // pred_fallthru
      _
    %p201 = scmp.lt.s32.totalorder %s12, 2
    // Predicated region
    $region29: #{_lambda_.30} parent=5 // pred_check
      %p202 = pneg %p201
    $region30: #{_lambda_.30} parent=5 // pred_check_branch
      %204 = sbr.rel (%p202) target = $region32
    $region31: #{_lambda_.30} parent=5 // pred_region
      // Predicated region
      $region33: #{_lambda_.30} parent=31 // pred_check
        %p205 = pneg %p32
      $region34: #{_lambda_.30} parent=31 // pred_check_branch
        %207 = sbr.rel (%p205) target = $region36
      $region35: #{_lambda_.30} parent=31 // pred_region
        %p208 = scmp.lt.s32.totalorder %s12, 1
        %s209 = scalar_select %p208, %s12, 1
        %s210 = smul.addr %s209, 8
        %s211 = scalar_lea.vmem %s0, %s210
      $region36: #{_lambda_.30} parent=31 // pred_fallthru
        _
      // Predicated region
      $region37: #{_lambda_.30} parent=31 // pred_check
        %p212 = pneg %p58
      $region38: #{_lambda_.30} parent=31 // pred_check_branch
        %214 = sbr.rel (%p212) target = $region40
      $region39: #{_lambda_.30} parent=31 // pred_region
        %p215 = scmp.lt.s32.totalorder %s12, 1
        %s216 = scalar_select %p215, %s12, 1
        %s217 = smul.addr %s216, 8
        %s218 = scalar_lea.vmem %s1, %s217
      $region40: #{_lambda_.30} parent=31 // pred_fallthru
        _
    $region32: #{_lambda_.30} parent=5 // pred_fallthru
      _
    %p219 = scmp.le.s32.totalorder 1, %s12
    %p220 = scmp.lt.s32.totalorder %s12, 3
    %p221 = pnand %p219, %p220
    %p222 = pneg %p221
    // Predicated region
    $region41: #{_lambda_.30} parent=5 // pred_check
      _
    $region42: #{_lambda_.30} parent=5 // pred_check_branch
      %224 = sbr.rel (%p221) target = $region44
    $region43: #{_lambda_.30} parent=5 // pred_region
      %s225 = ssub.s32 %s12, 1
      %p226 = scmp.lt.s32.totalorder %s17, 1
      %s227 = scalar_select %p226, %s17, 1
      %s228 = smul.addr %s227, 8
      %s229 = scalar_lea.vmem %s0, %s228
      %p230 = pneg %p38
      %p231 = pneg %p35
      %p232 = scmp.lt.s32.totalorder %s17, 1
      %s233 = scalar_select %p232, %s17, 1
      %s234 = smul.addr %s233, 8
      %s235 = scalar_lea.vmem %s1, %s234
      %p236 = pneg %p64
      %p237 = pneg %p61
      %p238 = pneg %p85
      %p239 = pneg %p82
      %p240 = pneg %p106
      %p241 = pneg %p103
      %p242 = pneg %p127
      %p243 = pneg %p124
      %p244 = pneg %p148
      %p245 = pneg %p145
      %p246 = pneg %p174
      %p247 = pneg %p171
      %p248 = scmp.lt.s32.totalorder %s17, 1
      %s249 = scalar_select %p248, %s17, 1
      %s250 = smul.addr %s249, 8
      %s251 = scalar_lea.vmem %s6, %s250
      %p252 = scmp.lt.s32.totalorder %s17, 1
      %s253 = scalar_select %p252, %s17, 1
      %s254 = smul.addr %s253, 8
      %s255 = scalar_lea.vmem %s0, %s254
      %p256 = scmp.lt.s32.totalorder %s17, 1
      %s257 = scalar_select %p256, %s17, 1
      %s258 = smul.addr %s257, 8
      %s259 = scalar_lea.vmem %s1, %s258
      %p260 = scmp.lt.s32.totalorder %s17, 1
      %s261 = scalar_select %p260, %s17, 1
      %s262 = smul.addr %s261, 8
      %s263 = scalar_lea.vmem %s6, %s262
      %v265 = vld [vmem:[%s255] sm:$0xff]
      %v266 = vpack.c.bf16 %v265, %v265
      %v267 = vld [vmem:[%s2] sm:$0xf]
      %v268 = vld [vmem:[%s2 + $0x4] sm:$0xf]
      %v269 = vld [vmem:[%s2 + $0x8] sm:$0xf]
      %v270 = vld [vmem:[%s2 + $0xc] sm:$0xf]
      %v271 = vld [vmem:[%s2 + $0x10] sm:$0xf]
      %v272 = vld [vmem:[%s2 + $0x14] sm:$0xf]
      %v273 = vld [vmem:[%s2 + $0x18] sm:$0xf]
      %v274 = vld [vmem:[%s2 + $0x1c] sm:$0xf]
      %v275 = vld [vmem:[%s3] sm:$0x1]
      %v277 = vlaneseq
      %v278 = vshrl.u32 %v277, 7
      %v279 = vsub.s32 0, %v278
      %v280 = vrot.slane %v275, %v279
      %v290 = vunpack.c.l.b16 %v267
      %v291 = vunpack.c.l.b16 %v268
      %v292 = vunpack.c.l.b16 %v269
      %v293 = vunpack.c.l.b16 %v270
      %v294 = vunpack.c.l.b16 %v271
      %v295 = vunpack.c.l.b16 %v272
      %v296 = vunpack.c.l.b16 %v273
      %v297 = vunpack.c.l.b16 %v274
      %v298 = vpack.c.b16 %v291, %v290
      %v299 = vpack.c.b16 %v293, %v292
      %v300 = vpack.c.b16 %v295, %v294
      %v301 = vpack.c.b16 %v297, %v296
      %vm306 = vcmask 523264
      %v308 = vsel %vm306, %v266, 0
      %310 = vmatprep.subr.bf16.mxu0 0
      %311 = vmatpush1.bf16.msra.mxu0 %v298
      %312 = vmatprep.subr.bf16.mxu0 0
      %313 = vmatpush1.bf16.msra.mxu0 %v299
      %314 = vmatprep.subr.bf16.mxu0 0
      %315 = vmatpush1.bf16.msra.mxu0 %v300
      %316 = vmatprep.subr.bf16.mxu0 0
      %317 = vmatpush1.bf16.msra.mxu0 %v301
      %318 = vmatprep.subr.bf16.mxu0 0
      %319 = vmatpush1.bf16.msra.mxu0 0
      %320 = vmatprep.subr.bf16.mxu0 0
      %321 = vmatpush1.bf16.msra.mxu0 0
      %322 = vmatprep.subr.bf16.mxu0 0
      %323 = vmatpush1.bf16.msra.mxu0 0
      %324 = vmatprep.subr.bf16.mxu0 0
      %325 = vmatpush1.bf16.msra.mxu0 0
      %326 = vmatprep.subr.bf16.mxu0 0
      %327 = vmatpush1.bf16.msra.mxu0 0
      %328 = vmatprep.subr.bf16.mxu0 0
      %329 = vmatpush1.bf16.msra.mxu0 0
      %330 = vmatprep.subr.bf16.mxu0 0
      %331 = vmatpush1.bf16.msra.mxu0 0
      %332 = vmatprep.subr.bf16.mxu0 0
      %333 = vmatpush1.bf16.msra.mxu0 0
      %334 = vmatprep.subr.bf16.mxu0 0
      %335 = vmatpush1.bf16.msra.mxu0 0
      %336 = vmatprep.subr.bf16.mxu0 0
      %337 = vmatpush1.bf16.msra.mxu0 0
      %338 = vmatprep.subr.bf16.mxu0 0
      %339 = vmatpush1.bf16.msra.mxu0 0
      %340 = vmatprep.subr.bf16.mxu0 0
      %341 = vmatpush1.bf16.msra.mxu0 0
      %342 = vmatprep.mubr.bf16.mxu0 0
      %343 = vmatmul.mubr.bf16.gmra.mrb[0].mxu0 %v308
      %v344 = vpop.f32.mrb[0].mxu0
      %v345 = vadd.f32 %v280, %v344
      %v346 = vpop.f32.mrb[0].mxu0
      %v347 = vpop.f32.mrb[0].mxu0
      %v348 = vpop.f32.mrb[0].mxu0
      %349 = vdwg.mxu0
      %v350 = vld [vmem:[%s259] sm:$0xff]
      %v351 = vadd.f32 %v345, %v350
      %v352 = vld [vmem:[%s4] sm:$0x1]
      %v353 = vld [vmem:[%s5] sm:$0x1]
      %v354 = vsel %vm306, %v351, 0.0
      %355 = vadd.xlane.f32.xlu0 %v354
      %v356 = vpop.xlane.xlu0 %355
      %v357 = vrcp.pop 64.0
      %v358 = vmul.f32 %v356, %v357
      %v359 = vsub.f32 %v351, %v358
      %v360 = vmul.f32 %v359, %v359
      %v361 = vsel %vm306, %v360, 0.0
      %362 = vadd.xlane.f32.xlu0 %v361
      %v363 = vpop.xlane.xlu0 %362
      %v364 = vmul.f32 %v363, %v357
      %v365 = vadd.f32 %v364, 1e-12
      %v366 = vrsqrt.pop %v365
      %v367 = vmul.f32 %v359, %v366
      %v369 = vlaneseq
      %v370 = vshrl.u32 %v369, 7
      %v371 = vsub.s32 0, %v370
      %v372 = vrot.slane %v352, %v371
      %v374 = vmul.f32 %v367, %v372
      %v376 = vlaneseq
      %v377 = vshrl.u32 %v376, 7
      %v378 = vsub.s32 0, %v377
      %v379 = vrot.slane %v353, %v378
      %v381 = vadd.f32 %v374, %v379
      %382 = vst.msk [vmem:[%s263] sm:$0xff] %vm306, %v381
      %p383 = scmp.lt.s32.totalorder %s17, 1
      %s384 = scalar_select %p383, %s17, 1
      %s385 = smul.addr %s384, 8
      %s386 = scalar_lea.vmem %s6, %s385
      // Predicated region
      $region45: #{_lambda_.30} parent=43 // pred_check
        %p387 = pneg %p171
      $region46: #{_lambda_.30} parent=43 // pred_check_branch
        %389 = sbr.rel (%p387) target = $region48
      $region47: #{_lambda_.30} parent=43 // pred_region
        _
      $region48: #{_lambda_.30} parent=43 // pred_fallthru
        _
    $region44: #{_lambda_.30} parent=5 // pred_fallthru
      _
    %p390 = scmp.le.s32.totalorder 2, %s12
    // Predicated region
    $region49: #{_lambda_.30} parent=5 // pred_check
      %p391 = pneg %p390
    $region50: #{_lambda_.30} parent=5 // pred_check_branch
      %393 = sbr.rel (%p391) target = $region52
    $region51: #{_lambda_.30} parent=5 // pred_region
      %s394 = ssub.s32 %s12, 2
      // Predicated region
      $region53: #{_lambda_.30} parent=51 // pred_check
        %p395 = pneg %p177
      $region54: #{_lambda_.30} parent=51 // pred_check_branch
        %397 = sbr.rel (%p395) target = $region56
      $region55: #{_lambda_.30} parent=51 // pred_region
        %p398 = scmp.lt.s32.totalorder %s18, 1
        %s399 = scalar_select %p398, %s18, 1
        %s400 = smul.addr %s399, 8
        %s401 = scalar_lea.vmem %s6, %s400
      $region56: #{_lambda_.30} parent=51 // pred_fallthru
        _
    $region52: #{_lambda_.30} parent=5 // pred_fallthru
      _
  $region6: #{_lambda_.30} parent=0 // loop_footer
    %s16 = sadd.s32 1, %s12
  $region7: #{_lambda_.30} parent=0 // loop_footer_branch
    %11 = sbr.rel target = $region3
  $region8: #{_lambda_.30} parent=0 // loop_exit
    _

// kernel: _lambda_.27
$region0: #{_lambda_.27}
  #allocation0 [shape = 'u32[]', space=smem, size = 0x4, offset = 0x4, fixed_abs, tag = 'smem constant byte address 0x4 - core index']
  #allocation1 [shape = 'u32[144,128]{1,0:T(1,128)}', space=vmem, size = 0x12000, scoped, tag = 'internal scratch']
  %s0 = inlined_call_operand.vmem [shape: f32[16,32], index: 0, kind: input, shape index: {}]
  %s1 = inlined_call_operand.vmem [shape: bf16[32,64], index: 1, kind: input, shape index: {}]
  %s2 = inlined_call_operand.vmem [shape: f32[1,64], index: 2, kind: input, shape index: {}]
  %s3 = inlined_call_operand.vmem [shape: bf16[64,32], index: 3, kind: input, shape index: {}]
  %s4 = inlined_call_operand.vmem [shape: f32[1,32], index: 4, kind: input, shape index: {}]
  %s5 = inlined_call_operand.vmem [shape: f32[1,32], index: 5, kind: input, shape index: {}]
  %s6 = inlined_call_operand.vmem [shape: f32[1,32], index: 6, kind: input, shape index: {}]
  %s7 = inlined_call_operand.vmem [shape: f32[16,32], index: 7, kind: output, shape index: {}]
  %s8 = sld [smem:[#allocation0]]
  $region61: #{_lambda_.27} parent=0
    _
  %s10 = ssub.s32 1, %s8
  %s11 = scalar_select 0, %s10, %s8
  loop: start=0, step=1, limit=4
  $region2: #{_lambda_.27} parent=0 // loop_pre_header
    _
  $region3: #{_lambda_.27} parent=0 // loop_header
    %s13 = sphi 0, %s17
    %p14 = scmp.ge.s32.totalorder %s13, 4
    %s23 = sphi 0, %s25
    %s26 = sphi 0, %s23
    %s27 = sphi 0, %s26
    %s43 = sphi 0, %s27
    %s47 = sphi 0, %s47
    %s49 = sphi 0, %s47
    %s50 = sphi 0, %s49
    %s64 = sphi 0, %s50
    %s68 = sphi 0, %s68
    %s70 = sphi 0, %s68
    %s71 = sphi 0, %s70
    %s85 = sphi 0, %s71
    %s89 = sphi 0, %s89
    %s91 = sphi 0, %s89
    %s92 = sphi 0, %s91
    %s106 = sphi 0, %s92
    %s110 = sphi 0, %s110
    %s112 = sphi 0, %s110
    %s113 = sphi 0, %s112
    %s127 = sphi 0, %s113
    %s131 = sphi 0, %s131
    %s133 = sphi 0, %s131
    %s134 = sphi 0, %s133
    %s148 = sphi 0, %s134
    %s152 = sphi 0, %s152
    %s154 = sphi 0, %s152
    %s155 = sphi 0, %s154
    %s169 = sphi 0, %s155
    %s175 = sphi 0, %s177
    %s178 = sphi 0, %s175
    %s179 = sphi 0, %s178
    %s195 = sphi 0, %s179
  $region4: #{_lambda_.27} parent=0 // loop_header_branch
    %16 = sbr.rel (%p14) target = $region8
  $region5: #{_lambda_.27} parent=0 // loop_body
    %s18 = ssub.s32 %s13, 1
    %s19 = ssub.s32 %s13, 2
    %s20 = sadd.s32 %s13, 1
    %s21 = ssub.s32 %s13, %s20
    %p22 = scmp.eq.s32.totalorder %s21, 0
    %s24 = sadd.s32 %s23, 1
    %s25 = scalar_select %p22, %s23, %s24
    %p28 = pneg %p22
    %p29 = scmp.eq.s32.totalorder %s13, 1
    %p30 = por %p28, %p29
    %p31 = scmp.ne.s32.totalorder %s23, %s26
    %p32 = scmp.eq.s32.totalorder %s13, 0
    %p33 = por %p31, %p32
    %p34 = scmp.ne.s32.totalorder %s23, %s26
    %p35 = scmp.eq.s32.totalorder %s18, 1
    %p36 = por %p34, %p35
    %p37 = scmp.ne.s32.totalorder %s26, %s27
    %p38 = scmp.eq.s32.totalorder %s18, 0
    %p39 = por %p37, %p38
    %p40 = scmp.ne.s32.totalorder %s26, %s27
    %p41 = scmp.eq.s32.totalorder %s19, 1
    %p42 = por %p40, %p41
    %p44 = scmp.ne.s32.totalorder %s27, %s43
    %p45 = scmp.eq.s32.totalorder %s19, 0
    %p46 = por %p44, %p45
    %s48 = sadd.s32 %s47, 1
    %p51 = scmp.eq.s32.totalorder %s13, 1
    %p52 = scmp.ne.s32.totalorder %s47, %s49
    %p53 = scmp.eq.s32.totalorder %s13, 0
    %p54 = por %p52, %p53
    %p55 = scmp.ne.s32.totalorder %s47, %s49
    %p56 = scmp.eq.s32.totalorder %s18, 1
    %p57 = por %p55, %p56
    %p58 = scmp.ne.s32.totalorder %s49, %s50
    %p59 = scmp.eq.s32.totalorder %s18, 0
    %p60 = por %p58, %p59
    %p61 = scmp.ne.s32.totalorder %s49, %s50
    %p62 = scmp.eq.s32.totalorder %s19, 1
    %p63 = por %p61, %p62
    %p65 = scmp.ne.s32.totalorder %s50, %s64
    %p66 = scmp.eq.s32.totalorder %s19, 0
    %p67 = por %p65, %p66
    %s69 = sadd.s32 %s68, 1
    %p72 = scmp.eq.s32.totalorder %s13, 1
    %p73 = scmp.ne.s32.totalorder %s68, %s70
    %p74 = scmp.eq.s32.totalorder %s13, 0
    %p75 = por %p73, %p74
    %p76 = scmp.ne.s32.totalorder %s68, %s70
    %p77 = scmp.eq.s32.totalorder %s18, 1
    %p78 = por %p76, %p77
    %p79 = scmp.ne.s32.totalorder %s70, %s71
    %p80 = scmp.eq.s32.totalorder %s18, 0
    %p81 = por %p79, %p80
    %p82 = scmp.ne.s32.totalorder %s70, %s71
    %p83 = scmp.eq.s32.totalorder %s19, 1
    %p84 = por %p82, %p83
    %p86 = scmp.ne.s32.totalorder %s71, %s85
    %p87 = scmp.eq.s32.totalorder %s19, 0
    %p88 = por %p86, %p87
    %s90 = sadd.s32 %s89, 1
    %p93 = scmp.eq.s32.totalorder %s13, 1
    %p94 = scmp.ne.s32.totalorder %s89, %s91
    %p95 = scmp.eq.s32.totalorder %s13, 0
    %p96 = por %p94, %p95
    %p97 = scmp.ne.s32.totalorder %s89, %s91
    %p98 = scmp.eq.s32.totalorder %s18, 1
    %p99 = por %p97, %p98
    %p100 = scmp.ne.s32.totalorder %s91, %s92
    %p101 = scmp.eq.s32.totalorder %s18, 0
    %p102 = por %p100, %p101
    %p103 = scmp.ne.s32.totalorder %s91, %s92
    %p104 = scmp.eq.s32.totalorder %s19, 1
    %p105 = por %p103, %p104
    %p107 = scmp.ne.s32.totalorder %s92, %s106
    %p108 = scmp.eq.s32.totalorder %s19, 0
    %p109 = por %p107, %p108
    %s111 = sadd.s32 %s110, 1
    %p114 = scmp.eq.s32.totalorder %s13, 1
    %p115 = scmp.ne.s32.totalorder %s110, %s112
    %p116 = scmp.eq.s32.totalorder %s13, 0
    %p117 = por %p115, %p116
    %p118 = scmp.ne.s32.totalorder %s110, %s112
    %p119 = scmp.eq.s32.totalorder %s18, 1
    %p120 = por %p118, %p119
    %p121 = scmp.ne.s32.totalorder %s112, %s113
    %p122 = scmp.eq.s32.totalorder %s18, 0
    %p123 = por %p121, %p122
    %p124 = scmp.ne.s32.totalorder %s112, %s113
    %p125 = scmp.eq.s32.totalorder %s19, 1
    %p126 = por %p124, %p125
    %p128 = scmp.ne.s32.totalorder %s113, %s127
    %p129 = scmp.eq.s32.totalorder %s19, 0
    %p130 = por %p128, %p129
    %s132 = sadd.s32 %s131, 1
    %p135 = scmp.eq.s32.totalorder %s13, 1
    %p136 = scmp.ne.s32.totalorder %s131, %s133
    %p137 = scmp.eq.s32.totalorder %s13, 0
    %p138 = por %p136, %p137
    %p139 = scmp.ne.s32.totalorder %s131, %s133
    %p140 = scmp.eq.s32.totalorder %s18, 1
    %p141 = por %p139, %p140
    %p142 = scmp.ne.s32.totalorder %s133, %s134
    %p143 = scmp.eq.s32.totalorder %s18, 0
    %p144 = por %p142, %p143
    %p145 = scmp.ne.s32.totalorder %s133, %s134
    %p146 = scmp.eq.s32.totalorder %s19, 1
    %p147 = por %p145, %p146
    %p149 = scmp.ne.s32.totalorder %s134, %s148
    %p150 = scmp.eq.s32.totalorder %s19, 0
    %p151 = por %p149, %p150
    %s153 = sadd.s32 %s152, 1
    %p156 = scmp.eq.s32.totalorder %s13, 1
    %p157 = scmp.ne.s32.totalorder %s152, %s154
    %p158 = scmp.eq.s32.totalorder %s13, 0
    %p159 = por %p157, %p158
    %p160 = scmp.ne.s32.totalorder %s152, %s154
    %p161 = scmp.eq.s32.totalorder %s18, 1
    %p162 = por %p160, %p161
    %p163 = scmp.ne.s32.totalorder %s154, %s155
    %p164 = scmp.eq.s32.totalorder %s18, 0
    %p165 = por %p163, %p164
    %p166 = scmp.ne.s32.totalorder %s154, %s155
    %p167 = scmp.eq.s32.totalorder %s19, 1
    %p168 = por %p166, %p167
    %p170 = scmp.ne.s32.totalorder %s155, %s169
    %p171 = scmp.eq.s32.totalorder %s19, 0
    %p172 = por %p170, %p171
    %s173 = ssub.s32 %s13, %s20
    %p174 = scmp.eq.s32.totalorder %s173, 0
    %s176 = sadd.s32 %s175, 1
    %s177 = scalar_select %p174, %s175, %s176
    %p180 = pneg %p174
    %p181 = scmp.eq.s32.totalorder %s13, 1
    %p182 = por %p180, %p181
    %p183 = scmp.ne.s32.totalorder %s175, %s178
    %p184 = scmp.eq.s32.totalorder %s13, 0
    %p185 = por %p183, %p184
    %p186 = scmp.ne.s32.totalorder %s175, %s178
    %p187 = scmp.eq.s32.totalorder %s18, 1
    %p188 = por %p186, %p187
    %p189 = scmp.ne.s32.totalorder %s178, %s179
    %p190 = scmp.eq.s32.totalorder %s18, 0
    %p191 = por %p189, %p190
    %p192 = scmp.ne.s32.totalorder %s178, %s179
    %p193 = scmp.eq.s32.totalorder %s19, 1
    %p194 = por %p192, %p193
    %p196 = scmp.ne.s32.totalorder %s179, %s195
    %p197 = scmp.eq.s32.totalorder %s19, 0
    %p198 = por %p196, %p197
    %p199 = scmp.le.s32.totalorder 1, %s13
    %p200 = scmp.lt.s32.totalorder %s13, 3
    %p201 = pnand %p199, %p200
    %p202 = pneg %p201
    // Predicated region
    $region9: #{_lambda_.27} parent=5 // pred_check
      _
    $region10: #{_lambda_.27} parent=5 // pred_check_branch
      %204 = sbr.rel (%p201) target = $region12
    $region11: #{_lambda_.27} parent=5 // pred_region
      %s205 = ssub.s32 %s13, 1
      // Predicated region
      $region13: #{_lambda_.27} parent=11 // pred_check
        %p206 = pneg %p60
      $region14: #{_lambda_.27} parent=11 // pred_check_branch
        %208 = sbr.rel (%p206) target = $region16
      $region15: #{_lambda_.27} parent=11 // pred_region
        _
      $region16: #{_lambda_.27} parent=11 // pred_fallthru
        _
      // Predicated region
      $region17: #{_lambda_.27} parent=11 // pred_check
        %p209 = pneg %p81
      $region18: #{_lambda_.27} parent=11 // pred_check_branch
        %211 = sbr.rel (%p209) target = $region20
      $region19: #{_lambda_.27} parent=11 // pred_region
        _
      $region20: #{_lambda_.27} parent=11 // pred_fallthru
        _
      // Predicated region
      $region21: #{_lambda_.27} parent=11 // pred_check
        %p212 = pneg %p102
      $region22: #{_lambda_.27} parent=11 // pred_check_branch
        %214 = sbr.rel (%p212) target = $region24
      $region23: #{_lambda_.27} parent=11 // pred_region
        _
      $region24: #{_lambda_.27} parent=11 // pred_fallthru
        _
      // Predicated region
      $region25: #{_lambda_.27} parent=11 // pred_check
        %p215 = pneg %p123
      $region26: #{_lambda_.27} parent=11 // pred_check_branch
        %217 = sbr.rel (%p215) target = $region28
      $region27: #{_lambda_.27} parent=11 // pred_region
        _
      $region28: #{_lambda_.27} parent=11 // pred_fallthru
        _
      // Predicated region
      $region29: #{_lambda_.27} parent=11 // pred_check
        %p218 = pneg %p144
      $region30: #{_lambda_.27} parent=11 // pred_check_branch
        %220 = sbr.rel (%p218) target = $region32
      $region31: #{_lambda_.27} parent=11 // pred_region
        _
      $region32: #{_lambda_.27} parent=11 // pred_fallthru
        _
      // Predicated region
      $region33: #{_lambda_.27} parent=11 // pred_check
        %p221 = pneg %p165
      $region34: #{_lambda_.27} parent=11 // pred_check_branch
        %223 = sbr.rel (%p221) target = $region36
      $region35: #{_lambda_.27} parent=11 // pred_region
        _
      $region36: #{_lambda_.27} parent=11 // pred_fallthru
        _
    $region12: #{_lambda_.27} parent=5 // pred_fallthru
      _
    %p224 = scmp.lt.s32.totalorder %s13, 2
    // Predicated region
    $region37: #{_lambda_.27} parent=5 // pred_check
      %p225 = pneg %p224
    $region38: #{_lambda_.27} parent=5 // pred_check_branch
      %227 = sbr.rel (%p225) target = $region40
    $region39: #{_lambda_.27} parent=5 // pred_region
      // Predicated region
      $region41: #{_lambda_.27} parent=39 // pred_check
        %p228 = pneg %p33
      $region42: #{_lambda_.27} parent=39 // pred_check_branch
        %230 = sbr.rel (%p228) target = $region44
      $region43: #{_lambda_.27} parent=39 // pred_region
        %p231 = scmp.lt.s32.totalorder %s13, 1
        %s232 = scalar_select %p231, %s13, 1
        %s233 = smul.addr %s232, 8
        %s234 = scalar_lea.vmem %s0, %s233
      $region44: #{_lambda_.27} parent=39 // pred_fallthru
        _
    $region40: #{_lambda_.27} parent=5 // pred_fallthru
      _
    %p235 = scmp.le.s32.totalorder 1, %s13
    %p236 = scmp.lt.s32.totalorder %s13, 3
    %p237 = pnand %p235, %p236
    %p238 = pneg %p237
    // Predicated region
    $region45: #{_lambda_.27} parent=5 // pred_check
      _
    $region46: #{_lambda_.27} parent=5 // pred_check_branch
      %240 = sbr.rel (%p237) target = $region48
    $region47: #{_lambda_.27} parent=5 // pred_region
      %s241 = ssub.s32 %s13, 1
      %p242 = scmp.lt.s32.totalorder %s18, 1
      %s243 = scalar_select %p242, %s18, 1
      %s244 = smul.addr %s243, 8
      %s245 = scalar_lea.vmem %s0, %s244
      %p246 = pneg %p39
      %p247 = pneg %p36
      %p248 = pneg %p60
      %p249 = pneg %p57
      %p250 = pneg %p81
      %p251 = pneg %p78
      %p252 = pneg %p102
      %p253 = pneg %p99
      %p254 = pneg %p123
      %p255 = pneg %p120
      %p256 = pneg %p144
      %p257 = pneg %p141
      %p258 = pneg %p165
      %p259 = pneg %p162
      %p260 = pneg %p191
      %p261 = pneg %p188
      %p262 = scmp.lt.s32.totalorder %s18, 1
      %s263 = scalar_select %p262, %s18, 1
      %s264 = smul.addr %s263, 8
      %s265 = scalar_lea.vmem %s7, %s264
      %p266 = scmp.lt.s32.totalorder %s18, 1
      %s267 = scalar_select %p266, %s18, 1
      %s268 = smul.addr %s267, 8
      %s269 = scalar_lea.vmem %s0, %s268
      %p270 = scmp.lt.s32.totalorder %s18, 1
      %s271 = scalar_select %p270, %s18, 1
      %s272 = smul.addr %s271, 8
      %s273 = scalar_lea.vmem %s7, %s272
      %v275 = vld [vmem:[%s269] sm:$0xff]
      %v276 = vpack.c.bf16 %v275, %v275
      %v277 = vld [vmem:[%s1] sm:$0xf]
      %v278 = vld [vmem:[%s1 + $0x4] sm:$0xf]
      %v279 = vld [vmem:[%s1 + $0x8] sm:$0xf]
      %v280 = vld [vmem:[%s1 + $0xc] sm:$0xf]
      %v281 = vld [vmem:[%s2] sm:$0x1]
      %v283 = vlaneseq
      %v284 = vshrl.u32 %v283, 7
      %v285 = vsub.s32 0, %v284
      %v286 = vrot.slane %v281, %v285
      %v292 = vunpack.c.l.b16 %v277
      %v293 = vunpack.c.l.b16 %v278
      %v294 = vunpack.c.l.b16 %v279
      %v295 = vunpack.c.l.b16 %v280
      %v296 = vpack.c.b16 %v293, %v292
      %v297 = vpack.c.b16 %v295, %v294
      %vm300 = vcmask 261120
      %v302 = vsel %vm300, %v276, 0
      %304 = vmatprep.subr.bf16.mxu0 0
      %305 = vmatpush1.bf16.msra.mxu0 %v296
      %306 = vmatprep.subr.bf16.mxu0 0
      %307 = vmatpush1.bf16.msra.mxu0 %v297
      %308 = vmatprep.subr.bf16.mxu0 0
      %309 = vmatpush1.bf16.msra.mxu0 0
      %310 = vmatprep.subr.bf16.mxu0 0
      %311 = vmatpush1.bf16.msra.mxu0 0
      %312 = vmatprep.subr.bf16.mxu0 0
      %313 = vmatpush1.bf16.msra.mxu0 0
      %314 = vmatprep.subr.bf16.mxu0 0
      %315 = vmatpush1.bf16.msra.mxu0 0
      %316 = vmatprep.subr.bf16.mxu0 0
      %317 = vmatpush1.bf16.msra.mxu0 0
      %318 = vmatprep.subr.bf16.mxu0 0
      %319 = vmatpush1.bf16.msra.mxu0 0
      %320 = vmatprep.subr.bf16.mxu0 0
      %321 = vmatpush1.bf16.msra.mxu0 0
      %322 = vmatprep.subr.bf16.mxu0 0
      %323 = vmatpush1.bf16.msra.mxu0 0
      %324 = vmatprep.subr.bf16.mxu0 0
      %325 = vmatpush1.bf16.msra.mxu0 0
      %326 = vmatprep.subr.bf16.mxu0 0
      %327 = vmatpush1.bf16.msra.mxu0 0
      %328 = vmatprep.subr.bf16.mxu0 0
      %329 = vmatpush1.bf16.msra.mxu0 0
      %330 = vmatprep.subr.bf16.mxu0 0
      %331 = vmatpush1.bf16.msra.mxu0 0
      %332 = vmatprep.subr.bf16.mxu0 0
      %333 = vmatpush1.bf16.msra.mxu0 0
      %334 = vmatprep.subr.bf16.mxu0 0
      %335 = vmatpush1.bf16.msra.mxu0 0
      %336 = vmatprep.mubr.bf16.mxu0 0
      %337 = vmatmul.mubr.bf16.gmra.mrb[0].mxu0 %v302
      %v338 = vpop.f32.mrb[0].mxu0
      %v339 = vadd.f32 %v286, %v338
      %v340 = vpop.f32.mrb[0].mxu0
      %v341 = vpop.f32.mrb[0].mxu0
      %v342 = vpop.f32.mrb[0].mxu0
      %343 = vdwg.mxu0
      %v344 = vmul.f32 %v339, 0.5
      %v345 = vmul.f32 %v339, 0.70710677
      %v346 = vand.u32 2147483647, %v345
      %v347 = vmul.f32 %v346, 0.3275911
      %v348 = vadd.f32 %v347, 1.0
      %v349 = vrcp.pop %v348
      %v350 = vmul.f32 1.0, %v349
      %v351 = vmul.f32 %v350, 1.0614054
      %v352 = vadd.f32 %v351, -1.4531521
      %v353 = vmul.f32 %v352, %v350
      %v354 = vadd.f32 %v353, 1.4214138
      %v355 = vmul.f32 %v354, %v350
      %v356 = vadd.f32 %v355, -0.28449672
      %v357 = vmul.f32 %v356, %v350
      %v358 = vadd.f32 %v357, 0.2548296
      %v359 = vmul.f32 %v358, %v350
      %v360 = vsub.f32 0.0, %v346
      %v361 = vmul.f32 %v360, %v346
      %v362 = vmul.f32 %v361, 1.442695
      %v363 = vpow.pop %v362
      %v364 = vmul.f32 %v359, %v363
      %v365 = vsub.f32 1.0, %v364
      %vm366 = vcmp.ge.f32.partialorder %v345, 0.0
      %v367 = vsub.f32 0.0, %v365
      %v368 = vsel %vm366, %v365, %v367
      %v369 = vadd.f32 %v368, 1.0
      %v370 = vmul.f32 %v344, %v369
      %v371 = vpack.c.bf16 %v370, %v370
      %v372 = vld [vmem:[%s3] sm:$0xf]
      %v373 = vld [vmem:[%s3 + $0x4] sm:$0xf]
      %v374 = vld [vmem:[%s3 + $0x8] sm:$0xf]
      %v375 = vld [vmem:[%s3 + $0xc] sm:$0xf]
      %v376 = vld [vmem:[%s3 + $0x10] sm:$0xf]
      %v377 = vld [vmem:[%s3 + $0x14] sm:$0xf]
      %v378 = vld [vmem:[%s3 + $0x18] sm:$0xf]
      %v379 = vld [vmem:[%s3 + $0x1c] sm:$0xf]
      %v380 = vld [vmem:[%s4] sm:$0x1]
      %v382 = vlaneseq
      %v383 = vshrl.u32 %v382, 7
      %v384 = vsub.s32 0, %v383
      %v385 = vrot.slane %v380, %v384
      %v395 = vunpack.c.l.b16 %v372
      %v396 = vunpack.c.l.b16 %v373
      %v397 = vunpack.c.l.b16 %v374
      %v398 = vunpack.c.l.b16 %v375
      %v399 = vunpack.c.l.b16 %v376
      %v400 = vunpack.c.l.b16 %v377
      %v401 = vunpack.c.l.b16 %v378
      %v402 = vunpack.c.l.b16 %v379
      %v403 = vpack.c.b16 %v396, %v395
      %v404 = vpack.c.b16 %v398, %v397
      %v405 = vpack.c.b16 %v400, %v399
      %v406 = vpack.c.b16 %v402, %v401
      %vm411 = vcmask 523264
      %v413 = vsel %vm411, %v371, 0
      %415 = vmatprep.subr.bf16.mxu0 0
      %416 = vmatpush1.bf16.msra.mxu0 %v403
      %417 = vmatprep.subr.bf16.mxu0 0
      %418 = vmatpush1.bf16.msra.mxu0 %v404
      %419 = vmatprep.subr.bf16.mxu0 0
      %420 = vmatpush1.bf16.msra.mxu0 %v405
      %421 = vmatprep.subr.bf16.mxu0 0
      %422 = vmatpush1.bf16.msra.mxu0 %v406
      %423 = vmatprep.subr.bf16.mxu0 0
      %424 = vmatpush1.bf16.msra.mxu0 0
      %425 = vmatprep.subr.bf16.mxu0 0
      %426 = vmatpush1.bf16.msra.mxu0 0
      %427 = vmatprep.subr.bf16.mxu0 0
      %428 = vmatpush1.bf16.msra.mxu0 0
      %429 = vmatprep.subr.bf16.mxu0 0
      %430 = vmatpush1.bf16.msra.mxu0 0
      %431 = vmatprep.subr.bf16.mxu0 0
      %432 = vmatpush1.bf16.msra.mxu0 0
      %433 = vmatprep.subr.bf16.mxu0 0
      %434 = vmatpush1.bf16.msra.mxu0 0
      %435 = vmatprep.subr.bf16.mxu0 0
      %436 = vmatpush1.bf16.msra.mxu0 0
      %437 = vmatprep.subr.bf16.mxu0 0
      %438 = vmatpush1.bf16.msra.mxu0 0
      %439 = vmatprep.subr.bf16.mxu0 0
      %440 = vmatpush1.bf16.msra.mxu0 0
      %441 = vmatprep.subr.bf16.mxu0 0
      %442 = vmatpush1.bf16.msra.mxu0 0
      %443 = vmatprep.subr.bf16.mxu0 0
      %444 = vmatpush1.bf16.msra.mxu0 0
      %445 = vmatprep.subr.bf16.mxu0 0
      %446 = vmatpush1.bf16.msra.mxu0 0
      %447 = vmatprep.mubr.bf16.mxu0 0
      %448 = vmatmul.mubr.bf16.gmra.mrb[0].mxu0 %v413
      %v449 = vpop.f32.mrb[0].mxu0
      %v450 = vadd.f32 %v385, %v449
      %v451 = vpop.f32.mrb[0].mxu0
      %v452 = vpop.f32.mrb[0].mxu0
      %v453 = vpop.f32.mrb[0].mxu0
      %454 = vdwg.mxu0
      %v455 = vadd.f32 %v450, %v275
      %v456 = vld [vmem:[%s5] sm:$0x1]
      %v457 = vld [vmem:[%s6] sm:$0x1]
      %v458 = vsel %vm300, %v455, 0.0
      %459 = vadd.xlane.f32.xlu0 %v458
      %v460 = vpop.xlane.xlu0 %459
      %v461 = vrcp.pop 32.0
      %v462 = vmul.f32 %v460, %v461
      %v463 = vsub.f32 %v455, %v462
      %v464 = vmul.f32 %v463, %v463
      %v465 = vsel %vm300, %v464, 0.0
      %466 = vadd.xlane.f32.xlu0 %v465
      %v467 = vpop.xlane.xlu0 %466
      %v468 = vmul.f32 %v467, %v461
      %v469 = vadd.f32 %v468, 1e-12
      %v470 = vrsqrt.pop %v469
      %v471 = vmul.f32 %v463, %v470
      %v473 = vlaneseq
      %v474 = vshrl.u32 %v473, 7
      %v475 = vsub.s32 0, %v474
      %v476 = vrot.slane %v456, %v475
      %v478 = vmul.f32 %v471, %v476
      %v480 = vlaneseq
      %v481 = vshrl.u32 %v480, 7
      %v482 = vsub.s32 0, %v481
      %v483 = vrot.slane %v457, %v482
      %v485 = vadd.f32 %v478, %v483
      %486 = vst.msk [vmem:[%s273] sm:$0xff] %vm300, %v485
      %p487 = scmp.lt.s32.totalorder %s18, 1
      %s488 = scalar_select %p487, %s18, 1
      %s489 = smul.addr %s488, 8
      %s490 = scalar_lea.vmem %s7, %s489
      // Predicated region
      $region49: #{_lambda_.27} parent=47 // pred_check
        %p491 = pneg %p188
      $region50: #{_lambda_.27} parent=47 // pred_check_branch
        %493 = sbr.rel (%p491) target = $region52
      $region51: #{_lambda_.27} parent=47 // pred_region
        _
      $region52: #{_lambda_.27} parent=47 // pred_fallthru
        _
    $region48: #{_lambda_.27} parent=5 // pred_fallthru
      _
    %p494 = scmp.le.s32.totalorder 2, %s13
    // Predicated region
    $region53: #{_lambda_.27} parent=5 // pred_check
      %p495 = pneg %p494
    $region54: #{_lambda_.27} parent=5 // pred_check_branch
      %497 = sbr.rel (%p495) target = $region56
    $region55: #{_lambda_.27} parent=5 // pred_region
      %s498 = ssub.s32 %s13, 2
      // Predicated region
      $region57: #{_lambda_.27} parent=55 // pred_check
        %p499 = pneg %p194
      $region58: #{_lambda_.27} parent=55 // pred_check_branch
        %501 = sbr.rel (%p499) target = $region60
      $region59: #{_lambda_.27} parent=55 // pred_region
        %p502 = scmp.lt.s32.totalorder %s19, 1
        %s503 = scalar_select %p502, %s19, 1
        %s504 = smul.addr %s503, 8
        %s505 = scalar_lea.vmem %s7, %s504
      $region60: #{_lambda_.27} parent=55 // pred_fallthru
        _
    $region56: #{_lambda_.27} parent=5 // pred_fallthru
      _
  $region6: #{_lambda_.27} parent=0 // loop_footer
    %s17 = sadd.s32 1, %s13
  $region7: #{_lambda_.27} parent=0 // loop_footer_branch
    %12 = sbr.rel target = $region3
  $region8: #{_lambda_.27} parent=0 // loop_exit
    _

// kernel: _lambda_.28
$region0: #{_lambda_.28}
  #allocation0 [shape = 'u32[]', space=smem, size = 0x4, offset = 0x4, fixed_abs, tag = 'smem constant byte address 0x4 - core index']
  #allocation1 [shape = 'u32[144,128]{1,0:T(1,128)}', space=vmem, size = 0x12000, scoped, tag = 'internal scratch']
  %s0 = inlined_call_operand.vmem [shape: f32[16,64], index: 0, kind: input, shape index: {}]
  %s1 = inlined_call_operand.vmem [shape: bf16[64,64], index: 1, kind: input, shape index: {}]
  %s2 = inlined_call_operand.vmem [shape: f32[1,64], index: 2, kind: input, shape index: {}]
  %s3 = inlined_call_operand.vmem [shape: bf16[64,64], index: 3, kind: input, shape index: {}]
  %s4 = inlined_call_operand.vmem [shape: f32[1,64], index: 4, kind: input, shape index: {}]
  %s5 = inlined_call_operand.vmem [shape: bf16[64,64], index: 5, kind: input, shape index: {}]
  %s6 = inlined_call_operand.vmem [shape: f32[1,64], index: 6, kind: input, shape index: {}]
  %s7 = inlined_call_operand.vmem [shape: f32[16,64], index: 7, kind: output, shape index: {0}]
  %s8 = inlined_call_operand.vmem [shape: f32[16,64], index: 8, kind: output, shape index: {1}]
  %s9 = inlined_call_operand.vmem [shape: f32[16,64], index: 9, kind: output, shape index: {2}]
  %10 = xla_tuple %s7, %s8, %s9
  %s11 = sld [smem:[#allocation0]]
  $region77: #{_lambda_.28} parent=0
    _
  %s13 = ssub.s32 1, %s11
  %s14 = scalar_select 0, %s13, %s11
  loop: start=0, step=1, limit=4
  $region2: #{_lambda_.28} parent=0 // loop_pre_header
    _
  $region3: #{_lambda_.28} parent=0 // loop_header
    %s16 = sphi 0, %s20
    %p17 = scmp.ge.s32.totalorder %s16, 4
    %s26 = sphi 0, %s28
    %s29 = sphi 0, %s26
    %s30 = sphi 0, %s29
    %s46 = sphi 0, %s30
    %s50 = sphi 0, %s50
    %s52 = sphi 0, %s50
    %s53 = sphi 0, %s52
    %s67 = sphi 0, %s53
    %s71 = sphi 0, %s71
    %s73 = sphi 0, %s71
    %s74 = sphi 0, %s73
    %s88 = sphi 0, %s74
    %s92 = sphi 0, %s92
    %s94 = sphi 0, %s92
    %s95 = sphi 0, %s94
    %s109 = sphi 0, %s95
    %s113 = sphi 0, %s113
    %s115 = sphi 0, %s113
    %s116 = sphi 0, %s115
    %s130 = sphi 0, %s116
    %s134 = sphi 0, %s134
    %s136 = sphi 0, %s134
    %s137 = sphi 0, %s136
    %s151 = sphi 0, %s137
    %s155 = sphi 0, %s155
    %s157 = sphi 0, %s155
    %s158 = sphi 0, %s157
    %s172 = sphi 0, %s158
    %s178 = sphi 0, %s180
    %s181 = sphi 0, %s178
    %s182 = sphi 0, %s181
    %s198 = sphi 0, %s182
    %s204 = sphi 0, %s206
    %s207 = sphi 0, %s204
    %s208 = sphi 0, %s207
    %s224 = sphi 0, %s208
    %s230 = sphi 0, %s232
    %s233 = sphi 0, %s230
    %s234 = sphi 0, %s233
    %s250 = sphi 0, %s234
  $region4: #{_lambda_.28} parent=0 // loop_header_branch
    %19 = sbr.rel (%p17) target = $region8
  $region5: #{_lambda_.28} parent=0 // loop_body
    %s21 = ssub.s32 %s16, 1
    %s22 = ssub.s32 %s16, 2
    %s23 = sadd.s32 %s16, 1
    %s24 = ssub.s32 %s16, %s23
    %p25 = scmp.eq.s32.totalorder %s24, 0
    %s27 = sadd.s32 %s26, 1
    %s28 = scalar_select %p25, %s26, %s27
    %p31 = pneg %p25
    %p32 = scmp.eq.s32.totalorder %s16, 1
    %p33 = por %p31, %p32
    %p34 = scmp.ne.s32.totalorder %s26, %s29
    %p35 = scmp.eq.s32.totalorder %s16, 0
    %p36 = por %p34, %p35
    %p37 = scmp.ne.s32.totalorder %s26, %s29
    %p38 = scmp.eq.s32.totalorder %s21, 1
    %p39 = por %p37, %p38
    %p40 = scmp.ne.s32.totalorder %s29, %s30
    %p41 = scmp.eq.s32.totalorder %s21, 0
    %p42 = por %p40, %p41
    %p43 = scmp.ne.s32.totalorder %s29, %s30
    %p44 = scmp.eq.s32.totalorder %s22, 1
    %p45 = por %p43, %p44
    %p47 = scmp.ne.s32.totalorder %s30, %s46
    %p48 = scmp.eq.s32.totalorder %s22, 0
    %p49 = por %p47, %p48
    %s51 = sadd.s32 %s50, 1
    %p54 = scmp.eq.s32.totalorder %s16, 1
    %p55 = scmp.ne.s32.totalorder %s50, %s52
    %p56 = scmp.eq.s32.totalorder %s16, 0
    %p57 = por %p55, %p56
    %p58 = scmp.ne.s32.totalorder %s50, %s52
    %p59 = scmp.eq.s32.totalorder %s21, 1
    %p60 = por %p58, %p59
    %p61 = scmp.ne.s32.totalorder %s52, %s53
    %p62 = scmp.eq.s32.totalorder %s21, 0
    %p63 = por %p61, %p62
    %p64 = scmp.ne.s32.totalorder %s52, %s53
    %p65 = scmp.eq.s32.totalorder %s22, 1
    %p66 = por %p64, %p65
    %p68 = scmp.ne.s32.totalorder %s53, %s67
    %p69 = scmp.eq.s32.totalorder %s22, 0
    %p70 = por %p68, %p69
    %s72 = sadd.s32 %s71, 1
    %p75 = scmp.eq.s32.totalorder %s16, 1
    %p76 = scmp.ne.s32.totalorder %s71, %s73
    %p77 = scmp.eq.s32.totalorder %s16, 0
    %p78 = por %p76, %p77
    %p79 = scmp.ne.s32.totalorder %s71, %s73
    %p80 = scmp.eq.s32.totalorder %s21, 1
    %p81 = por %p79, %p80
    %p82 = scmp.ne.s32.totalorder %s73, %s74
    %p83 = scmp.eq.s32.totalorder %s21, 0
    %p84 = por %p82, %p83
    %p85 = scmp.ne.s32.totalorder %s73, %s74
    %p86 = scmp.eq.s32.totalorder %s22, 1
    %p87 = por %p85, %p86
    %p89 = scmp.ne.s32.totalorder %s74, %s88
    %p90 = scmp.eq.s32.totalorder %s22, 0
    %p91 = por %p89, %p90
    %s93 = sadd.s32 %s92, 1
    %p96 = scmp.eq.s32.totalorder %s16, 1
    %p97 = scmp.ne.s32.totalorder %s92, %s94
    %p98 = scmp.eq.s32.totalorder %s16, 0
    %p99 = por %p97, %p98
    %p100 = scmp.ne.s32.totalorder %s92, %s94
    %p101 = scmp.eq.s32.totalorder %s21, 1
    %p102 = por %p100, %p101
    %p103 = scmp.ne.s32.totalorder %s94, %s95
    %p104 = scmp.eq.s32.totalorder %s21, 0
    %p105 = por %p103, %p104
    %p106 = scmp.ne.s32.totalorder %s94, %s95
    %p107 = scmp.eq.s32.totalorder %s22, 1
    %p108 = por %p106, %p107
    %p110 = scmp.ne.s32.totalorder %s95, %s109
    %p111 = scmp.eq.s32.totalorder %s22, 0
    %p112 = por %p110, %p111
    %s114 = sadd.s32 %s113, 1
    %p117 = scmp.eq.s32.totalorder %s16, 1
    %p118 = scmp.ne.s32.totalorder %s113, %s115
    %p119 = scmp.eq.s32.totalorder %s16, 0
    %p120 = por %p118, %p119
    %p121 = scmp.ne.s32.totalorder %s113, %s115
    %p122 = scmp.eq.s32.totalorder %s21, 1
    %p123 = por %p121, %p122
    %p124 = scmp.ne.s32.totalorder %s115, %s116
    %p125 = scmp.eq.s32.totalorder %s21, 0
    %p126 = por %p124, %p125
    %p127 = scmp.ne.s32.totalorder %s115, %s116
    %p128 = scmp.eq.s32.totalorder %s22, 1
    %p129 = por %p127, %p128
    %p131 = scmp.ne.s32.totalorder %s116, %s130
    %p132 = scmp.eq.s32.totalorder %s22, 0
    %p133 = por %p131, %p132
    %s135 = sadd.s32 %s134, 1
    %p138 = scmp.eq.s32.totalorder %s16, 1
    %p139 = scmp.ne.s32.totalorder %s134, %s136
    %p140 = scmp.eq.s32.totalorder %s16, 0
    %p141 = por %p139, %p140
    %p142 = scmp.ne.s32.totalorder %s134, %s136
    %p143 = scmp.eq.s32.totalorder %s21, 1
    %p144 = por %p142, %p143
    %p145 = scmp.ne.s32.totalorder %s136, %s137
    %p146 = scmp.eq.s32.totalorder %s21, 0
    %p147 = por %p145, %p146
    %p148 = scmp.ne.s32.totalorder %s136, %s137
    %p149 = scmp.eq.s32.totalorder %s22, 1
    %p150 = por %p148, %p149
    %p152 = scmp.ne.s32.totalorder %s137, %s151
    %p153 = scmp.eq.s32.totalorder %s22, 0
    %p154 = por %p152, %p153
    %s156 = sadd.s32 %s155, 1
    %p159 = scmp.eq.s32.totalorder %s16, 1
    %p160 = scmp.ne.s32.totalorder %s155, %s157
    %p161 = scmp.eq.s32.totalorder %s16, 0
    %p162 = por %p160, %p161
    %p163 = scmp.ne.s32.totalorder %s155, %s157
    %p164 = scmp.eq.s32.totalorder %s21, 1
    %p165 = por %p163, %p164
    %p166 = scmp.ne.s32.totalorder %s157, %s158
    %p167 = scmp.eq.s32.totalorder %s21, 0
    %p168 = por %p166, %p167
    %p169 = scmp.ne.s32.totalorder %s157, %s158
    %p170 = scmp.eq.s32.totalorder %s22, 1
    %p171 = por %p169, %p170
    %p173 = scmp.ne.s32.totalorder %s158, %s172
    %p174 = scmp.eq.s32.totalorder %s22, 0
    %p175 = por %p173, %p174
    %s176 = ssub.s32 %s16, %s23
    %p177 = scmp.eq.s32.totalorder %s176, 0
    %s179 = sadd.s32 %s178, 1
    %s180 = scalar_select %p177, %s178, %s179
    %p183 = pneg %p177
    %p184 = scmp.eq.s32.totalorder %s16, 1
    %p185 = por %p183, %p184
    %p186 = scmp.ne.s32.totalorder %s178, %s181
    %p187 = scmp.eq.s32.totalorder %s16, 0
    %p188 = por %p186, %p187
    %p189 = scmp.ne.s32.totalorder %s178, %s181
    %p190 = scmp.eq.s32.totalorder %s21, 1
    %p191 = por %p189, %p190
    %p192 = scmp.ne.s32.totalorder %s181, %s182
    %p193 = scmp.eq.s32.totalorder %s21, 0
    %p194 = por %p192, %p193
    %p195 = scmp.ne.s32.totalorder %s181, %s182
    %p196 = scmp.eq.s32.totalorder %s22, 1
    %p197 = por %p195, %p196
    %p199 = scmp.ne.s32.totalorder %s182, %s198
    %p200 = scmp.eq.s32.totalorder %s22, 0
    %p201 = por %p199, %p200
    %s202 = ssub.s32 %s16, %s23
    %p203 = scmp.eq.s32.totalorder %s202, 0
    %s205 = sadd.s32 %s204, 1
    %s206 = scalar_select %p203, %s204, %s205
    %p209 = pneg %p203
    %p210 = scmp.eq.s32.totalorder %s16, 1
    %p211 = por %p209, %p210
    %p212 = scmp.ne.s32.totalorder %s204, %s207
    %p213 = scmp.eq.s32.totalorder %s16, 0
    %p214 = por %p212, %p213
    %p215 = scmp.ne.s32.totalorder %s204, %s207
    %p216 = scmp.eq.s32.totalorder %s21, 1
    %p217 = por %p215, %p216
    %p218 = scmp.ne.s32.totalorder %s207, %s208
    %p219 = scmp.eq.s32.totalorder %s21, 0
    %p220 = por %p218, %p219
    %p221 = scmp.ne.s32.totalorder %s207, %s208
    %p222 = scmp.eq.s32.totalorder %s22, 1
    %p223 = por %p221, %p222
    %p225 = scmp.ne.s32.totalorder %s208, %s224
    %p226 = scmp.eq.s32.totalorder %s22, 0
    %p227 = por %p225, %p226
    %s228 = ssub.s32 %s16, %s23
    %p229 = scmp.eq.s32.totalorder %s228, 0
    %s231 = sadd.s32 %s230, 1
    %s232 = scalar_select %p229, %s230, %s231
    %p235 = pneg %p229
    %p236 = scmp.eq.s32.totalorder %s16, 1
    %p237 = por %p235, %p236
    %p238 = scmp.ne.s32.totalorder %s230, %s233
    %p239 = scmp.eq.s32.totalorder %s16, 0
    %p240 = por %p238, %p239
    %p241 = scmp.ne.s32.totalorder %s230, %s233
    %p242 = scmp.eq.s32.totalorder %s21, 1
    %p243 = por %p241, %p242
    %p244 = scmp.ne.s32.totalorder %s233, %s234
    %p245 = scmp.eq.s32.totalorder %s21, 0
    %p246 = por %p244, %p245
    %p247 = scmp.ne.s32.totalorder %s233, %s234
    %p248 = scmp.eq.s32.totalorder %s22, 1
    %p249 = por %p247, %p248
    %p251 = scmp.ne.s32.totalorder %s234, %s250
    %p252 = scmp.eq.s32.totalorder %s22, 0
    %p253 = por %p251, %p252
    %p254 = scmp.le.s32.totalorder 1, %s16
    %p255 = scmp.lt.s32.totalorder %s16, 3
    %p256 = pnand %p254, %p255
    %p257 = pneg %p256
    // Predicated region
    $region9: #{_lambda_.28} parent=5 // pred_check
      _
    $region10: #{_lambda_.28} parent=5 // pred_check_branch
      %259 = sbr.rel (%p256) target = $region12
    $region11: #{_lambda_.28} parent=5 // pred_region
      %s260 = ssub.s32 %s16, 1
      // Predicated region
      $region13: #{_lambda_.28} parent=11 // pred_check
        %p261 = pneg %p63
      $region14: #{_lambda_.28} parent=11 // pred_check_branch
        %263 = sbr.rel (%p261) target = $region16
      $region15: #{_lambda_.28} parent=11 // pred_region
        _
      $region16: #{_lambda_.28} parent=11 // pred_fallthru
        _
      // Predicated region
      $region17: #{_lambda_.28} parent=11 // pred_check
        %p264 = pneg %p84
      $region18: #{_lambda_.28} parent=11 // pred_check_branch
        %266 = sbr.rel (%p264) target = $region20
      $region19: #{_lambda_.28} parent=11 // pred_region
        _
      $region20: #{_lambda_.28} parent=11 // pred_fallthru
        _
      // Predicated region
      $region21: #{_lambda_.28} parent=11 // pred_check
        %p267 = pneg %p105
      $region22: #{_lambda_.28} parent=11 // pred_check_branch
        %269 = sbr.rel (%p267) target = $region24
      $region23: #{_lambda_.28} parent=11 // pred_region
        _
      $region24: #{_lambda_.28} parent=11 // pred_fallthru
        _
      // Predicated region
      $region25: #{_lambda_.28} parent=11 // pred_check
        %p270 = pneg %p126
      $region26: #{_lambda_.28} parent=11 // pred_check_branch
        %272 = sbr.rel (%p270) target = $region28
      $region27: #{_lambda_.28} parent=11 // pred_region
        _
      $region28: #{_lambda_.28} parent=11 // pred_fallthru
        _
      // Predicated region
      $region29: #{_lambda_.28} parent=11 // pred_check
        %p273 = pneg %p147
      $region30: #{_lambda_.28} parent=11 // pred_check_branch
        %275 = sbr.rel (%p273) target = $region32
      $region31: #{_lambda_.28} parent=11 // pred_region
        _
      $region32: #{_lambda_.28} parent=11 // pred_fallthru
        _
      // Predicated region
      $region33: #{_lambda_.28} parent=11 // pred_check
        %p276 = pneg %p168
      $region34: #{_lambda_.28} parent=11 // pred_check_branch
        %278 = sbr.rel (%p276) target = $region36
      $region35: #{_lambda_.28} parent=11 // pred_region
        _
      $region36: #{_lambda_.28} parent=11 // pred_fallthru
        _
    $region12: #{_lambda_.28} parent=5 // pred_fallthru
      _
    %p279 = scmp.lt.s32.totalorder %s16, 2
    // Predicated region
    $region37: #{_lambda_.28} parent=5 // pred_check
      %p280 = pneg %p279
    $region38: #{_lambda_.28} parent=5 // pred_check_branch
      %282 = sbr.rel (%p280) target = $region40
    $region39: #{_lambda_.28} parent=5 // pred_region
      // Predicated region
      $region41: #{_lambda_.28} parent=39 // pred_check
        %p283 = pneg %p36
      $region42: #{_lambda_.28} parent=39 // pred_check_branch
        %285 = sbr.rel (%p283) target = $region44
      $region43: #{_lambda_.28} parent=39 // pred_region
        %p286 = scmp.lt.s32.totalorder %s16, 1
        %s287 = scalar_select %p286, %s16, 1
        %s288 = smul.addr %s287, 8
        %s289 = scalar_lea.vmem %s0, %s288
      $region44: #{_lambda_.28} parent=39 // pred_fallthru
        _
    $region40: #{_lambda_.28} parent=5 // pred_fallthru
      _
    %p290 = scmp.le.s32.totalorder 1, %s16
    %p291 = scmp.lt.s32.totalorder %s16, 3
    %p292 = pnand %p290, %p291
    %p293 = pneg %p292
    // Predicated region
    $region45: #{_lambda_.28} parent=5 // pred_check
      _
    $region46: #{_lambda_.28} parent=5 // pred_check_branch
      %295 = sbr.rel (%p292) target = $region48
    $region47: #{_lambda_.28} parent=5 // pred_region
      %s296 = ssub.s32 %s16, 1
      %p297 = scmp.lt.s32.totalorder %s21, 1
      %s298 = scalar_select %p297, %s21, 1
      %s299 = smul.addr %s298, 8
      %s300 = scalar_lea.vmem %s0, %s299
      %p301 = pneg %p42
      %p302 = pneg %p39
      %p303 = pneg %p63
      %p304 = pneg %p60
      %p305 = pneg %p84
      %p306 = pneg %p81
      %p307 = pneg %p105
      %p308 = pneg %p102
      %p309 = pneg %p126
      %p310 = pneg %p123
      %p311 = pneg %p147
      %p312 = pneg %p144
      %p313 = pneg %p168
      %p314 = pneg %p165
      %p315 = pneg %p194
      %p316 = pneg %p191
      %p317 = scmp.lt.s32.totalorder %s21, 1
      %s318 = scalar_select %p317, %s21, 1
      %s319 = smul.addr %s318, 8
      %s320 = scalar_lea.vmem %s7, %s319
      %p321 = pneg %p220
      %p322 = pneg %p217
      %p323 = scmp.lt.s32.totalorder %s21, 1
      %s324 = scalar_select %p323, %s21, 1
      %s325 = smul.addr %s324, 8
      %s326 = scalar_lea.vmem %s8, %s325
      %p327 = pneg %p246
      %p328 = pneg %p243
      %p329 = scmp.lt.s32.totalorder %s21, 1
      %s330 = scalar_select %p329, %s21, 1
      %s331 = smul.addr %s330, 8
      %s332 = scalar_lea.vmem %s9, %s331
      %p333 = scmp.lt.s32.totalorder %s21, 1
      %s334 = scalar_select %p333, %s21, 1
      %s335 = smul.addr %s334, 8
      %s336 = scalar_lea.vmem %s0, %s335
      %p337 = scmp.lt.s32.totalorder %s21, 1
      %s338 = scalar_select %p337, %s21, 1
      %s339 = smul.addr %s338, 8
      %s340 = scalar_lea.vmem %s7, %s339
      %p341 = scmp.lt.s32.totalorder %s21, 1
      %s342 = scalar_select %p341, %s21, 1
      %s343 = smul.addr %s342, 8
      %s344 = scalar_lea.vmem %s8, %s343
      %p345 = scmp.lt.s32.totalorder %s21, 1
      %s346 = scalar_select %p345, %s21, 1
      %s347 = smul.addr %s346, 8
      %s348 = scalar_lea.vmem %s9, %s347
      %v350 = vld [vmem:[%s336] sm:$0xff]
      %v351 = vpack.c.bf16 %v350, %v350
      %v352 = vld [vmem:[%s1] sm:$0xf]
      %v353 = vld [vmem:[%s1 + $0x4] sm:$0xf]
      %v354 = vld [vmem:[%s1 + $0x8] sm:$0xf]
      %v355 = vld [vmem:[%s1 + $0xc] sm:$0xf]
      %v356 = vld [vmem:[%s1 + $0x10] sm:$0xf]
      %v357 = vld [vmem:[%s1 + $0x14] sm:$0xf]
      %v358 = vld [vmem:[%s1 + $0x18] sm:$0xf]
      %v359 = vld [vmem:[%s1 + $0x1c] sm:$0xf]
      %v360 = vld [vmem:[%s2] sm:$0x1]
      %v362 = vlaneseq
      %v363 = vshrl.u32 %v362, 7
      %v364 = vsub.s32 0, %v363
      %v365 = vrot.slane %v360, %v364
      %v375 = vunpack.c.l.b16 %v352
      %v376 = vunpack.c.l.b16 %v353
      %v377 = vunpack.c.l.b16 %v354
      %v378 = vunpack.c.l.b16 %v355
      %v379 = vunpack.c.l.b16 %v356
      %v380 = vunpack.c.l.b16 %v357
      %v381 = vunpack.c.l.b16 %v358
      %v382 = vunpack.c.l.b16 %v359
      %v383 = vpack.c.b16 %v376, %v375
      %v384 = vpack.c.b16 %v378, %v377
      %v385 = vpack.c.b16 %v380, %v379
      %v386 = vpack.c.b16 %v382, %v381
      %vm391 = vcmask 523264
      %v393 = vsel %vm391, %v351, 0
      %395 = vmatprep.subr.bf16.mxu0 0
      %396 = vmatpush1.bf16.msra.mxu0 %v383
      %397 = vmatprep.subr.bf16.mxu0 0
      %398 = vmatpush1.bf16.msra.mxu0 %v384
      %399 = vmatprep.subr.bf16.mxu0 0
      %400 = vmatpush1.bf16.msra.mxu0 %v385
      %401 = vmatprep.subr.bf16.mxu0 0
      %402 = vmatpush1.bf16.msra.mxu0 %v386
      %403 = vmatprep.subr.bf16.mxu0 0
      %404 = vmatpush1.bf16.msra.mxu0 0
      %405 = vmatprep.subr.bf16.mxu0 0
      %406 = vmatpush1.bf16.msra.mxu0 0
      %407 = vmatprep.subr.bf16.mxu0 0
      %408 = vmatpush1.bf16.msra.mxu0 0
      %409 = vmatprep.subr.bf16.mxu0 0
      %410 = vmatpush1.bf16.msra.mxu0 0
      %411 = vmatprep.subr.bf16.mxu0 0
      %412 = vmatpush1.bf16.msra.mxu0 0
      %413 = vmatprep.subr.bf16.mxu0 0
      %414 = vmatpush1.bf16.msra.mxu0 0
      %415 = vmatprep.subr.bf16.mxu0 0
      %416 = vmatpush1.bf16.msra.mxu0 0
      %417 = vmatprep.subr.bf16.mxu0 0
      %418 = vmatpush1.bf16.msra.mxu0 0
      %419 = vmatprep.subr.bf16.mxu0 0
      %420 = vmatpush1.bf16.msra.mxu0 0
      %421 = vmatprep.subr.bf16.mxu0 0
      %422 = vmatpush1.bf16.msra.mxu0 0
      %423 = vmatprep.subr.bf16.mxu0 0
      %424 = vmatpush1.bf16.msra.mxu0 0
      %425 = vmatprep.subr.bf16.mxu0 0
      %426 = vmatpush1.bf16.msra.mxu0 0
      %427 = vmatprep.mubr.bf16.mxu0 0
      %428 = vmatmul.mubr.bf16.gmra.mrb[0].mxu0 %v393
      %v429 = vpop.f32.mrb[0].mxu0
      %v430 = vadd.f32 %v365, %v429
      %v431 = vpop.f32.mrb[0].mxu0
      %v432 = vpop.f32.mrb[0].mxu0
      %v433 = vpop.f32.mrb[0].mxu0
      %434 = vdwg.mxu0
      %435 = vst.msk [vmem:[%s340] sm:$0xff] %vm391, %v430
      %v436 = vld [vmem:[%s3] sm:$0xf]
      %v437 = vld [vmem:[%s3 + $0x4] sm:$0xf]
      %v438 = vld [vmem:[%s3 + $0x8] sm:$0xf]
      %v439 = vld [vmem:[%s3 + $0xc] sm:$0xf]
      %v440 = vld [vmem:[%s3 + $0x10] sm:$0xf]
      %v441 = vld [vmem:[%s3 + $0x14] sm:$0xf]
      %v442 = vld [vmem:[%s3 + $0x18] sm:$0xf]
      %v443 = vld [vmem:[%s3 + $0x1c] sm:$0xf]
      %v444 = vld [vmem:[%s4] sm:$0x1]
      %v446 = vlaneseq
      %v447 = vshrl.u32 %v446, 7
      %v448 = vsub.s32 0, %v447
      %v449 = vrot.slane %v444, %v448
      %v459 = vunpack.c.l.b16 %v436
      %v460 = vunpack.c.l.b16 %v437
      %v461 = vunpack.c.l.b16 %v438
      %v462 = vunpack.c.l.b16 %v439
      %v463 = vunpack.c.l.b16 %v440
      %v464 = vunpack.c.l.b16 %v441
      %v465 = vunpack.c.l.b16 %v442
      %v466 = vunpack.c.l.b16 %v443
      %v467 = vpack.c.b16 %v460, %v459
      %v468 = vpack.c.b16 %v462, %v461
      %v469 = vpack.c.b16 %v464, %v463
      %v470 = vpack.c.b16 %v466, %v465
      %475 = vmatprep.subr.bf16.mxu0 0
      %476 = vmatpush1.bf16.msra.mxu0 %v467
      %477 = vmatprep.subr.bf16.mxu0 0
      %478 = vmatpush1.bf16.msra.mxu0 %v468
      %479 = vmatprep.subr.bf16.mxu0 0
      %480 = vmatpush1.bf16.msra.mxu0 %v469
      %481 = vmatprep.subr.bf16.mxu0 0
      %482 = vmatpush1.bf16.msra.mxu0 %v470
      %483 = vmatprep.subr.bf16.mxu0 0
      %484 = vmatpush1.bf16.msra.mxu0 0
      %485 = vmatprep.subr.bf16.mxu0 0
      %486 = vmatpush1.bf16.msra.mxu0 0
      %487 = vmatprep.subr.bf16.mxu0 0
      %488 = vmatpush1.bf16.msra.mxu0 0
      %489 = vmatprep.subr.bf16.mxu0 0
      %490 = vmatpush1.bf16.msra.mxu0 0
      %491 = vmatprep.subr.bf16.mxu0 0
      %492 = vmatpush1.bf16.msra.mxu0 0
      %493 = vmatprep.subr.bf16.mxu0 0
      %494 = vmatpush1.bf16.msra.mxu0 0
      %495 = vmatprep.subr.bf16.mxu0 0
      %496 = vmatpush1.bf16.msra.mxu0 0
      %497 = vmatprep.subr.bf16.mxu0 0
      %498 = vmatpush1.bf16.msra.mxu0 0
      %499 = vmatprep.subr.bf16.mxu0 0
      %500 = vmatpush1.bf16.msra.mxu0 0
      %501 = vmatprep.subr.bf16.mxu0 0
      %502 = vmatpush1.bf16.msra.mxu0 0
      %503 = vmatprep.subr.bf16.mxu0 0
      %504 = vmatpush1.bf16.msra.mxu0 0
      %505 = vmatprep.subr.bf16.mxu0 0
      %506 = vmatpush1.bf16.msra.mxu0 0
      %507 = vmatprep.mubr.bf16.mxu0 0
      %508 = vmatmul.mubr.bf16.gmra.mrb[0].mxu0 %v393
      %v509 = vpop.f32.mrb[0].mxu0
      %v510 = vadd.f32 %v449, %v509
      %v511 = vpop.f32.mrb[0].mxu0
      %v512 = vpop.f32.mrb[0].mxu0
      %v513 = vpop.f32.mrb[0].mxu0
      %514 = vdwg.mxu0
      %515 = vst.msk [vmem:[%s344] sm:$0xff] %vm391, %v510
      %v516 = vld [vmem:[%s5] sm:$0xf]
      %v517 = vld [vmem:[%s5 + $0x4] sm:$0xf]
      %v518 = vld [vmem:[%s5 + $0x8] sm:$0xf]
      %v519 = vld [vmem:[%s5 + $0xc] sm:$0xf]
      %v520 = vld [vmem:[%s5 + $0x10] sm:$0xf]
      %v521 = vld [vmem:[%s5 + $0x14] sm:$0xf]
      %v522 = vld [vmem:[%s5 + $0x18] sm:$0xf]
      %v523 = vld [vmem:[%s5 + $0x1c] sm:$0xf]
      %v524 = vld [vmem:[%s6] sm:$0x1]
      %v526 = vlaneseq
      %v527 = vshrl.u32 %v526, 7
      %v528 = vsub.s32 0, %v527
      %v529 = vrot.slane %v524, %v528
      %v539 = vunpack.c.l.b16 %v516
      %v540 = vunpack.c.l.b16 %v517
      %v541 = vunpack.c.l.b16 %v518
      %v542 = vunpack.c.l.b16 %v519
      %v543 = vunpack.c.l.b16 %v520
      %v544 = vunpack.c.l.b16 %v521
      %v545 = vunpack.c.l.b16 %v522
      %v546 = vunpack.c.l.b16 %v523
      %v547 = vpack.c.b16 %v540, %v539
      %v548 = vpack.c.b16 %v542, %v541
      %v549 = vpack.c.b16 %v544, %v543
      %v550 = vpack.c.b16 %v546, %v545
      %555 = vmatprep.subr.bf16.mxu0 0
      %556 = vmatpush1.bf16.msra.mxu0 %v547
      %557 = vmatprep.subr.bf16.mxu0 0
      %558 = vmatpush1.bf16.msra.mxu0 %v548
      %559 = vmatprep.subr.bf16.mxu0 0
      %560 = vmatpush1.bf16.msra.mxu0 %v549
      %561 = vmatprep.subr.bf16.mxu0 0
      %562 = vmatpush1.bf16.msra.mxu0 %v550
      %563 = vmatprep.subr.bf16.mxu0 0
      %564 = vmatpush1.bf16.msra.mxu0 0
      %565 = vmatprep.subr.bf16.mxu0 0
      %566 = vmatpush1.bf16.msra.mxu0 0
      %567 = vmatprep.subr.bf16.mxu0 0
      %568 = vmatpush1.bf16.msra.mxu0 0
      %569 = vmatprep.subr.bf16.mxu0 0
      %570 = vmatpush1.bf16.msra.mxu0 0
      %571 = vmatprep.subr.bf16.mxu0 0
      %572 = vmatpush1.bf16.msra.mxu0 0
      %573 = vmatprep.subr.bf16.mxu0 0
      %574 = vmatpush1.bf16.msra.mxu0 0
      %575 = vmatprep.subr.bf16.mxu0 0
      %576 = vmatpush1.bf16.msra.mxu0 0
      %577 = vmatprep.subr.bf16.mxu0 0
      %578 = vmatpush1.bf16.msra.mxu0 0
      %579 = vmatprep.subr.bf16.mxu0 0
      %580 = vmatpush1.bf16.msra.mxu0 0
      %581 = vmatprep.subr.bf16.mxu0 0
      %582 = vmatpush1.bf16.msra.mxu0 0
      %583 = vmatprep.subr.bf16.mxu0 0
      %584 = vmatpush1.bf16.msra.mxu0 0
      %585 = vmatprep.subr.bf16.mxu0 0
      %586 = vmatpush1.bf16.msra.mxu0 0
      %587 = vmatprep.mubr.bf16.mxu0 0
      %588 = vmatmul.mubr.bf16.gmra.mrb[0].mxu0 %v393
      %v589 = vpop.f32.mrb[0].mxu0
      %v590 = vadd.f32 %v529, %v589
      %v591 = vpop.f32.mrb[0].mxu0
      %v592 = vpop.f32.mrb[0].mxu0
      %v593 = vpop.f32.mrb[0].mxu0
      %594 = vdwg.mxu0
      %595 = vst.msk [vmem:[%s348] sm:$0xff] %vm391, %v590
      %p596 = scmp.lt.s32.totalorder %s21, 1
      %s597 = scalar_select %p596, %s21, 1
      %s598 = smul.addr %s597, 8
      %s599 = scalar_lea.vmem %s7, %s598
      %p600 = scmp.lt.s32.totalorder %s21, 1
      %s601 = scalar_select %p600, %s21, 1
      %s602 = smul.addr %s601, 8
      %s603 = scalar_lea.vmem %s8, %s602
      %p604 = scmp.lt.s32.totalorder %s21, 1
      %s605 = scalar_select %p604, %s21, 1
      %s606 = smul.addr %s605, 8
      %s607 = scalar_lea.vmem %s9, %s606
      // Predicated region
      $region49: #{_lambda_.28} parent=47 // pred_check
        %p608 = pneg %p191
      $region50: #{_lambda_.28} parent=47 // pred_check_branch
        %610 = sbr.rel (%p608) target = $region52
      $region51: #{_lambda_.28} parent=47 // pred_region
        _
      $region52: #{_lambda_.28} parent=47 // pred_fallthru
        _
      // Predicated region
      $region53: #{_lambda_.28} parent=47 // pred_check
        %p611 = pneg %p217
      $region54: #{_lambda_.28} parent=47 // pred_check_branch
        %613 = sbr.rel (%p611) target = $region56
      $region55: #{_lambda_.28} parent=47 // pred_region
        _
      $region56: #{_lambda_.28} parent=47 // pred_fallthru
        _
      // Predicated region
      $region57: #{_lambda_.28} parent=47 // pred_check
        %p614 = pneg %p243
      $region58: #{_lambda_.28} parent=47 // pred_check_branch
        %616 = sbr.rel (%p614) target = $region60
      $region59: #{_lambda_.28} parent=47 // pred_region
        _
      $region60: #{_lambda_.28} parent=47 // pred_fallthru
        _
    $region48: #{_lambda_.28} parent=5 // pred_fallthru
      _
    %p617 = scmp.le.s32.totalorder 2, %s16
    // Predicated region
    $region61: #{_lambda_.28} parent=5 // pred_check
      %p618 = pneg %p617
    $region62: #{_lambda_.28} parent=5 // pred_check_branch
      %620 = sbr.rel (%p618) target = $region64
    $region63: #{_lambda_.28} parent=5 // pred_region
      %s621 = ssub.s32 %s16, 2
      // Predicated region
      $region65: #{_lambda_.28} parent=63 // pred_check
        %p622 = pneg %p197
      $region66: #{_lambda_.28} parent=63 // pred_check_branch
        %624 = sbr.rel (%p622) target = $region68
      $region67: #{_lambda_.28} parent=63 // pred_region
        %p625 = scmp.lt.s32.totalorder %s22, 1
        %s626 = scalar_select %p625, %s22, 1
        %s627 = smul.addr %s626, 8
        %s628 = scalar_lea.vmem %s7, %s627
      $region68: #{_lambda_.28} parent=63 // pred_fallthru
        _
      // Predicated region
      $region69: #{_lambda_.28} parent=63 // pred_check
        %p629 = pneg %p223
      $region70: #{_lambda_.28} parent=63 // pred_check_branch
        %631 = sbr.rel (%p629) target = $region72
      $region71: #{_lambda_.28} parent=63 // pred_region
        %p632 = scmp.lt.s32.totalorder %s22, 1
        %s633 = scalar_select %p632, %s22, 1
        %s634 = smul.addr %s633, 8
        %s635 = scalar_lea.vmem %s8, %s634
      $region72: #{_lambda_.28} parent=63 // pred_fallthru
        _
      // Predicated region
      $region73: #{_lambda_.28} parent=63 // pred_check
        %p636 = pneg %p249
      $region74: #{_lambda_.28} parent=63 // pred_check_branch
        %638 = sbr.rel (%p636) target = $region76
      $region75: #{_lambda_.28} parent=63 // pred_region
        %p639 = scmp.lt.s32.totalorder %s22, 1
        %s640 = scalar_select %p639, %s22, 1
        %s641 = smul.addr %s640, 8
        %s642 = scalar_lea.vmem %s9, %s641
      $region76: #{_lambda_.28} parent=63 // pred_fallthru
        _
    $region64: #{_lambda_.28} parent=5 // pred_fallthru
      _
  $region6: #{_lambda_.28} parent=0 // loop_footer
    %s20 = sadd.s32 1, %s16
  $region7: #{_lambda_.28} parent=0 // loop_footer_branch
    %15 = sbr.rel target = $region3
  $region8: #{_lambda_.28} parent=0 // loop_exit
    _

// kernel: _lambda_.29
$region0: #{_lambda_.29}
  #allocation0 [shape = 'u32[]', space=smem, size = 0x4, offset = 0x4, fixed_abs, tag = 'smem constant byte address 0x4 - core index']
  #allocation1 [shape = 'u32[144,128]{1,0:T(1,128)}', space=vmem, size = 0x12000, scoped, tag = 'internal scratch']
  %s0 = inlined_call_operand.vmem [shape: f32[2,8,64], index: 0, kind: input, shape index: {}]
  %s1 = inlined_call_operand.vmem [shape: f32[2,8,64], index: 1, kind: input, shape index: {}]
  %s2 = inlined_call_operand.vmem [shape: f32[2,8,64], index: 2, kind: input, shape index: {}]
  %s3 = inlined_call_operand.vmem [shape: f32[2,1,8], index: 3, kind: input, shape index: {}]
  %s4 = inlined_call_operand.vmem [shape: f32[2,8,64], index: 4, kind: output, shape index: {}]
  %s5 = sld [smem:[#allocation0]]
  $region49: #{_lambda_.29} parent=0
    _
  %s7 = ssub.s32 1, %s5
  %s8 = scalar_select 0, %s7, %s5
  loop: start=0, step=1, limit=4
  $region2: #{_lambda_.29} parent=0 // loop_pre_header
    _
  $region3: #{_lambda_.29} parent=0 // loop_header
    %s10 = sphi 0, %s14
    %p11 = scmp.ge.s32.totalorder %s10, 4
    %s20 = sphi 0, %s22
    %s23 = sphi 0, %s20
    %s24 = sphi 0, %s23
    %s40 = sphi 0, %s24
    %s46 = sphi 0, %s48
    %s49 = sphi 0, %s46
    %s50 = sphi 0, %s49
    %s66 = sphi 0, %s50
    %s72 = sphi 0, %s74
    %s75 = sphi 0, %s72
    %s76 = sphi 0, %s75
    %s92 = sphi 0, %s76
    %s98 = sphi 0, %s100
    %s101 = sphi 0, %s98
    %s102 = sphi 0, %s101
    %s118 = sphi 0, %s102
    %s124 = sphi 0, %s126
    %s127 = sphi 0, %s124
    %s128 = sphi 0, %s127
    %s144 = sphi 0, %s128
  $region4: #{_lambda_.29} parent=0 // loop_header_branch
    %13 = sbr.rel (%p11) target = $region8
  $region5: #{_lambda_.29} parent=0 // loop_body
    %s15 = ssub.s32 %s10, 1
    %s16 = ssub.s32 %s10, 2
    %s17 = sadd.s32 %s10, 1
    %s18 = ssub.s32 %s10, %s17
    %p19 = scmp.eq.s32.totalorder %s18, 0
    %s21 = sadd.s32 %s20, 1
    %s22 = scalar_select %p19, %s20, %s21
    %p25 = pneg %p19
    %p26 = scmp.eq.s32.totalorder %s10, 1
    %p27 = por %p25, %p26
    %p28 = scmp.ne.s32.totalorder %s20, %s23
    %p29 = scmp.eq.s32.totalorder %s10, 0
    %p30 = por %p28, %p29
    %p31 = scmp.ne.s32.totalorder %s20, %s23
    %p32 = scmp.eq.s32.totalorder %s15, 1
    %p33 = por %p31, %p32
    %p34 = scmp.ne.s32.totalorder %s23, %s24
    %p35 = scmp.eq.s32.totalorder %s15, 0
    %p36 = por %p34, %p35
    %p37 = scmp.ne.s32.totalorder %s23, %s24
    %p38 = scmp.eq.s32.totalorder %s16, 1
    %p39 = por %p37, %p38
    %p41 = scmp.ne.s32.totalorder %s24, %s40
    %p42 = scmp.eq.s32.totalorder %s16, 0
    %p43 = por %p41, %p42
    %s44 = ssub.s32 %s10, %s17
    %p45 = scmp.eq.s32.totalorder %s44, 0
    %s47 = sadd.s32 %s46, 1
    %s48 = scalar_select %p45, %s46, %s47
    %p51 = pneg %p45
    %p52 = scmp.eq.s32.totalorder %s10, 1
    %p53 = por %p51, %p52
    %p54 = scmp.ne.s32.totalorder %s46, %s49
    %p55 = scmp.eq.s32.totalorder %s10, 0
    %p56 = por %p54, %p55
    %p57 = scmp.ne.s32.totalorder %s46, %s49
    %p58 = scmp.eq.s32.totalorder %s15, 1
    %p59 = por %p57, %p58
    %p60 = scmp.ne.s32.totalorder %s49, %s50
    %p61 = scmp.eq.s32.totalorder %s15, 0
    %p62 = por %p60, %p61
    %p63 = scmp.ne.s32.totalorder %s49, %s50
    %p64 = scmp.eq.s32.totalorder %s16, 1
    %p65 = por %p63, %p64
    %p67 = scmp.ne.s32.totalorder %s50, %s66
    %p68 = scmp.eq.s32.totalorder %s16, 0
    %p69 = por %p67, %p68
    %s70 = ssub.s32 %s10, %s17
    %p71 = scmp.eq.s32.totalorder %s70, 0
    %s73 = sadd.s32 %s72, 1
    %s74 = scalar_select %p71, %s72, %s73
    %p77 = pneg %p71
    %p78 = scmp.eq.s32.totalorder %s10, 1
    %p79 = por %p77, %p78
    %p80 = scmp.ne.s32.totalorder %s72, %s75
    %p81 = scmp.eq.s32.totalorder %s10, 0
    %p82 = por %p80, %p81
    %p83 = scmp.ne.s32.totalorder %s72, %s75
    %p84 = scmp.eq.s32.totalorder %s15, 1
    %p85 = por %p83, %p84
    %p86 = scmp.ne.s32.totalorder %s75, %s76
    %p87 = scmp.eq.s32.totalorder %s15, 0
    %p88 = por %p86, %p87
    %p89 = scmp.ne.s32.totalorder %s75, %s76
    %p90 = scmp.eq.s32.totalorder %s16, 1
    %p91 = por %p89, %p90
    %p93 = scmp.ne.s32.totalorder %s76, %s92
    %p94 = scmp.eq.s32.totalorder %s16, 0
    %p95 = por %p93, %p94
    %s96 = ssub.s32 %s10, %s17
    %p97 = scmp.eq.s32.totalorder %s96, 0
    %s99 = sadd.s32 %s98, 1
    %s100 = scalar_select %p97, %s98, %s99
    %p103 = pneg %p97
    %p104 = scmp.eq.s32.totalorder %s10, 1
    %p105 = por %p103, %p104
    %p106 = scmp.ne.s32.totalorder %s98, %s101
    %p107 = scmp.eq.s32.totalorder %s10, 0
    %p108 = por %p106, %p107
    %p109 = scmp.ne.s32.totalorder %s98, %s101
    %p110 = scmp.eq.s32.totalorder %s15, 1
    %p111 = por %p109, %p110
    %p112 = scmp.ne.s32.totalorder %s101, %s102
    %p113 = scmp.eq.s32.totalorder %s15, 0
    %p114 = por %p112, %p113
    %p115 = scmp.ne.s32.totalorder %s101, %s102
    %p116 = scmp.eq.s32.totalorder %s16, 1
    %p117 = por %p115, %p116
    %p119 = scmp.ne.s32.totalorder %s102, %s118
    %p120 = scmp.eq.s32.totalorder %s16, 0
    %p121 = por %p119, %p120
    %s122 = ssub.s32 %s10, %s17
    %p123 = scmp.eq.s32.totalorder %s122, 0
    %s125 = sadd.s32 %s124, 1
    %s126 = scalar_select %p123, %s124, %s125
    %p129 = pneg %p123
    %p130 = scmp.eq.s32.totalorder %s10, 1
    %p131 = por %p129, %p130
    %p132 = scmp.ne.s32.totalorder %s124, %s127
    %p133 = scmp.eq.s32.totalorder %s10, 0
    %p134 = por %p132, %p133
    %p135 = scmp.ne.s32.totalorder %s124, %s127
    %p136 = scmp.eq.s32.totalorder %s15, 1
    %p137 = por %p135, %p136
    %p138 = scmp.ne.s32.totalorder %s127, %s128
    %p139 = scmp.eq.s32.totalorder %s15, 0
    %p140 = por %p138, %p139
    %p141 = scmp.ne.s32.totalorder %s127, %s128
    %p142 = scmp.eq.s32.totalorder %s16, 1
    %p143 = por %p141, %p142
    %p145 = scmp.ne.s32.totalorder %s128, %s144
    %p146 = scmp.eq.s32.totalorder %s16, 0
    %p147 = por %p145, %p146
    %p148 = scmp.le.s32.totalorder 1, %s10
    %p149 = scmp.lt.s32.totalorder %s10, 3
    %p150 = pnand %p148, %p149
    %p151 = pneg %p150
    // Predicated region
    $region9: #{_lambda_.29} parent=5 // pred_check
      _
    $region10: #{_lambda_.29} parent=5 // pred_check_branch
      %153 = sbr.rel (%p150) target = $region12
    $region11: #{_lambda_.29} parent=5 // pred_region
      %s154 = ssub.s32 %s10, 1
    $region12: #{_lambda_.29} parent=5 // pred_fallthru
      _
    %p155 = scmp.lt.s32.totalorder %s10, 2
    // Predicated region
    $region13: #{_lambda_.29} parent=5 // pred_check
      %p156 = pneg %p155
    $region14: #{_lambda_.29} parent=5 // pred_check_branch
      %158 = sbr.rel (%p156) target = $region16
    $region15: #{_lambda_.29} parent=5 // pred_region
      // Predicated region
      $region17: #{_lambda_.29} parent=15 // pred_check
        %p159 = pneg %p30
      $region18: #{_lambda_.29} parent=15 // pred_check_branch
        %161 = sbr.rel (%p159) target = $region20
      $region19: #{_lambda_.29} parent=15 // pred_region
        %p162 = scmp.lt.s32.totalorder %s10, 1
        %s163 = scalar_select %p162, %s10, 1
        %s164 = smul.addr %s163, 8
        %s165 = scalar_lea.vmem %s0, %s164
      $region20: #{_lambda_.29} parent=15 // pred_fallthru
        _
      // Predicated region
      $region21: #{_lambda_.29} parent=15 // pred_check
        %p166 = pneg %p56
      $region22: #{_lambda_.29} parent=15 // pred_check_branch
        %168 = sbr.rel (%p166) target = $region24
      $region23: #{_lambda_.29} parent=15 // pred_region
        %p169 = scmp.lt.s32.totalorder %s10, 1
        %s170 = scalar_select %p169, %s10, 1
        %s171 = smul.addr %s170, 8
        %s172 = scalar_lea.vmem %s1, %s171
      $region24: #{_lambda_.29} parent=15 // pred_fallthru
        _
      // Predicated region
      $region25: #{_lambda_.29} parent=15 // pred_check
        %p173 = pneg %p82
      $region26: #{_lambda_.29} parent=15 // pred_check_branch
        %175 = sbr.rel (%p173) target = $region28
      $region27: #{_lambda_.29} parent=15 // pred_region
        %p176 = scmp.lt.s32.totalorder %s10, 1
        %s177 = scalar_select %p176, %s10, 1
        %s178 = smul.addr %s177, 8
        %s179 = scalar_lea.vmem %s2, %s178
      $region28: #{_lambda_.29} parent=15 // pred_fallthru
        _
      // Predicated region
      $region29: #{_lambda_.29} parent=15 // pred_check
        %p180 = pneg %p108
      $region30: #{_lambda_.29} parent=15 // pred_check_branch
        %182 = sbr.rel (%p180) target = $region32
      $region31: #{_lambda_.29} parent=15 // pred_region
        %p183 = scmp.lt.s32.totalorder %s10, 1
        %s184 = scalar_select %p183, %s10, 1
        %s185 = scalar_lea.vmem %s3, %s184
      $region32: #{_lambda_.29} parent=15 // pred_fallthru
        _
    $region16: #{_lambda_.29} parent=5 // pred_fallthru
      _
    %p186 = scmp.le.s32.totalorder 1, %s10
    %p187 = scmp.lt.s32.totalorder %s10, 3
    %p188 = pnand %p186, %p187
    %p189 = pneg %p188
    // Predicated region
    $region33: #{_lambda_.29} parent=5 // pred_check
      _
    $region34: #{_lambda_.29} parent=5 // pred_check_branch
      %191 = sbr.rel (%p188) target = $region36
    $region35: #{_lambda_.29} parent=5 // pred_region
      %s192 = ssub.s32 %s10, 1
      %p193 = scmp.lt.s32.totalorder %s15, 1
      %s194 = scalar_select %p193, %s15, 1
      %s195 = smul.addr %s194, 8
      %s196 = scalar_lea.vmem %s0, %s195
      %p197 = pneg %p36
      %p198 = pneg %p33
      %p199 = scmp.lt.s32.totalorder %s15, 1
      %s200 = scalar_select %p199, %s15, 1
      %s201 = smul.addr %s200, 8
      %s202 = scalar_lea.vmem %s1, %s201
      %p203 = pneg %p62
      %p204 = pneg %p59
      %p205 = scmp.lt.s32.totalorder %s15, 1
      %s206 = scalar_select %p205, %s15, 1
      %s207 = smul.addr %s206, 8
      %s208 = scalar_lea.vmem %s2, %s207
      %p209 = pneg %p88
      %p210 = pneg %p85
      %p211 = scmp.lt.s32.totalorder %s15, 1
      %s212 = scalar_select %p211, %s15, 1
      %s213 = scalar_lea.vmem %s3, %s212
      %p214 = pneg %p114
      %p215 = pneg %p111
      %p216 = pneg %p140
      %p217 = pneg %p137
      %p218 = scmp.lt.s32.totalorder %s15, 1
      %s219 = scalar_select %p218, %s15, 1
      %s220 = smul.addr %s219, 8
      %s221 = scalar_lea.vmem %s4, %s220
      %p222 = scmp.lt.s32.totalorder %s15, 1
      %s223 = scalar_select %p222, %s15, 1
      %s224 = smul.addr %s223, 8
      %s225 = scalar_lea.vmem %s0, %s224
      %p226 = scmp.lt.s32.totalorder %s15, 1
      %s227 = scalar_select %p226, %s15, 1
      %s228 = smul.addr %s227, 8
      %s229 = scalar_lea.vmem %s1, %s228
      %p230 = scmp.lt.s32.totalorder %s15, 1
      %s231 = scalar_select %p230, %s15, 1
      %s232 = smul.addr %s231, 8
      %s233 = scalar_lea.vmem %s2, %s232
      %p234 = scmp.lt.s32.totalorder %s15, 1
      %s235 = scalar_select %p234, %s15, 1
      %s236 = scalar_lea.vmem %s3, %s235
      %p237 = scmp.lt.s32.totalorder %s15, 1
      %s238 = scalar_select %p237, %s15, 1
      %s239 = smul.addr %s238, 8
      %s240 = scalar_lea.vmem %s4, %s239
      %v242 = vld [vmem:[%s225] sm:$0xff]
      %v243 = vpack.c.bf16 %v242, %v242
      %v244 = vld [vmem:[%s229] sm:$0xff]
      %v245 = vpack.c.bf16 %v244, %v244
      %v246 = vld [vmem:[%s233] sm:$0xff]
      %v247 = vpack.c.bf16 %v246, %v246
      %v248 = vld [vmem:[%s236] sm:$0x1]
      %vm249 = vcmask 130048
      %v251 = vsel %vm249, %v243, 0
      %v254 = vsel %vm249, %v245, 0
      %256 = vmatprep.subr.bf16.mxu0 0
      %257 = vmatpush1.bf16.xpose.msra.mxu0 %v254
      %258 = vmatprep.subr.bf16.mxu0 0
      %259 = vmatpush1.bf16.xpose.msra.mxu0 0
      %260 = vmatprep.subr.bf16.mxu0 0
      %261 = vmatpush1.bf16.xpose.msra.mxu0 0
      %262 = vmatprep.subr.bf16.mxu0 0
      %263 = vmatpush1.bf16.xpose.msra.mxu0 0
      %264 = vmatprep.subr.bf16.mxu0 0
      %265 = vmatpush1.bf16.xpose.msra.mxu0 0
      %266 = vmatprep.subr.bf16.mxu0 0
      %267 = vmatpush1.bf16.xpose.msra.mxu0 0
      %268 = vmatprep.subr.bf16.mxu0 0
      %269 = vmatpush1.bf16.xpose.msra.mxu0 0
      %270 = vmatprep.subr.bf16.mxu0 0
      %271 = vmatpush1.bf16.xpose.msra.mxu0 0
      %272 = vmatprep.subr.bf16.mxu0 0
      %273 = vmatpush1.bf16.xpose.msra.mxu0 0
      %274 = vmatprep.subr.bf16.mxu0 0
      %275 = vmatpush1.bf16.xpose.msra.mxu0 0
      %276 = vmatprep.subr.bf16.mxu0 0
      %277 = vmatpush1.bf16.xpose.msra.mxu0 0
      %278 = vmatprep.subr.bf16.mxu0 0
      %279 = vmatpush1.bf16.xpose.msra.mxu0 0
      %280 = vmatprep.subr.bf16.mxu0 0
      %281 = vmatpush1.bf16.xpose.msra.mxu0 0
      %282 = vmatprep.subr.bf16.mxu0 0
      %283 = vmatpush1.bf16.xpose.msra.mxu0 0
      %284 = vmatprep.subr.bf16.mxu0 0
      %285 = vmatpush1.bf16.xpose.msra.mxu0 0
      %286 = vmatprep.subr.bf16.mxu0 0
      %287 = vmatpush1.bf16.xpose.msra.mxu0 0
      %288 = vmatprep.mubr.bf16.mxu0 0
      %289 = vmatmul.mubr.bf16.gmra.mrb[0].mxu0 %v251
      %v290 = vpop.f32.mrb[0].mxu0
      %v291 = vadd.f32 0.0, %v290
      %v292 = vpop.f32.mrb[0].mxu0
      %v293 = vpop.f32.mrb[0].mxu0
      %v294 = vpop.f32.mrb[0].mxu0
      %295 = vdwg.mxu0
      %v296 = vmul.f32 %v291, 0.25
      %v298 = vlaneseq
      %v299 = vshrl.u32 %v298, 7
      %v300 = vsub.s32 0, %v299
      %v301 = vrot.slane %v248, %v300
      %v303 = vadd.f32 %v296, %v301
      %vm304 = vcmask 64512
      %v305 = vsel %vm304, %v303, -inf
      %306 = vmax.xlane.f32.xlu0 %v305
      %v307 = vpop.xlane.xlu0 %306
      %v308 = vsub.f32 %v303, %v307
      %v309 = vmul.f32 %v308, 1.442695
      %v310 = vpow.pop %v309
      %v311 = vsel %vm304, %v310, 0.0
      %312 = vadd.xlane.f32.xlu0 %v311
      %v313 = vpop.xlane.xlu0 %312
      %v314 = vrcp.pop %v313
      %v315 = vmul.f32 %v310, %v314
      %v316 = vpack.c.bf16 %v315, %v315
      %v318 = vsel %vm304, %v316, 0
      %vm320 = vcmask 1043456
      %v322 = vsel %vm320, %v247, 0
      %324 = vmatprep.subr.bf16.mxu0 0
      %325 = vmatpush1.bf16.msra.mxu0 %v322
      %326 = vmatprep.subr.bf16.mxu0 0
      %327 = vmatpush1.bf16.msra.mxu0 0
      %328 = vmatprep.subr.bf16.mxu0 0
      %329 = vmatpush1.bf16.msra.mxu0 0
      %330 = vmatprep.subr.bf16.mxu0 0
      %331 = vmatpush1.bf16.msra.mxu0 0
      %332 = vmatprep.subr.bf16.mxu0 0
      %333 = vmatpush1.bf16.msra.mxu0 0
      %334 = vmatprep.subr.bf16.mxu0 0
      %335 = vmatpush1.bf16.msra.mxu0 0
      %336 = vmatprep.subr.bf16.mxu0 0
      %337 = vmatpush1.bf16.msra.mxu0 0
      %338 = vmatprep.subr.bf16.mxu0 0
      %339 = vmatpush1.bf16.msra.mxu0 0
      %340 = vmatprep.subr.bf16.mxu0 0
      %341 = vmatpush1.bf16.msra.mxu0 0
      %342 = vmatprep.subr.bf16.mxu0 0
      %343 = vmatpush1.bf16.msra.mxu0 0
      %344 = vmatprep.subr.bf16.mxu0 0
      %345 = vmatpush1.bf16.msra.mxu0 0
      %346 = vmatprep.subr.bf16.mxu0 0
      %347 = vmatpush1.bf16.msra.mxu0 0
      %348 = vmatprep.subr.bf16.mxu0 0
      %349 = vmatpush1.bf16.msra.mxu0 0
      %350 = vmatprep.subr.bf16.mxu0 0
      %351 = vmatpush1.bf16.msra.mxu0 0
      %352 = vmatprep.subr.bf16.mxu0 0
      %353 = vmatpush1.bf16.msra.mxu0 0
      %354 = vmatprep.subr.bf16.mxu0 0
      %355 = vmatpush1.bf16.msra.mxu0 0
      %356 = vmatprep.mubr.bf16.mxu0 0
      %357 = vmatmul.mubr.bf16.gmra.mrb[0].mxu0 %v318
      %v358 = vpop.f32.mrb[0].mxu0
      %v359 = vadd.f32 0.0, %v358
      %v360 = vpop.f32.mrb[0].mxu0
      %v361 = vpop.f32.mrb[0].mxu0
      %v362 = vpop.f32.mrb[0].mxu0
      %363 = vdwg.mxu0
      %365 = vrot.lane.b32.xlu0 %v243, 112
      %v366 = vpop.permute.xlu0 %365
      %368 = vrot.lane.b32.xlu0 %v245, 112
      %v369 = vpop.permute.xlu0 %368
      %v371 = vsel %vm249, %v366, 0
      %v374 = vsel %vm249, %v369, 0
      %376 = vmatprep.subr.bf16.mxu0 0
      %377 = vmatpush1.bf16.xpose.msra.mxu0 %v374
      %378 = vmatprep.subr.bf16.mxu0 0
      %379 = vmatpush1.bf16.xpose.msra.mxu0 0
      %380 = vmatprep.subr.bf16.mxu0 0
      %381 = vmatpush1.bf16.xpose.msra.mxu0 0
      %382 = vmatprep.subr.bf16.mxu0 0
      %383 = vmatpush1.bf16.xpose.msra.mxu0 0
      %384 = vmatprep.subr.bf16.mxu0 0
      %385 = vmatpush1.bf16.xpose.msra.mxu0 0
      %386 = vmatprep.subr.bf16.mxu0 0
      %387 = vmatpush1.bf16.xpose.msra.mxu0 0
      %388 = vmatprep.subr.bf16.mxu0 0
      %389 = vmatpush1.bf16.xpose.msra.mxu0 0
      %390 = vmatprep.subr.bf16.mxu0 0
      %391 = vmatpush1.bf16.xpose.msra.mxu0 0
      %392 = vmatprep.subr.bf16.mxu0 0
      %393 = vmatpush1.bf16.xpose.msra.mxu0 0
      %394 = vmatprep.subr.bf16.mxu0 0
      %395 = vmatpush1.bf16.xpose.msra.mxu0 0
      %396 = vmatprep.subr.bf16.mxu0 0
      %397 = vmatpush1.bf16.xpose.msra.mxu0 0
      %398 = vmatprep.subr.bf16.mxu0 0
      %399 = vmatpush1.bf16.xpose.msra.mxu0 0
      %400 = vmatprep.subr.bf16.mxu0 0
      %401 = vmatpush1.bf16.xpose.msra.mxu0 0
      %402 = vmatprep.subr.bf16.mxu0 0
      %403 = vmatpush1.bf16.xpose.msra.mxu0 0
      %404 = vmatprep.subr.bf16.mxu0 0
      %405 = vmatpush1.bf16.xpose.msra.mxu0 0
      %406 = vmatprep.subr.bf16.mxu0 0
      %407 = vmatpush1.bf16.xpose.msra.mxu0 0
      %408 = vmatprep.mubr.bf16.mxu0 0
      %409 = vmatmul.mubr.bf16.gmra.mrb[0].mxu0 %v371
      %v410 = vpop.f32.mrb[0].mxu0
      %v411 = vadd.f32 0.0, %v410
      %v412 = vpop.f32.mrb[0].mxu0
      %v413 = vpop.f32.mrb[0].mxu0
      %v414 = vpop.f32.mrb[0].mxu0
      %415 = vdwg.mxu0
      %v416 = vmul.f32 %v411, 0.25
      %v417 = vadd.f32 %v416, %v301
      %v418 = vsel %vm304, %v417, -inf
      %419 = vmax.xlane.f32.xlu0 %v418
      %v420 = vpop.xlane.xlu0 %419
      %v421 = vsub.f32 %v417, %v420
      %v422 = vmul.f32 %v421, 1.442695
      %v423 = vpow.pop %v422
      %v424 = vsel %vm304, %v423, 0.0
      %425 = vadd.xlane.f32.xlu0 %v424
      %v426 = vpop.xlane.xlu0 %425
      %v427 = vrcp.pop %v426
      %v428 = vmul.f32 %v423, %v427
      %v429 = vpack.c.bf16 %v428, %v428
      %431 = vrot.lane.b32.xlu0 %v247, 112
      %v432 = vpop.permute.xlu0 %431
      %v434 = vsel %vm304, %v429, 0
      %v437 = vsel %vm320, %v432, 0
      %439 = vmatprep.subr.bf16.mxu0 0
      %440 = vmatpush1.bf16.msra.mxu0 %v437
      %441 = vmatprep.subr.bf16.mxu0 0
      %442 = vmatpush1.bf16.msra.mxu0 0
      %443 = vmatprep.subr.bf16.mxu0 0
      %444 = vmatpush1.bf16.msra.mxu0 0
      %445 = vmatprep.subr.bf16.mxu0 0
      %446 = vmatpush1.bf16.msra.mxu0 0
      %447 = vmatprep.subr.bf16.mxu0 0
      %448 = vmatpush1.bf16.msra.mxu0 0
      %449 = vmatprep.subr.bf16.mxu0 0
      %450 = vmatpush1.bf16.msra.mxu0 0
      %451 = vmatprep.subr.bf16.mxu0 0
      %452 = vmatpush1.bf16.msra.mxu0 0
      %453 = vmatprep.subr.bf16.mxu0 0
      %454 = vmatpush1.bf16.msra.mxu0 0
      %455 = vmatprep.subr.bf16.mxu0 0
      %456 = vmatpush1.bf16.msra.mxu0 0
      %457 = vmatprep.subr.bf16.mxu0 0
      %458 = vmatpush1.bf16.msra.mxu0 0
      %459 = vmatprep.subr.bf16.mxu0 0
      %460 = vmatpush1.bf16.msra.mxu0 0
      %461 = vmatprep.subr.bf16.mxu0 0
      %462 = vmatpush1.bf16.msra.mxu0 0
      %463 = vmatprep.subr.bf16.mxu0 0
      %464 = vmatpush1.bf16.msra.mxu0 0
      %465 = vmatprep.subr.bf16.mxu0 0
      %466 = vmatpush1.bf16.msra.mxu0 0
      %467 = vmatprep.subr.bf16.mxu0 0
      %468 = vmatpush1.bf16.msra.mxu0 0
      %469 = vmatprep.subr.bf16.mxu0 0
      %470 = vmatpush1.bf16.msra.mxu0 0
      %471 = vmatprep.mubr.bf16.mxu0 0
      %472 = vmatmul.mubr.bf16.gmra.mrb[0].mxu0 %v434
      %v473 = vpop.f32.mrb[0].mxu0
      %v474 = vadd.f32 0.0, %v473
      %v475 = vpop.f32.mrb[0].mxu0
      %v476 = vpop.f32.mrb[0].mxu0
      %v477 = vpop.f32.mrb[0].mxu0
      %478 = vdwg.mxu0
      %479 = vrot.lane.b32.xlu0 %v243, 96
      %v480 = vpop.permute.xlu0 %479
      %481 = vrot.lane.b32.xlu0 %v245, 96
      %v482 = vpop.permute.xlu0 %481
      %v484 = vsel %vm249, %v480, 0
      %v487 = vsel %vm249, %v482, 0
      %489 = vmatprep.subr.bf16.mxu0 0
      %490 = vmatpush1.bf16.xpose.msra.mxu0 %v487
      %491 = vmatprep.subr.bf16.mxu0 0
      %492 = vmatpush1.bf16.xpose.msra.mxu0 0
      %493 = vmatprep.subr.bf16.mxu0 0
      %494 = vmatpush1.bf16.xpose.msra.mxu0 0
      %495 = vmatprep.subr.bf16.mxu0 0
      %496 = vmatpush1.bf16.xpose.msra.mxu0 0
      %497 = vmatprep.subr.bf16.mxu0 0
      %498 = vmatpush1.bf16.xpose.msra.mxu0 0
      %499 = vmatprep.subr.bf16.mxu0 0
      %500 = vmatpush1.bf16.xpose.msra.mxu0 0
      %501 = vmatprep.subr.bf16.mxu0 0
      %502 = vmatpush1.bf16.xpose.msra.mxu0 0
      %503 = vmatprep.subr.bf16.mxu0 0
      %504 = vmatpush1.bf16.xpose.msra.mxu0 0
      %505 = vmatprep.subr.bf16.mxu0 0
      %506 = vmatpush1.bf16.xpose.msra.mxu0 0
      %507 = vmatprep.subr.bf16.mxu0 0
      %508 = vmatpush1.bf16.xpose.msra.mxu0 0
      %509 = vmatprep.subr.bf16.mxu0 0
      %510 = vmatpush1.bf16.xpose.msra.mxu0 0
      %511 = vmatprep.subr.bf16.mxu0 0
      %512 = vmatpush1.bf16.xpose.msra.mxu0 0
      %513 = vmatprep.subr.bf16.mxu0 0
      %514 = vmatpush1.bf16.xpose.msra.mxu0 0
      %515 = vmatprep.subr.bf16.mxu0 0
      %516 = vmatpush1.bf16.xpose.msra.mxu0 0
      %517 = vmatprep.subr.bf16.mxu0 0
      %518 = vmatpush1.bf16.xpose.msra.mxu0 0
      %519 = vmatprep.subr.bf16.mxu0 0
      %520 = vmatpush1.bf16.xpose.msra.mxu0 0
      %521 = vmatprep.mubr.bf16.mxu0 0
      %522 = vmatmul.mubr.bf16.gmra.mrb[0].mxu0 %v484
      %v523 = vpop.f32.mrb[0].mxu0
      %v524 = vadd.f32 0.0, %v523
      %v525 = vpop.f32.mrb[0].mxu0
      %v526 = vpop.f32.mrb[0].mxu0
      %v527 = vpop.f32.mrb[0].mxu0
      %528 = vdwg.mxu0
      %v529 = vmul.f32 %v524, 0.25
      %v530 = vadd.f32 %v529, %v301
      %v531 = vsel %vm304, %v530, -inf
      %532 = vmax.xlane.f32.xlu0 %v531
      %v533 = vpop.xlane.xlu0 %532
      %v534 = vsub.f32 %v530, %v533
      %v535 = vmul.f32 %v534, 1.442695
      %v536 = vpow.pop %v535
      %v537 = vsel %vm304, %v536, 0.0
      %538 = vadd.xlane.f32.xlu0 %v537
      %v539 = vpop.xlane.xlu0 %538
      %v540 = vrcp.pop %v539
      %v541 = vmul.f32 %v536, %v540
      %v542 = vpack.c.bf16 %v541, %v541
      %543 = vrot.lane.b32.xlu0 %v247, 96
      %v544 = vpop.permute.xlu0 %543
      %v546 = vsel %vm304, %v542, 0
      %v549 = vsel %vm320, %v544, 0
      %551 = vmatprep.subr.bf16.mxu0 0
      %552 = vmatpush1.bf16.msra.mxu0 %v549
      %553 = vmatprep.subr.bf16.mxu0 0
      %554 = vmatpush1.bf16.msra.mxu0 0
      %555 = vmatprep.subr.bf16.mxu0 0
      %556 = vmatpush1.bf16.msra.mxu0 0
      %557 = vmatprep.subr.bf16.mxu0 0
      %558 = vmatpush1.bf16.msra.mxu0 0
      %559 = vmatprep.subr.bf16.mxu0 0
      %560 = vmatpush1.bf16.msra.mxu0 0
      %561 = vmatprep.subr.bf16.mxu0 0
      %562 = vmatpush1.bf16.msra.mxu0 0
      %563 = vmatprep.subr.bf16.mxu0 0
      %564 = vmatpush1.bf16.msra.mxu0 0
      %565 = vmatprep.subr.bf16.mxu0 0
      %566 = vmatpush1.bf16.msra.mxu0 0
      %567 = vmatprep.subr.bf16.mxu0 0
      %568 = vmatpush1.bf16.msra.mxu0 0
      %569 = vmatprep.subr.bf16.mxu0 0
      %570 = vmatpush1.bf16.msra.mxu0 0
      %571 = vmatprep.subr.bf16.mxu0 0
      %572 = vmatpush1.bf16.msra.mxu0 0
      %573 = vmatprep.subr.bf16.mxu0 0
      %574 = vmatpush1.bf16.msra.mxu0 0
      %575 = vmatprep.subr.bf16.mxu0 0
      %576 = vmatpush1.bf16.msra.mxu0 0
      %577 = vmatprep.subr.bf16.mxu0 0
      %578 = vmatpush1.bf16.msra.mxu0 0
      %579 = vmatprep.subr.bf16.mxu0 0
      %580 = vmatpush1.bf16.msra.mxu0 0
      %581 = vmatprep.subr.bf16.mxu0 0
      %582 = vmatpush1.bf16.msra.mxu0 0
      %583 = vmatprep.mubr.bf16.mxu0 0
      %584 = vmatmul.mubr.bf16.gmra.mrb[0].mxu0 %v546
      %v585 = vpop.f32.mrb[0].mxu0
      %v586 = vadd.f32 0.0, %v585
      %v587 = vpop.f32.mrb[0].mxu0
      %v588 = vpop.f32.mrb[0].mxu0
      %v589 = vpop.f32.mrb[0].mxu0
      %590 = vdwg.mxu0
      %591 = vrot.lane.b32.xlu0 %v243, 80
      %v592 = vpop.permute.xlu0 %591
      %593 = vrot.lane.b32.xlu0 %v245, 80
      %v594 = vpop.permute.xlu0 %593
      %v596 = vsel %vm249, %v592, 0
      %v599 = vsel %vm249, %v594, 0
      %601 = vmatprep.subr.bf16.mxu0 0
      %602 = vmatpush1.bf16.xpose.msra.mxu0 %v599
      %603 = vmatprep.subr.bf16.mxu0 0
      %604 = vmatpush1.bf16.xpose.msra.mxu0 0
      %605 = vmatprep.subr.bf16.mxu0 0
      %606 = vmatpush1.bf16.xpose.msra.mxu0 0
      %607 = vmatprep.subr.bf16.mxu0 0
      %608 = vmatpush1.bf16.xpose.msra.mxu0 0
      %609 = vmatprep.subr.bf16.mxu0 0
      %610 = vmatpush1.bf16.xpose.msra.mxu0 0
      %611 = vmatprep.subr.bf16.mxu0 0
      %612 = vmatpush1.bf16.xpose.msra.mxu0 0
      %613 = vmatprep.subr.bf16.mxu0 0
      %614 = vmatpush1.bf16.xpose.msra.mxu0 0
      %615 = vmatprep.subr.bf16.mxu0 0
      %616 = vmatpush1.bf16.xpose.msra.mxu0 0
      %617 = vmatprep.subr.bf16.mxu0 0
      %618 = vmatpush1.bf16.xpose.msra.mxu0 0
      %619 = vmatprep.subr.bf16.mxu0 0
      %620 = vmatpush1.bf16.xpose.msra.mxu0 0
      %621 = vmatprep.subr.bf16.mxu0 0
      %622 = vmatpush1.bf16.xpose.msra.mxu0 0
      %623 = vmatprep.subr.bf16.mxu0 0
      %624 = vmatpush1.bf16.xpose.msra.mxu0 0
      %625 = vmatprep.subr.bf16.mxu0 0
      %626 = vmatpush1.bf16.xpose.msra.mxu0 0
      %627 = vmatprep.subr.bf16.mxu0 0
      %628 = vmatpush1.bf16.xpose.msra.mxu0 0
      %629 = vmatprep.subr.bf16.mxu0 0
      %630 = vmatpush1.bf16.xpose.msra.mxu0 0
      %631 = vmatprep.subr.bf16.mxu0 0
      %632 = vmatpush1.bf16.xpose.msra.mxu0 0
      %633 = vmatprep.mubr.bf16.mxu0 0
      %634 = vmatmul.mubr.bf16.gmra.mrb[0].mxu0 %v596
      %v635 = vpop.f32.mrb[0].mxu0
      %v636 = vadd.f32 0.0, %v635
      %v637 = vpop.f32.mrb[0].mxu0
      %v638 = vpop.f32.mrb[0].mxu0
      %v639 = vpop.f32.mrb[0].mxu0
      %640 = vdwg.mxu0
      %v641 = vmul.f32 %v636, 0.25
      %v642 = vadd.f32 %v641, %v301
      %v643 = vsel %vm304, %v642, -inf
      %644 = vmax.xlane.f32.xlu0 %v643
      %v645 = vpop.xlane.xlu0 %644
      %v646 = vsub.f32 %v642, %v645
      %v647 = vmul.f32 %v646, 1.442695
      %v648 = vpow.pop %v647
      %v649 = vsel %vm304, %v648, 0.0
      %650 = vadd.xlane.f32.xlu0 %v649
      %v651 = vpop.xlane.xlu0 %650
      %v652 = vrcp.pop %v651
      %v653 = vmul.f32 %v648, %v652
      %v654 = vpack.c.bf16 %v653, %v653
      %655 = vrot.lane.b32.xlu0 %v247, 80
      %v656 = vpop.permute.xlu0 %655
      %v658 = vsel %vm304, %v654, 0
      %v661 = vsel %vm320, %v656, 0
      %663 = vmatprep.subr.bf16.mxu0 0
      %664 = vmatpush1.bf16.msra.mxu0 %v661
      %665 = vmatprep.subr.bf16.mxu0 0
      %666 = vmatpush1.bf16.msra.mxu0 0
      %667 = vmatprep.subr.bf16.mxu0 0
      %668 = vmatpush1.bf16.msra.mxu0 0
      %669 = vmatprep.subr.bf16.mxu0 0
      %670 = vmatpush1.bf16.msra.mxu0 0
      %671 = vmatprep.subr.bf16.mxu0 0
      %672 = vmatpush1.bf16.msra.mxu0 0
      %673 = vmatprep.subr.bf16.mxu0 0
      %674 = vmatpush1.bf16.msra.mxu0 0
      %675 = vmatprep.subr.bf16.mxu0 0
      %676 = vmatpush1.bf16.msra.mxu0 0
      %677 = vmatprep.subr.bf16.mxu0 0
      %678 = vmatpush1.bf16.msra.mxu0 0
      %679 = vmatprep.subr.bf16.mxu0 0
      %680 = vmatpush1.bf16.msra.mxu0 0
      %681 = vmatprep.subr.bf16.mxu0 0
      %682 = vmatpush1.bf16.msra.mxu0 0
      %683 = vmatprep.subr.bf16.mxu0 0
      %684 = vmatpush1.bf16.msra.mxu0 0
      %685 = vmatprep.subr.bf16.mxu0 0
      %686 = vmatpush1.bf16.msra.mxu0 0
      %687 = vmatprep.subr.bf16.mxu0 0
      %688 = vmatpush1.bf16.msra.mxu0 0
      %689 = vmatprep.subr.bf16.mxu0 0
      %690 = vmatpush1.bf16.msra.mxu0 0
      %691 = vmatprep.subr.bf16.mxu0 0
      %692 = vmatpush1.bf16.msra.mxu0 0
      %693 = vmatprep.subr.bf16.mxu0 0
      %694 = vmatpush1.bf16.msra.mxu0 0
      %695 = vmatprep.mubr.bf16.mxu0 0
      %696 = vmatmul.mubr.bf16.gmra.mrb[0].mxu0 %v658
      %v697 = vpop.f32.mrb[0].mxu0
      %v698 = vadd.f32 0.0, %v697
      %v699 = vpop.f32.mrb[0].mxu0
      %v700 = vpop.f32.mrb[0].mxu0
      %v701 = vpop.f32.mrb[0].mxu0
      %702 = vdwg.mxu0
      %704 = vrot.lane.b32.xlu0 %v474, 16
      %v705 = vpop.permute.xlu0 %704
      %708 = vrot.lane.b32.xlu0 %v586, 32
      %v709 = vpop.permute.xlu0 %708
      %712 = vrot.lane.b32.xlu0 %v698, 48
      %v713 = vpop.permute.xlu0 %712
      %v715 = vsel %vm249, %v359, %v705
      %vm716 = vcmask 261120
      %v717 = vsel %vm716, %v715, %v709
      %vm718 = vcmask 392192
      %v719 = vsel %vm718, %v717, %v713
      %vm720 = vcmask 523264
      %721 = vst.msk [vmem:[%s240] sm:$0xff] %vm720, %v719
      %p722 = scmp.lt.s32.totalorder %s15, 1
      %s723 = scalar_select %p722, %s15, 1
      %s724 = smul.addr %s723, 8
      %s725 = scalar_lea.vmem %s4, %s724
      // Predicated region
      $region37: #{_lambda_.29} parent=35 // pred_check
        %p726 = pneg %p137
      $region38: #{_lambda_.29} parent=35 // pred_check_branch
        %728 = sbr.rel (%p726) target = $region40
      $region39: #{_lambda_.29} parent=35 // pred_region
        _
      $region40: #{_lambda_.29} parent=35 // pred_fallthru
        _
    $region36: #{_lambda_.29} parent=5 // pred_fallthru
      _
    %p729 = scmp.le.s32.totalorder 2, %s10
    // Predicated region
    $region41: #{_lambda_.29} parent=5 // pred_check
      %p730 = pneg %p729
    $region42: #{_lambda_.29} parent=5 // pred_check_branch
      %732 = sbr.rel (%p730) target = $region44
    $region43: #{_lambda_.29} parent=5 // pred_region
      %s733 = ssub.s32 %s10, 2
      // Predicated region
      $region45: #{_lambda_.29} parent=43 // pred_check
        %p734 = pneg %p143
      $region46: #{_lambda_.29} parent=43 // pred_check_branch
        %736 = sbr.rel (%p734) target = $region48
      $region47: #{_lambda_.29} parent=43 // pred_region
        %p737 = scmp.lt.s32.totalorder %s16, 1
        %s738 = scalar_select %p737, %s16, 1
        %s739 = smul.addr %s738, 8
        %s740 = scalar_lea.vmem %s4, %s739
      $region48: #{_lambda_.29} parent=43 // pred_fallthru
        _
    $region44: #{_lambda_.29} parent=5 // pred_fallthru
      _
  $region6: #{_lambda_.29} parent=0 // loop_footer
    %s14 = sadd.s32 1, %s10
  $region7: #{_lambda_.29} parent=0 // loop_footer_branch
    %9 = sbr.rel target = $region3
  $region8: #{_lambda_.29} parent=0 // loop_exit
    _

// kernel: _lambda_.32
$region0: #{_lambda_.32}
  #allocation0 [shape = 'u32[]', space=smem, size = 0x4, offset = 0x4, fixed_abs, tag = 'smem constant byte address 0x4 - core index']
  #allocation1 [shape = 'u32[144,128]{1,0:T(1,128)}', space=vmem, size = 0x12000, scoped, tag = 'internal scratch']
  %s0 = inlined_call_operand.vmem [shape: f32[16,64], index: 0, kind: input, shape index: {}]
  %s1 = inlined_call_operand.vmem [shape: bf16[64,32], index: 1, kind: input, shape index: {}]
  %s2 = inlined_call_operand.vmem [shape: f32[1,32], index: 2, kind: input, shape index: {}]
  %s3 = inlined_call_operand.vmem [shape: bf16[64,32], index: 3, kind: input, shape index: {}]
  %s4 = inlined_call_operand.vmem [shape: f32[1,32], index: 4, kind: input, shape index: {}]
  %s5 = inlined_call_operand.vmem [shape: bf16[64,32], index: 5, kind: input, shape index: {}]
  %s6 = inlined_call_operand.vmem [shape: f32[1,32], index: 6, kind: input, shape index: {}]
  %s7 = inlined_call_operand.vmem [shape: f32[16,32], index: 7, kind: output, shape index: {0}]
  %s8 = inlined_call_operand.vmem [shape: f32[16,32], index: 8, kind: output, shape index: {1}]
  %s9 = inlined_call_operand.vmem [shape: f32[16,32], index: 9, kind: output, shape index: {2}]
  %10 = xla_tuple %s7, %s8, %s9
  %s11 = sld [smem:[#allocation0]]
  $region77: #{_lambda_.32} parent=0
    _
  %s13 = ssub.s32 1, %s11
  %s14 = scalar_select 0, %s13, %s11
  loop: start=0, step=1, limit=4
  $region2: #{_lambda_.32} parent=0 // loop_pre_header
    _
  $region3: #{_lambda_.32} parent=0 // loop_header
    %s16 = sphi 0, %s20
    %p17 = scmp.ge.s32.totalorder %s16, 4
    %s26 = sphi 0, %s28
    %s29 = sphi 0, %s26
    %s30 = sphi 0, %s29
    %s46 = sphi 0, %s30
    %s50 = sphi 0, %s50
    %s52 = sphi 0, %s50
    %s53 = sphi 0, %s52
    %s67 = sphi 0, %s53
    %s71 = sphi 0, %s71
    %s73 = sphi 0, %s71
    %s74 = sphi 0, %s73
    %s88 = sphi 0, %s74
    %s92 = sphi 0, %s92
    %s94 = sphi 0, %s92
    %s95 = sphi 0, %s94
    %s109 = sphi 0, %s95
    %s113 = sphi 0, %s113
    %s115 = sphi 0, %s113
    %s116 = sphi 0, %s115
    %s130 = sphi 0, %s116
    %s134 = sphi 0, %s134
    %s136 = sphi 0, %s134
    %s137 = sphi 0, %s136
    %s151 = sphi 0, %s137
    %s155 = sphi 0, %s155
    %s157 = sphi 0, %s155
    %s158 = sphi 0, %s157
    %s172 = sphi 0, %s158
    %s178 = sphi 0, %s180
    %s181 = sphi 0, %s178
    %s182 = sphi 0, %s181
    %s198 = sphi 0, %s182
    %s204 = sphi 0, %s206
    %s207 = sphi 0, %s204
    %s208 = sphi 0, %s207
    %s224 = sphi 0, %s208
    %s230 = sphi 0, %s232
    %s233 = sphi 0, %s230
    %s234 = sphi 0, %s233
    %s250 = sphi 0, %s234
  $region4: #{_lambda_.32} parent=0 // loop_header_branch
    %19 = sbr.rel (%p17) target = $region8
  $region5: #{_lambda_.32} parent=0 // loop_body
    %s21 = ssub.s32 %s16, 1
    %s22 = ssub.s32 %s16, 2
    %s23 = sadd.s32 %s16, 1
    %s24 = ssub.s32 %s16, %s23
    %p25 = scmp.eq.s32.totalorder %s24, 0
    %s27 = sadd.s32 %s26, 1
    %s28 = scalar_select %p25, %s26, %s27
    %p31 = pneg %p25
    %p32 = scmp.eq.s32.totalorder %s16, 1
    %p33 = por %p31, %p32
    %p34 = scmp.ne.s32.totalorder %s26, %s29
    %p35 = scmp.eq.s32.totalorder %s16, 0
    %p36 = por %p34, %p35
    %p37 = scmp.ne.s32.totalorder %s26, %s29
    %p38 = scmp.eq.s32.totalorder %s21, 1
    %p39 = por %p37, %p38
    %p40 = scmp.ne.s32.totalorder %s29, %s30
    %p41 = scmp.eq.s32.totalorder %s21, 0
    %p42 = por %p40, %p41
    %p43 = scmp.ne.s32.totalorder %s29, %s30
    %p44 = scmp.eq.s32.totalorder %s22, 1
    %p45 = por %p43, %p44
    %p47 = scmp.ne.s32.totalorder %s30, %s46
    %p48 = scmp.eq.s32.totalorder %s22, 0
    %p49 = por %p47, %p48
    %s51 = sadd.s32 %s50, 1
    %p54 = scmp.eq.s32.totalorder %s16, 1
    %p55 = scmp.ne.s32.totalorder %s50, %s52
    %p56 = scmp.eq.s32.totalorder %s16, 0
    %p57 = por %p55, %p56
    %p58 = scmp.ne.s32.totalorder %s50, %s52
    %p59 = scmp.eq.s32.totalorder %s21, 1
    %p60 = por %p58, %p59
    %p61 = scmp.ne.s32.totalorder %s52, %s53
    %p62 = scmp.eq.s32.totalorder %s21, 0
    %p63 = por %p61, %p62
    %p64 = scmp.ne.s32.totalorder %s52, %s53
    %p65 = scmp.eq.s32.totalorder %s22, 1
    %p66 = por %p64, %p65
    %p68 = scmp.ne.s32.totalorder %s53, %s67
    %p69 = scmp.eq.s32.totalorder %s22, 0
    %p70 = por %p68, %p69
    %s72 = sadd.s32 %s71, 1
    %p75 = scmp.eq.s32.totalorder %s16, 1
    %p76 = scmp.ne.s32.totalorder %s71, %s73
    %p77 = scmp.eq.s32.totalorder %s16, 0
    %p78 = por %p76, %p77
    %p79 = scmp.ne.s32.totalorder %s71, %s73
    %p80 = scmp.eq.s32.totalorder %s21, 1
    %p81 = por %p79, %p80
    %p82 = scmp.ne.s32.totalorder %s73, %s74
    %p83 = scmp.eq.s32.totalorder %s21, 0
    %p84 = por %p82, %p83
    %p85 = scmp.ne.s32.totalorder %s73, %s74
    %p86 = scmp.eq.s32.totalorder %s22, 1
    %p87 = por %p85, %p86
    %p89 = scmp.ne.s32.totalorder %s74, %s88
    %p90 = scmp.eq.s32.totalorder %s22, 0
    %p91 = por %p89, %p90
    %s93 = sadd.s32 %s92, 1
    %p96 = scmp.eq.s32.totalorder %s16, 1
    %p97 = scmp.ne.s32.totalorder %s92, %s94
    %p98 = scmp.eq.s32.totalorder %s16, 0
    %p99 = por %p97, %p98
    %p100 = scmp.ne.s32.totalorder %s92, %s94
    %p101 = scmp.eq.s32.totalorder %s21, 1
    %p102 = por %p100, %p101
    %p103 = scmp.ne.s32.totalorder %s94, %s95
    %p104 = scmp.eq.s32.totalorder %s21, 0
    %p105 = por %p103, %p104
    %p106 = scmp.ne.s32.totalorder %s94, %s95
    %p107 = scmp.eq.s32.totalorder %s22, 1
    %p108 = por %p106, %p107
    %p110 = scmp.ne.s32.totalorder %s95, %s109
    %p111 = scmp.eq.s32.totalorder %s22, 0
    %p112 = por %p110, %p111
    %s114 = sadd.s32 %s113, 1
    %p117 = scmp.eq.s32.totalorder %s16, 1
    %p118 = scmp.ne.s32.totalorder %s113, %s115
    %p119 = scmp.eq.s32.totalorder %s16, 0
    %p120 = por %p118, %p119
    %p121 = scmp.ne.s32.totalorder %s113, %s115
    %p122 = scmp.eq.s32.totalorder %s21, 1
    %p123 = por %p121, %p122
    %p124 = scmp.ne.s32.totalorder %s115, %s116
    %p125 = scmp.eq.s32.totalorder %s21, 0
    %p126 = por %p124, %p125
    %p127 = scmp.ne.s32.totalorder %s115, %s116
    %p128 = scmp.eq.s32.totalorder %s22, 1
    %p129 = por %p127, %p128
    %p131 = scmp.ne.s32.totalorder %s116, %s130
    %p132 = scmp.eq.s32.totalorder %s22, 0
    %p133 = por %p131, %p132
    %s135 = sadd.s32 %s134, 1
    %p138 = scmp.eq.s32.totalorder %s16, 1
    %p139 = scmp.ne.s32.totalorder %s134, %s136
    %p140 = scmp.eq.s32.totalorder %s16, 0
    %p141 = por %p139, %p140
    %p142 = scmp.ne.s32.totalorder %s134, %s136
    %p143 = scmp.eq.s32.totalorder %s21, 1
    %p144 = por %p142, %p143
    %p145 = scmp.ne.s32.totalorder %s136, %s137
    %p146 = scmp.eq.s32.totalorder %s21, 0
    %p147 = por %p145, %p146
    %p148 = scmp.ne.s32.totalorder %s136, %s137
    %p149 = scmp.eq.s32.totalorder %s22, 1
    %p150 = por %p148, %p149
    %p152 = scmp.ne.s32.totalorder %s137, %s151
    %p153 = scmp.eq.s32.totalorder %s22, 0
    %p154 = por %p152, %p153
    %s156 = sadd.s32 %s155, 1
    %p159 = scmp.eq.s32.totalorder %s16, 1
    %p160 = scmp.ne.s32.totalorder %s155, %s157
    %p161 = scmp.eq.s32.totalorder %s16, 0
    %p162 = por %p160, %p161
    %p163 = scmp.ne.s32.totalorder %s155, %s157
    %p164 = scmp.eq.s32.totalorder %s21, 1
    %p165 = por %p163, %p164
    %p166 = scmp.ne.s32.totalorder %s157, %s158
    %p167 = scmp.eq.s32.totalorder %s21, 0
    %p168 = por %p166, %p167
    %p169 = scmp.ne.s32.totalorder %s157, %s158
    %p170 = scmp.eq.s32.totalorder %s22, 1
    %p171 = por %p169, %p170
    %p173 = scmp.ne.s32.totalorder %s158, %s172
    %p174 = scmp.eq.s32.totalorder %s22, 0
    %p175 = por %p173, %p174
    %s176 = ssub.s32 %s16, %s23
    %p177 = scmp.eq.s32.totalorder %s176, 0
    %s179 = sadd.s32 %s178, 1
    %s180 = scalar_select %p177, %s178, %s179
    %p183 = pneg %p177
    %p184 = scmp.eq.s32.totalorder %s16, 1
    %p185 = por %p183, %p184
    %p186 = scmp.ne.s32.totalorder %s178, %s181
    %p187 = scmp.eq.s32.totalorder %s16, 0
    %p188 = por %p186, %p187
    %p189 = scmp.ne.s32.totalorder %s178, %s181
    %p190 = scmp.eq.s32.totalorder %s21, 1
    %p191 = por %p189, %p190
    %p192 = scmp.ne.s32.totalorder %s181, %s182
    %p193 = scmp.eq.s32.totalorder %s21, 0
    %p194 = por %p192, %p193
    %p195 = scmp.ne.s32.totalorder %s181, %s182
    %p196 = scmp.eq.s32.totalorder %s22, 1
    %p197 = por %p195, %p196
    %p199 = scmp.ne.s32.totalorder %s182, %s198
    %p200 = scmp.eq.s32.totalorder %s22, 0
    %p201 = por %p199, %p200
    %s202 = ssub.s32 %s16, %s23
    %p203 = scmp.eq.s32.totalorder %s202, 0
    %s205 = sadd.s32 %s204, 1
    %s206 = scalar_select %p203, %s204, %s205
    %p209 = pneg %p203
    %p210 = scmp.eq.s32.totalorder %s16, 1
    %p211 = por %p209, %p210
    %p212 = scmp.ne.s32.totalorder %s204, %s207
    %p213 = scmp.eq.s32.totalorder %s16, 0
    %p214 = por %p212, %p213
    %p215 = scmp.ne.s32.totalorder %s204, %s207
    %p216 = scmp.eq.s32.totalorder %s21, 1
    %p217 = por %p215, %p216
    %p218 = scmp.ne.s32.totalorder %s207, %s208
    %p219 = scmp.eq.s32.totalorder %s21, 0
    %p220 = por %p218, %p219
    %p221 = scmp.ne.s32.totalorder %s207, %s208
    %p222 = scmp.eq.s32.totalorder %s22, 1
    %p223 = por %p221, %p222
    %p225 = scmp.ne.s32.totalorder %s208, %s224
    %p226 = scmp.eq.s32.totalorder %s22, 0
    %p227 = por %p225, %p226
    %s228 = ssub.s32 %s16, %s23
    %p229 = scmp.eq.s32.totalorder %s228, 0
    %s231 = sadd.s32 %s230, 1
    %s232 = scalar_select %p229, %s230, %s231
    %p235 = pneg %p229
    %p236 = scmp.eq.s32.totalorder %s16, 1
    %p237 = por %p235, %p236
    %p238 = scmp.ne.s32.totalorder %s230, %s233
    %p239 = scmp.eq.s32.totalorder %s16, 0
    %p240 = por %p238, %p239
    %p241 = scmp.ne.s32.totalorder %s230, %s233
    %p242 = scmp.eq.s32.totalorder %s21, 1
    %p243 = por %p241, %p242
    %p244 = scmp.ne.s32.totalorder %s233, %s234
    %p245 = scmp.eq.s32.totalorder %s21, 0
    %p246 = por %p244, %p245
    %p247 = scmp.ne.s32.totalorder %s233, %s234
    %p248 = scmp.eq.s32.totalorder %s22, 1
    %p249 = por %p247, %p248
    %p251 = scmp.ne.s32.totalorder %s234, %s250
    %p252 = scmp.eq.s32.totalorder %s22, 0
    %p253 = por %p251, %p252
    %p254 = scmp.le.s32.totalorder 1, %s16
    %p255 = scmp.lt.s32.totalorder %s16, 3
    %p256 = pnand %p254, %p255
    %p257 = pneg %p256
    // Predicated region
    $region9: #{_lambda_.32} parent=5 // pred_check
      _
    $region10: #{_lambda_.32} parent=5 // pred_check_branch
      %259 = sbr.rel (%p256) target = $region12
    $region11: #{_lambda_.32} parent=5 // pred_region
      %s260 = ssub.s32 %s16, 1
      // Predicated region
      $region13: #{_lambda_.32} parent=11 // pred_check
        %p261 = pneg %p63
      $region14: #{_lambda_.32} parent=11 // pred_check_branch
        %263 = sbr.rel (%p261) target = $region16
      $region15: #{_lambda_.32} parent=11 // pred_region
        _
      $region16: #{_lambda_.32} parent=11 // pred_fallthru
        _
      // Predicated region
      $region17: #{_lambda_.32} parent=11 // pred_check
        %p264 = pneg %p84
      $region18: #{_lambda_.32} parent=11 // pred_check_branch
        %266 = sbr.rel (%p264) target = $region20
      $region19: #{_lambda_.32} parent=11 // pred_region
        _
      $region20: #{_lambda_.32} parent=11 // pred_fallthru
        _
      // Predicated region
      $region21: #{_lambda_.32} parent=11 // pred_check
        %p267 = pneg %p105
      $region22: #{_lambda_.32} parent=11 // pred_check_branch
        %269 = sbr.rel (%p267) target = $region24
      $region23: #{_lambda_.32} parent=11 // pred_region
        _
      $region24: #{_lambda_.32} parent=11 // pred_fallthru
        _
      // Predicated region
      $region25: #{_lambda_.32} parent=11 // pred_check
        %p270 = pneg %p126
      $region26: #{_lambda_.32} parent=11 // pred_check_branch
        %272 = sbr.rel (%p270) target = $region28
      $region27: #{_lambda_.32} parent=11 // pred_region
        _
      $region28: #{_lambda_.32} parent=11 // pred_fallthru
        _
      // Predicated region
      $region29: #{_lambda_.32} parent=11 // pred_check
        %p273 = pneg %p147
      $region30: #{_lambda_.32} parent=11 // pred_check_branch
        %275 = sbr.rel (%p273) target = $region32
      $region31: #{_lambda_.32} parent=11 // pred_region
        _
      $region32: #{_lambda_.32} parent=11 // pred_fallthru
        _
      // Predicated region
      $region33: #{_lambda_.32} parent=11 // pred_check
        %p276 = pneg %p168
      $region34: #{_lambda_.32} parent=11 // pred_check_branch
        %278 = sbr.rel (%p276) target = $region36
      $region35: #{_lambda_.32} parent=11 // pred_region
        _
      $region36: #{_lambda_.32} parent=11 // pred_fallthru
        _
    $region12: #{_lambda_.32} parent=5 // pred_fallthru
      _
    %p279 = scmp.lt.s32.totalorder %s16, 2
    // Predicated region
    $region37: #{_lambda_.32} parent=5 // pred_check
      %p280 = pneg %p279
    $region38: #{_lambda_.32} parent=5 // pred_check_branch
      %282 = sbr.rel (%p280) target = $region40
    $region39: #{_lambda_.32} parent=5 // pred_region
      // Predicated region
      $region41: #{_lambda_.32} parent=39 // pred_check
        %p283 = pneg %p36
      $region42: #{_lambda_.32} parent=39 // pred_check_branch
        %285 = sbr.rel (%p283) target = $region44
      $region43: #{_lambda_.32} parent=39 // pred_region
        %p286 = scmp.lt.s32.totalorder %s16, 1
        %s287 = scalar_select %p286, %s16, 1
        %s288 = smul.addr %s287, 8
        %s289 = scalar_lea.vmem %s0, %s288
      $region44: #{_lambda_.32} parent=39 // pred_fallthru
        _
    $region40: #{_lambda_.32} parent=5 // pred_fallthru
      _
    %p290 = scmp.le.s32.totalorder 1, %s16
    %p291 = scmp.lt.s32.totalorder %s16, 3
    %p292 = pnand %p290, %p291
    %p293 = pneg %p292
    // Predicated region
    $region45: #{_lambda_.32} parent=5 // pred_check
      _
    $region46: #{_lambda_.32} parent=5 // pred_check_branch
      %295 = sbr.rel (%p292) target = $region48
    $region47: #{_lambda_.32} parent=5 // pred_region
      %s296 = ssub.s32 %s16, 1
      %p297 = scmp.lt.s32.totalorder %s21, 1
      %s298 = scalar_select %p297, %s21, 1
      %s299 = smul.addr %s298, 8
      %s300 = scalar_lea.vmem %s0, %s299
      %p301 = pneg %p42
      %p302 = pneg %p39
      %p303 = pneg %p63
      %p304 = pneg %p60
      %p305 = pneg %p84
      %p306 = pneg %p81
      %p307 = pneg %p105
      %p308 = pneg %p102
      %p309 = pneg %p126
      %p310 = pneg %p123
      %p311 = pneg %p147
      %p312 = pneg %p144
      %p313 = pneg %p168
      %p314 = pneg %p165
      %p315 = pneg %p194
      %p316 = pneg %p191
      %p317 = scmp.lt.s32.totalorder %s21, 1
      %s318 = scalar_select %p317, %s21, 1
      %s319 = smul.addr %s318, 8
      %s320 = scalar_lea.vmem %s7, %s319
      %p321 = pneg %p220
      %p322 = pneg %p217
      %p323 = scmp.lt.s32.totalorder %s21, 1
      %s324 = scalar_select %p323, %s21, 1
      %s325 = smul.addr %s324, 8
      %s326 = scalar_lea.vmem %s8, %s325
      %p327 = pneg %p246
      %p328 = pneg %p243
      %p329 = scmp.lt.s32.totalorder %s21, 1
      %s330 = scalar_select %p329, %s21, 1
      %s331 = smul.addr %s330, 8
      %s332 = scalar_lea.vmem %s9, %s331
      %p333 = scmp.lt.s32.totalorder %s21, 1
      %s334 = scalar_select %p333, %s21, 1
      %s335 = smul.addr %s334, 8
      %s336 = scalar_lea.vmem %s0, %s335
      %p337 = scmp.lt.s32.totalorder %s21, 1
      %s338 = scalar_select %p337, %s21, 1
      %s339 = smul.addr %s338, 8
      %s340 = scalar_lea.vmem %s7, %s339
      %p341 = scmp.lt.s32.totalorder %s21, 1
      %s342 = scalar_select %p341, %s21, 1
      %s343 = smul.addr %s342, 8
      %s344 = scalar_lea.vmem %s8, %s343
      %p345 = scmp.lt.s32.totalorder %s21, 1
      %s346 = scalar_select %p345, %s21, 1
      %s347 = smul.addr %s346, 8
      %s348 = scalar_lea.vmem %s9, %s347
      %v350 = vld [vmem:[%s336] sm:$0xff]
      %v351 = vpack.c.bf16 %v350, %v350
      %v352 = vld [vmem:[%s1] sm:$0xf]
      %v353 = vld [vmem:[%s1 + $0x4] sm:$0xf]
      %v354 = vld [vmem:[%s1 + $0x8] sm:$0xf]
      %v355 = vld [vmem:[%s1 + $0xc] sm:$0xf]
      %v356 = vld [vmem:[%s1 + $0x10] sm:$0xf]
      %v357 = vld [vmem:[%s1 + $0x14] sm:$0xf]
      %v358 = vld [vmem:[%s1 + $0x18] sm:$0xf]
      %v359 = vld [vmem:[%s1 + $0x1c] sm:$0xf]
      %v360 = vld [vmem:[%s2] sm:$0x1]
      %v362 = vlaneseq
      %v363 = vshrl.u32 %v362, 7
      %v364 = vsub.s32 0, %v363
      %v365 = vrot.slane %v360, %v364
      %v375 = vunpack.c.l.b16 %v352
      %v376 = vunpack.c.l.b16 %v353
      %v377 = vunpack.c.l.b16 %v354
      %v378 = vunpack.c.l.b16 %v355
      %v379 = vunpack.c.l.b16 %v356
      %v380 = vunpack.c.l.b16 %v357
      %v381 = vunpack.c.l.b16 %v358
      %v382 = vunpack.c.l.b16 %v359
      %v383 = vpack.c.b16 %v376, %v375
      %v384 = vpack.c.b16 %v378, %v377
      %v385 = vpack.c.b16 %v380, %v379
      %v386 = vpack.c.b16 %v382, %v381
      %vm391 = vcmask 523264
      %v393 = vsel %vm391, %v351, 0
      %395 = vmatprep.subr.bf16.mxu0 0
      %396 = vmatpush1.bf16.msra.mxu0 %v383
      %397 = vmatprep.subr.bf16.mxu0 0
      %398 = vmatpush1.bf16.msra.mxu0 %v384
      %399 = vmatprep.subr.bf16.mxu0 0
      %400 = vmatpush1.bf16.msra.mxu0 %v385
      %401 = vmatprep.subr.bf16.mxu0 0
      %402 = vmatpush1.bf16.msra.mxu0 %v386
      %403 = vmatprep.subr.bf16.mxu0 0
      %404 = vmatpush1.bf16.msra.mxu0 0
      %405 = vmatprep.subr.bf16.mxu0 0
      %406 = vmatpush1.bf16.msra.mxu0 0
      %407 = vmatprep.subr.bf16.mxu0 0
      %408 = vmatpush1.bf16.msra.mxu0 0
      %409 = vmatprep.subr.bf16.mxu0 0
      %410 = vmatpush1.bf16.msra.mxu0 0
      %411 = vmatprep.subr.bf16.mxu0 0
      %412 = vmatpush1.bf16.msra.mxu0 0
      %413 = vmatprep.subr.bf16.mxu0 0
      %414 = vmatpush1.bf16.msra.mxu0 0
      %415 = vmatprep.subr.bf16.mxu0 0
      %416 = vmatpush1.bf16.msra.mxu0 0
      %417 = vmatprep.subr.bf16.mxu0 0
      %418 = vmatpush1.bf16.msra.mxu0 0
      %419 = vmatprep.subr.bf16.mxu0 0
      %420 = vmatpush1.bf16.msra.mxu0 0
      %421 = vmatprep.subr.bf16.mxu0 0
      %422 = vmatpush1.bf16.msra.mxu0 0
      %423 = vmatprep.subr.bf16.mxu0 0
      %424 = vmatpush1.bf16.msra.mxu0 0
      %425 = vmatprep.subr.bf16.mxu0 0
      %426 = vmatpush1.bf16.msra.mxu0 0
      %427 = vmatprep.mubr.bf16.mxu0 0
      %428 = vmatmul.mubr.bf16.gmra.mrb[0].mxu0 %v393
      %v429 = vpop.f32.mrb[0].mxu0
      %v430 = vadd.f32 %v365, %v429
      %v431 = vpop.f32.mrb[0].mxu0
      %v432 = vpop.f32.mrb[0].mxu0
      %v433 = vpop.f32.mrb[0].mxu0
      %434 = vdwg.mxu0
      %vm435 = vcmask 261120
      %436 = vst.msk [vmem:[%s340] sm:$0xff] %vm435, %v430
      %v437 = vld [vmem:[%s3] sm:$0xf]
      %v438 = vld [vmem:[%s3 + $0x4] sm:$0xf]
      %v439 = vld [vmem:[%s3 + $0x8] sm:$0xf]
      %v440 = vld [vmem:[%s3 + $0xc] sm:$0xf]
      %v441 = vld [vmem:[%s3 + $0x10] sm:$0xf]
      %v442 = vld [vmem:[%s3 + $0x14] sm:$0xf]
      %v443 = vld [vmem:[%s3 + $0x18] sm:$0xf]
      %v444 = vld [vmem:[%s3 + $0x1c] sm:$0xf]
      %v445 = vld [vmem:[%s4] sm:$0x1]
      %v447 = vlaneseq
      %v448 = vshrl.u32 %v447, 7
      %v449 = vsub.s32 0, %v448
      %v450 = vrot.slane %v445, %v449
      %v460 = vunpack.c.l.b16 %v437
      %v461 = vunpack.c.l.b16 %v438
      %v462 = vunpack.c.l.b16 %v439
      %v463 = vunpack.c.l.b16 %v440
      %v464 = vunpack.c.l.b16 %v441
      %v465 = vunpack.c.l.b16 %v442
      %v466 = vunpack.c.l.b16 %v443
      %v467 = vunpack.c.l.b16 %v444
      %v468 = vpack.c.b16 %v461, %v460
      %v469 = vpack.c.b16 %v463, %v462
      %v470 = vpack.c.b16 %v465, %v464
      %v471 = vpack.c.b16 %v467, %v466
      %476 = vmatprep.subr.bf16.mxu0 0
      %477 = vmatpush1.bf16.msra.mxu0 %v468
      %478 = vmatprep.subr.bf16.mxu0 0
      %479 = vmatpush1.bf16.msra.mxu0 %v469
      %480 = vmatprep.subr.bf16.mxu0 0
      %481 = vmatpush1.bf16.msra.mxu0 %v470
      %482 = vmatprep.subr.bf16.mxu0 0
      %483 = vmatpush1.bf16.msra.mxu0 %v471
      %484 = vmatprep.subr.bf16.mxu0 0
      %485 = vmatpush1.bf16.msra.mxu0 0
      %486 = vmatprep.subr.bf16.mxu0 0
      %487 = vmatpush1.bf16.msra.mxu0 0
      %488 = vmatprep.subr.bf16.mxu0 0
      %489 = vmatpush1.bf16.msra.mxu0 0
      %490 = vmatprep.subr.bf16.mxu0 0
      %491 = vmatpush1.bf16.msra.mxu0 0
      %492 = vmatprep.subr.bf16.mxu0 0
      %493 = vmatpush1.bf16.msra.mxu0 0
      %494 = vmatprep.subr.bf16.mxu0 0
      %495 = vmatpush1.bf16.msra.mxu0 0
      %496 = vmatprep.subr.bf16.mxu0 0
      %497 = vmatpush1.bf16.msra.mxu0 0
      %498 = vmatprep.subr.bf16.mxu0 0
      %499 = vmatpush1.bf16.msra.mxu0 0
      %500 = vmatprep.subr.bf16.mxu0 0
      %501 = vmatpush1.bf16.msra.mxu0 0
      %502 = vmatprep.subr.bf16.mxu0 0
      %503 = vmatpush1.bf16.msra.mxu0 0
      %504 = vmatprep.subr.bf16.mxu0 0
      %505 = vmatpush1.bf16.msra.mxu0 0
      %506 = vmatprep.subr.bf16.mxu0 0
      %507 = vmatpush1.bf16.msra.mxu0 0
      %508 = vmatprep.mubr.bf16.mxu0 0
      %509 = vmatmul.mubr.bf16.gmra.mrb[0].mxu0 %v393
      %v510 = vpop.f32.mrb[0].mxu0
      %v511 = vadd.f32 %v450, %v510
      %v512 = vpop.f32.mrb[0].mxu0
      %v513 = vpop.f32.mrb[0].mxu0
      %v514 = vpop.f32.mrb[0].mxu0
      %515 = vdwg.mxu0
      %516 = vst.msk [vmem:[%s344] sm:$0xff] %vm435, %v511
      %v517 = vld [vmem:[%s5] sm:$0xf]
      %v518 = vld [vmem:[%s5 + $0x4] sm:$0xf]
      %v519 = vld [vmem:[%s5 + $0x8] sm:$0xf]
      %v520 = vld [vmem:[%s5 + $0xc] sm:$0xf]
      %v521 = vld [vmem:[%s5 + $0x10] sm:$0xf]
      %v522 = vld [vmem:[%s5 + $0x14] sm:$0xf]
      %v523 = vld [vmem:[%s5 + $0x18] sm:$0xf]
      %v524 = vld [vmem:[%s5 + $0x1c] sm:$0xf]
      %v525 = vld [vmem:[%s6] sm:$0x1]
      %v527 = vlaneseq
      %v528 = vshrl.u32 %v527, 7
      %v529 = vsub.s32 0, %v528
      %v530 = vrot.slane %v525, %v529
      %v540 = vunpack.c.l.b16 %v517
      %v541 = vunpack.c.l.b16 %v518
      %v542 = vunpack.c.l.b16 %v519
      %v543 = vunpack.c.l.b16 %v520
      %v544 = vunpack.c.l.b16 %v521
      %v545 = vunpack.c.l.b16 %v522
      %v546 = vunpack.c.l.b16 %v523
      %v547 = vunpack.c.l.b16 %v524
      %v548 = vpack.c.b16 %v541, %v540
      %v549 = vpack.c.b16 %v543, %v542
      %v550 = vpack.c.b16 %v545, %v544
      %v551 = vpack.c.b16 %v547, %v546
      %556 = vmatprep.subr.bf16.mxu0 0
      %557 = vmatpush1.bf16.msra.mxu0 %v548
      %558 = vmatprep.subr.bf16.mxu0 0
      %559 = vmatpush1.bf16.msra.mxu0 %v549
      %560 = vmatprep.subr.bf16.mxu0 0
      %561 = vmatpush1.bf16.msra.mxu0 %v550
      %562 = vmatprep.subr.bf16.mxu0 0
      %563 = vmatpush1.bf16.msra.mxu0 %v551
      %564 = vmatprep.subr.bf16.mxu0 0
      %565 = vmatpush1.bf16.msra.mxu0 0
      %566 = vmatprep.subr.bf16.mxu0 0
      %567 = vmatpush1.bf16.msra.mxu0 0
      %568 = vmatprep.subr.bf16.mxu0 0
      %569 = vmatpush1.bf16.msra.mxu0 0
      %570 = vmatprep.subr.bf16.mxu0 0
      %571 = vmatpush1.bf16.msra.mxu0 0
      %572 = vmatprep.subr.bf16.mxu0 0
      %573 = vmatpush1.bf16.msra.mxu0 0
      %574 = vmatprep.subr.bf16.mxu0 0
      %575 = vmatpush1.bf16.msra.mxu0 0
      %576 = vmatprep.subr.bf16.mxu0 0
      %577 = vmatpush1.bf16.msra.mxu0 0
      %578 = vmatprep.subr.bf16.mxu0 0
      %579 = vmatpush1.bf16.msra.mxu0 0
      %580 = vmatprep.subr.bf16.mxu0 0
      %581 = vmatpush1.bf16.msra.mxu0 0
      %582 = vmatprep.subr.bf16.mxu0 0
      %583 = vmatpush1.bf16.msra.mxu0 0
      %584 = vmatprep.subr.bf16.mxu0 0
      %585 = vmatpush1.bf16.msra.mxu0 0
      %586 = vmatprep.subr.bf16.mxu0 0
      %587 = vmatpush1.bf16.msra.mxu0 0
      %588 = vmatprep.mubr.bf16.mxu0 0
      %589 = vmatmul.mubr.bf16.gmra.mrb[0].mxu0 %v393
      %v590 = vpop.f32.mrb[0].mxu0
      %v591 = vadd.f32 %v530, %v590
      %v592 = vpop.f32.mrb[0].mxu0
      %v593 = vpop.f32.mrb[0].mxu0
      %v594 = vpop.f32.mrb[0].mxu0
      %595 = vdwg.mxu0
      %596 = vst.msk [vmem:[%s348] sm:$0xff] %vm435, %v591
      %p597 = scmp.lt.s32.totalorder %s21, 1
      %s598 = scalar_select %p597, %s21, 1
      %s599 = smul.addr %s598, 8
      %s600 = scalar_lea.vmem %s7, %s599
      %p601 = scmp.lt.s32.totalorder %s21, 1
      %s602 = scalar_select %p601, %s21, 1
      %s603 = smul.addr %s602, 8
      %s604 = scalar_lea.vmem %s8, %s603
      %p605 = scmp.lt.s32.totalorder %s21, 1
      %s606 = scalar_select %p605, %s21, 1
      %s607 = smul.addr %s606, 8
      %s608 = scalar_lea.vmem %s9, %s607
      // Predicated region
      $region49: #{_lambda_.32} parent=47 // pred_check
        %p609 = pneg %p191
      $region50: #{_lambda_.32} parent=47 // pred_check_branch
        %611 = sbr.rel (%p609) target = $region52
      $region51: #{_lambda_.32} parent=47 // pred_region
        _
      $region52: #{_lambda_.32} parent=47 // pred_fallthru
        _
      // Predicated region
      $region53: #{_lambda_.32} parent=47 // pred_check
        %p612 = pneg %p217
      $region54: #{_lambda_.32} parent=47 // pred_check_branch
        %614 = sbr.rel (%p612) target = $region56
      $region55: #{_lambda_.32} parent=47 // pred_region
        _
      $region56: #{_lambda_.32} parent=47 // pred_fallthru
        _
      // Predicated region
      $region57: #{_lambda_.32} parent=47 // pred_check
        %p615 = pneg %p243
      $region58: #{_lambda_.32} parent=47 // pred_check_branch
        %617 = sbr.rel (%p615) target = $region60
      $region59: #{_lambda_.32} parent=47 // pred_region
        _
      $region60: #{_lambda_.32} parent=47 // pred_fallthru
        _
    $region48: #{_lambda_.32} parent=5 // pred_fallthru
      _
    %p618 = scmp.le.s32.totalorder 2, %s16
    // Predicated region
    $region61: #{_lambda_.32} parent=5 // pred_check
      %p619 = pneg %p618
    $region62: #{_lambda_.32} parent=5 // pred_check_branch
      %621 = sbr.rel (%p619) target = $region64
    $region63: #{_lambda_.32} parent=5 // pred_region
      %s622 = ssub.s32 %s16, 2
      // Predicated region
      $region65: #{_lambda_.32} parent=63 // pred_check
        %p623 = pneg %p197
      $region66: #{_lambda_.32} parent=63 // pred_check_branch
        %625 = sbr.rel (%p623) target = $region68
      $region67: #{_lambda_.32} parent=63 // pred_region
        %p626 = scmp.lt.s32.totalorder %s22, 1
        %s627 = scalar_select %p626, %s22, 1
        %s628 = smul.addr %s627, 8
        %s629 = scalar_lea.vmem %s7, %s628
      $region68: #{_lambda_.32} parent=63 // pred_fallthru
        _
      // Predicated region
      $region69: #{_lambda_.32} parent=63 // pred_check
        %p630 = pneg %p223
      $region70: #{_lambda_.32} parent=63 // pred_check_branch
        %632 = sbr.rel (%p630) target = $region72
      $region71: #{_lambda_.32} parent=63 // pred_region
        %p633 = scmp.lt.s32.totalorder %s22, 1
        %s634 = scalar_select %p633, %s22, 1
        %s635 = smul.addr %s634, 8
        %s636 = scalar_lea.vmem %s8, %s635
      $region72: #{_lambda_.32} parent=63 // pred_fallthru
        _
      // Predicated region
      $region73: #{_lambda_.32} parent=63 // pred_check
        %p637 = pneg %p249
      $region74: #{_lambda_.32} parent=63 // pred_check_branch
        %639 = sbr.rel (%p637) target = $region76
      $region75: #{_lambda_.32} parent=63 // pred_region
        %p640 = scmp.lt.s32.totalorder %s22, 1
        %s641 = scalar_select %p640, %s22, 1
        %s642 = smul.addr %s641, 8
        %s643 = scalar_lea.vmem %s9, %s642
      $region76: #{_lambda_.32} parent=63 // pred_fallthru
        _
    $region64: #{_lambda_.32} parent=5 // pred_fallthru
      _
  $region6: #{_lambda_.32} parent=0 // loop_footer
    %s20 = sadd.s32 1, %s16
  $region7: #{_lambda_.32} parent=0 // loop_footer_branch
    %15 = sbr.rel target = $region3
  $region8: #{_lambda_.32} parent=0 // loop_exit
    _

// kernel: _lambda_.31
$region0: #{_lambda_.31}
  #allocation0 [shape = 'u32[]', space=smem, size = 0x4, offset = 0x4, fixed_abs, tag = 'smem constant byte address 0x4 - core index']
  #allocation1 [shape = 'u32[144,128]{1,0:T(1,128)}', space=vmem, size = 0x12000, scoped, tag = 'internal scratch']
  %s0 = inlined_call_operand.vmem [shape: f32[16,64], index: 0, kind: input, shape index: {}]
  %s1 = inlined_call_operand.vmem [shape: bf16[64,128], index: 1, kind: input, shape index: {}]
  %s2 = inlined_call_operand.vmem [shape: f32[1,128], index: 2, kind: input, shape index: {}]
  %s3 = inlined_call_operand.vmem [shape: bf16[128,64], index: 3, kind: input, shape index: {}]
  %s4 = inlined_call_operand.vmem [shape: f32[1,64], index: 4, kind: input, shape index: {}]
  %s5 = inlined_call_operand.vmem [shape: f32[1,64], index: 5, kind: input, shape index: {}]
  %s6 = inlined_call_operand.vmem [shape: f32[1,64], index: 6, kind: input, shape index: {}]
  %s7 = inlined_call_operand.vmem [shape: f32[16,64], index: 7, kind: output, shape index: {}]
  %s8 = sld [smem:[#allocation0]]
  $region61: #{_lambda_.31} parent=0
    _
  %s10 = ssub.s32 1, %s8
  %s11 = scalar_select 0, %s10, %s8
  loop: start=0, step=1, limit=4
  $region2: #{_lambda_.31} parent=0 // loop_pre_header
    _
  $region3: #{_lambda_.31} parent=0 // loop_header
    %s13 = sphi 0, %s17
    %p14 = scmp.ge.s32.totalorder %s13, 4
    %s23 = sphi 0, %s25
    %s26 = sphi 0, %s23
    %s27 = sphi 0, %s26
    %s43 = sphi 0, %s27
    %s47 = sphi 0, %s47
    %s49 = sphi 0, %s47
    %s50 = sphi 0, %s49
    %s64 = sphi 0, %s50
    %s68 = sphi 0, %s68
    %s70 = sphi 0, %s68
    %s71 = sphi 0, %s70
    %s85 = sphi 0, %s71
    %s89 = sphi 0, %s89
    %s91 = sphi 0, %s89
    %s92 = sphi 0, %s91
    %s106 = sphi 0, %s92
    %s110 = sphi 0, %s110
    %s112 = sphi 0, %s110
    %s113 = sphi 0, %s112
    %s127 = sphi 0, %s113
    %s131 = sphi 0, %s131
    %s133 = sphi 0, %s131
    %s134 = sphi 0, %s133
    %s148 = sphi 0, %s134
    %s152 = sphi 0, %s152
    %s154 = sphi 0, %s152
    %s155 = sphi 0, %s154
    %s169 = sphi 0, %s155
    %s175 = sphi 0, %s177
    %s178 = sphi 0, %s175
    %s179 = sphi 0, %s178
    %s195 = sphi 0, %s179
  $region4: #{_lambda_.31} parent=0 // loop_header_branch
    %16 = sbr.rel (%p14) target = $region8
  $region5: #{_lambda_.31} parent=0 // loop_body
    %s18 = ssub.s32 %s13, 1
    %s19 = ssub.s32 %s13, 2
    %s20 = sadd.s32 %s13, 1
    %s21 = ssub.s32 %s13, %s20
    %p22 = scmp.eq.s32.totalorder %s21, 0
    %s24 = sadd.s32 %s23, 1
    %s25 = scalar_select %p22, %s23, %s24
    %p28 = pneg %p22
    %p29 = scmp.eq.s32.totalorder %s13, 1
    %p30 = por %p28, %p29
    %p31 = scmp.ne.s32.totalorder %s23, %s26
    %p32 = scmp.eq.s32.totalorder %s13, 0
    %p33 = por %p31, %p32
    %p34 = scmp.ne.s32.totalorder %s23, %s26
    %p35 = scmp.eq.s32.totalorder %s18, 1
    %p36 = por %p34, %p35
    %p37 = scmp.ne.s32.totalorder %s26, %s27
    %p38 = scmp.eq.s32.totalorder %s18, 0
    %p39 = por %p37, %p38
    %p40 = scmp.ne.s32.totalorder %s26, %s27
    %p41 = scmp.eq.s32.totalorder %s19, 1
    %p42 = por %p40, %p41
    %p44 = scmp.ne.s32.totalorder %s27, %s43
    %p45 = scmp.eq.s32.totalorder %s19, 0
    %p46 = por %p44, %p45
    %s48 = sadd.s32 %s47, 1
    %p51 = scmp.eq.s32.totalorder %s13, 1
    %p52 = scmp.ne.s32.totalorder %s47, %s49
    %p53 = scmp.eq.s32.totalorder %s13, 0
    %p54 = por %p52, %p53
    %p55 = scmp.ne.s32.totalorder %s47, %s49
    %p56 = scmp.eq.s32.totalorder %s18, 1
    %p57 = por %p55, %p56
    %p58 = scmp.ne.s32.totalorder %s49, %s50
    %p59 = scmp.eq.s32.totalorder %s18, 0
    %p60 = por %p58, %p59
    %p61 = scmp.ne.s32.totalorder %s49, %s50
    %p62 = scmp.eq.s32.totalorder %s19, 1
    %p63 = por %p61, %p62
    %p65 = scmp.ne.s32.totalorder %s50, %s64
    %p66 = scmp.eq.s32.totalorder %s19, 0
    %p67 = por %p65, %p66
    %s69 = sadd.s32 %s68, 1
    %p72 = scmp.eq.s32.totalorder %s13, 1
    %p73 = scmp.ne.s32.totalorder %s68, %s70
    %p74 = scmp.eq.s32.totalorder %s13, 0
    %p75 = por %p73, %p74
    %p76 = scmp.ne.s32.totalorder %s68, %s70
    %p77 = scmp.eq.s32.totalorder %s18, 1
    %p78 = por %p76, %p77
    %p79 = scmp.ne.s32.totalorder %s70, %s71
    %p80 = scmp.eq.s32.totalorder %s18, 0
    %p81 = por %p79, %p80
    %p82 = scmp.ne.s32.totalorder %s70, %s71
    %p83 = scmp.eq.s32.totalorder %s19, 1
    %p84 = por %p82, %p83
    %p86 = scmp.ne.s32.totalorder %s71, %s85
    %p87 = scmp.eq.s32.totalorder %s19, 0
    %p88 = por %p86, %p87
    %s90 = sadd.s32 %s89, 1
    %p93 = scmp.eq.s32.totalorder %s13, 1
    %p94 = scmp.ne.s32.totalorder %s89, %s91
    %p95 = scmp.eq.s32.totalorder %s13, 0
    %p96 = por %p94, %p95
    %p97 = scmp.ne.s32.totalorder %s89, %s91
    %p98 = scmp.eq.s32.totalorder %s18, 1
    %p99 = por %p97, %p98
    %p100 = scmp.ne.s32.totalorder %s91, %s92
    %p101 = scmp.eq.s32.totalorder %s18, 0
    %p102 = por %p100, %p101
    %p103 = scmp.ne.s32.totalorder %s91, %s92
    %p104 = scmp.eq.s32.totalorder %s19, 1
    %p105 = por %p103, %p104
    %p107 = scmp.ne.s32.totalorder %s92, %s106
    %p108 = scmp.eq.s32.totalorder %s19, 0
    %p109 = por %p107, %p108
    %s111 = sadd.s32 %s110, 1
    %p114 = scmp.eq.s32.totalorder %s13, 1
    %p115 = scmp.ne.s32.totalorder %s110, %s112
    %p116 = scmp.eq.s32.totalorder %s13, 0
    %p117 = por %p115, %p116
    %p118 = scmp.ne.s32.totalorder %s110, %s112
    %p119 = scmp.eq.s32.totalorder %s18, 1
    %p120 = por %p118, %p119
    %p121 = scmp.ne.s32.totalorder %s112, %s113
    %p122 = scmp.eq.s32.totalorder %s18, 0
    %p123 = por %p121, %p122
    %p124 = scmp.ne.s32.totalorder %s112, %s113
    %p125 = scmp.eq.s32.totalorder %s19, 1
    %p126 = por %p124, %p125
    %p128 = scmp.ne.s32.totalorder %s113, %s127
    %p129 = scmp.eq.s32.totalorder %s19, 0
    %p130 = por %p128, %p129
    %s132 = sadd.s32 %s131, 1
    %p135 = scmp.eq.s32.totalorder %s13, 1
    %p136 = scmp.ne.s32.totalorder %s131, %s133
    %p137 = scmp.eq.s32.totalorder %s13, 0
    %p138 = por %p136, %p137
    %p139 = scmp.ne.s32.totalorder %s131, %s133
    %p140 = scmp.eq.s32.totalorder %s18, 1
    %p141 = por %p139, %p140
    %p142 = scmp.ne.s32.totalorder %s133, %s134
    %p143 = scmp.eq.s32.totalorder %s18, 0
    %p144 = por %p142, %p143
    %p145 = scmp.ne.s32.totalorder %s133, %s134
    %p146 = scmp.eq.s32.totalorder %s19, 1
    %p147 = por %p145, %p146
    %p149 = scmp.ne.s32.totalorder %s134, %s148
    %p150 = scmp.eq.s32.totalorder %s19, 0
    %p151 = por %p149, %p150
    %s153 = sadd.s32 %s152, 1
    %p156 = scmp.eq.s32.totalorder %s13, 1
    %p157 = scmp.ne.s32.totalorder %s152, %s154
    %p158 = scmp.eq.s32.totalorder %s13, 0
    %p159 = por %p157, %p158
    %p160 = scmp.ne.s32.totalorder %s152, %s154
    %p161 = scmp.eq.s32.totalorder %s18, 1
    %p162 = por %p160, %p161
    %p163 = scmp.ne.s32.totalorder %s154, %s155
    %p164 = scmp.eq.s32.totalorder %s18, 0
    %p165 = por %p163, %p164
    %p166 = scmp.ne.s32.totalorder %s154, %s155
    %p167 = scmp.eq.s32.totalorder %s19, 1
    %p168 = por %p166, %p167
    %p170 = scmp.ne.s32.totalorder %s155, %s169
    %p171 = scmp.eq.s32.totalorder %s19, 0
    %p172 = por %p170, %p171
    %s173 = ssub.s32 %s13, %s20
    %p174 = scmp.eq.s32.totalorder %s173, 0
    %s176 = sadd.s32 %s175, 1
    %s177 = scalar_select %p174, %s175, %s176
    %p180 = pneg %p174
    %p181 = scmp.eq.s32.totalorder %s13, 1
    %p182 = por %p180, %p181
    %p183 = scmp.ne.s32.totalorder %s175, %s178
    %p184 = scmp.eq.s32.totalorder %s13, 0
    %p185 = por %p183, %p184
    %p186 = scmp.ne.s32.totalorder %s175, %s178
    %p187 = scmp.eq.s32.totalorder %s18, 1
    %p188 = por %p186, %p187
    %p189 = scmp.ne.s32.totalorder %s178, %s179
    %p190 = scmp.eq.s32.totalorder %s18, 0
    %p191 = por %p189, %p190
    %p192 = scmp.ne.s32.totalorder %s178, %s179
    %p193 = scmp.eq.s32.totalorder %s19, 1
    %p194 = por %p192, %p193
    %p196 = scmp.ne.s32.totalorder %s179, %s195
    %p197 = scmp.eq.s32.totalorder %s19, 0
    %p198 = por %p196, %p197
    %p199 = scmp.le.s32.totalorder 1, %s13
    %p200 = scmp.lt.s32.totalorder %s13, 3
    %p201 = pnand %p199, %p200
    %p202 = pneg %p201
    // Predicated region
    $region9: #{_lambda_.31} parent=5 // pred_check
      _
    $region10: #{_lambda_.31} parent=5 // pred_check_branch
      %204 = sbr.rel (%p201) target = $region12
    $region11: #{_lambda_.31} parent=5 // pred_region
      %s205 = ssub.s32 %s13, 1
      // Predicated region
      $region13: #{_lambda_.31} parent=11 // pred_check
        %p206 = pneg %p60
      $region14: #{_lambda_.31} parent=11 // pred_check_branch
        %208 = sbr.rel (%p206) target = $region16
      $region15: #{_lambda_.31} parent=11 // pred_region
        _
      $region16: #{_lambda_.31} parent=11 // pred_fallthru
        _
      // Predicated region
      $region17: #{_lambda_.31} parent=11 // pred_check
        %p209 = pneg %p81
      $region18: #{_lambda_.31} parent=11 // pred_check_branch
        %211 = sbr.rel (%p209) target = $region20
      $region19: #{_lambda_.31} parent=11 // pred_region
        _
      $region20: #{_lambda_.31} parent=11 // pred_fallthru
        _
      // Predicated region
      $region21: #{_lambda_.31} parent=11 // pred_check
        %p212 = pneg %p102
      $region22: #{_lambda_.31} parent=11 // pred_check_branch
        %214 = sbr.rel (%p212) target = $region24
      $region23: #{_lambda_.31} parent=11 // pred_region
        _
      $region24: #{_lambda_.31} parent=11 // pred_fallthru
        _
      // Predicated region
      $region25: #{_lambda_.31} parent=11 // pred_check
        %p215 = pneg %p123
      $region26: #{_lambda_.31} parent=11 // pred_check_branch
        %217 = sbr.rel (%p215) target = $region28
      $region27: #{_lambda_.31} parent=11 // pred_region
        _
      $region28: #{_lambda_.31} parent=11 // pred_fallthru
        _
      // Predicated region
      $region29: #{_lambda_.31} parent=11 // pred_check
        %p218 = pneg %p144
      $region30: #{_lambda_.31} parent=11 // pred_check_branch
        %220 = sbr.rel (%p218) target = $region32
      $region31: #{_lambda_.31} parent=11 // pred_region
        _
      $region32: #{_lambda_.31} parent=11 // pred_fallthru
        _
      // Predicated region
      $region33: #{_lambda_.31} parent=11 // pred_check
        %p221 = pneg %p165
      $region34: #{_lambda_.31} parent=11 // pred_check_branch
        %223 = sbr.rel (%p221) target = $region36
      $region35: #{_lambda_.31} parent=11 // pred_region
        _
      $region36: #{_lambda_.31} parent=11 // pred_fallthru
        _
    $region12: #{_lambda_.31} parent=5 // pred_fallthru
      _
    %p224 = scmp.lt.s32.totalorder %s13, 2
    // Predicated region
    $region37: #{_lambda_.31} parent=5 // pred_check
      %p225 = pneg %p224
    $region38: #{_lambda_.31} parent=5 // pred_check_branch
      %227 = sbr.rel (%p225) target = $region40
    $region39: #{_lambda_.31} parent=5 // pred_region
      // Predicated region
      $region41: #{_lambda_.31} parent=39 // pred_check
        %p228 = pneg %p33
      $region42: #{_lambda_.31} parent=39 // pred_check_branch
        %230 = sbr.rel (%p228) target = $region44
      $region43: #{_lambda_.31} parent=39 // pred_region
        %p231 = scmp.lt.s32.totalorder %s13, 1
        %s232 = scalar_select %p231, %s13, 1
        %s233 = smul.addr %s232, 8
        %s234 = scalar_lea.vmem %s0, %s233
      $region44: #{_lambda_.31} parent=39 // pred_fallthru
        _
    $region40: #{_lambda_.31} parent=5 // pred_fallthru
      _
    %p235 = scmp.le.s32.totalorder 1, %s13
    %p236 = scmp.lt.s32.totalorder %s13, 3
    %p237 = pnand %p235, %p236
    %p238 = pneg %p237
    // Predicated region
    $region45: #{_lambda_.31} parent=5 // pred_check
      _
    $region46: #{_lambda_.31} parent=5 // pred_check_branch
      %240 = sbr.rel (%p237) target = $region48
    $region47: #{_lambda_.31} parent=5 // pred_region
      %s241 = ssub.s32 %s13, 1
      %p242 = scmp.lt.s32.totalorder %s18, 1
      %s243 = scalar_select %p242, %s18, 1
      %s244 = smul.addr %s243, 8
      %s245 = scalar_lea.vmem %s0, %s244
      %p246 = pneg %p39
      %p247 = pneg %p36
      %p248 = pneg %p60
      %p249 = pneg %p57
      %p250 = pneg %p81
      %p251 = pneg %p78
      %p252 = pneg %p102
      %p253 = pneg %p99
      %p254 = pneg %p123
      %p255 = pneg %p120
      %p256 = pneg %p144
      %p257 = pneg %p141
      %p258 = pneg %p165
      %p259 = pneg %p162
      %p260 = pneg %p191
      %p261 = pneg %p188
      %p262 = scmp.lt.s32.totalorder %s18, 1
      %s263 = scalar_select %p262, %s18, 1
      %s264 = smul.addr %s263, 8
      %s265 = scalar_lea.vmem %s7, %s264
      %p266 = scmp.lt.s32.totalorder %s18, 1
      %s267 = scalar_select %p266, %s18, 1
      %s268 = smul.addr %s267, 8
      %s269 = scalar_lea.vmem %s0, %s268
      %p270 = scmp.lt.s32.totalorder %s18, 1
      %s271 = scalar_select %p270, %s18, 1
      %s272 = smul.addr %s271, 8
      %s273 = scalar_lea.vmem %s7, %s272
      %v275 = vld [vmem:[%s269] sm:$0xff]
      %v276 = vpack.c.bf16 %v275, %v275
      %v277 = vld [vmem:[%s1] sm:$0xf]
      %v278 = vld [vmem:[%s1 + $0x4] sm:$0xf]
      %v279 = vld [vmem:[%s1 + $0x8] sm:$0xf]
      %v280 = vld [vmem:[%s1 + $0xc] sm:$0xf]
      %v281 = vld [vmem:[%s1 + $0x10] sm:$0xf]
      %v282 = vld [vmem:[%s1 + $0x14] sm:$0xf]
      %v283 = vld [vmem:[%s1 + $0x18] sm:$0xf]
      %v284 = vld [vmem:[%s1 + $0x1c] sm:$0xf]
      %v285 = vld [vmem:[%s2] sm:$0x1]
      %v287 = vlaneseq
      %v288 = vshrl.u32 %v287, 7
      %v289 = vsub.s32 0, %v288
      %v290 = vrot.slane %v285, %v289
      %v300 = vunpack.c.l.b16 %v277
      %v301 = vunpack.c.l.b16 %v278
      %v302 = vunpack.c.l.b16 %v279
      %v303 = vunpack.c.l.b16 %v280
      %v304 = vunpack.c.l.b16 %v281
      %v305 = vunpack.c.l.b16 %v282
      %v306 = vunpack.c.l.b16 %v283
      %v307 = vunpack.c.l.b16 %v284
      %v308 = vpack.c.b16 %v301, %v300
      %v309 = vpack.c.b16 %v303, %v302
      %v310 = vpack.c.b16 %v305, %v304
      %v311 = vpack.c.b16 %v307, %v306
      %vm316 = vcmask 523264
      %v318 = vsel %vm316, %v276, 0
      %320 = vmatprep.subr.bf16.mxu0 0
      %321 = vmatpush1.bf16.msra.mxu0 %v308
      %322 = vmatprep.subr.bf16.mxu0 0
      %323 = vmatpush1.bf16.msra.mxu0 %v309
      %324 = vmatprep.subr.bf16.mxu0 0
      %325 = vmatpush1.bf16.msra.mxu0 %v310
      %326 = vmatprep.subr.bf16.mxu0 0
      %327 = vmatpush1.bf16.msra.mxu0 %v311
      %328 = vmatprep.subr.bf16.mxu0 0
      %329 = vmatpush1.bf16.msra.mxu0 0
      %330 = vmatprep.subr.bf16.mxu0 0
      %331 = vmatpush1.bf16.msra.mxu0 0
      %332 = vmatprep.subr.bf16.mxu0 0
      %333 = vmatpush1.bf16.msra.mxu0 0
      %334 = vmatprep.subr.bf16.mxu0 0
      %335 = vmatpush1.bf16.msra.mxu0 0
      %336 = vmatprep.subr.bf16.mxu0 0
      %337 = vmatpush1.bf16.msra.mxu0 0
      %338 = vmatprep.subr.bf16.mxu0 0
      %339 = vmatpush1.bf16.msra.mxu0 0
      %340 = vmatprep.subr.bf16.mxu0 0
      %341 = vmatpush1.bf16.msra.mxu0 0
      %342 = vmatprep.subr.bf16.mxu0 0
      %343 = vmatpush1.bf16.msra.mxu0 0
      %344 = vmatprep.subr.bf16.mxu0 0
      %345 = vmatpush1.bf16.msra.mxu0 0
      %346 = vmatprep.subr.bf16.mxu0 0
      %347 = vmatpush1.bf16.msra.mxu0 0
      %348 = vmatprep.subr.bf16.mxu0 0
      %349 = vmatpush1.bf16.msra.mxu0 0
      %350 = vmatprep.subr.bf16.mxu0 0
      %351 = vmatpush1.bf16.msra.mxu0 0
      %352 = vmatprep.mubr.bf16.mxu0 0
      %353 = vmatmul.mubr.bf16.gmra.mrb[0].mxu0 %v318
      %v354 = vpop.f32.mrb[0].mxu0
      %v355 = vadd.f32 %v290, %v354
      %v356 = vpop.f32.mrb[0].mxu0
      %v357 = vpop.f32.mrb[0].mxu0
      %v358 = vpop.f32.mrb[0].mxu0
      %359 = vdwg.mxu0
      %v360 = vmul.f32 %v355, 0.5
      %v361 = vmul.f32 %v355, 0.70710677
      %v362 = vand.u32 2147483647, %v361
      %v363 = vmul.f32 %v362, 0.3275911
      %v364 = vadd.f32 %v363, 1.0
      %v365 = vrcp.pop %v364
      %v366 = vmul.f32 1.0, %v365
      %v367 = vmul.f32 %v366, 1.0614054
      %v368 = vadd.f32 %v367, -1.4531521
      %v369 = vmul.f32 %v368, %v366
      %v370 = vadd.f32 %v369, 1.4214138
      %v371 = vmul.f32 %v370, %v366
      %v372 = vadd.f32 %v371, -0.28449672
      %v373 = vmul.f32 %v372, %v366
      %v374 = vadd.f32 %v373, 0.2548296
      %v375 = vmul.f32 %v374, %v366
      %v376 = vsub.f32 0.0, %v362
      %v377 = vmul.f32 %v376, %v362
      %v378 = vmul.f32 %v377, 1.442695
      %v379 = vpow.pop %v378
      %v380 = vmul.f32 %v375, %v379
      %v381 = vsub.f32 1.0, %v380
      %vm382 = vcmp.ge.f32.partialorder %v361, 0.0
      %v383 = vsub.f32 0.0, %v381
      %v384 = vsel %vm382, %v381, %v383
      %v385 = vadd.f32 %v384, 1.0
      %v386 = vmul.f32 %v360, %v385
      %v387 = vpack.c.bf16 %v386, %v386
      %v388 = vld [vmem:[%s3] sm:$0xf]
      %v389 = vld [vmem:[%s3 + $0x4] sm:$0xf]
      %v390 = vld [vmem:[%s3 + $0x8] sm:$0xf]
      %v391 = vld [vmem:[%s3 + $0xc] sm:$0xf]
      %v392 = vld [vmem:[%s3 + $0x10] sm:$0xf]
      %v393 = vld [vmem:[%s3 + $0x14] sm:$0xf]
      %v394 = vld [vmem:[%s3 + $0x18] sm:$0xf]
      %v395 = vld [vmem:[%s3 + $0x1c] sm:$0xf]
      %v396 = vld [vmem:[%s3 + $0x20] sm:$0xf]
      %v397 = vld [vmem:[%s3 + $0x24] sm:$0xf]
      %v398 = vld [vmem:[%s3 + $0x28] sm:$0xf]
      %v399 = vld [vmem:[%s3 + $0x2c] sm:$0xf]
      %v400 = vld [vmem:[%s3 + $0x30] sm:$0xf]
      %v401 = vld [vmem:[%s3 + $0x34] sm:$0xf]
      %v402 = vld [vmem:[%s3 + $0x38] sm:$0xf]
      %v403 = vld [vmem:[%s3 + $0x3c] sm:$0xf]
      %v404 = vld [vmem:[%s4] sm:$0x1]
      %v406 = vlaneseq
      %v407 = vshrl.u32 %v406, 7
      %v408 = vsub.s32 0, %v407
      %v409 = vrot.slane %v404, %v408
      %v427 = vunpack.c.l.b16 %v388
      %v428 = vunpack.c.l.b16 %v389
      %v429 = vunpack.c.l.b16 %v390
      %v430 = vunpack.c.l.b16 %v391
      %v431 = vunpack.c.l.b16 %v392
      %v432 = vunpack.c.l.b16 %v393
      %v433 = vunpack.c.l.b16 %v394
      %v434 = vunpack.c.l.b16 %v395
      %v435 = vunpack.c.l.b16 %v396
      %v436 = vunpack.c.l.b16 %v397
      %v437 = vunpack.c.l.b16 %v398
      %v438 = vunpack.c.l.b16 %v399
      %v439 = vunpack.c.l.b16 %v400
      %v440 = vunpack.c.l.b16 %v401
      %v441 = vunpack.c.l.b16 %v402
      %v442 = vunpack.c.l.b16 %v403
      %v443 = vpack.c.b16 %v428, %v427
      %v444 = vpack.c.b16 %v430, %v429
      %v445 = vpack.c.b16 %v432, %v431
      %v446 = vpack.c.b16 %v434, %v433
      %v447 = vpack.c.b16 %v436, %v435
      %v448 = vpack.c.b16 %v438, %v437
      %v449 = vpack.c.b16 %v440, %v439
      %v450 = vpack.c.b16 %v442, %v441
      %459 = vmatprep.subr.bf16.mxu0 0
      %460 = vmatpush1.bf16.msra.mxu0 %v443
      %461 = vmatprep.subr.bf16.mxu0 0
      %462 = vmatpush1.bf16.msra.mxu0 %v444
      %463 = vmatprep.subr.bf16.mxu0 0
      %464 = vmatpush1.bf16.msra.mxu0 %v445
      %465 = vmatprep.subr.bf16.mxu0 0
      %466 = vmatpush1.bf16.msra.mxu0 %v446
      %467 = vmatprep.subr.bf16.mxu0 0
      %468 = vmatpush1.bf16.msra.mxu0 %v447
      %469 = vmatprep.subr.bf16.mxu0 0
      %470 = vmatpush1.bf16.msra.mxu0 %v448
      %471 = vmatprep.subr.bf16.mxu0 0
      %472 = vmatpush1.bf16.msra.mxu0 %v449
      %473 = vmatprep.subr.bf16.mxu0 0
      %474 = vmatpush1.bf16.msra.mxu0 %v450
      %475 = vmatprep.subr.bf16.mxu0 0
      %476 = vmatpush1.bf16.msra.mxu0 0
      %477 = vmatprep.subr.bf16.mxu0 0
      %478 = vmatpush1.bf16.msra.mxu0 0
      %479 = vmatprep.subr.bf16.mxu0 0
      %480 = vmatpush1.bf16.msra.mxu0 0
      %481 = vmatprep.subr.bf16.mxu0 0
      %482 = vmatpush1.bf16.msra.mxu0 0
      %483 = vmatprep.subr.bf16.mxu0 0
      %484 = vmatpush1.bf16.msra.mxu0 0
      %485 = vmatprep.subr.bf16.mxu0 0
      %486 = vmatpush1.bf16.msra.mxu0 0
      %487 = vmatprep.subr.bf16.mxu0 0
      %488 = vmatpush1.bf16.msra.mxu0 0
      %489 = vmatprep.subr.bf16.mxu0 0
      %490 = vmatpush1.bf16.msra.mxu0 0
      %491 = vmatprep.mubr.bf16.mxu0 0
      %492 = vmatmul.mubr.bf16.gmra.mrb[0].mxu0 %v387
      %v493 = vpop.f32.mrb[0].mxu0
      %v494 = vadd.f32 %v409, %v493
      %v495 = vpop.f32.mrb[0].mxu0
      %v496 = vpop.f32.mrb[0].mxu0
      %v497 = vpop.f32.mrb[0].mxu0
      %498 = vdwg.mxu0
      %v499 = vadd.f32 %v494, %v275
      %v500 = vld [vmem:[%s5] sm:$0x1]
      %v501 = vld [vmem:[%s6] sm:$0x1]
      %v502 = vsel %vm316, %v499, 0.0
      %503 = vadd.xlane.f32.xlu0 %v502
      %v504 = vpop.xlane.xlu0 %503
      %v505 = vrcp.pop 64.0
      %v506 = vmul.f32 %v504, %v505
      %v507 = vsub.f32 %v499, %v506
      %v508 = vmul.f32 %v507, %v507
      %v509 = vsel %vm316, %v508, 0.0
      %510 = vadd.xlane.f32.xlu0 %v509
      %v511 = vpop.xlane.xlu0 %510
      %v512 = vmul.f32 %v511, %v505
      %v513 = vadd.f32 %v512, 1e-12
      %v514 = vrsqrt.pop %v513
      %v515 = vmul.f32 %v507, %v514
      %v517 = vlaneseq
      %v518 = vshrl.u32 %v517, 7
      %v519 = vsub.s32 0, %v518
      %v520 = vrot.slane %v500, %v519
      %v522 = vmul.f32 %v515, %v520
      %v524 = vlaneseq
      %v525 = vshrl.u32 %v524, 7
      %v526 = vsub.s32 0, %v525
      %v527 = vrot.slane %v501, %v526
      %v529 = vadd.f32 %v522, %v527
      %530 = vst.msk [vmem:[%s273] sm:$0xff] %vm316, %v529
      %p531 = scmp.lt.s32.totalorder %s18, 1
      %s532 = scalar_select %p531, %s18, 1
      %s533 = smul.addr %s532, 8
      %s534 = scalar_lea.vmem %s7, %s533
      // Predicated region
      $region49: #{_lambda_.31} parent=47 // pred_check
        %p535 = pneg %p188
      $region50: #{_lambda_.31} parent=47 // pred_check_branch
        %537 = sbr.rel (%p535) target = $region52
      $region51: #{_lambda_.31} parent=47 // pred_region
        _
      $region52: #{_lambda_.31} parent=47 // pred_fallthru
        _
    $region48: #{_lambda_.31} parent=5 // pred_fallthru
      _
    %p538 = scmp.le.s32.totalorder 2, %s13
    // Predicated region
    $region53: #{_lambda_.31} parent=5 // pred_check
      %p539 = pneg %p538
    $region54: #{_lambda_.31} parent=5 // pred_check_branch
      %541 = sbr.rel (%p539) target = $region56
    $region55: #{_lambda_.31} parent=5 // pred_region
      %s542 = ssub.s32 %s13, 2
      // Predicated region
      $region57: #{_lambda_.31} parent=55 // pred_check
        %p543 = pneg %p194
      $region58: #{_lambda_.31} parent=55 // pred_check_branch
        %545 = sbr.rel (%p543) target = $region60
      $region59: #{_lambda_.31} parent=55 // pred_region
        %p546 = scmp.lt.s32.totalorder %s19, 1
        %s547 = scalar_select %p546, %s19, 1
        %s548 = smul.addr %s547, 8
        %s549 = scalar_lea.vmem %s7, %s548
      $region60: #{_lambda_.31} parent=55 // pred_fallthru
        _
    $region56: #{_lambda_.31} parent=5 // pred_fallthru
      _
  $region6: #{_lambda_.31} parent=0 // loop_footer
    %s17 = sadd.s32 1, %s13
  $region7: #{_lambda_.31} parent=0 // loop_footer_branch
    %12 = sbr.rel target = $region3
  $region8: #{_lambda_.31} parent=0 // loop_exit
    _

// kernel: _lambda_.36
$region0: #{_lambda_.36}
  #allocation0 [shape = 'u32[]', space=smem, size = 0x4, offset = 0x4, fixed_abs, tag = 'smem constant byte address 0x4 - core index']
  #allocation1 [shape = 'u32[144,128]{1,0:T(1,128)}', space=vmem, size = 0x12000, scoped, tag = 'internal scratch']
  %s0 = inlined_call_operand.vmem [shape: f32[16,32], index: 0, kind: input, shape index: {}]
  %s1 = inlined_call_operand.vmem [shape: f32[16,64], index: 1, kind: input, shape index: {}]
  %s2 = inlined_call_operand.vmem [shape: bf16[32,64], index: 2, kind: input, shape index: {}]
  %s3 = inlined_call_operand.vmem [shape: f32[1,64], index: 3, kind: input, shape index: {}]
  %s4 = inlined_call_operand.vmem [shape: f32[1,64], index: 4, kind: input, shape index: {}]
  %s5 = inlined_call_operand.vmem [shape: f32[1,64], index: 5, kind: input, shape index: {}]
  %s6 = inlined_call_operand.vmem [shape: f32[16,64], index: 6, kind: output, shape index: {}]
  %s7 = sld [smem:[#allocation0]]
  $region57: #{_lambda_.36} parent=0
    _
  %s9 = ssub.s32 1, %s7
  %s10 = scalar_select 0, %s9, %s7
  loop: start=0, step=1, limit=4
  $region2: #{_lambda_.36} parent=0 // loop_pre_header
    _
  $region3: #{_lambda_.36} parent=0 // loop_header
    %s12 = sphi 0, %s16
    %p13 = scmp.ge.s32.totalorder %s12, 4
    %s22 = sphi 0, %s24
    %s25 = sphi 0, %s22
    %s26 = sphi 0, %s25
    %s42 = sphi 0, %s26
    %s48 = sphi 0, %s50
    %s51 = sphi 0, %s48
    %s52 = sphi 0, %s51
    %s68 = sphi 0, %s52
    %s72 = sphi 0, %s72
    %s74 = sphi 0, %s72
    %s75 = sphi 0, %s74
    %s89 = sphi 0, %s75
    %s93 = sphi 0, %s93
    %s95 = sphi 0, %s93
    %s96 = sphi 0, %s95
    %s110 = sphi 0, %s96
    %s114 = sphi 0, %s114
    %s116 = sphi 0, %s114
    %s117 = sphi 0, %s116
    %s131 = sphi 0, %s117
    %s135 = sphi 0, %s135
    %s137 = sphi 0, %s135
    %s138 = sphi 0, %s137
    %s152 = sphi 0, %s138
    %s158 = sphi 0, %s160
    %s161 = sphi 0, %s158
    %s162 = sphi 0, %s161
    %s178 = sphi 0, %s162
  $region4: #{_lambda_.36} parent=0 // loop_header_branch
    %15 = sbr.rel (%p13) target = $region8
  $region5: #{_lambda_.36} parent=0 // loop_body
    %s17 = ssub.s32 %s12, 1
    %s18 = ssub.s32 %s12, 2
    %s19 = sadd.s32 %s12, 1
    %s20 = ssub.s32 %s12, %s19
    %p21 = scmp.eq.s32.totalorder %s20, 0
    %s23 = sadd.s32 %s22, 1
    %s24 = scalar_select %p21, %s22, %s23
    %p27 = pneg %p21
    %p28 = scmp.eq.s32.totalorder %s12, 1
    %p29 = por %p27, %p28
    %p30 = scmp.ne.s32.totalorder %s22, %s25
    %p31 = scmp.eq.s32.totalorder %s12, 0
    %p32 = por %p30, %p31
    %p33 = scmp.ne.s32.totalorder %s22, %s25
    %p34 = scmp.eq.s32.totalorder %s17, 1
    %p35 = por %p33, %p34
    %p36 = scmp.ne.s32.totalorder %s25, %s26
    %p37 = scmp.eq.s32.totalorder %s17, 0
    %p38 = por %p36, %p37
    %p39 = scmp.ne.s32.totalorder %s25, %s26
    %p40 = scmp.eq.s32.totalorder %s18, 1
    %p41 = por %p39, %p40
    %p43 = scmp.ne.s32.totalorder %s26, %s42
    %p44 = scmp.eq.s32.totalorder %s18, 0
    %p45 = por %p43, %p44
    %s46 = ssub.s32 %s12, %s19
    %p47 = scmp.eq.s32.totalorder %s46, 0
    %s49 = sadd.s32 %s48, 1
    %s50 = scalar_select %p47, %s48, %s49
    %p53 = pneg %p47
    %p54 = scmp.eq.s32.totalorder %s12, 1
    %p55 = por %p53, %p54
    %p56 = scmp.ne.s32.totalorder %s48, %s51
    %p57 = scmp.eq.s32.totalorder %s12, 0
    %p58 = por %p56, %p57
    %p59 = scmp.ne.s32.totalorder %s48, %s51
    %p60 = scmp.eq.s32.totalorder %s17, 1
    %p61 = por %p59, %p60
    %p62 = scmp.ne.s32.totalorder %s51, %s52
    %p63 = scmp.eq.s32.totalorder %s17, 0
    %p64 = por %p62, %p63
    %p65 = scmp.ne.s32.totalorder %s51, %s52
    %p66 = scmp.eq.s32.totalorder %s18, 1
    %p67 = por %p65, %p66
    %p69 = scmp.ne.s32.totalorder %s52, %s68
    %p70 = scmp.eq.s32.totalorder %s18, 0
    %p71 = por %p69, %p70
    %s73 = sadd.s32 %s72, 1
    %p76 = scmp.eq.s32.totalorder %s12, 1
    %p77 = scmp.ne.s32.totalorder %s72, %s74
    %p78 = scmp.eq.s32.totalorder %s12, 0
    %p79 = por %p77, %p78
    %p80 = scmp.ne.s32.totalorder %s72, %s74
    %p81 = scmp.eq.s32.totalorder %s17, 1
    %p82 = por %p80, %p81
    %p83 = scmp.ne.s32.totalorder %s74, %s75
    %p84 = scmp.eq.s32.totalorder %s17, 0
    %p85 = por %p83, %p84
    %p86 = scmp.ne.s32.totalorder %s74, %s75
    %p87 = scmp.eq.s32.totalorder %s18, 1
    %p88 = por %p86, %p87
    %p90 = scmp.ne.s32.totalorder %s75, %s89
    %p91 = scmp.eq.s32.totalorder %s18, 0
    %p92 = por %p90, %p91
    %s94 = sadd.s32 %s93, 1
    %p97 = scmp.eq.s32.totalorder %s12, 1
    %p98 = scmp.ne.s32.totalorder %s93, %s95
    %p99 = scmp.eq.s32.totalorder %s12, 0
    %p100 = por %p98, %p99
    %p101 = scmp.ne.s32.totalorder %s93, %s95
    %p102 = scmp.eq.s32.totalorder %s17, 1
    %p103 = por %p101, %p102
    %p104 = scmp.ne.s32.totalorder %s95, %s96
    %p105 = scmp.eq.s32.totalorder %s17, 0
    %p106 = por %p104, %p105
    %p107 = scmp.ne.s32.totalorder %s95, %s96
    %p108 = scmp.eq.s32.totalorder %s18, 1
    %p109 = por %p107, %p108
    %p111 = scmp.ne.s32.totalorder %s96, %s110
    %p112 = scmp.eq.s32.totalorder %s18, 0
    %p113 = por %p111, %p112
    %s115 = sadd.s32 %s114, 1
    %p118 = scmp.eq.s32.totalorder %s12, 1
    %p119 = scmp.ne.s32.totalorder %s114, %s116
    %p120 = scmp.eq.s32.totalorder %s12, 0
    %p121 = por %p119, %p120
    %p122 = scmp.ne.s32.totalorder %s114, %s116
    %p123 = scmp.eq.s32.totalorder %s17, 1
    %p124 = por %p122, %p123
    %p125 = scmp.ne.s32.totalorder %s116, %s117
    %p126 = scmp.eq.s32.totalorder %s17, 0
    %p127 = por %p125, %p126
    %p128 = scmp.ne.s32.totalorder %s116, %s117
    %p129 = scmp.eq.s32.totalorder %s18, 1
    %p130 = por %p128, %p129
    %p132 = scmp.ne.s32.totalorder %s117, %s131
    %p133 = scmp.eq.s32.totalorder %s18, 0
    %p134 = por %p132, %p133
    %s136 = sadd.s32 %s135, 1
    %p139 = scmp.eq.s32.totalorder %s12, 1
    %p140 = scmp.ne.s32.totalorder %s135, %s137
    %p141 = scmp.eq.s32.totalorder %s12, 0
    %p142 = por %p140, %p141
    %p143 = scmp.ne.s32.totalorder %s135, %s137
    %p144 = scmp.eq.s32.totalorder %s17, 1
    %p145 = por %p143, %p144
    %p146 = scmp.ne.s32.totalorder %s137, %s138
    %p147 = scmp.eq.s32.totalorder %s17, 0
    %p148 = por %p146, %p147
    %p149 = scmp.ne.s32.totalorder %s137, %s138
    %p150 = scmp.eq.s32.totalorder %s18, 1
    %p151 = por %p149, %p150
    %p153 = scmp.ne.s32.totalorder %s138, %s152
    %p154 = scmp.eq.s32.totalorder %s18, 0
    %p155 = por %p153, %p154
    %s156 = ssub.s32 %s12, %s19
    %p157 = scmp.eq.s32.totalorder %s156, 0
    %s159 = sadd.s32 %s158, 1
    %s160 = scalar_select %p157, %s158, %s159
    %p163 = pneg %p157
    %p164 = scmp.eq.s32.totalorder %s12, 1
    %p165 = por %p163, %p164
    %p166 = scmp.ne.s32.totalorder %s158, %s161
    %p167 = scmp.eq.s32.totalorder %s12, 0
    %p168 = por %p166, %p167
    %p169 = scmp.ne.s32.totalorder %s158, %s161
    %p170 = scmp.eq.s32.totalorder %s17, 1
    %p171 = por %p169, %p170
    %p172 = scmp.ne.s32.totalorder %s161, %s162
    %p173 = scmp.eq.s32.totalorder %s17, 0
    %p174 = por %p172, %p173
    %p175 = scmp.ne.s32.totalorder %s161, %s162
    %p176 = scmp.eq.s32.totalorder %s18, 1
    %p177 = por %p175, %p176
    %p179 = scmp.ne.s32.totalorder %s162, %s178
    %p180 = scmp.eq.s32.totalorder %s18, 0
    %p181 = por %p179, %p180
    %p182 = scmp.le.s32.totalorder 1, %s12
    %p183 = scmp.lt.s32.totalorder %s12, 3
    %p184 = pnand %p182, %p183
    %p185 = pneg %p184
    // Predicated region
    $region9: #{_lambda_.36} parent=5 // pred_check
      _
    $region10: #{_lambda_.36} parent=5 // pred_check_branch
      %187 = sbr.rel (%p184) target = $region12
    $region11: #{_lambda_.36} parent=5 // pred_region
      %s188 = ssub.s32 %s12, 1
      // Predicated region
      $region13: #{_lambda_.36} parent=11 // pred_check
        %p189 = pneg %p85
      $region14: #{_lambda_.36} parent=11 // pred_check_branch
        %191 = sbr.rel (%p189) target = $region16
      $region15: #{_lambda_.36} parent=11 // pred_region
        _
      $region16: #{_lambda_.36} parent=11 // pred_fallthru
        _
      // Predicated region
      $region17: #{_lambda_.36} parent=11 // pred_check
        %p192 = pneg %p106
      $region18: #{_lambda_.36} parent=11 // pred_check_branch
        %194 = sbr.rel (%p192) target = $region20
      $region19: #{_lambda_.36} parent=11 // pred_region
        _
      $region20: #{_lambda_.36} parent=11 // pred_fallthru
        _
      // Predicated region
      $region21: #{_lambda_.36} parent=11 // pred_check
        %p195 = pneg %p127
      $region22: #{_lambda_.36} parent=11 // pred_check_branch
        %197 = sbr.rel (%p195) target = $region24
      $region23: #{_lambda_.36} parent=11 // pred_region
        _
      $region24: #{_lambda_.36} parent=11 // pred_fallthru
        _
      // Predicated region
      $region25: #{_lambda_.36} parent=11 // pred_check
        %p198 = pneg %p148
      $region26: #{_lambda_.36} parent=11 // pred_check_branch
        %200 = sbr.rel (%p198) target = $region28
      $region27: #{_lambda_.36} parent=11 // pred_region
        _
      $region28: #{_lambda_.36} parent=11 // pred_fallthru
        _
    $region12: #{_lambda_.36} parent=5 // pred_fallthru
      _
    %p201 = scmp.lt.s32.totalorder %s12, 2
    // Predicated region
    $region29: #{_lambda_.36} parent=5 // pred_check
      %p202 = pneg %p201
    $region30: #{_lambda_.36} parent=5 // pred_check_branch
      %204 = sbr.rel (%p202) target = $region32
    $region31: #{_lambda_.36} parent=5 // pred_region
      // Predicated region
      $region33: #{_lambda_.36} parent=31 // pred_check
        %p205 = pneg %p32
      $region34: #{_lambda_.36} parent=31 // pred_check_branch
        %207 = sbr.rel (%p205) target = $region36
      $region35: #{_lambda_.36} parent=31 // pred_region
        %p208 = scmp.lt.s32.totalorder %s12, 1
        %s209 = scalar_select %p208, %s12, 1
        %s210 = smul.addr %s209, 8
        %s211 = scalar_lea.vmem %s0, %s210
      $region36: #{_lambda_.36} parent=31 // pred_fallthru
        _
      // Predicated region
      $region37: #{_lambda_.36} parent=31 // pred_check
        %p212 = pneg %p58
      $region38: #{_lambda_.36} parent=31 // pred_check_branch
        %214 = sbr.rel (%p212) target = $region40
      $region39: #{_lambda_.36} parent=31 // pred_region
        %p215 = scmp.lt.s32.totalorder %s12, 1
        %s216 = scalar_select %p215, %s12, 1
        %s217 = smul.addr %s216, 8
        %s218 = scalar_lea.vmem %s1, %s217
      $region40: #{_lambda_.36} parent=31 // pred_fallthru
        _
    $region32: #{_lambda_.36} parent=5 // pred_fallthru
      _
    %p219 = scmp.le.s32.totalorder 1, %s12
    %p220 = scmp.lt.s32.totalorder %s12, 3
    %p221 = pnand %p219, %p220
    %p222 = pneg %p221
    // Predicated region
    $region41: #{_lambda_.36} parent=5 // pred_check
      _
    $region42: #{_lambda_.36} parent=5 // pred_check_branch
      %224 = sbr.rel (%p221) target = $region44
    $region43: #{_lambda_.36} parent=5 // pred_region
      %s225 = ssub.s32 %s12, 1
      %p226 = scmp.lt.s32.totalorder %s17, 1
      %s227 = scalar_select %p226, %s17, 1
      %s228 = smul.addr %s227, 8
      %s229 = scalar_lea.vmem %s0, %s228
      %p230 = pneg %p38
      %p231 = pneg %p35
      %p232 = scmp.lt.s32.totalorder %s17, 1
      %s233 = scalar_select %p232, %s17, 1
      %s234 = smul.addr %s233, 8
      %s235 = scalar_lea.vmem %s1, %s234
      %p236 = pneg %p64
      %p237 = pneg %p61
      %p238 = pneg %p85
      %p239 = pneg %p82
      %p240 = pneg %p106
      %p241 = pneg %p103
      %p242 = pneg %p127
      %p243 = pneg %p124
      %p244 = pneg %p148
      %p245 = pneg %p145
      %p246 = pneg %p174
      %p247 = pneg %p171
      %p248 = scmp.lt.s32.totalorder %s17, 1
      %s249 = scalar_select %p248, %s17, 1
      %s250 = smul.addr %s249, 8
      %s251 = scalar_lea.vmem %s6, %s250
      %p252 = scmp.lt.s32.totalorder %s17, 1
      %s253 = scalar_select %p252, %s17, 1
      %s254 = smul.addr %s253, 8
      %s255 = scalar_lea.vmem %s0, %s254
      %p256 = scmp.lt.s32.totalorder %s17, 1
      %s257 = scalar_select %p256, %s17, 1
      %s258 = smul.addr %s257, 8
      %s259 = scalar_lea.vmem %s1, %s258
      %p260 = scmp.lt.s32.totalorder %s17, 1
      %s261 = scalar_select %p260, %s17, 1
      %s262 = smul.addr %s261, 8
      %s263 = scalar_lea.vmem %s6, %s262
      %v265 = vld [vmem:[%s255] sm:$0xff]
      %v266 = vpack.c.bf16 %v265, %v265
      %v267 = vld [vmem:[%s2] sm:$0xf]
      %v268 = vld [vmem:[%s2 + $0x4] sm:$0xf]
      %v269 = vld [vmem:[%s2 + $0x8] sm:$0xf]
      %v270 = vld [vmem:[%s2 + $0xc] sm:$0xf]
      %v271 = vld [vmem:[%s3] sm:$0x1]
      %v273 = vlaneseq
      %v274 = vshrl.u32 %v273, 7
      %v275 = vsub.s32 0, %v274
      %v276 = vrot.slane %v271, %v275
      %v282 = vunpack.c.l.b16 %v267
      %v283 = vunpack.c.l.b16 %v268
      %v284 = vunpack.c.l.b16 %v269
      %v285 = vunpack.c.l.b16 %v270
      %v286 = vpack.c.b16 %v283, %v282
      %v287 = vpack.c.b16 %v285, %v284
      %vm290 = vcmask 261120
      %v292 = vsel %vm290, %v266, 0
      %294 = vmatprep.subr.bf16.mxu0 0
      %295 = vmatpush1.bf16.msra.mxu0 %v286
      %296 = vmatprep.subr.bf16.mxu0 0
      %297 = vmatpush1.bf16.msra.mxu0 %v287
      %298 = vmatprep.subr.bf16.mxu0 0
      %299 = vmatpush1.bf16.msra.mxu0 0
      %300 = vmatprep.subr.bf16.mxu0 0
      %301 = vmatpush1.bf16.msra.mxu0 0
      %302 = vmatprep.subr.bf16.mxu0 0
      %303 = vmatpush1.bf16.msra.mxu0 0
      %304 = vmatprep.subr.bf16.mxu0 0
      %305 = vmatpush1.bf16.msra.mxu0 0
      %306 = vmatprep.subr.bf16.mxu0 0
      %307 = vmatpush1.bf16.msra.mxu0 0
      %308 = vmatprep.subr.bf16.mxu0 0
      %309 = vmatpush1.bf16.msra.mxu0 0
      %310 = vmatprep.subr.bf16.mxu0 0
      %311 = vmatpush1.bf16.msra.mxu0 0
      %312 = vmatprep.subr.bf16.mxu0 0
      %313 = vmatpush1.bf16.msra.mxu0 0
      %314 = vmatprep.subr.bf16.mxu0 0
      %315 = vmatpush1.bf16.msra.mxu0 0
      %316 = vmatprep.subr.bf16.mxu0 0
      %317 = vmatpush1.bf16.msra.mxu0 0
      %318 = vmatprep.subr.bf16.mxu0 0
      %319 = vmatpush1.bf16.msra.mxu0 0
      %320 = vmatprep.subr.bf16.mxu0 0
      %321 = vmatpush1.bf16.msra.mxu0 0
      %322 = vmatprep.subr.bf16.mxu0 0
      %323 = vmatpush1.bf16.msra.mxu0 0
      %324 = vmatprep.subr.bf16.mxu0 0
      %325 = vmatpush1.bf16.msra.mxu0 0
      %326 = vmatprep.mubr.bf16.mxu0 0
      %327 = vmatmul.mubr.bf16.gmra.mrb[0].mxu0 %v292
      %v328 = vpop.f32.mrb[0].mxu0
      %v329 = vadd.f32 %v276, %v328
      %v330 = vpop.f32.mrb[0].mxu0
      %v331 = vpop.f32.mrb[0].mxu0
      %v332 = vpop.f32.mrb[0].mxu0
      %333 = vdwg.mxu0
      %v334 = vld [vmem:[%s259] sm:$0xff]
      %v335 = vadd.f32 %v329, %v334
      %v336 = vld [vmem:[%s4] sm:$0x1]
      %v337 = vld [vmem:[%s5] sm:$0x1]
      %vm338 = vcmask 523264
      %v339 = vsel %vm338, %v335, 0.0
      %340 = vadd.xlane.f32.xlu0 %v339
      %v341 = vpop.xlane.xlu0 %340
      %v342 = vrcp.pop 64.0
      %v343 = vmul.f32 %v341, %v342
      %v344 = vsub.f32 %v335, %v343
      %v345 = vmul.f32 %v344, %v344
      %v346 = vsel %vm338, %v345, 0.0
      %347 = vadd.xlane.f32.xlu0 %v346
      %v348 = vpop.xlane.xlu0 %347
      %v349 = vmul.f32 %v348, %v342
      %v350 = vadd.f32 %v349, 1e-12
      %v351 = vrsqrt.pop %v350
      %v352 = vmul.f32 %v344, %v351
      %v354 = vlaneseq
      %v355 = vshrl.u32 %v354, 7
      %v356 = vsub.s32 0, %v355
      %v357 = vrot.slane %v336, %v356
      %v359 = vmul.f32 %v352, %v357
      %v361 = vlaneseq
      %v362 = vshrl.u32 %v361, 7
      %v363 = vsub.s32 0, %v362
      %v364 = vrot.slane %v337, %v363
      %v366 = vadd.f32 %v359, %v364
      %367 = vst.msk [vmem:[%s263] sm:$0xff] %vm338, %v366
      %p368 = scmp.lt.s32.totalorder %s17, 1
      %s369 = scalar_select %p368, %s17, 1
      %s370 = smul.addr %s369, 8
      %s371 = scalar_lea.vmem %s6, %s370
      // Predicated region
      $region45: #{_lambda_.36} parent=43 // pred_check
        %p372 = pneg %p171
      $region46: #{_lambda_.36} parent=43 // pred_check_branch
        %374 = sbr.rel (%p372) target = $region48
      $region47: #{_lambda_.36} parent=43 // pred_region
        _
      $region48: #{_lambda_.36} parent=43 // pred_fallthru
        _
    $region44: #{_lambda_.36} parent=5 // pred_fallthru
      _
    %p375 = scmp.le.s32.totalorder 2, %s12
    // Predicated region
    $region49: #{_lambda_.36} parent=5 // pred_check
      %p376 = pneg %p375
    $region50: #{_lambda_.36} parent=5 // pred_check_branch
      %378 = sbr.rel (%p376) target = $region52
    $region51: #{_lambda_.36} parent=5 // pred_region
      %s379 = ssub.s32 %s12, 2
      // Predicated region
      $region53: #{_lambda_.36} parent=51 // pred_check
        %p380 = pneg %p177
      $region54: #{_lambda_.36} parent=51 // pred_check_branch
        %382 = sbr.rel (%p380) target = $region56
      $region55: #{_lambda_.36} parent=51 // pred_region
        %p383 = scmp.lt.s32.totalorder %s18, 1
        %s384 = scalar_select %p383, %s18, 1
        %s385 = smul.addr %s384, 8
        %s386 = scalar_lea.vmem %s6, %s385
      $region56: #{_lambda_.36} parent=51 // pred_fallthru
        _
    $region52: #{_lambda_.36} parent=5 // pred_fallthru
      _
  $region6: #{_lambda_.36} parent=0 // loop_footer
    %s16 = sadd.s32 1, %s12
  $region7: #{_lambda_.36} parent=0 // loop_footer_branch
    %11 = sbr.rel target = $region3
  $region8: #{_lambda_.36} parent=0 // loop_exit
    _

// kernel: _lambda_.47
$region0: #{_lambda_.47}
  #allocation0 [shape = 'u32[]', space=smem, size = 0x4, offset = 0x4, fixed_abs, tag = 'smem constant byte address 0x4 - core index']
  #allocation1 [shape = 'u32[144,128]{1,0:T(1,128)}', space=vmem, size = 0x12000, scoped, tag = 'internal scratch']
  %s0 = inlined_call_operand.vmem [shape: f32[16,32], index: 0, kind: input, shape index: {}]
  %s1 = inlined_call_operand.vmem [shape: bf16[32,64], index: 1, kind: input, shape index: {}]
  %s2 = inlined_call_operand.vmem [shape: f32[1,64], index: 2, kind: input, shape index: {}]
  %s3 = inlined_call_operand.vmem [shape: bf16[64,32], index: 3, kind: input, shape index: {}]
  %s4 = inlined_call_operand.vmem [shape: f32[1,32], index: 4, kind: input, shape index: {}]
  %s5 = inlined_call_operand.vmem [shape: f32[1,32], index: 5, kind: input, shape index: {}]
  %s6 = inlined_call_operand.vmem [shape: f32[1,32], index: 6, kind: input, shape index: {}]
  %s7 = inlined_call_operand.hbm [shape: f32[16,32], index: 7, kind: output, shape index: {}]
  %s8 = sld [smem:[#allocation0]]
  $region61: #{_lambda_.47} parent=0
    _
  %s10 = ssub.s32 1, %s8
  %s11 = scalar_select 0, %s10, %s8
  $region1: #{_lambda_.47} parent=0
    #allocation2 [shape = 'u8[8192]{0}', space=vmem, size = 0x2000, scoped, tag = 'output window, operand 0']
    #allocation3 [shape = 's32[2]{0}', space=sflag, size = 0x8, scoped, tag = 'scoped memory for _lambda_.47']
    %12 = vsyncpa [#allocation3], 0
    %s13 = scalar_lea.sflag [#allocation3], 1
    %14 = vsyncpa %s13, 0
    loop: start=0, step=1, limit=4
    $region2: #{_lambda_.47} parent=1 // loop_pre_header
      _
    $region3: #{_lambda_.47} parent=1 // loop_header
      %s16 = sphi 0, %s20
      %p17 = scmp.ge.s32.totalorder %s16, 4
      %s26 = sphi 0, %s28
      %s29 = sphi 0, %s26
      %s30 = sphi 0, %s29
      %s46 = sphi 0, %s30
      %s50 = sphi 0, %s50
      %s52 = sphi 0, %s50
      %s53 = sphi 0, %s52
      %s67 = sphi 0, %s53
      %s71 = sphi 0, %s71
      %s73 = sphi 0, %s71
      %s74 = sphi 0, %s73
      %s88 = sphi 0, %s74
      %s92 = sphi 0, %s92
      %s94 = sphi 0, %s92
      %s95 = sphi 0, %s94
      %s109 = sphi 0, %s95
      %s113 = sphi 0, %s113
      %s115 = sphi 0, %s113
      %s116 = sphi 0, %s115
      %s130 = sphi 0, %s116
      %s134 = sphi 0, %s134
      %s136 = sphi 0, %s134
      %s137 = sphi 0, %s136
      %s151 = sphi 0, %s137
      %s155 = sphi 0, %s155
      %s157 = sphi 0, %s155
      %s158 = sphi 0, %s157
      %s172 = sphi 0, %s158
      %s178 = sphi 0, %s180
      %s181 = sphi 0, %s178
      %s182 = sphi 0, %s181
      %s198 = sphi 0, %s182
    $region4: #{_lambda_.47} parent=1 // loop_header_branch
      %19 = sbr.rel (%p17) target = $region8
    $region5: #{_lambda_.47} parent=1 // loop_body
      %s21 = ssub.s32 %s16, 1
      %s22 = ssub.s32 %s16, 2
      %s23 = sadd.s32 %s16, 1
      %s24 = ssub.s32 %s16, %s23
      %p25 = scmp.eq.s32.totalorder %s24, 0
      %s27 = sadd.s32 %s26, 1
      %s28 = scalar_select %p25, %s26, %s27
      %p31 = pneg %p25
      %p32 = scmp.eq.s32.totalorder %s16, 1
      %p33 = por %p31, %p32
      %p34 = scmp.ne.s32.totalorder %s26, %s29
      %p35 = scmp.eq.s32.totalorder %s16, 0
      %p36 = por %p34, %p35
      %p37 = scmp.ne.s32.totalorder %s26, %s29
      %p38 = scmp.eq.s32.totalorder %s21, 1
      %p39 = por %p37, %p38
      %p40 = scmp.ne.s32.totalorder %s29, %s30
      %p41 = scmp.eq.s32.totalorder %s21, 0
      %p42 = por %p40, %p41
      %p43 = scmp.ne.s32.totalorder %s29, %s30
      %p44 = scmp.eq.s32.totalorder %s22, 1
      %p45 = por %p43, %p44
      %p47 = scmp.ne.s32.totalorder %s30, %s46
      %p48 = scmp.eq.s32.totalorder %s22, 0
      %p49 = por %p47, %p48
      %s51 = sadd.s32 %s50, 1
      %p54 = scmp.eq.s32.totalorder %s16, 1
      %p55 = scmp.ne.s32.totalorder %s50, %s52
      %p56 = scmp.eq.s32.totalorder %s16, 0
      %p57 = por %p55, %p56
      %p58 = scmp.ne.s32.totalorder %s50, %s52
      %p59 = scmp.eq.s32.totalorder %s21, 1
      %p60 = por %p58, %p59
      %p61 = scmp.ne.s32.totalorder %s52, %s53
      %p62 = scmp.eq.s32.totalorder %s21, 0
      %p63 = por %p61, %p62
      %p64 = scmp.ne.s32.totalorder %s52, %s53
      %p65 = scmp.eq.s32.totalorder %s22, 1
      %p66 = por %p64, %p65
      %p68 = scmp.ne.s32.totalorder %s53, %s67
      %p69 = scmp.eq.s32.totalorder %s22, 0
      %p70 = por %p68, %p69
      %s72 = sadd.s32 %s71, 1
      %p75 = scmp.eq.s32.totalorder %s16, 1
      %p76 = scmp.ne.s32.totalorder %s71, %s73
      %p77 = scmp.eq.s32.totalorder %s16, 0
      %p78 = por %p76, %p77
      %p79 = scmp.ne.s32.totalorder %s71, %s73
      %p80 = scmp.eq.s32.totalorder %s21, 1
      %p81 = por %p79, %p80
      %p82 = scmp.ne.s32.totalorder %s73, %s74
      %p83 = scmp.eq.s32.totalorder %s21, 0
      %p84 = por %p82, %p83
      %p85 = scmp.ne.s32.totalorder %s73, %s74
      %p86 = scmp.eq.s32.totalorder %s22, 1
      %p87 = por %p85, %p86
      %p89 = scmp.ne.s32.totalorder %s74, %s88
      %p90 = scmp.eq.s32.totalorder %s22, 0
      %p91 = por %p89, %p90
      %s93 = sadd.s32 %s92, 1
      %p96 = scmp.eq.s32.totalorder %s16, 1
      %p97 = scmp.ne.s32.totalorder %s92, %s94
      %p98 = scmp.eq.s32.totalorder %s16, 0
      %p99 = por %p97, %p98
      %p100 = scmp.ne.s32.totalorder %s92, %s94
      %p101 = scmp.eq.s32.totalorder %s21, 1
      %p102 = por %p100, %p101
      %p103 = scmp.ne.s32.totalorder %s94, %s95
      %p104 = scmp.eq.s32.totalorder %s21, 0
      %p105 = por %p103, %p104
      %p106 = scmp.ne.s32.totalorder %s94, %s95
      %p107 = scmp.eq.s32.totalorder %s22, 1
      %p108 = por %p106, %p107
      %p110 = scmp.ne.s32.totalorder %s95, %s109
      %p111 = scmp.eq.s32.totalorder %s22, 0
      %p112 = por %p110, %p111
      %s114 = sadd.s32 %s113, 1
      %p117 = scmp.eq.s32.totalorder %s16, 1
      %p118 = scmp.ne.s32.totalorder %s113, %s115
      %p119 = scmp.eq.s32.totalorder %s16, 0
      %p120 = por %p118, %p119
      %p121 = scmp.ne.s32.totalorder %s113, %s115
      %p122 = scmp.eq.s32.totalorder %s21, 1
      %p123 = por %p121, %p122
      %p124 = scmp.ne.s32.totalorder %s115, %s116
      %p125 = scmp.eq.s32.totalorder %s21, 0
      %p126 = por %p124, %p125
      %p127 = scmp.ne.s32.totalorder %s115, %s116
      %p128 = scmp.eq.s32.totalorder %s22, 1
      %p129 = por %p127, %p128
      %p131 = scmp.ne.s32.totalorder %s116, %s130
      %p132 = scmp.eq.s32.totalorder %s22, 0
      %p133 = por %p131, %p132
      %s135 = sadd.s32 %s134, 1
      %p138 = scmp.eq.s32.totalorder %s16, 1
      %p139 = scmp.ne.s32.totalorder %s134, %s136
      %p140 = scmp.eq.s32.totalorder %s16, 0
      %p141 = por %p139, %p140
      %p142 = scmp.ne.s32.totalorder %s134, %s136
      %p143 = scmp.eq.s32.totalorder %s21, 1
      %p144 = por %p142, %p143
      %p145 = scmp.ne.s32.totalorder %s136, %s137
      %p146 = scmp.eq.s32.totalorder %s21, 0
      %p147 = por %p145, %p146
      %p148 = scmp.ne.s32.totalorder %s136, %s137
      %p149 = scmp.eq.s32.totalorder %s22, 1
      %p150 = por %p148, %p149
      %p152 = scmp.ne.s32.totalorder %s137, %s151
      %p153 = scmp.eq.s32.totalorder %s22, 0
      %p154 = por %p152, %p153
      %s156 = sadd.s32 %s155, 1
      %p159 = scmp.eq.s32.totalorder %s16, 1
      %p160 = scmp.ne.s32.totalorder %s155, %s157
      %p161 = scmp.eq.s32.totalorder %s16, 0
      %p162 = por %p160, %p161
      %p163 = scmp.ne.s32.totalorder %s155, %s157
      %p164 = scmp.eq.s32.totalorder %s21, 1
      %p165 = por %p163, %p164
      %p166 = scmp.ne.s32.totalorder %s157, %s158
      %p167 = scmp.eq.s32.totalorder %s21, 0
      %p168 = por %p166, %p167
      %p169 = scmp.ne.s32.totalorder %s157, %s158
      %p170 = scmp.eq.s32.totalorder %s22, 1
      %p171 = por %p169, %p170
      %p173 = scmp.ne.s32.totalorder %s158, %s172
      %p174 = scmp.eq.s32.totalorder %s22, 0
      %p175 = por %p173, %p174
      %s176 = ssub.s32 %s16, %s23
      %p177 = scmp.eq.s32.totalorder %s176, 0
      %s179 = sadd.s32 %s178, 1
      %s180 = scalar_select %p177, %s178, %s179
      %p183 = pneg %p177
      %p184 = scmp.eq.s32.totalorder %s16, 1
      %p185 = por %p183, %p184
      %p186 = scmp.ne.s32.totalorder %s178, %s181
      %p187 = scmp.eq.s32.totalorder %s16, 0
      %p188 = por %p186, %p187
      %p189 = scmp.ne.s32.totalorder %s178, %s181
      %p190 = scmp.eq.s32.totalorder %s21, 1
      %p191 = por %p189, %p190
      %p192 = scmp.ne.s32.totalorder %s181, %s182
      %p193 = scmp.eq.s32.totalorder %s21, 0
      %p194 = por %p192, %p193
      %p195 = scmp.ne.s32.totalorder %s181, %s182
      %p196 = scmp.eq.s32.totalorder %s22, 1
      %p197 = por %p195, %p196
      %p199 = scmp.ne.s32.totalorder %s182, %s198
      %p200 = scmp.eq.s32.totalorder %s22, 0
      %p201 = por %p199, %p200
      %p202 = scmp.le.s32.totalorder 1, %s16
      %p203 = scmp.lt.s32.totalorder %s16, 3
      %p204 = pnand %p202, %p203
      %p205 = pneg %p204
      // Predicated region
      $region9: #{_lambda_.47} parent=5 // pred_check
        _
      $region10: #{_lambda_.47} parent=5 // pred_check_branch
        %207 = sbr.rel (%p204) target = $region12
      $region11: #{_lambda_.47} parent=5 // pred_region
        %s208 = ssub.s32 %s16, 1
        // Predicated region
        $region13: #{_lambda_.47} parent=11 // pred_check
          %p209 = pneg %p63
        $region14: #{_lambda_.47} parent=11 // pred_check_branch
          %211 = sbr.rel (%p209) target = $region16
        $region15: #{_lambda_.47} parent=11 // pred_region
          _
        $region16: #{_lambda_.47} parent=11 // pred_fallthru
          _
        // Predicated region
        $region17: #{_lambda_.47} parent=11 // pred_check
          %p212 = pneg %p84
        $region18: #{_lambda_.47} parent=11 // pred_check_branch
          %214 = sbr.rel (%p212) target = $region20
        $region19: #{_lambda_.47} parent=11 // pred_region
          _
        $region20: #{_lambda_.47} parent=11 // pred_fallthru
          _
        // Predicated region
        $region21: #{_lambda_.47} parent=11 // pred_check
          %p215 = pneg %p105
        $region22: #{_lambda_.47} parent=11 // pred_check_branch
          %217 = sbr.rel (%p215) target = $region24
        $region23: #{_lambda_.47} parent=11 // pred_region
          _
        $region24: #{_lambda_.47} parent=11 // pred_fallthru
          _
        // Predicated region
        $region25: #{_lambda_.47} parent=11 // pred_check
          %p218 = pneg %p126
        $region26: #{_lambda_.47} parent=11 // pred_check_branch
          %220 = sbr.rel (%p218) target = $region28
        $region27: #{_lambda_.47} parent=11 // pred_region
          _
        $region28: #{_lambda_.47} parent=11 // pred_fallthru
          _
        // Predicated region
        $region29: #{_lambda_.47} parent=11 // pred_check
          %p221 = pneg %p147
        $region30: #{_lambda_.47} parent=11 // pred_check_branch
          %223 = sbr.rel (%p221) target = $region32
        $region31: #{_lambda_.47} parent=11 // pred_region
          _
        $region32: #{_lambda_.47} parent=11 // pred_fallthru
          _
        // Predicated region
        $region33: #{_lambda_.47} parent=11 // pred_check
          %p224 = pneg %p168
        $region34: #{_lambda_.47} parent=11 // pred_check_branch
          %226 = sbr.rel (%p224) target = $region36
        $region35: #{_lambda_.47} parent=11 // pred_region
          _
        $region36: #{_lambda_.47} parent=11 // pred_fallthru
          _
      $region12: #{_lambda_.47} parent=5 // pred_fallthru
        _
      %p227 = scmp.lt.s32.totalorder %s16, 2
      // Predicated region
      $region37: #{_lambda_.47} parent=5 // pred_check
        %p228 = pneg %p227
      $region38: #{_lambda_.47} parent=5 // pred_check_branch
        %230 = sbr.rel (%p228) target = $region40
      $region39: #{_lambda_.47} parent=5 // pred_region
        // Predicated region
        $region41: #{_lambda_.47} parent=39 // pred_check
          %p231 = pneg %p36
        $region42: #{_lambda_.47} parent=39 // pred_check_branch
          %233 = sbr.rel (%p231) target = $region44
        $region43: #{_lambda_.47} parent=39 // pred_region
          %p234 = scmp.lt.s32.totalorder %s16, 1
          %s235 = scalar_select %p234, %s16, 1
          %s236 = smul.addr %s235, 8
          %s237 = scalar_lea.vmem %s0, %s236
        $region44: #{_lambda_.47} parent=39 // pred_fallthru
          _
      $region40: #{_lambda_.47} parent=5 // pred_fallthru
        _
      %p238 = scmp.le.s32.totalorder 1, %s16
      %p239 = scmp.lt.s32.totalorder %s16, 3
      %p240 = pnand %p238, %p239
      %p241 = pneg %p240
      // Predicated region
      $region45: #{_lambda_.47} parent=5 // pred_check
        _
      $region46: #{_lambda_.47} parent=5 // pred_check_branch
        %243 = sbr.rel (%p240) target = $region48
      $region47: #{_lambda_.47} parent=5 // pred_region
        %s244 = ssub.s32 %s16, 1
        %p245 = scmp.lt.s32.totalorder %s21, 1
        %s246 = scalar_select %p245, %s21, 1
        %s247 = smul.addr %s246, 8
        %s248 = scalar_lea.vmem %s0, %s247
        %p249 = pneg %p42
        %p250 = pneg %p39
        %p251 = pneg %p63
        %p252 = pneg %p60
        %p253 = pneg %p84
        %p254 = pneg %p81
        %p255 = pneg %p105
        %p256 = pneg %p102
        %p257 = pneg %p126
        %p258 = pneg %p123
        %p259 = pneg %p147
        %p260 = pneg %p144
        %p261 = pneg %p168
        %p262 = pneg %p165
        %p263 = pneg %p194
        %p264 = pneg %p191
        %s265 = sand.u32 %s181, 1
        %s266 = scalar_lea.sflag [#allocation3], %s265
        %s267 = sand.u32 %s181, 1
        %s268 = smul.addr %s267, 8
        %s269 = scalar_lea.vmem [#allocation2], %s268
        %p270 = scmp.lt.s32.totalorder %s21, 1
        %s271 = scalar_select %p270, %s21, 1
        %s272 = smul.addr %s271, 8
        %s273 = scalar_lea.vmem %s0, %s272
        %v275 = vld [vmem:[%s273] sm:$0xff]
        %v276 = vpack.c.bf16 %v275, %v275
        %v277 = vld [vmem:[%s1] sm:$0xf]
        %v278 = vld [vmem:[%s1 + $0x4] sm:$0xf]
        %v279 = vld [vmem:[%s1 + $0x8] sm:$0xf]
        %v280 = vld [vmem:[%s1 + $0xc] sm:$0xf]
        %v281 = vld [vmem:[%s2] sm:$0x1]
        %v283 = vlaneseq
        %v284 = vshrl.u32 %v283, 7
        %v285 = vsub.s32 0, %v284
        %v286 = vrot.slane %v281, %v285
        %v292 = vunpack.c.l.b16 %v277
        %v293 = vunpack.c.l.b16 %v278
        %v294 = vunpack.c.l.b16 %v279
        %v295 = vunpack.c.l.b16 %v280
        %v296 = vpack.c.b16 %v293, %v292
        %v297 = vpack.c.b16 %v295, %v294
        %vm300 = vcmask 261120
        %v302 = vsel %vm300, %v276, 0
        %304 = vmatprep.subr.bf16.mxu0 0
        %305 = vmatpush1.bf16.msra.mxu0 %v296
        %306 = vmatprep.subr.bf16.mxu0 0
        %307 = vmatpush1.bf16.msra.mxu0 %v297
        %308 = vmatprep.subr.bf16.mxu0 0
        %309 = vmatpush1.bf16.msra.mxu0 0
        %310 = vmatprep.subr.bf16.mxu0 0
        %311 = vmatpush1.bf16.msra.mxu0 0
        %312 = vmatprep.subr.bf16.mxu0 0
        %313 = vmatpush1.bf16.msra.mxu0 0
        %314 = vmatprep.subr.bf16.mxu0 0
        %315 = vmatpush1.bf16.msra.mxu0 0
        %316 = vmatprep.subr.bf16.mxu0 0
        %317 = vmatpush1.bf16.msra.mxu0 0
        %318 = vmatprep.subr.bf16.mxu0 0
        %319 = vmatpush1.bf16.msra.mxu0 0
        %320 = vmatprep.subr.bf16.mxu0 0
        %321 = vmatpush1.bf16.msra.mxu0 0
        %322 = vmatprep.subr.bf16.mxu0 0
        %323 = vmatpush1.bf16.msra.mxu0 0
        %324 = vmatprep.subr.bf16.mxu0 0
        %325 = vmatpush1.bf16.msra.mxu0 0
        %326 = vmatprep.subr.bf16.mxu0 0
        %327 = vmatpush1.bf16.msra.mxu0 0
        %328 = vmatprep.subr.bf16.mxu0 0
        %329 = vmatpush1.bf16.msra.mxu0 0
        %330 = vmatprep.subr.bf16.mxu0 0
        %331 = vmatpush1.bf16.msra.mxu0 0
        %332 = vmatprep.subr.bf16.mxu0 0
        %333 = vmatpush1.bf16.msra.mxu0 0
        %334 = vmatprep.subr.bf16.mxu0 0
        %335 = vmatpush1.bf16.msra.mxu0 0
        %336 = vmatprep.mubr.bf16.mxu0 0
        %337 = vmatmul.mubr.bf16.gmra.mrb[0].mxu0 %v302
        %v338 = vpop.f32.mrb[0].mxu0
        %v339 = vadd.f32 %v286, %v338
        %v340 = vpop.f32.mrb[0].mxu0
        %v341 = vpop.f32.mrb[0].mxu0
        %v342 = vpop.f32.mrb[0].mxu0
        %343 = vdwg.mxu0
        %v344 = vmul.f32 %v339, 0.5
        %v345 = vmul.f32 %v339, 0.70710677
        %v346 = vand.u32 2147483647, %v345
        %v347 = vmul.f32 %v346, 0.3275911
        %v348 = vadd.f32 %v347, 1.0
        %v349 = vrcp.pop %v348
        %v350 = vmul.f32 1.0, %v349
        %v351 = vmul.f32 %v350, 1.0614054
        %v352 = vadd.f32 %v351, -1.4531521
        %v353 = vmul.f32 %v352, %v350
        %v354 = vadd.f32 %v353, 1.4214138
        %v355 = vmul.f32 %v354, %v350
        %v356 = vadd.f32 %v355, -0.28449672
        %v357 = vmul.f32 %v356, %v350
        %v358 = vadd.f32 %v357, 0.2548296
        %v359 = vmul.f32 %v358, %v350
        %v360 = vsub.f32 0.0, %v346
        %v361 = vmul.f32 %v360, %v346
        %v362 = vmul.f32 %v361, 1.442695
        %v363 = vpow.pop %v362
        %v364 = vmul.f32 %v359, %v363
        %v365 = vsub.f32 1.0, %v364
        %vm366 = vcmp.ge.f32.partialorder %v345, 0.0
        %v367 = vsub.f32 0.0, %v365
        %v368 = vsel %vm366, %v365, %v367
        %v369 = vadd.f32 %v368, 1.0
        %v370 = vmul.f32 %v344, %v369
        %v371 = vpack.c.bf16 %v370, %v370
        %v372 = vld [vmem:[%s3] sm:$0xf]
        %v373 = vld [vmem:[%s3 + $0x4] sm:$0xf]
        %v374 = vld [vmem:[%s3 + $0x8] sm:$0xf]
        %v375 = vld [vmem:[%s3 + $0xc] sm:$0xf]
        %v376 = vld [vmem:[%s3 + $0x10] sm:$0xf]
        %v377 = vld [vmem:[%s3 + $0x14] sm:$0xf]
        %v378 = vld [vmem:[%s3 + $0x18] sm:$0xf]
        %v379 = vld [vmem:[%s3 + $0x1c] sm:$0xf]
        %v380 = vld [vmem:[%s4] sm:$0x1]
        %v382 = vlaneseq
        %v383 = vshrl.u32 %v382, 7
        %v384 = vsub.s32 0, %v383
        %v385 = vrot.slane %v380, %v384
        %v395 = vunpack.c.l.b16 %v372
        %v396 = vunpack.c.l.b16 %v373
        %v397 = vunpack.c.l.b16 %v374
        %v398 = vunpack.c.l.b16 %v375
        %v399 = vunpack.c.l.b16 %v376
        %v400 = vunpack.c.l.b16 %v377
        %v401 = vunpack.c.l.b16 %v378
        %v402 = vunpack.c.l.b16 %v379
        %v403 = vpack.c.b16 %v396, %v395
        %v404 = vpack.c.b16 %v398, %v397
        %v405 = vpack.c.b16 %v400, %v399
        %v406 = vpack.c.b16 %v402, %v401
        %vm411 = vcmask 523264
        %v413 = vsel %vm411, %v371, 0
        %415 = vmatprep.subr.bf16.mxu0 0
        %416 = vmatpush1.bf16.msra.mxu0 %v403
        %417 = vmatprep.subr.bf16.mxu0 0
        %418 = vmatpush1.bf16.msra.mxu0 %v404
        %419 = vmatprep.subr.bf16.mxu0 0
        %420 = vmatpush1.bf16.msra.mxu0 %v405
        %421 = vmatprep.subr.bf16.mxu0 0
        %422 = vmatpush1.bf16.msra.mxu0 %v406
        %423 = vmatprep.subr.bf16.mxu0 0
        %424 = vmatpush1.bf16.msra.mxu0 0
        %425 = vmatprep.subr.bf16.mxu0 0
        %426 = vmatpush1.bf16.msra.mxu0 0
        %427 = vmatprep.subr.bf16.mxu0 0
        %428 = vmatpush1.bf16.msra.mxu0 0
        %429 = vmatprep.subr.bf16.mxu0 0
        %430 = vmatpush1.bf16.msra.mxu0 0
        %431 = vmatprep.subr.bf16.mxu0 0
        %432 = vmatpush1.bf16.msra.mxu0 0
        %433 = vmatprep.subr.bf16.mxu0 0
        %434 = vmatpush1.bf16.msra.mxu0 0
        %435 = vmatprep.subr.bf16.mxu0 0
        %436 = vmatpush1.bf16.msra.mxu0 0
        %437 = vmatprep.subr.bf16.mxu0 0
        %438 = vmatpush1.bf16.msra.mxu0 0
        %439 = vmatprep.subr.bf16.mxu0 0
        %440 = vmatpush1.bf16.msra.mxu0 0
        %441 = vmatprep.subr.bf16.mxu0 0
        %442 = vmatpush1.bf16.msra.mxu0 0
        %443 = vmatprep.subr.bf16.mxu0 0
        %444 = vmatpush1.bf16.msra.mxu0 0
        %445 = vmatprep.subr.bf16.mxu0 0
        %446 = vmatpush1.bf16.msra.mxu0 0
        %447 = vmatprep.mubr.bf16.mxu0 0
        %448 = vmatmul.mubr.bf16.gmra.mrb[0].mxu0 %v413
        %v449 = vpop.f32.mrb[0].mxu0
        %v450 = vadd.f32 %v385, %v449
        %v451 = vpop.f32.mrb[0].mxu0
        %v452 = vpop.f32.mrb[0].mxu0
        %v453 = vpop.f32.mrb[0].mxu0
        %454 = vdwg.mxu0
        %v455 = vadd.f32 %v450, %v275
        %v456 = vld [vmem:[%s5] sm:$0x1]
        %v457 = vld [vmem:[%s6] sm:$0x1]
        %v458 = vsel %vm300, %v455, 0.0
        %459 = vadd.xlane.f32.xlu0 %v458
        %v460 = vpop.xlane.xlu0 %459
        %v461 = vrcp.pop 32.0
        %v462 = vmul.f32 %v460, %v461
        %v463 = vsub.f32 %v455, %v462
        %v464 = vmul.f32 %v463, %v463
        %v465 = vsel %vm300, %v464, 0.0
        %466 = vadd.xlane.f32.xlu0 %v465
        %v467 = vpop.xlane.xlu0 %466
        %v468 = vmul.f32 %v467, %v461
        %v469 = vadd.f32 %v468, 1e-12
        %v470 = vrsqrt.pop %v469
        %v471 = vmul.f32 %v463, %v470
        %v473 = vlaneseq
        %v474 = vshrl.u32 %v473, 7
        %v475 = vsub.s32 0, %v474
        %v476 = vrot.slane %v456, %v475
        %v478 = vmul.f32 %v471, %v476
        %v480 = vlaneseq
        %v481 = vshrl.u32 %v480, 7
        %v482 = vsub.s32 0, %v481
        %v483 = vrot.slane %v457, %v482
        %v485 = vadd.f32 %v478, %v483
        %486 = vst.msk [vmem:[%s269] sm:$0xff] %vm300, %v485
        %s487 = sand.u32 %s181, 1
        %s488 = scalar_lea.sflag [#allocation3], %s487
        %s489 = sand.u32 %s181, 1
        %s490 = smul.addr %s489, 8
        %s491 = scalar_lea.vmem [#allocation2], %s490
        // Predicated region
        $region49: #{_lambda_.47} parent=47 // pred_check
          %p492 = pneg %p191
        $region50: #{_lambda_.47} parent=47 // pred_check_branch
          %494 = sbr.rel (%p492) target = $region52
        $region51: #{_lambda_.47} parent=47 // pred_region
          %s496 = ssub.s32 128, 128
          %497 = vsyncadd %s488, %s496
          %s498 = smul.addr %s21, 128
          %s499 = scalar_lea.hbm %s7, %s498
          %s501 = sshll.u32 %s491, 4
          %s502 = int_to_ptr.vmem [resolvable:$true] %s501
          %504 = dma.vmem_to_hbm [thread:$0]  %s502, 128, %s499, %s488
        $region52: #{_lambda_.47} parent=47 // pred_fallthru
          _
      $region48: #{_lambda_.47} parent=5 // pred_fallthru
        _
      %p505 = scmp.le.s32.totalorder 2, %s16
      // Predicated region
      $region53: #{_lambda_.47} parent=5 // pred_check
        %p506 = pneg %p505
      $region54: #{_lambda_.47} parent=5 // pred_check_branch
        %508 = sbr.rel (%p506) target = $region56
      $region55: #{_lambda_.47} parent=5 // pred_region
        %s509 = ssub.s32 %s16, 2
        // Predicated region
        $region57: #{_lambda_.47} parent=55 // pred_check
          %p510 = pneg %p197
        $region58: #{_lambda_.47} parent=55 // pred_check_branch
          %512 = sbr.rel (%p510) target = $region60
        $region59: #{_lambda_.47} parent=55 // pred_region
          %s513 = sand.u32 %s182, 1
          %s514 = scalar_lea.sflag [#allocation3], %s513
          %s515 = sand.u32 %s182, 1
          %s516 = smul.addr %s515, 8
          %s517 = scalar_lea.vmem [#allocation2], %s516
          %518 = dma.done %s514, 128
        $region60: #{_lambda_.47} parent=55 // pred_fallthru
          _
      $region56: #{_lambda_.47} parent=5 // pred_fallthru
        _
    $region6: #{_lambda_.47} parent=1 // loop_footer
      %s20 = sadd.s32 1, %s16
    $region7: #{_lambda_.47} parent=1 // loop_footer_branch
      %15 = sbr.rel target = $region3
    $region8: #{_lambda_.47} parent=1 // loop_exit
      _
    %519 = vsyncpa [#allocation3], 1
    %s520 = scalar_lea.sflag [#allocation3], 1
    %521 = vsyncpa %s520, 1

// kernel: _lambda_.43
$region0: #{_lambda_.43}
  #allocation0 [shape = 'u32[]', space=smem, size = 0x4, offset = 0x4, fixed_abs, tag = 'smem constant byte address 0x4 - core index']
  #allocation1 [shape = 'u32[144,128]{1,0:T(1,128)}', space=vmem, size = 0x12000, scoped, tag = 'internal scratch']
  %s0 = inlined_call_operand.vmem [shape: f32[16,64], index: 0, kind: input, shape index: {}]
  %s1 = inlined_call_operand.vmem [shape: bf16[64,128], index: 1, kind: input, shape index: {}]
  %s2 = inlined_call_operand.vmem [shape: f32[1,128], index: 2, kind: input, shape index: {}]
  %s3 = inlined_call_operand.vmem [shape: bf16[128,64], index: 3, kind: input, shape index: {}]
  %s4 = inlined_call_operand.vmem [shape: f32[1,64], index: 4, kind: input, shape index: {}]
  %s5 = inlined_call_operand.vmem [shape: f32[1,64], index: 5, kind: input, shape index: {}]
  %s6 = inlined_call_operand.vmem [shape: f32[1,64], index: 6, kind: input, shape index: {}]
  %s7 = inlined_call_operand.hbm [shape: f32[16,64], index: 7, kind: output, shape index: {}]
  %s8 = sld [smem:[#allocation0]]
  $region61: #{_lambda_.43} parent=0
    _
  %s10 = ssub.s32 1, %s8
  %s11 = scalar_select 0, %s10, %s8
  $region1: #{_lambda_.43} parent=0
    #allocation2 [shape = 'u8[8192]{0}', space=vmem, size = 0x2000, scoped, tag = 'output window, operand 0']
    #allocation3 [shape = 's32[2]{0}', space=sflag, size = 0x8, scoped, tag = 'scoped memory for _lambda_.43']
    %12 = vsyncpa [#allocation3], 0
    %s13 = scalar_lea.sflag [#allocation3], 1
    %14 = vsyncpa %s13, 0
    loop: start=0, step=1, limit=4
    $region2: #{_lambda_.43} parent=1 // loop_pre_header
      _
    $region3: #{_lambda_.43} parent=1 // loop_header
      %s16 = sphi 0, %s20
      %p17 = scmp.ge.s32.totalorder %s16, 4
      %s26 = sphi 0, %s28
      %s29 = sphi 0, %s26
      %s30 = sphi 0, %s29
      %s46 = sphi 0, %s30
      %s50 = sphi 0, %s50
      %s52 = sphi 0, %s50
      %s53 = sphi 0, %s52
      %s67 = sphi 0, %s53
      %s71 = sphi 0, %s71
      %s73 = sphi 0, %s71
      %s74 = sphi 0, %s73
      %s88 = sphi 0, %s74
      %s92 = sphi 0, %s92
      %s94 = sphi 0, %s92
      %s95 = sphi 0, %s94
      %s109 = sphi 0, %s95
      %s113 = sphi 0, %s113
      %s115 = sphi 0, %s113
      %s116 = sphi 0, %s115
      %s130 = sphi 0, %s116
      %s134 = sphi 0, %s134
      %s136 = sphi 0, %s134
      %s137 = sphi 0, %s136
      %s151 = sphi 0, %s137
      %s155 = sphi 0, %s155
      %s157 = sphi 0, %s155
      %s158 = sphi 0, %s157
      %s172 = sphi 0, %s158
      %s178 = sphi 0, %s180
      %s181 = sphi 0, %s178
      %s182 = sphi 0, %s181
      %s198 = sphi 0, %s182
    $region4: #{_lambda_.43} parent=1 // loop_header_branch
      %19 = sbr.rel (%p17) target = $region8
    $region5: #{_lambda_.43} parent=1 // loop_body
      %s21 = ssub.s32 %s16, 1
      %s22 = ssub.s32 %s16, 2
      %s23 = sadd.s32 %s16, 1
      %s24 = ssub.s32 %s16, %s23
      %p25 = scmp.eq.s32.totalorder %s24, 0
      %s27 = sadd.s32 %s26, 1
      %s28 = scalar_select %p25, %s26, %s27
      %p31 = pneg %p25
      %p32 = scmp.eq.s32.totalorder %s16, 1
      %p33 = por %p31, %p32
      %p34 = scmp.ne.s32.totalorder %s26, %s29
      %p35 = scmp.eq.s32.totalorder %s16, 0
      %p36 = por %p34, %p35
      %p37 = scmp.ne.s32.totalorder %s26, %s29
      %p38 = scmp.eq.s32.totalorder %s21, 1
      %p39 = por %p37, %p38
      %p40 = scmp.ne.s32.totalorder %s29, %s30
      %p41 = scmp.eq.s32.totalorder %s21, 0
      %p42 = por %p40, %p41
      %p43 = scmp.ne.s32.totalorder %s29, %s30
      %p44 = scmp.eq.s32.totalorder %s22, 1
      %p45 = por %p43, %p44
      %p47 = scmp.ne.s32.totalorder %s30, %s46
      %p48 = scmp.eq.s32.totalorder %s22, 0
      %p49 = por %p47, %p48
      %s51 = sadd.s32 %s50, 1
      %p54 = scmp.eq.s32.totalorder %s16, 1
      %p55 = scmp.ne.s32.totalorder %s50, %s52
      %p56 = scmp.eq.s32.totalorder %s16, 0
      %p57 = por %p55, %p56
      %p58 = scmp.ne.s32.totalorder %s50, %s52
      %p59 = scmp.eq.s32.totalorder %s21, 1
      %p60 = por %p58, %p59
      %p61 = scmp.ne.s32.totalorder %s52, %s53
      %p62 = scmp.eq.s32.totalorder %s21, 0
      %p63 = por %p61, %p62
      %p64 = scmp.ne.s32.totalorder %s52, %s53
      %p65 = scmp.eq.s32.totalorder %s22, 1
      %p66 = por %p64, %p65
      %p68 = scmp.ne.s32.totalorder %s53, %s67
      %p69 = scmp.eq.s32.totalorder %s22, 0
      %p70 = por %p68, %p69
      %s72 = sadd.s32 %s71, 1
      %p75 = scmp.eq.s32.totalorder %s16, 1
      %p76 = scmp.ne.s32.totalorder %s71, %s73
      %p77 = scmp.eq.s32.totalorder %s16, 0
      %p78 = por %p76, %p77
      %p79 = scmp.ne.s32.totalorder %s71, %s73
      %p80 = scmp.eq.s32.totalorder %s21, 1
      %p81 = por %p79, %p80
      %p82 = scmp.ne.s32.totalorder %s73, %s74
      %p83 = scmp.eq.s32.totalorder %s21, 0
      %p84 = por %p82, %p83
      %p85 = scmp.ne.s32.totalorder %s73, %s74
      %p86 = scmp.eq.s32.totalorder %s22, 1
      %p87 = por %p85, %p86
      %p89 = scmp.ne.s32.totalorder %s74, %s88
      %p90 = scmp.eq.s32.totalorder %s22, 0
      %p91 = por %p89, %p90
      %s93 = sadd.s32 %s92, 1
      %p96 = scmp.eq.s32.totalorder %s16, 1
      %p97 = scmp.ne.s32.totalorder %s92, %s94
      %p98 = scmp.eq.s32.totalorder %s16, 0
      %p99 = por %p97, %p98
      %p100 = scmp.ne.s32.totalorder %s92, %s94
      %p101 = scmp.eq.s32.totalorder %s21, 1
      %p102 = por %p100, %p101
      %p103 = scmp.ne.s32.totalorder %s94, %s95
      %p104 = scmp.eq.s32.totalorder %s21, 0
      %p105 = por %p103, %p104
      %p106 = scmp.ne.s32.totalorder %s94, %s95
      %p107 = scmp.eq.s32.totalorder %s22, 1
      %p108 = por %p106, %p107
      %p110 = scmp.ne.s32.totalorder %s95, %s109
      %p111 = scmp.eq.s32.totalorder %s22, 0
      %p112 = por %p110, %p111
      %s114 = sadd.s32 %s113, 1
      %p117 = scmp.eq.s32.totalorder %s16, 1
      %p118 = scmp.ne.s32.totalorder %s113, %s115
      %p119 = scmp.eq.s32.totalorder %s16, 0
      %p120 = por %p118, %p119
      %p121 = scmp.ne.s32.totalorder %s113, %s115
      %p122 = scmp.eq.s32.totalorder %s21, 1
      %p123 = por %p121, %p122
      %p124 = scmp.ne.s32.totalorder %s115, %s116
      %p125 = scmp.eq.s32.totalorder %s21, 0
      %p126 = por %p124, %p125
      %p127 = scmp.ne.s32.totalorder %s115, %s116
      %p128 = scmp.eq.s32.totalorder %s22, 1
      %p129 = por %p127, %p128
      %p131 = scmp.ne.s32.totalorder %s116, %s130
      %p132 = scmp.eq.s32.totalorder %s22, 0
      %p133 = por %p131, %p132
      %s135 = sadd.s32 %s134, 1
      %p138 = scmp.eq.s32.totalorder %s16, 1
      %p139 = scmp.ne.s32.totalorder %s134, %s136
      %p140 = scmp.eq.s32.totalorder %s16, 0
      %p141 = por %p139, %p140
      %p142 = scmp.ne.s32.totalorder %s134, %s136
      %p143 = scmp.eq.s32.totalorder %s21, 1
      %p144 = por %p142, %p143
      %p145 = scmp.ne.s32.totalorder %s136, %s137
      %p146 = scmp.eq.s32.totalorder %s21, 0
      %p147 = por %p145, %p146
      %p148 = scmp.ne.s32.totalorder %s136, %s137
      %p149 = scmp.eq.s32.totalorder %s22, 1
      %p150 = por %p148, %p149
      %p152 = scmp.ne.s32.totalorder %s137, %s151
      %p153 = scmp.eq.s32.totalorder %s22, 0
      %p154 = por %p152, %p153
      %s156 = sadd.s32 %s155, 1
      %p159 = scmp.eq.s32.totalorder %s16, 1
      %p160 = scmp.ne.s32.totalorder %s155, %s157
      %p161 = scmp.eq.s32.totalorder %s16, 0
      %p162 = por %p160, %p161
      %p163 = scmp.ne.s32.totalorder %s155, %s157
      %p164 = scmp.eq.s32.totalorder %s21, 1
      %p165 = por %p163, %p164
      %p166 = scmp.ne.s32.totalorder %s157, %s158
      %p167 = scmp.eq.s32.totalorder %s21, 0
      %p168 = por %p166, %p167
      %p169 = scmp.ne.s32.totalorder %s157, %s158
      %p170 = scmp.eq.s32.totalorder %s22, 1
      %p171 = por %p169, %p170
      %p173 = scmp.ne.s32.totalorder %s158, %s172
      %p174 = scmp.eq.s32.totalorder %s22, 0
      %p175 = por %p173, %p174
      %s176 = ssub.s32 %s16, %s23
      %p177 = scmp.eq.s32.totalorder %s176, 0
      %s179 = sadd.s32 %s178, 1
      %s180 = scalar_select %p177, %s178, %s179
      %p183 = pneg %p177
      %p184 = scmp.eq.s32.totalorder %s16, 1
      %p185 = por %p183, %p184
      %p186 = scmp.ne.s32.totalorder %s178, %s181
      %p187 = scmp.eq.s32.totalorder %s16, 0
      %p188 = por %p186, %p187
      %p189 = scmp.ne.s32.totalorder %s178, %s181
      %p190 = scmp.eq.s32.totalorder %s21, 1
      %p191 = por %p189, %p190
      %p192 = scmp.ne.s32.totalorder %s181, %s182
      %p193 = scmp.eq.s32.totalorder %s21, 0
      %p194 = por %p192, %p193
      %p195 = scmp.ne.s32.totalorder %s181, %s182
      %p196 = scmp.eq.s32.totalorder %s22, 1
      %p197 = por %p195, %p196
      %p199 = scmp.ne.s32.totalorder %s182, %s198
      %p200 = scmp.eq.s32.totalorder %s22, 0
      %p201 = por %p199, %p200
      %p202 = scmp.le.s32.totalorder 1, %s16
      %p203 = scmp.lt.s32.totalorder %s16, 3
      %p204 = pnand %p202, %p203
      %p205 = pneg %p204
      // Predicated region
      $region9: #{_lambda_.43} parent=5 // pred_check
        _
      $region10: #{_lambda_.43} parent=5 // pred_check_branch
        %207 = sbr.rel (%p204) target = $region12
      $region11: #{_lambda_.43} parent=5 // pred_region
        %s208 = ssub.s32 %s16, 1
        // Predicated region
        $region13: #{_lambda_.43} parent=11 // pred_check
          %p209 = pneg %p63
        $region14: #{_lambda_.43} parent=11 // pred_check_branch
          %211 = sbr.rel (%p209) target = $region16
        $region15: #{_lambda_.43} parent=11 // pred_region
          _
        $region16: #{_lambda_.43} parent=11 // pred_fallthru
          _
        // Predicated region
        $region17: #{_lambda_.43} parent=11 // pred_check
          %p212 = pneg %p84
        $region18: #{_lambda_.43} parent=11 // pred_check_branch
          %214 = sbr.rel (%p212) target = $region20
        $region19: #{_lambda_.43} parent=11 // pred_region
          _
        $region20: #{_lambda_.43} parent=11 // pred_fallthru
          _
        // Predicated region
        $region21: #{_lambda_.43} parent=11 // pred_check
          %p215 = pneg %p105
        $region22: #{_lambda_.43} parent=11 // pred_check_branch
          %217 = sbr.rel (%p215) target = $region24
        $region23: #{_lambda_.43} parent=11 // pred_region
          _
        $region24: #{_lambda_.43} parent=11 // pred_fallthru
          _
        // Predicated region
        $region25: #{_lambda_.43} parent=11 // pred_check
          %p218 = pneg %p126
        $region26: #{_lambda_.43} parent=11 // pred_check_branch
          %220 = sbr.rel (%p218) target = $region28
        $region27: #{_lambda_.43} parent=11 // pred_region
          _
        $region28: #{_lambda_.43} parent=11 // pred_fallthru
          _
        // Predicated region
        $region29: #{_lambda_.43} parent=11 // pred_check
          %p221 = pneg %p147
        $region30: #{_lambda_.43} parent=11 // pred_check_branch
          %223 = sbr.rel (%p221) target = $region32
        $region31: #{_lambda_.43} parent=11 // pred_region
          _
        $region32: #{_lambda_.43} parent=11 // pred_fallthru
          _
        // Predicated region
        $region33: #{_lambda_.43} parent=11 // pred_check
          %p224 = pneg %p168
        $region34: #{_lambda_.43} parent=11 // pred_check_branch
          %226 = sbr.rel (%p224) target = $region36
        $region35: #{_lambda_.43} parent=11 // pred_region
          _
        $region36: #{_lambda_.43} parent=11 // pred_fallthru
          _
      $region12: #{_lambda_.43} parent=5 // pred_fallthru
        _
      %p227 = scmp.lt.s32.totalorder %s16, 2
      // Predicated region
      $region37: #{_lambda_.43} parent=5 // pred_check
        %p228 = pneg %p227
      $region38: #{_lambda_.43} parent=5 // pred_check_branch
        %230 = sbr.rel (%p228) target = $region40
      $region39: #{_lambda_.43} parent=5 // pred_region
        // Predicated region
        $region41: #{_lambda_.43} parent=39 // pred_check
          %p231 = pneg %p36
        $region42: #{_lambda_.43} parent=39 // pred_check_branch
          %233 = sbr.rel (%p231) target = $region44
        $region43: #{_lambda_.43} parent=39 // pred_region
          %p234 = scmp.lt.s32.totalorder %s16, 1
          %s235 = scalar_select %p234, %s16, 1
          %s236 = smul.addr %s235, 8
          %s237 = scalar_lea.vmem %s0, %s236
        $region44: #{_lambda_.43} parent=39 // pred_fallthru
          _
      $region40: #{_lambda_.43} parent=5 // pred_fallthru
        _
      %p238 = scmp.le.s32.totalorder 1, %s16
      %p239 = scmp.lt.s32.totalorder %s16, 3
      %p240 = pnand %p238, %p239
      %p241 = pneg %p240
      // Predicated region
      $region45: #{_lambda_.43} parent=5 // pred_check
        _
      $region46: #{_lambda_.43} parent=5 // pred_check_branch
        %243 = sbr.rel (%p240) target = $region48
      $region47: #{_lambda_.43} parent=5 // pred_region
        %s244 = ssub.s32 %s16, 1
        %p245 = scmp.lt.s32.totalorder %s21, 1
        %s246 = scalar_select %p245, %s21, 1
        %s247 = smul.addr %s246, 8
        %s248 = scalar_lea.vmem %s0, %s247
        %p249 = pneg %p42
        %p250 = pneg %p39
        %p251 = pneg %p63
        %p252 = pneg %p60
        %p253 = pneg %p84
        %p254 = pneg %p81
        %p255 = pneg %p105
        %p256 = pneg %p102
        %p257 = pneg %p126
        %p258 = pneg %p123
        %p259 = pneg %p147
        %p260 = pneg %p144
        %p261 = pneg %p168
        %p262 = pneg %p165
        %p263 = pneg %p194
        %p264 = pneg %p191
        %s265 = sand.u32 %s181, 1
        %s266 = scalar_lea.sflag [#allocation3], %s265
        %s267 = sand.u32 %s181, 1
        %s268 = smul.addr %s267, 8
        %s269 = scalar_lea.vmem [#allocation2], %s268
        %p270 = scmp.lt.s32.totalorder %s21, 1
        %s271 = scalar_select %p270, %s21, 1
        %s272 = smul.addr %s271, 8
        %s273 = scalar_lea.vmem %s0, %s272
        %v275 = vld [vmem:[%s273] sm:$0xff]
        %v276 = vpack.c.bf16 %v275, %v275
        %v277 = vld [vmem:[%s1] sm:$0xf]
        %v278 = vld [vmem:[%s1 + $0x4] sm:$0xf]
        %v279 = vld [vmem:[%s1 + $0x8] sm:$0xf]
        %v280 = vld [vmem:[%s1 + $0xc] sm:$0xf]
        %v281 = vld [vmem:[%s1 + $0x10] sm:$0xf]
        %v282 = vld [vmem:[%s1 + $0x14] sm:$0xf]
        %v283 = vld [vmem:[%s1 + $0x18] sm:$0xf]
        %v284 = vld [vmem:[%s1 + $0x1c] sm:$0xf]
        %v285 = vld [vmem:[%s2] sm:$0x1]
        %v287 = vlaneseq
        %v288 = vshrl.u32 %v287, 7
        %v289 = vsub.s32 0, %v288
        %v290 = vrot.slane %v285, %v289
        %v300 = vunpack.c.l.b16 %v277
        %v301 = vunpack.c.l.b16 %v278
        %v302 = vunpack.c.l.b16 %v279
        %v303 = vunpack.c.l.b16 %v280
        %v304 = vunpack.c.l.b16 %v281
        %v305 = vunpack.c.l.b16 %v282
        %v306 = vunpack.c.l.b16 %v283
        %v307 = vunpack.c.l.b16 %v284
        %v308 = vpack.c.b16 %v301, %v300
        %v309 = vpack.c.b16 %v303, %v302
        %v310 = vpack.c.b16 %v305, %v304
        %v311 = vpack.c.b16 %v307, %v306
        %vm316 = vcmask 523264
        %v318 = vsel %vm316, %v276, 0
        %320 = vmatprep.subr.bf16.mxu0 0
        %321 = vmatpush1.bf16.msra.mxu0 %v308
        %322 = vmatprep.subr.bf16.mxu0 0
        %323 = vmatpush1.bf16.msra.mxu0 %v309
        %324 = vmatprep.subr.bf16.mxu0 0
        %325 = vmatpush1.bf16.msra.mxu0 %v310
        %326 = vmatprep.subr.bf16.mxu0 0
        %327 = vmatpush1.bf16.msra.mxu0 %v311
        %328 = vmatprep.subr.bf16.mxu0 0
        %329 = vmatpush1.bf16.msra.mxu0 0
        %330 = vmatprep.subr.bf16.mxu0 0
        %331 = vmatpush1.bf16.msra.mxu0 0
        %332 = vmatprep.subr.bf16.mxu0 0
        %333 = vmatpush1.bf16.msra.mxu0 0
        %334 = vmatprep.subr.bf16.mxu0 0
        %335 = vmatpush1.bf16.msra.mxu0 0
        %336 = vmatprep.subr.bf16.mxu0 0
        %337 = vmatpush1.bf16.msra.mxu0 0
        %338 = vmatprep.subr.bf16.mxu0 0
        %339 = vmatpush1.bf16.msra.mxu0 0
        %340 = vmatprep.subr.bf16.mxu0 0
        %341 = vmatpush1.bf16.msra.mxu0 0
        %342 = vmatprep.subr.bf16.mxu0 0
        %343 = vmatpush1.bf16.msra.mxu0 0
        %344 = vmatprep.subr.bf16.mxu0 0
        %345 = vmatpush1.bf16.msra.mxu0 0
        %346 = vmatprep.subr.bf16.mxu0 0
        %347 = vmatpush1.bf16.msra.mxu0 0
        %348 = vmatprep.subr.bf16.mxu0 0
        %349 = vmatpush1.bf16.msra.mxu0 0
        %350 = vmatprep.subr.bf16.mxu0 0
        %351 = vmatpush1.bf16.msra.mxu0 0
        %352 = vmatprep.mubr.bf16.mxu0 0
        %353 = vmatmul.mubr.bf16.gmra.mrb[0].mxu0 %v318
        %v354 = vpop.f32.mrb[0].mxu0
        %v355 = vadd.f32 %v290, %v354
        %v356 = vpop.f32.mrb[0].mxu0
        %v357 = vpop.f32.mrb[0].mxu0
        %v358 = vpop.f32.mrb[0].mxu0
        %359 = vdwg.mxu0
        %v360 = vmul.f32 %v355, 0.5
        %v361 = vmul.f32 %v355, 0.70710677
        %v362 = vand.u32 2147483647, %v361
        %v363 = vmul.f32 %v362, 0.3275911
        %v364 = vadd.f32 %v363, 1.0
        %v365 = vrcp.pop %v364
        %v366 = vmul.f32 1.0, %v365
        %v367 = vmul.f32 %v366, 1.0614054
        %v368 = vadd.f32 %v367, -1.4531521
        %v369 = vmul.f32 %v368, %v366
        %v370 = vadd.f32 %v369, 1.4214138
        %v371 = vmul.f32 %v370, %v366
        %v372 = vadd.f32 %v371, -0.28449672
        %v373 = vmul.f32 %v372, %v366
        %v374 = vadd.f32 %v373, 0.2548296
        %v375 = vmul.f32 %v374, %v366
        %v376 = vsub.f32 0.0, %v362
        %v377 = vmul.f32 %v376, %v362
        %v378 = vmul.f32 %v377, 1.442695
        %v379 = vpow.pop %v378
        %v380 = vmul.f32 %v375, %v379
        %v381 = vsub.f32 1.0, %v380
        %vm382 = vcmp.ge.f32.partialorder %v361, 0.0
        %v383 = vsub.f32 0.0, %v381
        %v384 = vsel %vm382, %v381, %v383
        %v385 = vadd.f32 %v384, 1.0
        %v386 = vmul.f32 %v360, %v385
        %v387 = vpack.c.bf16 %v386, %v386
        %v388 = vld [vmem:[%s3] sm:$0xf]
        %v389 = vld [vmem:[%s3 + $0x4] sm:$0xf]
        %v390 = vld [vmem:[%s3 + $0x8] sm:$0xf]
        %v391 = vld [vmem:[%s3 + $0xc] sm:$0xf]
        %v392 = vld [vmem:[%s3 + $0x10] sm:$0xf]
        %v393 = vld [vmem:[%s3 + $0x14] sm:$0xf]
        %v394 = vld [vmem:[%s3 + $0x18] sm:$0xf]
        %v395 = vld [vmem:[%s3 + $0x1c] sm:$0xf]
        %v396 = vld [vmem:[%s3 + $0x20] sm:$0xf]
        %v397 = vld [vmem:[%s3 + $0x24] sm:$0xf]
        %v398 = vld [vmem:[%s3 + $0x28] sm:$0xf]
        %v399 = vld [vmem:[%s3 + $0x2c] sm:$0xf]
        %v400 = vld [vmem:[%s3 + $0x30] sm:$0xf]
        %v401 = vld [vmem:[%s3 + $0x34] sm:$0xf]
        %v402 = vld [vmem:[%s3 + $0x38] sm:$0xf]
        %v403 = vld [vmem:[%s3 + $0x3c] sm:$0xf]
        %v404 = vld [vmem:[%s4] sm:$0x1]
        %v406 = vlaneseq
        %v407 = vshrl.u32 %v406, 7
        %v408 = vsub.s32 0, %v407
        %v409 = vrot.slane %v404, %v408
        %v427 = vunpack.c.l.b16 %v388
        %v428 = vunpack.c.l.b16 %v389
        %v429 = vunpack.c.l.b16 %v390
        %v430 = vunpack.c.l.b16 %v391
        %v431 = vunpack.c.l.b16 %v392
        %v432 = vunpack.c.l.b16 %v393
        %v433 = vunpack.c.l.b16 %v394
        %v434 = vunpack.c.l.b16 %v395
        %v435 = vunpack.c.l.b16 %v396
        %v436 = vunpack.c.l.b16 %v397
        %v437 = vunpack.c.l.b16 %v398
        %v438 = vunpack.c.l.b16 %v399
        %v439 = vunpack.c.l.b16 %v400
        %v440 = vunpack.c.l.b16 %v401
        %v441 = vunpack.c.l.b16 %v402
        %v442 = vunpack.c.l.b16 %v403
        %v443 = vpack.c.b16 %v428, %v427
        %v444 = vpack.c.b16 %v430, %v429
        %v445 = vpack.c.b16 %v432, %v431
        %v446 = vpack.c.b16 %v434, %v433
        %v447 = vpack.c.b16 %v436, %v435
        %v448 = vpack.c.b16 %v438, %v437
        %v449 = vpack.c.b16 %v440, %v439
        %v450 = vpack.c.b16 %v442, %v441
        %459 = vmatprep.subr.bf16.mxu0 0
        %460 = vmatpush1.bf16.msra.mxu0 %v443
        %461 = vmatprep.subr.bf16.mxu0 0
        %462 = vmatpush1.bf16.msra.mxu0 %v444
        %463 = vmatprep.subr.bf16.mxu0 0
        %464 = vmatpush1.bf16.msra.mxu0 %v445
        %465 = vmatprep.subr.bf16.mxu0 0
        %466 = vmatpush1.bf16.msra.mxu0 %v446
        %467 = vmatprep.subr.bf16.mxu0 0
        %468 = vmatpush1.bf16.msra.mxu0 %v447
        %469 = vmatprep.subr.bf16.mxu0 0
        %470 = vmatpush1.bf16.msra.mxu0 %v448
        %471 = vmatprep.subr.bf16.mxu0 0
        %472 = vmatpush1.bf16.msra.mxu0 %v449
        %473 = vmatprep.subr.bf16.mxu0 0
        %474 = vmatpush1.bf16.msra.mxu0 %v450
        %475 = vmatprep.subr.bf16.mxu0 0
        %476 = vmatpush1.bf16.msra.mxu0 0
        %477 = vmatprep.subr.bf16.mxu0 0
        %478 = vmatpush1.bf16.msra.mxu0 0
        %479 = vmatprep.subr.bf16.mxu0 0
        %480 = vmatpush1.bf16.msra.mxu0 0
        %481 = vmatprep.subr.bf16.mxu0 0
        %482 = vmatpush1.bf16.msra.mxu0 0
        %483 = vmatprep.subr.bf16.mxu0 0
        %484 = vmatpush1.bf16.msra.mxu0 0
        %485 = vmatprep.subr.bf16.mxu0 0
        %486 = vmatpush1.bf16.msra.mxu0 0
        %487 = vmatprep.subr.bf16.mxu0 0
        %488 = vmatpush1.bf16.msra.mxu0 0
        %489 = vmatprep.subr.bf16.mxu0 0
        %490 = vmatpush1.bf16.msra.mxu0 0
        %491 = vmatprep.mubr.bf16.mxu0 0
        %492 = vmatmul.mubr.bf16.gmra.mrb[0].mxu0 %v387
        %v493 = vpop.f32.mrb[0].mxu0
        %v494 = vadd.f32 %v409, %v493
        %v495 = vpop.f32.mrb[0].mxu0
        %v496 = vpop.f32.mrb[0].mxu0
        %v497 = vpop.f32.mrb[0].mxu0
        %498 = vdwg.mxu0
        %v499 = vadd.f32 %v494, %v275
        %v500 = vld [vmem:[%s5] sm:$0x1]
        %v501 = vld [vmem:[%s6] sm:$0x1]
        %v502 = vsel %vm316, %v499, 0.0
        %503 = vadd.xlane.f32.xlu0 %v502
        %v504 = vpop.xlane.xlu0 %503
        %v505 = vrcp.pop 64.0
        %v506 = vmul.f32 %v504, %v505
        %v507 = vsub.f32 %v499, %v506
        %v508 = vmul.f32 %v507, %v507
        %v509 = vsel %vm316, %v508, 0.0
        %510 = vadd.xlane.f32.xlu0 %v509
        %v511 = vpop.xlane.xlu0 %510
        %v512 = vmul.f32 %v511, %v505
        %v513 = vadd.f32 %v512, 1e-12
        %v514 = vrsqrt.pop %v513
        %v515 = vmul.f32 %v507, %v514
        %v517 = vlaneseq
        %v518 = vshrl.u32 %v517, 7
        %v519 = vsub.s32 0, %v518
        %v520 = vrot.slane %v500, %v519
        %v522 = vmul.f32 %v515, %v520
        %v524 = vlaneseq
        %v525 = vshrl.u32 %v524, 7
        %v526 = vsub.s32 0, %v525
        %v527 = vrot.slane %v501, %v526
        %v529 = vadd.f32 %v522, %v527
        %530 = vst.msk [vmem:[%s269] sm:$0xff] %vm316, %v529
        %s531 = sand.u32 %s181, 1
        %s532 = scalar_lea.sflag [#allocation3], %s531
        %s533 = sand.u32 %s181, 1
        %s534 = smul.addr %s533, 8
        %s535 = scalar_lea.vmem [#allocation2], %s534
        // Predicated region
        $region49: #{_lambda_.43} parent=47 // pred_check
          %p536 = pneg %p191
        $region50: #{_lambda_.43} parent=47 // pred_check_branch
          %538 = sbr.rel (%p536) target = $region52
        $region51: #{_lambda_.43} parent=47 // pred_region
          %s540 = ssub.s32 128, 128
          %541 = vsyncadd %s532, %s540
          %s542 = smul.addr %s21, 128
          %s543 = scalar_lea.hbm %s7, %s542
          %s545 = sshll.u32 %s535, 4
          %s546 = int_to_ptr.vmem [resolvable:$true] %s545
          %548 = dma.vmem_to_hbm [thread:$0]  %s546, 128, %s543, %s532
        $region52: #{_lambda_.43} parent=47 // pred_fallthru
          _
      $region48: #{_lambda_.43} parent=5 // pred_fallthru
        _
      %p549 = scmp.le.s32.totalorder 2, %s16
      // Predicated region
      $region53: #{_lambda_.43} parent=5 // pred_check
        %p550 = pneg %p549
      $region54: #{_lambda_.43} parent=5 // pred_check_branch
        %552 = sbr.rel (%p550) target = $region56
      $region55: #{_lambda_.43} parent=5 // pred_region
        %s553 = ssub.s32 %s16, 2
        // Predicated region
        $region57: #{_lambda_.43} parent=55 // pred_check
          %p554 = pneg %p197
        $region58: #{_lambda_.43} parent=55 // pred_check_branch
          %556 = sbr.rel (%p554) target = $region60
        $region59: #{_lambda_.43} parent=55 // pred_region
          %s557 = sand.u32 %s182, 1
          %s558 = scalar_lea.sflag [#allocation3], %s557
          %s559 = sand.u32 %s182, 1
          %s560 = smul.addr %s559, 8
          %s561 = scalar_lea.vmem [#allocation2], %s560
          %562 = dma.done %s558, 128
        $region60: #{_lambda_.43} parent=55 // pred_fallthru
          _
      $region56: #{_lambda_.43} parent=5 // pred_fallthru
        _
    $region6: #{_lambda_.43} parent=1 // loop_footer
      %s20 = sadd.s32 1, %s16
    $region7: #{_lambda_.43} parent=1 // loop_footer_branch
      %15 = sbr.rel target = $region3
    $region8: #{_lambda_.43} parent=1 // loop_exit
      _
    %563 = vsyncpa [#allocation3], 1
    %s564 = scalar_lea.sflag [#allocation3], 1
    %565 = vsyncpa %s564, 1

</llo_original>
